<compile_context>
chip_gen: v6e
topology: v6e:2x2x1
jax: 0.10.0
libtpu: 0.0.40
codegen_flags: <defaults>
</compile_context>

<pallas_src>
import jax
import jax.numpy as jnp
from jax.experimental import pallas as pl
from jax.experimental.pallas import tpu as pltpu


def make_resblock_kernel(B, H, W, Cin, C, pooling):
    Hp, Wp = H + 2, W + 2
    HW = H * W
    M = B * HW          # matmul row dim: all output pixels of this batch block
    K1 = 9 * Cin        # im2col contraction dim for conv1 / downsample conv

    def kernel(p_ref, w1_ref, b1_ref, w2_ref, wd_ref, b2d_ref,
               out_ref, hpad_ref, hbuf_ref=None):
        # Refresh the 1-pixel zero border of the padded conv2-activation
        # scratch.  The interior is fully overwritten every step, so only the
        # thin strips need zeroing; doing it every step keeps it correct when
        # the batch axis is split across cores (megacore).  Issued first so it
        # overlaps with the conv1 matmul below.
        hpad_ref[:, 0:1, :, :] = jnp.zeros((B, 1, Wp, C), jnp.float32)
        hpad_ref[:, H + 1:H + 2, :, :] = jnp.zeros((B, 1, Wp, C), jnp.float32)
        hpad_ref[:, 1:H + 1, 0:1, :] = jnp.zeros((B, H, 1, C), jnp.float32)
        hpad_ref[:, 1:H + 1, W + 1:W + 2, :] = jnp.zeros((B, H, 1, C), jnp.float32)

        # im2col rows for this batch block: (B*H*W, 9*Cin), bf16.
        p = p_ref[...].reshape(M, K1)

        # conv1 (BN1 scale folded into w1) -> +bias -> ELU(alpha=1), f32 math.
        h1 = jnp.dot(p, w1_ref[...], preferred_element_type=jnp.float32) + b1_ref[0]
        h1 = jnp.where(h1 > 0, h1, jnp.exp(h1) - 1.0)

        # Park ELU activations in the padded VMEM scratch *before* computing
        # the residual branch so h1 and the accumulator are never live at the
        # same time (keeps vreg pressure / spills down).
        hpad_ref[:, 1:H + 1, 1:W + 1, :] = h1.reshape(B, H, W, C)

        # residual branch (BNd scale folded into wd); reused directly as the
        # conv2 accumulator.  b2d = (bn2 bias + bnd bias), applied once.
        acc = jnp.dot(p, wd_ref[...], preferred_element_type=jnp.float32) + b2d_ref[0]

        # conv2 (BN2 scale folded into w2): 9 shifted big-M matmuls accumulated
        # straight onto the residual branch, bf16 inputs / f32 accumulation.
        for k in range(9):
            dy, dx = k // 3, k % 3
            patch = hpad_ref[:, dy:dy + H, dx:dx + W, :].astype(jnp.bfloat16)
            acc = acc + jnp.dot(patch.reshape(M, C), w2_ref[k],
                                preferred_element_type=jnp.float32)

        if pooling:
            # 2x2 max-pool, stride 2.  The two H-rows of each pool window are
            # contiguous in the flat M layout, so the H-direction max is done
            # on values; only the stride-2 W-direction max uses a small scratch.
            o3 = acc.reshape(B * (H // 2), 2 * W, C)
            hbuf_ref[...] = jnp.maximum(o3[:, :W, :], o3[:, W:, :])
            pooled = jnp.maximum(
                hbuf_ref[:, pl.ds(0, W // 2, stride=2), :],
                hbuf_ref[:, pl.ds(1, W // 2, stride=2), :])
            out_ref[...] = pooled.reshape(B, H // 2, W // 2, C).astype(out_ref.dtype)
        else:
            out_ref[...] = acc.reshape(B, H, W, C).astype(out_ref.dtype)

        # dropout: eval-mode identity (see TODO at top)

    return kernel


def resblock_pallas(x_nchw, params, *, pooling=True, batch_block=None):
    """Runs the fused ResBlock kernel. x_nchw: (N, Cin, H, W) float32."""
    N, Cin, H, W = x_nchw.shape
    C = params["w1"].shape[-1]
    HW, K1 = H * W, 9 * Cin
    Hp, Wp = H + 2, W + 2
    Ho, Wo = (H // 2, W // 2) if pooling else (H, W)
    if batch_block is None:
        batch_block = next(b for b in (8, 4, 2, 1) if N % b == 0)
    B = batch_block
    assert N % B == 0 and W % 8 == 0
    if pooling:
        assert H % 2 == 0 and W % 2 == 0

    # NCHW -> NHWC, cast to bf16 up front (matmul inputs are bf16 anyway; this
    # halves the 9x im2col intermediate), zero-pad spatially (padding=1), then
    # im2col: rows = output pixels, K = 9*Cin (tap-major, matching the weights).
    x = jnp.transpose(x_nchw, (0, 2, 3, 1)).astype(jnp.bfloat16)
    xpad = jnp.pad(x, ((0, 0), (1, 1), (1, 1), (0, 0)))
    taps = [xpad[:, dy:dy + H, dx:dx + W, :] for dy in range(3) for dx in range(3)]
    patches = jnp.stack(taps, axis=3).reshape(N, HW, K1)

    def fold_bn(conv_b, gamma, beta, mean, var, eps=1e-5):
        scale = gamma / jnp.sqrt(var + eps)
        bias = beta + (conv_b - mean) * scale
        return scale.astype(jnp.float32), bias.astype(jnp.float32)

    s1, b1 = fold_bn(params["b1"], params["g1"], params["be1"], params["m1"], params["v1"])
    s2, b2 = fold_bn(params["b2"], params["g2"], params["be2"], params["m2"], params["v2"])
    sd, bd = fold_bn(params["bd"], params["gd"], params["bed"], params["md"], params["vd"])

    # Fold BN scales into the (bf16) conv weights; biases stay f32.
    w1m = (params["w1"].reshape(K1, C) * s1[None, :]).astype(jnp.bfloat16)
    wdm = (params["wd"].reshape(K1, C) * sd[None, :]).astype(jnp.bfloat16)
    w2t = (params["w2"].reshape(9, C, C) * s2[None, None, :]).astype(jnp.bfloat16)
    b1v = b1.reshape(1, C)
    b2d = (b2 + bd).reshape(1, C)   # conv2 bias + residual-branch bias, applied once

    vec_spec = pl.BlockSpec((1, C), lambda n: (0, 0))
    in_specs = [
        pl.BlockSpec((B, HW, K1), lambda n: (n, 0, 0)),       # im2col patches
        pl.BlockSpec((K1, C), lambda n: (0, 0)),              # conv1 weight
        vec_spec,                                             # conv1/bn1 bias
        pl.BlockSpec((9, C, C), lambda n: (0, 0, 0)),         # conv2 weight (tap-major)
        pl.BlockSpec((K1, C), lambda n: (0, 0)),              # downsample weight
        vec_spec,                                             # combined bias
    ]
    out_specs = pl.BlockSpec((B, Ho, Wo, C), lambda n: (n, 0, 0, 0))
    scratch = [pltpu.VMEM((B, Hp, Wp, C), jnp.float32)]       # padded conv1 activations
    if pooling:
        scratch.append(pltpu.VMEM((B * (H // 2), W, C), jnp.float32))  # row-pooled buffer

    out_nhwc = pl.pallas_call(
        make_resblock_kernel(B, H, W, Cin, C, pooling),
        out_shape=jax.ShapeDtypeStruct((N, Ho, Wo, C), jnp.float32),
        grid_spec=pltpu.PrefetchScalarGridSpec(
            num_scalar_prefetch=0,
            grid=(N // B,),
            in_specs=in_specs,
            out_specs=out_specs,
            scratch_shapes=scratch),
        compiler_params=pltpu.CompilerParams(
            dimension_semantics=("parallel",),          # batch axis -> megacore on v7x
            vmem_limit_bytes=64 * 1024 * 1024),
    )(patches, w1m, b1v, w2t, wdm, b2d)

    return jnp.transpose(out_nhwc, (0, 3, 1, 2))  # back to NCHW


# ---------------- pure-JAX reference (for correctness check) ----------------

def _conv3x3_ref(x_nhwc, w_hwio, b):
    y = jax.lax.conv_general_dilated(
        x_nhwc, w_hwio, window_strides=(1, 1), padding=((1, 1), (1, 1)),
        dimension_numbers=("NHWC", "HWIO", "NHWC"))
    return y + b


def _bn_ref(y, gamma, beta, mean, var, eps=1e-5):
    return (y - mean) / jnp.sqrt(var + eps) * gamma + beta


def resblock_ref(x_nchw, p, *, pooling=True):
    x = jnp.transpose(x_nchw, (0, 2, 3, 1)).astype(jnp.float32)
    out = _bn_ref(_conv3x3_ref(x, p["w1"], p["b1"]), p["g1"], p["be1"], p["m1"], p["v1"])
    out = jnp.where(out > 0, out, jnp.exp(out) - 1.0)          # ELU(alpha=1)
    out = _bn_ref(_conv3x3_ref(out, p["w2"], p["b2"]), p["g2"], p["be2"], p["m2"], p["v2"])
    res = _bn_ref(_conv3x3_ref(x, p["wd"], p["bd"]), p["gd"], p["bed"], p["md"], p["vd"])
    out = out + res
    if pooling:
        out = jax.lax.reduce_window(out, -jnp.inf, jax.lax.max,
                                    (1, 2, 2, 1), (1, 2, 2, 1), "VALID")
    return jnp.transpose(out, (0, 3, 1, 2))


def init_params(key, cin, c):
    ks = jax.random.split(key, 18)
    def bn(k0, k1, k2, k3):
        return (1.0 + 0.1 * jax.random.normal(k0, (c,)),          # gamma
                0.1 * jax.random.normal(k1, (c,)),                 # beta
                0.1 * jax.random.normal(k2, (c,)),                 # running_mean
                jnp.abs(jax.random.normal(k3, (c,))) + 0.5)        # running_var
    g1, be1, m1, v1 = bn(ks[2], ks[3], ks[4], ks[5])
    g2, be2, m2, v2 = bn(ks[8], ks[9], ks[10], ks[11])
    gd, bed, md, vd = bn(ks[14], ks[15], ks[16], ks[17])
    return dict(
        w1=0.1 * jax.random.normal(ks[0], (3, 3, cin, c)), b1=0.1 * jax.random.normal(ks[1], (c,)),
        g1=g1, be1=be1, m1=m1, v1=v1,
        w2=0.1 * jax.random.normal(ks[6], (3, 3, c, c)), b2=0.1 * jax.random.normal(ks[7], (c,)),
        g2=g2, be2=be2, m2=m2, v2=v2,
        wd=0.1 * jax.random.normal(ks[12], (3, 3, cin, c)), bd=0.1 * jax.random.normal(ks[13], (c,)),
        gd=gd, bed=bed, md=md, vd=vd,
    )


if __name__ == "__main__":
    N, Cin, C, H, W = 2, 4, 8, 16, 16
    key = jax.random.PRNGKey(0)
    kx, kp = jax.random.split(key)
    x = jax.random.normal(kx, (N, Cin, H, W), dtype=jnp.float32)
    params = init_params(kp, Cin, C)

    # downsample=True (required: forward with downsample=False references an
    # undefined `residual`), pooling=True, stride=1 (module default).
    out = resblock_pallas(x, params, pooling=True)
    out = jax.block_until_ready(out)

    ref = resblock_ref(x, params, pooling=True)
    assert out.shape == (N, C, H // 2, W // 2), out.shape
    # Tolerance reflects bf16 matmul inputs (f32 accumulation) in the kernel vs
    # the full-f32 reference.
    err = float(jnp.max(jnp.abs(out - ref)))
    assert jnp.allclose(out, ref, atol=5e-2, rtol=5e-2), err
    print("KERNEL_OK")
</pallas_src>

<mosaic_0001>
module attributes {stable_mosaic.version = 11 : i64} {
  func.func @kernel(%arg0: i32, %arg1: memref<2x256x36xbf16, #tpu.memory_space<vmem>>, %arg2: memref<36x8xbf16, #tpu.memory_space<vmem>>, %arg3: memref<1x8xf32, #tpu.memory_space<vmem>>, %arg4: memref<9x8x8xbf16, #tpu.memory_space<vmem>>, %arg5: memref<36x8xbf16, #tpu.memory_space<vmem>>, %arg6: memref<1x8xf32, #tpu.memory_space<vmem>>, %arg7: memref<2x8x8x8xf32, #tpu.memory_space<vmem>>, %arg8: memref<2x18x18x8xf32, #tpu.memory_space<vmem>>, %arg9: memref<16x16x8xf32, #tpu.memory_space<vmem>>) attributes {dimension_semantics = [#tpu.dimension_semantics<parallel>], iteration_bounds = array<i64: 1>, scalar_prefetch = 0 : i64, scratch_operands = 2 : i64, tpu.core_type = #tpu.core_type<tc>, window_params = [{transform_indices = @transform_0, window_bounds = array<i64: 2, 256, 36>}, {pipeline_mode = #tpu.pipeline_mode<synchronous>, transform_indices = @transform_1, window_bounds = array<i64: 36, 8>}, {pipeline_mode = #tpu.pipeline_mode<synchronous>, transform_indices = @transform_2, window_bounds = array<i64: 1, 8>}, {pipeline_mode = #tpu.pipeline_mode<synchronous>, transform_indices = @transform_3, window_bounds = array<i64: 9, 8, 8>}, {pipeline_mode = #tpu.pipeline_mode<synchronous>, transform_indices = @transform_4, window_bounds = array<i64: 36, 8>}, {pipeline_mode = #tpu.pipeline_mode<synchronous>, transform_indices = @transform_5, window_bounds = array<i64: 1, 8>}, {transform_indices = @transform_6, window_bounds = array<i64: 2, 8, 8, 8>}]} {
    %cst = arith.constant 0.000000e+00 : f32
    %0 = vector.broadcast %cst : f32 to vector<2x1x18x8xf32>
    %c0 = arith.constant 0 : index
    %c0_0 = arith.constant 0 : index
    %c0_1 = arith.constant 0 : index
    %c0_2 = arith.constant 0 : index
    %1 = vector.load %arg8[%c0, %c0_0, %c0_1, %c0_2] : memref<2x18x18x8xf32, #tpu.memory_space<vmem>>, vector<2x1x18x8xf32>
    tpu.vector_store %arg8[%c0, %c0_0, %c0_1, %c0_2], %0 {strides = array<i32>} : memref<2x18x18x8xf32, #tpu.memory_space<vmem>>, vector<2x1x18x8xf32>,
    %cst_3 = arith.constant 0.000000e+00 : f32
    %2 = vector.broadcast %cst_3 : f32 to vector<2x1x18x8xf32>
    %c0_4 = arith.constant 0 : index
    %c17 = arith.constant 17 : index
    %c0_5 = arith.constant 0 : index
    %c0_6 = arith.constant 0 : index
    %3 = vector.load %arg8[%c0_4, %c17, %c0_5, %c0_6] : memref<2x18x18x8xf32, #tpu.memory_space<vmem>>, vector<2x1x18x8xf32>
    tpu.vector_store %arg8[%c0_4, %c17, %c0_5, %c0_6], %2 {strides = array<i32>} : memref<2x18x18x8xf32, #tpu.memory_space<vmem>>, vector<2x1x18x8xf32>,
    %cst_7 = arith.constant 0.000000e+00 : f32
    %4 = vector.broadcast %cst_7 : f32 to vector<2x16x1x8xf32>
    %c0_8 = arith.constant 0 : index
    %c1 = arith.constant 1 : index
    %c0_9 = arith.constant 0 : index
    %c0_10 = arith.constant 0 : index
    %5 = vector.load %arg8[%c0_8, %c1, %c0_9, %c0_10] : memref<2x18x18x8xf32, #tpu.memory_space<vmem>>, vector<2x16x1x8xf32>
    tpu.vector_store %arg8[%c0_8, %c1, %c0_9, %c0_10], %4 {strides = array<i32>} : memref<2x18x18x8xf32, #tpu.memory_space<vmem>>, vector<2x16x1x8xf32>,
    %cst_11 = arith.constant 0.000000e+00 : f32
    %6 = vector.broadcast %cst_11 : f32 to vector<2x16x1x8xf32>
    %c0_12 = arith.constant 0 : index
    %c1_13 = arith.constant 1 : index
    %c17_14 = arith.constant 17 : index
    %c0_15 = arith.constant 0 : index
    %7 = vector.load %arg8[%c0_12, %c1_13, %c17_14, %c0_15] : memref<2x18x18x8xf32, #tpu.memory_space<vmem>>, vector<2x16x1x8xf32>
    tpu.vector_store %arg8[%c0_12, %c1_13, %c17_14, %c0_15], %6 {strides = array<i32>} : memref<2x18x18x8xf32, #tpu.memory_space<vmem>>, vector<2x16x1x8xf32>,
    %c0_16 = arith.constant 0 : index
    %c0_17 = arith.constant 0 : index
    %c0_18 = arith.constant 0 : index
    %8 = vector.load %arg1[%c0_16, %c0_17, %c0_18] : memref<2x256x36xbf16, #tpu.memory_space<vmem>>, vector<2x256x36xbf16>
    %9 = vector.shape_cast %8 : vector<2x256x36xbf16> to vector<512x36xbf16>
    %c0_19 = arith.constant 0 : index
    %c0_20 = arith.constant 0 : index
    %10 = vector.load %arg2[%c0_19, %c0_20] : memref<36x8xbf16, #tpu.memory_space<vmem>>, vector<36x8xbf16>
    %cst_21 = arith.constant dense<0.000000e+00> : vector<512x8xf32>
    %11 = tpu.matmul %9, %10, %cst_21 {dimension_numbers = #tpu.dot_dimension_numbers<[1], [0], [0], [1], [0, 0, 1, 1], [], []>} : vector<512x36xbf16>, vector<36x8xbf16>, vector<512x8xf32> -> vector<512x8xf32>
    %c0_22 = arith.constant 0 : index
    %c0_23 = arith.constant 0 : index
    %12 = vector.load %arg3[%c0_22, %c0_23] : memref<1x8xf32, #tpu.memory_space<vmem>>, vector<1x8xf32>
    %13 = vector.shape_cast %12 : vector<1x8xf32> to vector<8xf32>
    %14 = vector.shape_cast %13 : vector<8xf32> to vector<1x8xf32>
    %15 = vector.broadcast %14 : vector<1x8xf32> to vector<512x8xf32>
    %16 = arith.addf %11, %15 : vector<512x8xf32>
    %cst_24 = arith.constant 0.000000e+00 : f32
    %17 = vector.broadcast %cst_24 : f32 to vector<512x8xf32>
    %18 = arith.cmpf ogt, %16, %17 : vector<512x8xf32>
    %19 = math.exp %16 : vector<512x8xf32>
    %cst_25 = arith.constant 1.000000e+00 : f32
    %20 = vector.broadcast %cst_25 : f32 to vector<512x8xf32>
    %21 = arith.subf %19, %20 : vector<512x8xf32>
    %22 = arith.select %18, %16, %21 : vector<512x8xi1>, vector<512x8xf32>
    %23 = vector.shape_cast %22 : vector<512x8xf32> to vector<2x16x16x8xf32>
    %c0_26 = arith.constant 0 : index
    %c1_27 = arith.constant 1 : index
    %c1_28 = arith.constant 1 : index
    %c0_29 = arith.constant 0 : index
    %24 = vector.load %arg8[%c0_26, %c1_27, %c1_28, %c0_29] : memref<2x18x18x8xf32, #tpu.memory_space<vmem>>, vector<2x16x16x8xf32>
    tpu.vector_store %arg8[%c0_26, %c1_27, %c1_28, %c0_29], %23 {strides = array<i32>} : memref<2x18x18x8xf32, #tpu.memory_space<vmem>>, vector<2x16x16x8xf32>,
    %c0_30 = arith.constant 0 : index
    %c0_31 = arith.constant 0 : index
    %25 = vector.load %arg5[%c0_30, %c0_31] : memref<36x8xbf16, #tpu.memory_space<vmem>>, vector<36x8xbf16>
    %cst_32 = arith.constant dense<0.000000e+00> : vector<512x8xf32>
    %26 = tpu.matmul %9, %25, %cst_32 {dimension_numbers = #tpu.dot_dimension_numbers<[1], [0], [0], [1], [0, 0, 1, 1], [], []>} : vector<512x36xbf16>, vector<36x8xbf16>, vector<512x8xf32> -> vector<512x8xf32>
    %c0_33 = arith.constant 0 : index
    %c0_34 = arith.constant 0 : index
    %27 = vector.load %arg6[%c0_33, %c0_34] : memref<1x8xf32, #tpu.memory_space<vmem>>, vector<1x8xf32>
    %28 = vector.shape_cast %27 : vector<1x8xf32> to vector<8xf32>
    %29 = vector.shape_cast %28 : vector<8xf32> to vector<1x8xf32>
    %30 = vector.broadcast %29 : vector<1x8xf32> to vector<512x8xf32>
    %31 = arith.addf %26, %30 : vector<512x8xf32>
    %c0_35 = arith.constant 0 : index
    %c0_36 = arith.constant 0 : index
    %c0_37 = arith.constant 0 : index
    %c0_38 = arith.constant 0 : index
    %32 = vector.load %arg8[%c0_35, %c0_36, %c0_37, %c0_38] : memref<2x18x18x8xf32, #tpu.memory_space<vmem>>, vector<2x16x16x8xf32>
    %33 = arith.truncf %32 : vector<2x16x16x8xf32> to vector<2x16x16x8xbf16>
    %34 = vector.shape_cast %33 : vector<2x16x16x8xbf16> to vector<512x8xbf16>
    %c0_39 = arith.constant 0 : index
    %c0_40 = arith.constant 0 : index
    %c0_41 = arith.constant 0 : index
    %35 = vector.load %arg4[%c0_39, %c0_40, %c0_41] : memref<9x8x8xbf16, #tpu.memory_space<vmem>>, vector<1x8x8xbf16>
    %36 = vector.shape_cast %35 : vector<1x8x8xbf16> to vector<8x8xbf16>
    %cst_42 = arith.constant dense<0.000000e+00> : vector<512x8xf32>
    %37 = tpu.matmul %34, %36, %cst_42 {dimension_numbers = #tpu.dot_dimension_numbers<[1], [0], [0], [1], [0, 0, 1, 1], [], []>} : vector<512x8xbf16>, vector<8x8xbf16>, vector<512x8xf32> -> vector<512x8xf32>
    %38 = arith.addf %31, %37 : vector<512x8xf32>
    %c0_43 = arith.constant 0 : index
    %c0_44 = arith.constant 0 : index
    %c1_45 = arith.constant 1 : index
    %c0_46 = arith.constant 0 : index
    %39 = vector.load %arg8[%c0_43, %c0_44, %c1_45, %c0_46] : memref<2x18x18x8xf32, #tpu.memory_space<vmem>>, vector<2x16x16x8xf32>
    %40 = arith.truncf %39 : vector<2x16x16x8xf32> to vector<2x16x16x8xbf16>
    %41 = vector.shape_cast %40 : vector<2x16x16x8xbf16> to vector<512x8xbf16>
    %c1_47 = arith.constant 1 : index
    %c0_48 = arith.constant 0 : index
    %c0_49 = arith.constant 0 : index
    %42 = vector.load %arg4[%c1_47, %c0_48, %c0_49] : memref<9x8x8xbf16, #tpu.memory_space<vmem>>, vector<1x8x8xbf16>
    %43 = vector.shape_cast %42 : vector<1x8x8xbf16> to vector<8x8xbf16>
    %cst_50 = arith.constant dense<0.000000e+00> : vector<512x8xf32>
    %44 = tpu.matmul %41, %43, %cst_50 {dimension_numbers = #tpu.dot_dimension_numbers<[1], [0], [0], [1], [0, 0, 1, 1], [], []>} : vector<512x8xbf16>, vector<8x8xbf16>, vector<512x8xf32> -> vector<512x8xf32>
    %45 = arith.addf %38, %44 : vector<512x8xf32>
    %c0_51 = arith.constant 0 : index
    %c0_52 = arith.constant 0 : index
    %c2 = arith.constant 2 : index
    %c0_53 = arith.constant 0 : index
    %46 = vector.load %arg8[%c0_51, %c0_52, %c2, %c0_53] : memref<2x18x18x8xf32, #tpu.memory_space<vmem>>, vector<2x16x16x8xf32>
    %47 = arith.truncf %46 : vector<2x16x16x8xf32> to vector<2x16x16x8xbf16>
    %48 = vector.shape_cast %47 : vector<2x16x16x8xbf16> to vector<512x8xbf16>
    %c2_54 = arith.constant 2 : index
    %c0_55 = arith.constant 0 : index
    %c0_56 = arith.constant 0 : index
    %49 = vector.load %arg4[%c2_54, %c0_55, %c0_56] : memref<9x8x8xbf16, #tpu.memory_space<vmem>>, vector<1x8x8xbf16>
    %50 = vector.shape_cast %49 : vector<1x8x8xbf16> to vector<8x8xbf16>
    %cst_57 = arith.constant dense<0.000000e+00> : vector<512x8xf32>
    %51 = tpu.matmul %48, %50, %cst_57 {dimension_numbers = #tpu.dot_dimension_numbers<[1], [0], [0], [1], [0, 0, 1, 1], [], []>} : vector<512x8xbf16>, vector<8x8xbf16>, vector<512x8xf32> -> vector<512x8xf32>
    %52 = arith.addf %45, %51 : vector<512x8xf32>
    %c0_58 = arith.constant 0 : index
    %c1_59 = arith.constant 1 : index
    %c0_60 = arith.constant 0 : index
    %c0_61 = arith.constant 0 : index
    %53 = vector.load %arg8[%c0_58, %c1_59, %c0_60, %c0_61] : memref<2x18x18x8xf32, #tpu.memory_space<vmem>>, vector<2x16x16x8xf32>
    %54 = arith.truncf %53 : vector<2x16x16x8xf32> to vector<2x16x16x8xbf16>
    %55 = vector.shape_cast %54 : vector<2x16x16x8xbf16> to vector<512x8xbf16>
    %c3 = arith.constant 3 : index
    %c0_62 = arith.constant 0 : index
    %c0_63 = arith.constant 0 : index
    %56 = vector.load %arg4[%c3, %c0_62, %c0_63] : memref<9x8x8xbf16, #tpu.memory_space<vmem>>, vector<1x8x8xbf16>
    %57 = vector.shape_cast %56 : vector<1x8x8xbf16> to vector<8x8xbf16>
    %cst_64 = arith.constant dense<0.000000e+00> : vector<512x8xf32>
    %58 = tpu.matmul %55, %57, %cst_64 {dimension_numbers = #tpu.dot_dimension_numbers<[1], [0], [0], [1], [0, 0, 1, 1], [], []>} : vector<512x8xbf16>, vector<8x8xbf16>, vector<512x8xf32> -> vector<512x8xf32>
    %59 = arith.addf %52, %58 : vector<512x8xf32>
    %c0_65 = arith.constant 0 : index
    %c1_66 = arith.constant 1 : index
    %c1_67 = arith.constant 1 : index
    %c0_68 = arith.constant 0 : index
    %60 = vector.load %arg8[%c0_65, %c1_66, %c1_67, %c0_68] : memref<2x18x18x8xf32, #tpu.memory_space<vmem>>, vector<2x16x16x8xf32>
    %61 = arith.truncf %60 : vector<2x16x16x8xf32> to vector<2x16x16x8xbf16>
    %62 = vector.shape_cast %61 : vector<2x16x16x8xbf16> to vector<512x8xbf16>
    %c4 = arith.constant 4 : index
    %c0_69 = arith.constant 0 : index
    %c0_70 = arith.constant 0 : index
    %63 = vector.load %arg4[%c4, %c0_69, %c0_70] : memref<9x8x8xbf16, #tpu.memory_space<vmem>>, vector<1x8x8xbf16>
    %64 = vector.shape_cast %63 : vector<1x8x8xbf16> to vector<8x8xbf16>
    %cst_71 = arith.constant dense<0.000000e+00> : vector<512x8xf32>
    %65 = tpu.matmul %62, %64, %cst_71 {dimension_numbers = #tpu.dot_dimension_numbers<[1], [0], [0], [1], [0, 0, 1, 1], [], []>} : vector<512x8xbf16>, vector<8x8xbf16>, vector<512x8xf32> -> vector<512x8xf32>
    %66 = arith.addf %59, %65 : vector<512x8xf32>
    %c0_72 = arith.constant 0 : index
    %c1_73 = arith.constant 1 : index
    %c2_74 = arith.constant 2 : index
    %c0_75 = arith.constant 0 : index
    %67 = vector.load %arg8[%c0_72, %c1_73, %c2_74, %c0_75] : memref<2x18x18x8xf32, #tpu.memory_space<vmem>>, vector<2x16x16x8xf32>
    %68 = arith.truncf %67 : vector<2x16x16x8xf32> to vector<2x16x16x8xbf16>
    %69 = vector.shape_cast %68 : vector<2x16x16x8xbf16> to vector<512x8xbf16>
    %c5 = arith.constant 5 : index
    %c0_76 = arith.constant 0 : index
    %c0_77 = arith.constant 0 : index
    %70 = vector.load %arg4[%c5, %c0_76, %c0_77] : memref<9x8x8xbf16, #tpu.memory_space<vmem>>, vector<1x8x8xbf16>
    %71 = vector.shape_cast %70 : vector<1x8x8xbf16> to vector<8x8xbf16>
    %cst_78 = arith.constant dense<0.000000e+00> : vector<512x8xf32>
    %72 = tpu.matmul %69, %71, %cst_78 {dimension_numbers = #tpu.dot_dimension_numbers<[1], [0], [0], [1], [0, 0, 1, 1], [], []>} : vector<512x8xbf16>, vector<8x8xbf16>, vector<512x8xf32> -> vector<512x8xf32>
    %73 = arith.addf %66, %72 : vector<512x8xf32>
    %c0_79 = arith.constant 0 : index
    %c2_80 = arith.constant 2 : index
    %c0_81 = arith.constant 0 : index
    %c0_82 = arith.constant 0 : index
    %74 = vector.load %arg8[%c0_79, %c2_80, %c0_81, %c0_82] : memref<2x18x18x8xf32, #tpu.memory_space<vmem>>, vector<2x16x16x8xf32>
    %75 = arith.truncf %74 : vector<2x16x16x8xf32> to vector<2x16x16x8xbf16>
    %76 = vector.shape_cast %75 : vector<2x16x16x8xbf16> to vector<512x8xbf16>
    %c6 = arith.constant 6 : index
    %c0_83 = arith.constant 0 : index
    %c0_84 = arith.constant 0 : index
    %77 = vector.load %arg4[%c6, %c0_83, %c0_84] : memref<9x8x8xbf16, #tpu.memory_space<vmem>>, vector<1x8x8xbf16>
    %78 = vector.shape_cast %77 : vector<1x8x8xbf16> to vector<8x8xbf16>
    %cst_85 = arith.constant dense<0.000000e+00> : vector<512x8xf32>
    %79 = tpu.matmul %76, %78, %cst_85 {dimension_numbers = #tpu.dot_dimension_numbers<[1], [0], [0], [1], [0, 0, 1, 1], [], []>} : vector<512x8xbf16>, vector<8x8xbf16>, vector<512x8xf32> -> vector<512x8xf32>
    %80 = arith.addf %73, %79 : vector<512x8xf32>
    %c0_86 = arith.constant 0 : index
    %c2_87 = arith.constant 2 : index
    %c1_88 = arith.constant 1 : index
    %c0_89 = arith.constant 0 : index
    %81 = vector.load %arg8[%c0_86, %c2_87, %c1_88, %c0_89] : memref<2x18x18x8xf32, #tpu.memory_space<vmem>>, vector<2x16x16x8xf32>
    %82 = arith.truncf %81 : vector<2x16x16x8xf32> to vector<2x16x16x8xbf16>
    %83 = vector.shape_cast %82 : vector<2x16x16x8xbf16> to vector<512x8xbf16>
    %c7 = arith.constant 7 : index
    %c0_90 = arith.constant 0 : index
    %c0_91 = arith.constant 0 : index
    %84 = vector.load %arg4[%c7, %c0_90, %c0_91] : memref<9x8x8xbf16, #tpu.memory_space<vmem>>, vector<1x8x8xbf16>
    %85 = vector.shape_cast %84 : vector<1x8x8xbf16> to vector<8x8xbf16>
    %cst_92 = arith.constant dense<0.000000e+00> : vector<512x8xf32>
    %86 = tpu.matmul %83, %85, %cst_92 {dimension_numbers = #tpu.dot_dimension_numbers<[1], [0], [0], [1], [0, 0, 1, 1], [], []>} : vector<512x8xbf16>, vector<8x8xbf16>, vector<512x8xf32> -> vector<512x8xf32>
    %87 = arith.addf %80, %86 : vector<512x8xf32>
    %c0_93 = arith.constant 0 : index
    %c2_94 = arith.constant 2 : index
    %c2_95 = arith.constant 2 : index
    %c0_96 = arith.constant 0 : index
    %88 = vector.load %arg8[%c0_93, %c2_94, %c2_95, %c0_96] : memref<2x18x18x8xf32, #tpu.memory_space<vmem>>, vector<2x16x16x8xf32>
    %89 = arith.truncf %88 : vector<2x16x16x8xf32> to vector<2x16x16x8xbf16>
    %90 = vector.shape_cast %89 : vector<2x16x16x8xbf16> to vector<512x8xbf16>
    %c8 = arith.constant 8 : index
    %c0_97 = arith.constant 0 : index
    %c0_98 = arith.constant 0 : index
    %91 = vector.load %arg4[%c8, %c0_97, %c0_98] : memref<9x8x8xbf16, #tpu.memory_space<vmem>>, vector<1x8x8xbf16>
    %92 = vector.shape_cast %91 : vector<1x8x8xbf16> to vector<8x8xbf16>
    %cst_99 = arith.constant dense<0.000000e+00> : vector<512x8xf32>
    %93 = tpu.matmul %90, %92, %cst_99 {dimension_numbers = #tpu.dot_dimension_numbers<[1], [0], [0], [1], [0, 0, 1, 1], [], []>} : vector<512x8xbf16>, vector<8x8xbf16>, vector<512x8xf32> -> vector<512x8xf32>
    %94 = arith.addf %87, %93 : vector<512x8xf32>
    %95 = vector.shape_cast %94 : vector<512x8xf32> to vector<16x32x8xf32>
    %96 = vector.extract_strided_slice %95 {offsets = [0, 0, 0], sizes = [16, 16, 8], strides = [1, 1, 1]} : vector<16x32x8xf32> to vector<16x16x8xf32>
    %97 = vector.extract_strided_slice %95 {offsets = [0, 16, 0], sizes = [16, 16, 8], strides = [1, 1, 1]} : vector<16x32x8xf32> to vector<16x16x8xf32>
    %98 = arith.maximumf %96, %97 : vector<16x16x8xf32>
    %c0_100 = arith.constant 0 : index
    %c0_101 = arith.constant 0 : index
    %c0_102 = arith.constant 0 : index
    %99 = vector.load %arg9[%c0_100, %c0_101, %c0_102] : memref<16x16x8xf32, #tpu.memory_space<vmem>>, vector<16x16x8xf32>
    tpu.vector_store %arg9[%c0_100, %c0_101, %c0_102], %98 {strides = array<i32>} : memref<16x16x8xf32, #tpu.memory_space<vmem>>, vector<16x16x8xf32>,
    %c0_103 = arith.constant 0 : index
    %c0_104 = arith.constant 0 : index
    %c0_105 = arith.constant 0 : index
    %100 = tpu.strided_load %arg9[%c0_103, %c0_104, %c0_105] {strides = array<i32: 1, 2, 1>} : memref<16x16x8xf32, #tpu.memory_space<vmem>>, vector<16x8x8xf32>
    %c0_106 = arith.constant 0 : index
    %c1_107 = arith.constant 1 : index
    %c0_108 = arith.constant 0 : index
    %101 = tpu.strided_load %arg9[%c0_106, %c1_107, %c0_108] {strides = array<i32: 1, 2, 1>} : memref<16x16x8xf32, #tpu.memory_space<vmem>>, vector<16x8x8xf32>
    %102 = arith.maximumf %100, %101 : vector<16x8x8xf32>
    %103 = vector.shape_cast %102 : vector<16x8x8xf32> to vector<2x8x8x8xf32>
    %c0_109 = arith.constant 0 : index
    %c0_110 = arith.constant 0 : index
    %c0_111 = arith.constant 0 : index
    %c0_112 = arith.constant 0 : index
    %104 = vector.load %arg7[%c0_109, %c0_110, %c0_111, %c0_112] : memref<2x8x8x8xf32, #tpu.memory_space<vmem>>, vector<2x8x8x8xf32>
    tpu.vector_store %arg7[%c0_109, %c0_110, %c0_111, %c0_112], %103 {strides = array<i32>} : memref<2x8x8x8xf32, #tpu.memory_space<vmem>>, vector<2x8x8x8xf32>,
    return
  }
  func.func @transform_0(%arg0: i32) -> (i32, i32, i32) {
    %c0_i32 = arith.constant 0 : i32
    %c0_i32_0 = arith.constant 0 : i32
    %c0_i32_1 = arith.constant 0 : i32
    return %arg0, %c0_i32, %c0_i32_0 : i32, i32, i32
  }
  func.func @transform_1(%arg0: i32) -> (i32, i32) {
    %c0_i32 = arith.constant 0 : i32
    %c0_i32_0 = arith.constant 0 : i32
    %c0_i32_1 = arith.constant 0 : i32
    return %c0_i32, %c0_i32_0 : i32, i32
  }
  func.func @transform_2(%arg0: i32) -> (i32, i32) {
    %c0_i32 = arith.constant 0 : i32
    %c0_i32_0 = arith.constant 0 : i32
    %c0_i32_1 = arith.constant 0 : i32
    return %c0_i32, %c0_i32_0 : i32, i32
  }
  func.func @transform_3(%arg0: i32) -> (i32, i32, i32) {
    %c0_i32 = arith.constant 0 : i32
    %c0_i32_0 = arith.constant 0 : i32
    %c0_i32_1 = arith.constant 0 : i32
    %c0_i32_2 = arith.constant 0 : i32
    return %c0_i32, %c0_i32_0, %c0_i32_1 : i32, i32, i32
  }
  func.func @transform_4(%arg0: i32) -> (i32, i32) {
    %c0_i32 = arith.constant 0 : i32
    %c0_i32_0 = arith.constant 0 : i32
    %c0_i32_1 = arith.constant 0 : i32
    return %c0_i32, %c0_i32_0 : i32, i32
  }
  func.func @transform_5(%arg0: i32) -> (i32, i32) {
    %c0_i32 = arith.constant 0 : i32
    %c0_i32_0 = arith.constant 0 : i32
    %c0_i32_1 = arith.constant 0 : i32
    return %c0_i32, %c0_i32_0 : i32, i32
  }
  func.func @transform_6(%arg0: i32) -> (i32, i32, i32, i32) {
    %c0_i32 = arith.constant 0 : i32
    %c0_i32_0 = arith.constant 0 : i32
    %c0_i32_1 = arith.constant 0 : i32
    %c0_i32_2 = arith.constant 0 : i32
    return %arg0, %c0_i32, %c0_i32_0, %c0_i32_1 : i32, i32, i32, i32
  }
}

</mosaic_0001>

<llo_original>
// kernel: tpu_custom_call.1
$region0: #{tpu_custom_call.1}
  #allocation0 [shape = 'u32[]', space=smem, size = 0x4, offset = 0x4, fixed_abs, tag = 'smem constant byte address 0x4 - core index']
  #allocation1 [shape = 'u32[144,128]{1,0:T(1,128)}', space=vmem, size = 0x12000, scoped, tag = 'internal scratch']
  #allocation2 [shape = 'f32[2,18,18,8]{3,2,1,0:T(8,128)}', space=vmem, size = 0x6c000, scoped, tag = 'scratch operand']
  #allocation3 [shape = 'f32[16,16,8]{2,1,0:T(8,128)}', space=vmem, size = 0x20000, scoped, tag = 'scratch operand']
  %s0 = inlined_call_operand.vmem [shape: bf16[2,256,36], index: 0, kind: input, shape index: {}]
  %s1 = inlined_call_operand.vmem [shape: bf16[36,8], index: 1, kind: input, shape index: {}]
  %s2 = inlined_call_operand.vmem [shape: f32[1,8], index: 2, kind: input, shape index: {}]
  %s3 = inlined_call_operand.vmem [shape: bf16[9,8,8], index: 3, kind: input, shape index: {}]
  %s4 = inlined_call_operand.vmem [shape: bf16[36,8], index: 4, kind: input, shape index: {}]
  %s5 = inlined_call_operand.vmem [shape: f32[1,8], index: 5, kind: input, shape index: {}]
  %s6 = inlined_call_operand.hbm [shape: f32[2,8,8,8], index: 6, kind: output, shape index: {}]
  %s7 = sld [smem:[#allocation0]]
  $region34: #{tpu_custom_call.1} parent=0
    _
  %s9 = ssub.s32 1, %s7
  %s10 = scalar_select 0, %s9, %s7
  $region1: #{tpu_custom_call.1} parent=0
    #allocation4 [shape = 'u8[65536]{0}', space=vmem, size = 0x10000, scoped, tag = 'output window, operand 0, single buffered']
    #allocation5 [shape = 's32[1]{0}', space=sflag, size = 0x4, scoped, tag = 'scoped memory for tpu_custom_call.1']
    %11 = vsyncpa [#allocation5], 0
    // Predicated region
    $region2: #{tpu_custom_call.1} parent=1 // pred_check
      _
    $region3: #{tpu_custom_call.1} parent=1 // pred_check_branch
      %13 = sbr.rel (0) target = $region5
    $region4: #{tpu_custom_call.1} parent=1 // pred_region
      _
    $region5: #{tpu_custom_call.1} parent=1 // pred_fallthru
      _
    // Predicated region
    $region6: #{tpu_custom_call.1} parent=1 // pred_check
      _
    $region7: #{tpu_custom_call.1} parent=1 // pred_check_branch
      %15 = sbr.rel (0) target = $region9
    $region8: #{tpu_custom_call.1} parent=1 // pred_region
      _
    $region9: #{tpu_custom_call.1} parent=1 // pred_fallthru
      _
    // Predicated region
    $region10: #{tpu_custom_call.1} parent=1 // pred_check
      _
    $region11: #{tpu_custom_call.1} parent=1 // pred_check_branch
      %17 = sbr.rel (0) target = $region13
    $region12: #{tpu_custom_call.1} parent=1 // pred_region
      _
    $region13: #{tpu_custom_call.1} parent=1 // pred_fallthru
      _
    // Predicated region
    $region14: #{tpu_custom_call.1} parent=1 // pred_check
      _
    $region15: #{tpu_custom_call.1} parent=1 // pred_check_branch
      %19 = sbr.rel (0) target = $region17
    $region16: #{tpu_custom_call.1} parent=1 // pred_region
      _
    $region17: #{tpu_custom_call.1} parent=1 // pred_fallthru
      _
    // Predicated region
    $region18: #{tpu_custom_call.1} parent=1 // pred_check
      _
    $region19: #{tpu_custom_call.1} parent=1 // pred_check_branch
      %21 = sbr.rel (0) target = $region21
    $region20: #{tpu_custom_call.1} parent=1 // pred_region
      _
    $region21: #{tpu_custom_call.1} parent=1 // pred_fallthru
      _
    // Predicated region
    $region22: #{tpu_custom_call.1} parent=1 // pred_check
      _
    $region23: #{tpu_custom_call.1} parent=1 // pred_check_branch
      %23 = sbr.rel (0) target = $region25
    $region24: #{tpu_custom_call.1} parent=1 // pred_region
      _
    $region25: #{tpu_custom_call.1} parent=1 // pred_fallthru
      _
    %vm25 = vcmask 64512
    %26 = vst.msk [vmem:[#allocation2] sm:$0xff] %vm25, 0.0
    %27 = vst.msk [vmem:[#allocation2 + $0x8] sm:$0xff] %vm25, 0.0
    %vm28 = vcmask 58368
    %29 = vst.msk [vmem:[#allocation2 + $0x10] sm:$0x3] %vm28, 0.0
    %30 = vst.msk [vmem:[#allocation2 + $0x1b0] sm:$0xff] %vm25, 0.0
    %31 = vst.msk [vmem:[#allocation2 + $0x1b8] sm:$0xff] %vm25, 0.0
    %32 = vst.msk [vmem:[#allocation2 + $0x1c0] sm:$0x3] %vm28, 0.0
    %s33 = scalar_lea.vmem [#allocation2], 408
    %34 = vst.msk [vmem:[%s33] sm:$0xff] %vm25, 0.0
    %35 = vst.msk [vmem:[%s33 + $0x8] sm:$0xff] %vm25, 0.0
    %36 = vst.msk [vmem:[%s33 + $0x10] sm:$0x3] %vm28, 0.0
    %37 = vst.msk [vmem:[%s33 + $0x1b0] sm:$0xff] %vm25, 0.0
    %38 = vst.msk [vmem:[%s33 + $0x1b8] sm:$0xff] %vm25, 0.0
    %39 = vst.msk [vmem:[%s33 + $0x1c0] sm:$0x3] %vm28, 0.0
    %s40 = scalar_lea.vmem [#allocation2], 24
    %vm41 = vcmask 57344
    %42 = vst.msk [vmem:[%s40] sm:$0x1] %vm41, 0.0
    %43 = vst.msk [vmem:[%s40 + $0x18] sm:$0x1] %vm41, 0.0
    %44 = vst.msk [vmem:[%s40 + $0x30] sm:$0x1] %vm41, 0.0
    %45 = vst.msk [vmem:[%s40 + $0x48] sm:$0x1] %vm41, 0.0
    %46 = vst.msk [vmem:[%s40 + $0x60] sm:$0x1] %vm41, 0.0
    %47 = vst.msk [vmem:[%s40 + $0x78] sm:$0x1] %vm41, 0.0
    %48 = vst.msk [vmem:[%s40 + $0x90] sm:$0x1] %vm41, 0.0
    %49 = vst.msk [vmem:[%s40 + $0xa8] sm:$0x1] %vm41, 0.0
    %50 = vst.msk [vmem:[%s40 + $0xc0] sm:$0x1] %vm41, 0.0
    %51 = vst.msk [vmem:[%s40 + $0xd8] sm:$0x1] %vm41, 0.0
    %52 = vst.msk [vmem:[%s40 + $0xf0] sm:$0x1] %vm41, 0.0
    %53 = vst.msk [vmem:[%s40 + $0x108] sm:$0x1] %vm41, 0.0
    %54 = vst.msk [vmem:[%s40 + $0x120] sm:$0x1] %vm41, 0.0
    %55 = vst.msk [vmem:[%s40 + $0x138] sm:$0x1] %vm41, 0.0
    %56 = vst.msk [vmem:[%s40 + $0x150] sm:$0x1] %vm41, 0.0
    %57 = vst.msk [vmem:[%s40 + $0x168] sm:$0x1] %vm41, 0.0
    %58 = vst.msk [vmem:[%s40 + $0x1b0] sm:$0x1] %vm41, 0.0
    %59 = vst.msk [vmem:[%s40 + $0x1c8] sm:$0x1] %vm41, 0.0
    %60 = vst.msk [vmem:[%s40 + $0x1e0] sm:$0x1] %vm41, 0.0
    %61 = vst.msk [vmem:[%s40 + $0x1f8] sm:$0x1] %vm41, 0.0
    %62 = vst.msk [vmem:[%s40 + $0x210] sm:$0x1] %vm41, 0.0
    %63 = vst.msk [vmem:[%s40 + $0x228] sm:$0x1] %vm41, 0.0
    %64 = vst.msk [vmem:[%s40 + $0x240] sm:$0x1] %vm41, 0.0
    %65 = vst.msk [vmem:[%s40 + $0x258] sm:$0x1] %vm41, 0.0
    %66 = vst.msk [vmem:[%s40 + $0x270] sm:$0x1] %vm41, 0.0
    %67 = vst.msk [vmem:[%s40 + $0x288] sm:$0x1] %vm41, 0.0
    %68 = vst.msk [vmem:[%s40 + $0x2a0] sm:$0x1] %vm41, 0.0
    %69 = vst.msk [vmem:[%s40 + $0x2b8] sm:$0x1] %vm41, 0.0
    %70 = vst.msk [vmem:[%s40 + $0x2d0] sm:$0x1] %vm41, 0.0
    %71 = vst.msk [vmem:[%s40 + $0x2e8] sm:$0x1] %vm41, 0.0
    %72 = vst.msk [vmem:[%s40 + $0x300] sm:$0x1] %vm41, 0.0
    %73 = vst.msk [vmem:[%s40 + $0x318] sm:$0x1] %vm41, 0.0
    %74 = vst.msk [vmem:[%s40 + $0x11] sm:$0x1] %vm41, 0.0
    %75 = vst.msk [vmem:[%s40 + $0x29] sm:$0x1] %vm41, 0.0
    %76 = vst.msk [vmem:[%s40 + $0x41] sm:$0x1] %vm41, 0.0
    %77 = vst.msk [vmem:[%s40 + $0x59] sm:$0x1] %vm41, 0.0
    %78 = vst.msk [vmem:[%s40 + $0x71] sm:$0x1] %vm41, 0.0
    %79 = vst.msk [vmem:[%s40 + $0x89] sm:$0x1] %vm41, 0.0
    %80 = vst.msk [vmem:[%s40 + $0xa1] sm:$0x1] %vm41, 0.0
    %81 = vst.msk [vmem:[%s40 + $0xb9] sm:$0x1] %vm41, 0.0
    %82 = vst.msk [vmem:[%s40 + $0xd1] sm:$0x1] %vm41, 0.0
    %83 = vst.msk [vmem:[%s40 + $0xe9] sm:$0x1] %vm41, 0.0
    %84 = vst.msk [vmem:[%s40 + $0x101] sm:$0x1] %vm41, 0.0
    %85 = vst.msk [vmem:[%s40 + $0x119] sm:$0x1] %vm41, 0.0
    %86 = vst.msk [vmem:[%s40 + $0x131] sm:$0x1] %vm41, 0.0
    %87 = vst.msk [vmem:[%s40 + $0x149] sm:$0x1] %vm41, 0.0
    %88 = vst.msk [vmem:[%s40 + $0x161] sm:$0x1] %vm41, 0.0
    %89 = vst.msk [vmem:[%s40 + $0x179] sm:$0x1] %vm41, 0.0
    %90 = vst.msk [vmem:[%s40 + $0x1c1] sm:$0x1] %vm41, 0.0
    %91 = vst.msk [vmem:[%s40 + $0x1d9] sm:$0x1] %vm41, 0.0
    %92 = vst.msk [vmem:[%s40 + $0x1f1] sm:$0x1] %vm41, 0.0
    %93 = vst.msk [vmem:[%s40 + $0x209] sm:$0x1] %vm41, 0.0
    %94 = vst.msk [vmem:[%s40 + $0x221] sm:$0x1] %vm41, 0.0
    %95 = vst.msk [vmem:[%s40 + $0x239] sm:$0x1] %vm41, 0.0
    %96 = vst.msk [vmem:[%s40 + $0x251] sm:$0x1] %vm41, 0.0
    %97 = vst.msk [vmem:[%s40 + $0x269] sm:$0x1] %vm41, 0.0
    %98 = vst.msk [vmem:[%s40 + $0x281] sm:$0x1] %vm41, 0.0
    %99 = vst.msk [vmem:[%s40 + $0x299] sm:$0x1] %vm41, 0.0
    %100 = vst.msk [vmem:[%s40 + $0x2b1] sm:$0x1] %vm41, 0.0
    %101 = vst.msk [vmem:[%s40 + $0x2c9] sm:$0x1] %vm41, 0.0
    %102 = vst.msk [vmem:[%s40 + $0x2e1] sm:$0x1] %vm41, 0.0
    %103 = vst.msk [vmem:[%s40 + $0x2f9] sm:$0x1] %vm41, 0.0
    %104 = vst.msk [vmem:[%s40 + $0x311] sm:$0x1] %vm41, 0.0
    %105 = vst.msk [vmem:[%s40 + $0x329] sm:$0x1] %vm41, 0.0
    %v106 = vld [vmem:[%s0] sm:$0xf]
    %v107 = vld [vmem:[%s0 + $0x4] sm:$0xf]
    %v108 = vld [vmem:[%s0 + $0x8] sm:$0xf]
    %v109 = vld [vmem:[%s0 + $0xc] sm:$0xf]
    %v110 = vld [vmem:[%s0 + $0x10] sm:$0xf]
    %v111 = vld [vmem:[%s0 + $0x14] sm:$0xf]
    %v112 = vld [vmem:[%s0 + $0x18] sm:$0xf]
    %v113 = vld [vmem:[%s0 + $0x1c] sm:$0xf]
    %v114 = vld [vmem:[%s0 + $0x20] sm:$0xf]
    %v115 = vld [vmem:[%s0 + $0x24] sm:$0xf]
    %v116 = vld [vmem:[%s0 + $0x28] sm:$0xf]
    %v117 = vld [vmem:[%s0 + $0x2c] sm:$0xf]
    %v118 = vld [vmem:[%s0 + $0x30] sm:$0xf]
    %v119 = vld [vmem:[%s0 + $0x34] sm:$0xf]
    %v120 = vld [vmem:[%s0 + $0x38] sm:$0xf]
    %v121 = vld [vmem:[%s0 + $0x3c] sm:$0xf]
    %v122 = vld [vmem:[%s0 + $0x40] sm:$0xf]
    %v123 = vld [vmem:[%s0 + $0x44] sm:$0xf]
    %v124 = vld [vmem:[%s0 + $0x48] sm:$0xf]
    %v125 = vld [vmem:[%s0 + $0x4c] sm:$0xf]
    %v126 = vld [vmem:[%s0 + $0x50] sm:$0xf]
    %v127 = vld [vmem:[%s0 + $0x54] sm:$0xf]
    %v128 = vld [vmem:[%s0 + $0x58] sm:$0xf]
    %v129 = vld [vmem:[%s0 + $0x5c] sm:$0xf]
    %v130 = vld [vmem:[%s0 + $0x60] sm:$0xf]
    %v131 = vld [vmem:[%s0 + $0x64] sm:$0xf]
    %v132 = vld [vmem:[%s0 + $0x68] sm:$0xf]
    %v133 = vld [vmem:[%s0 + $0x6c] sm:$0xf]
    %v134 = vld [vmem:[%s0 + $0x70] sm:$0xf]
    %v135 = vld [vmem:[%s0 + $0x74] sm:$0xf]
    %v136 = vld [vmem:[%s0 + $0x78] sm:$0xf]
    %v137 = vld [vmem:[%s0 + $0x7c] sm:$0xf]
    %v138 = vld [vmem:[%s0 + $0x80] sm:$0xf]
    %v139 = vld [vmem:[%s0 + $0x84] sm:$0xf]
    %v140 = vld [vmem:[%s0 + $0x88] sm:$0xf]
    %v141 = vld [vmem:[%s0 + $0x8c] sm:$0xf]
    %v142 = vld [vmem:[%s0 + $0x90] sm:$0xf]
    %v143 = vld [vmem:[%s0 + $0x94] sm:$0xf]
    %v144 = vld [vmem:[%s0 + $0x98] sm:$0xf]
    %v145 = vld [vmem:[%s0 + $0x9c] sm:$0xf]
    %v146 = vld [vmem:[%s0 + $0xa0] sm:$0xf]
    %v147 = vld [vmem:[%s0 + $0xa4] sm:$0xf]
    %v148 = vld [vmem:[%s0 + $0xa8] sm:$0xf]
    %v149 = vld [vmem:[%s0 + $0xac] sm:$0xf]
    %v150 = vld [vmem:[%s0 + $0xb0] sm:$0xf]
    %v151 = vld [vmem:[%s0 + $0xb4] sm:$0xf]
    %v152 = vld [vmem:[%s0 + $0xb8] sm:$0xf]
    %v153 = vld [vmem:[%s0 + $0xbc] sm:$0xf]
    %v154 = vld [vmem:[%s0 + $0xc0] sm:$0xf]
    %v155 = vld [vmem:[%s0 + $0xc4] sm:$0xf]
    %v156 = vld [vmem:[%s0 + $0xc8] sm:$0xf]
    %v157 = vld [vmem:[%s0 + $0xcc] sm:$0xf]
    %v158 = vld [vmem:[%s0 + $0xd0] sm:$0xf]
    %v159 = vld [vmem:[%s0 + $0xd4] sm:$0xf]
    %v160 = vld [vmem:[%s0 + $0xd8] sm:$0xf]
    %v161 = vld [vmem:[%s0 + $0xdc] sm:$0xf]
    %v162 = vld [vmem:[%s0 + $0xe0] sm:$0xf]
    %v163 = vld [vmem:[%s0 + $0xe4] sm:$0xf]
    %v164 = vld [vmem:[%s0 + $0xe8] sm:$0xf]
    %v165 = vld [vmem:[%s0 + $0xec] sm:$0xf]
    %v166 = vld [vmem:[%s0 + $0xf0] sm:$0xf]
    %v167 = vld [vmem:[%s0 + $0xf4] sm:$0xf]
    %v168 = vld [vmem:[%s0 + $0xf8] sm:$0xf]
    %v169 = vld [vmem:[%s0 + $0xfc] sm:$0xf]
    %v170 = vld [vmem:[%s1] sm:$0xf]
    %v171 = vld [vmem:[%s1 + $0x4] sm:$0xf]
    %v172 = vld [vmem:[%s1 + $0x8] sm:$0xf]
    %v173 = vld [vmem:[%s1 + $0xc] sm:$0xf]
    %v174 = vld [vmem:[%s1 + $0x10] sm:$0x3]
    %v175 = vld [vmem:[%s2] sm:$0x1]
    %v177 = vlaneseq
    %v178 = vshrl.u32 %v177, 7
    %v179 = vsub.s32 0, %v178
    %v180 = vrot.slane %v175, %v179
    %v246 = vunpack.c.l.b16 %v106
    %v247 = vunpack.c.l.b16 %v107
    %v248 = vunpack.c.l.b16 %v108
    %v249 = vunpack.c.l.b16 %v109
    %v250 = vunpack.c.l.b16 %v110
    %v251 = vunpack.c.l.b16 %v111
    %v252 = vunpack.c.l.b16 %v112
    %v253 = vunpack.c.l.b16 %v113
    %v254 = vunpack.c.l.b16 %v114
    %v255 = vunpack.c.l.b16 %v115
    %v256 = vunpack.c.l.b16 %v116
    %v257 = vunpack.c.l.b16 %v117
    %v258 = vunpack.c.l.b16 %v118
    %v259 = vunpack.c.l.b16 %v119
    %v260 = vunpack.c.l.b16 %v120
    %v261 = vunpack.c.l.b16 %v121
    %v262 = vunpack.c.l.b16 %v122
    %v263 = vunpack.c.l.b16 %v123
    %v264 = vunpack.c.l.b16 %v124
    %v265 = vunpack.c.l.b16 %v125
    %v266 = vunpack.c.l.b16 %v126
    %v267 = vunpack.c.l.b16 %v127
    %v268 = vunpack.c.l.b16 %v128
    %v269 = vunpack.c.l.b16 %v129
    %v270 = vunpack.c.l.b16 %v130
    %v271 = vunpack.c.l.b16 %v131
    %v272 = vunpack.c.l.b16 %v132
    %v273 = vunpack.c.l.b16 %v133
    %v274 = vunpack.c.l.b16 %v134
    %v275 = vunpack.c.l.b16 %v135
    %v276 = vunpack.c.l.b16 %v136
    %v277 = vunpack.c.l.b16 %v137
    %v278 = vunpack.c.l.b16 %v138
    %v279 = vunpack.c.l.b16 %v139
    %v280 = vunpack.c.l.b16 %v140
    %v281 = vunpack.c.l.b16 %v141
    %v282 = vunpack.c.l.b16 %v142
    %v283 = vunpack.c.l.b16 %v143
    %v284 = vunpack.c.l.b16 %v144
    %v285 = vunpack.c.l.b16 %v145
    %v286 = vunpack.c.l.b16 %v146
    %v287 = vunpack.c.l.b16 %v147
    %v288 = vunpack.c.l.b16 %v148
    %v289 = vunpack.c.l.b16 %v149
    %v290 = vunpack.c.l.b16 %v150
    %v291 = vunpack.c.l.b16 %v151
    %v292 = vunpack.c.l.b16 %v152
    %v293 = vunpack.c.l.b16 %v153
    %v294 = vunpack.c.l.b16 %v154
    %v295 = vunpack.c.l.b16 %v155
    %v296 = vunpack.c.l.b16 %v156
    %v297 = vunpack.c.l.b16 %v157
    %v298 = vunpack.c.l.b16 %v158
    %v299 = vunpack.c.l.b16 %v159
    %v300 = vunpack.c.l.b16 %v160
    %v301 = vunpack.c.l.b16 %v161
    %v302 = vunpack.c.l.b16 %v162
    %v303 = vunpack.c.l.b16 %v163
    %v304 = vunpack.c.l.b16 %v164
    %v305 = vunpack.c.l.b16 %v165
    %v306 = vunpack.c.l.b16 %v166
    %v307 = vunpack.c.l.b16 %v167
    %v308 = vunpack.c.l.b16 %v168
    %v309 = vunpack.c.l.b16 %v169
    %v310 = vpack.c.b16 %v247, %v246
    %v311 = vpack.c.b16 %v249, %v248
    %v312 = vpack.c.b16 %v251, %v250
    %v313 = vpack.c.b16 %v253, %v252
    %v314 = vpack.c.b16 %v255, %v254
    %v315 = vpack.c.b16 %v257, %v256
    %v316 = vpack.c.b16 %v259, %v258
    %v317 = vpack.c.b16 %v261, %v260
    %v318 = vpack.c.b16 %v263, %v262
    %v319 = vpack.c.b16 %v265, %v264
    %v320 = vpack.c.b16 %v267, %v266
    %v321 = vpack.c.b16 %v269, %v268
    %v322 = vpack.c.b16 %v271, %v270
    %v323 = vpack.c.b16 %v273, %v272
    %v324 = vpack.c.b16 %v275, %v274
    %v325 = vpack.c.b16 %v277, %v276
    %v326 = vpack.c.b16 %v279, %v278
    %v327 = vpack.c.b16 %v281, %v280
    %v328 = vpack.c.b16 %v283, %v282
    %v329 = vpack.c.b16 %v285, %v284
    %v330 = vpack.c.b16 %v287, %v286
    %v331 = vpack.c.b16 %v289, %v288
    %v332 = vpack.c.b16 %v291, %v290
    %v333 = vpack.c.b16 %v293, %v292
    %v334 = vpack.c.b16 %v295, %v294
    %v335 = vpack.c.b16 %v297, %v296
    %v336 = vpack.c.b16 %v299, %v298
    %v337 = vpack.c.b16 %v301, %v300
    %v338 = vpack.c.b16 %v303, %v302
    %v339 = vpack.c.b16 %v305, %v304
    %v340 = vpack.c.b16 %v307, %v306
    %v341 = vpack.c.b16 %v309, %v308
    %v347 = vunpack.c.l.b16 %v170
    %v348 = vunpack.c.l.b16 %v171
    %v349 = vunpack.c.l.b16 %v172
    %v350 = vunpack.c.l.b16 %v173
    %v351 = vunpack.c.l.b16 %v174
    %v352 = vpack.c.b16 %v348, %v347
    %v353 = vpack.c.b16 %v350, %v349
    %v354 = vpack.c.b16 %v351, %v351
    %vm357 = vcmask 293888
    %v359 = vsel %vm357, %v310, 0
    %v362 = vsel %vm357, %v311, 0
    %v365 = vsel %vm357, %v312, 0
    %v368 = vsel %vm357, %v313, 0
    %v371 = vsel %vm357, %v314, 0
    %v374 = vsel %vm357, %v315, 0
    %v377 = vsel %vm357, %v316, 0
    %v380 = vsel %vm357, %v317, 0
    %v383 = vsel %vm357, %v318, 0
    %v386 = vsel %vm357, %v319, 0
    %v389 = vsel %vm357, %v320, 0
    %v392 = vsel %vm357, %v321, 0
    %v395 = vsel %vm357, %v322, 0
    %v398 = vsel %vm357, %v323, 0
    %v401 = vsel %vm357, %v324, 0
    %v404 = vsel %vm357, %v325, 0
    %v407 = vsel %vm357, %v326, 0
    %v410 = vsel %vm357, %v327, 0
    %v413 = vsel %vm357, %v328, 0
    %v416 = vsel %vm357, %v329, 0
    %v419 = vsel %vm357, %v330, 0
    %v422 = vsel %vm357, %v331, 0
    %v425 = vsel %vm357, %v332, 0
    %v428 = vsel %vm357, %v333, 0
    %v431 = vsel %vm357, %v334, 0
    %v434 = vsel %vm357, %v335, 0
    %v437 = vsel %vm357, %v336, 0
    %v440 = vsel %vm357, %v337, 0
    %v443 = vsel %vm357, %v338, 0
    %v446 = vsel %vm357, %v339, 0
    %v449 = vsel %vm357, %v340, 0
    %v452 = vsel %vm357, %v341, 0
    %vm454 = vcmask 1041408
    %v456 = vsel %vm454, %v354, 0
    %458 = vmatprep.subr.bf16.mxu0 0
    %459 = vmatpush1.bf16.msra.mxu0 0
    %460 = vmatprep.subr.bf16.mxu0 0
    %461 = vmatpush1.bf16.msra.mxu0 0
    %462 = vmatprep.subr.bf16.mxu0 0
    %463 = vmatpush1.bf16.msra.mxu0 0
    %464 = vmatprep.subr.bf16.mxu0 0
    %465 = vmatpush1.bf16.msra.mxu0 0
    %466 = vmatprep.subr.bf16.mxu0 0
    %467 = vmatpush1.bf16.msra.mxu0 0
    %468 = vmatprep.subr.bf16.mxu0 0
    %469 = vmatpush1.bf16.msra.mxu0 %v456
    %470 = vmatprep.subr.bf16.mxu0 0
    %471 = vmatpush1.bf16.msra.mxu0 %v353
    %472 = vmatprep.subr.bf16.mxu0 0
    %473 = vmatpush1.bf16.msra.mxu0 %v352
    %474 = vmatprep.subr.bf16.mxu0 0
    %475 = vmatpush2.bf16.msra.mxu0 0
    %476 = vmatprep.subr.bf16.mxu0 0
    %477 = vmatpush2.bf16.msra.mxu0 0
    %478 = vmatprep.subr.bf16.mxu0 0
    %479 = vmatpush2.bf16.msra.mxu0 0
    %480 = vmatprep.subr.bf16.mxu0 0
    %481 = vmatpush2.bf16.msra.mxu0 0
    %482 = vmatprep.subr.bf16.mxu0 0
    %483 = vmatpush2.bf16.msra.mxu0 0
    %484 = vmatprep.subr.bf16.mxu0 0
    %485 = vmatpush2.bf16.msra.mxu0 0
    %486 = vmatprep.subr.bf16.mxu0 0
    %487 = vmatpush2.bf16.msra.mxu0 0
    %488 = vmatprep.subr.bf16.mxu0 0
    %489 = vmatpush2.bf16.msra.mxu0 0
    %490 = vmatprep.mubr.bf16.mxu0 0
    %491 = vmatmul.mubr.bf16.gmra.mxu0 %v359
    %v492 = vpop.f32.mrf.mxu0
    %v493 = vadd.f32 %v180, %v492
    %v494 = vpop.f32.mrf.mxu0
    %v495 = vpop.f32.mrf.mxu0
    %v496 = vadd.f32 %v180, %v495
    %v497 = vpop.f32.mrf.mxu0
    %498 = vmatprep.mubr.bf16.mxu0 0
    %499 = vmatmul.mubr.bf16.gmra.mxu0 %v362
    %v500 = vpop.f32.mrf.mxu0
    %v501 = vadd.f32 %v180, %v500
    %v502 = vpop.f32.mrf.mxu0
    %v503 = vpop.f32.mrf.mxu0
    %v504 = vadd.f32 %v180, %v503
    %v505 = vpop.f32.mrf.mxu0
    %506 = vmatprep.mubr.bf16.mxu0 0
    %507 = vmatmul.mubr.bf16.gmra.mxu0 %v365
    %v508 = vpop.f32.mrf.mxu0
    %v509 = vadd.f32 %v180, %v508
    %v510 = vpop.f32.mrf.mxu0
    %v511 = vpop.f32.mrf.mxu0
    %v512 = vadd.f32 %v180, %v511
    %v513 = vpop.f32.mrf.mxu0
    %514 = vmatprep.mubr.bf16.mxu0 0
    %515 = vmatmul.mubr.bf16.gmra.mxu0 %v368
    %v516 = vpop.f32.mrf.mxu0
    %v517 = vadd.f32 %v180, %v516
    %v518 = vpop.f32.mrf.mxu0
    %v519 = vpop.f32.mrf.mxu0
    %v520 = vadd.f32 %v180, %v519
    %v521 = vpop.f32.mrf.mxu0
    %522 = vmatprep.mubr.bf16.mxu0 0
    %523 = vmatmul.mubr.bf16.gmra.mxu0 %v371
    %v524 = vpop.f32.mrf.mxu0
    %v525 = vadd.f32 %v180, %v524
    %v526 = vpop.f32.mrf.mxu0
    %v527 = vpop.f32.mrf.mxu0
    %v528 = vadd.f32 %v180, %v527
    %v529 = vpop.f32.mrf.mxu0
    %530 = vmatprep.mubr.bf16.mxu0 0
    %531 = vmatmul.mubr.bf16.gmra.mxu0 %v374
    %v532 = vpop.f32.mrf.mxu0
    %v533 = vadd.f32 %v180, %v532
    %v534 = vpop.f32.mrf.mxu0
    %v535 = vpop.f32.mrf.mxu0
    %v536 = vadd.f32 %v180, %v535
    %v537 = vpop.f32.mrf.mxu0
    %538 = vmatprep.mubr.bf16.mxu0 0
    %539 = vmatmul.mubr.bf16.gmra.mxu0 %v377
    %v540 = vpop.f32.mrf.mxu0
    %v541 = vadd.f32 %v180, %v540
    %v542 = vpop.f32.mrf.mxu0
    %v543 = vpop.f32.mrf.mxu0
    %v544 = vadd.f32 %v180, %v543
    %v545 = vpop.f32.mrf.mxu0
    %546 = vmatprep.mubr.bf16.mxu0 0
    %547 = vmatmul.mubr.bf16.gmra.mxu0 %v380
    %v548 = vpop.f32.mrf.mxu0
    %v549 = vadd.f32 %v180, %v548
    %v550 = vpop.f32.mrf.mxu0
    %v551 = vpop.f32.mrf.mxu0
    %v552 = vadd.f32 %v180, %v551
    %v553 = vpop.f32.mrf.mxu0
    %554 = vmatprep.mubr.bf16.mxu0 0
    %555 = vmatmul.mubr.bf16.gmra.mxu0 %v383
    %v556 = vpop.f32.mrf.mxu0
    %v557 = vadd.f32 %v180, %v556
    %v558 = vpop.f32.mrf.mxu0
    %v559 = vpop.f32.mrf.mxu0
    %v560 = vadd.f32 %v180, %v559
    %v561 = vpop.f32.mrf.mxu0
    %562 = vmatprep.mubr.bf16.mxu0 0
    %563 = vmatmul.mubr.bf16.gmra.mxu0 %v386
    %v564 = vpop.f32.mrf.mxu0
    %v565 = vadd.f32 %v180, %v564
    %v566 = vpop.f32.mrf.mxu0
    %v567 = vpop.f32.mrf.mxu0
    %v568 = vadd.f32 %v180, %v567
    %v569 = vpop.f32.mrf.mxu0
    %570 = vmatprep.mubr.bf16.mxu0 0
    %571 = vmatmul.mubr.bf16.gmra.mxu0 %v389
    %v572 = vpop.f32.mrf.mxu0
    %v573 = vadd.f32 %v180, %v572
    %v574 = vpop.f32.mrf.mxu0
    %v575 = vpop.f32.mrf.mxu0
    %v576 = vadd.f32 %v180, %v575
    %v577 = vpop.f32.mrf.mxu0
    %578 = vmatprep.mubr.bf16.mxu0 0
    %579 = vmatmul.mubr.bf16.gmra.mxu0 %v392
    %v580 = vpop.f32.mrf.mxu0
    %v581 = vadd.f32 %v180, %v580
    %v582 = vpop.f32.mrf.mxu0
    %v583 = vpop.f32.mrf.mxu0
    %v584 = vadd.f32 %v180, %v583
    %v585 = vpop.f32.mrf.mxu0
    %586 = vmatprep.mubr.bf16.mxu0 0
    %587 = vmatmul.mubr.bf16.gmra.mxu0 %v395
    %v588 = vpop.f32.mrf.mxu0
    %v589 = vadd.f32 %v180, %v588
    %v590 = vpop.f32.mrf.mxu0
    %v591 = vpop.f32.mrf.mxu0
    %v592 = vadd.f32 %v180, %v591
    %v593 = vpop.f32.mrf.mxu0
    %594 = vmatprep.mubr.bf16.mxu0 0
    %595 = vmatmul.mubr.bf16.gmra.mxu0 %v398
    %v596 = vpop.f32.mrf.mxu0
    %v597 = vadd.f32 %v180, %v596
    %v598 = vpop.f32.mrf.mxu0
    %v599 = vpop.f32.mrf.mxu0
    %v600 = vadd.f32 %v180, %v599
    %v601 = vpop.f32.mrf.mxu0
    %602 = vmatprep.mubr.bf16.mxu0 0
    %603 = vmatmul.mubr.bf16.gmra.mxu0 %v401
    %v604 = vpop.f32.mrf.mxu0
    %v605 = vadd.f32 %v180, %v604
    %v606 = vpop.f32.mrf.mxu0
    %v607 = vpop.f32.mrf.mxu0
    %v608 = vadd.f32 %v180, %v607
    %v609 = vpop.f32.mrf.mxu0
    %610 = vmatprep.mubr.bf16.mxu0 0
    %611 = vmatmul.mubr.bf16.gmra.mxu0 %v404
    %v612 = vpop.f32.mrf.mxu0
    %v613 = vadd.f32 %v180, %v612
    %v614 = vpop.f32.mrf.mxu0
    %v615 = vpop.f32.mrf.mxu0
    %v616 = vadd.f32 %v180, %v615
    %v617 = vpop.f32.mrf.mxu0
    %618 = vmatprep.mubr.bf16.mxu0 0
    %619 = vmatmul.mubr.bf16.gmra.mxu0 %v407
    %v620 = vpop.f32.mrf.mxu0
    %v621 = vadd.f32 %v180, %v620
    %v622 = vpop.f32.mrf.mxu0
    %v623 = vpop.f32.mrf.mxu0
    %v624 = vadd.f32 %v180, %v623
    %v625 = vpop.f32.mrf.mxu0
    %626 = vmatprep.mubr.bf16.mxu0 0
    %627 = vmatmul.mubr.bf16.gmra.mxu0 %v410
    %v628 = vpop.f32.mrf.mxu0
    %v629 = vadd.f32 %v180, %v628
    %v630 = vpop.f32.mrf.mxu0
    %v631 = vpop.f32.mrf.mxu0
    %v632 = vadd.f32 %v180, %v631
    %v633 = vpop.f32.mrf.mxu0
    %634 = vmatprep.mubr.bf16.mxu0 0
    %635 = vmatmul.mubr.bf16.gmra.mxu0 %v413
    %v636 = vpop.f32.mrf.mxu0
    %v637 = vadd.f32 %v180, %v636
    %v638 = vpop.f32.mrf.mxu0
    %v639 = vpop.f32.mrf.mxu0
    %v640 = vadd.f32 %v180, %v639
    %v641 = vpop.f32.mrf.mxu0
    %642 = vmatprep.mubr.bf16.mxu0 0
    %643 = vmatmul.mubr.bf16.gmra.mxu0 %v416
    %v644 = vpop.f32.mrf.mxu0
    %v645 = vadd.f32 %v180, %v644
    %v646 = vpop.f32.mrf.mxu0
    %v647 = vpop.f32.mrf.mxu0
    %v648 = vadd.f32 %v180, %v647
    %v649 = vpop.f32.mrf.mxu0
    %650 = vmatprep.mubr.bf16.mxu0 0
    %651 = vmatmul.mubr.bf16.gmra.mxu0 %v419
    %v652 = vpop.f32.mrf.mxu0
    %v653 = vadd.f32 %v180, %v652
    %v654 = vpop.f32.mrf.mxu0
    %v655 = vpop.f32.mrf.mxu0
    %v656 = vadd.f32 %v180, %v655
    %v657 = vpop.f32.mrf.mxu0
    %658 = vmatprep.mubr.bf16.mxu0 0
    %659 = vmatmul.mubr.bf16.gmra.mxu0 %v422
    %v660 = vpop.f32.mrf.mxu0
    %v661 = vadd.f32 %v180, %v660
    %v662 = vpop.f32.mrf.mxu0
    %v663 = vpop.f32.mrf.mxu0
    %v664 = vadd.f32 %v180, %v663
    %v665 = vpop.f32.mrf.mxu0
    %666 = vmatprep.mubr.bf16.mxu0 0
    %667 = vmatmul.mubr.bf16.gmra.mxu0 %v425
    %v668 = vpop.f32.mrf.mxu0
    %v669 = vadd.f32 %v180, %v668
    %v670 = vpop.f32.mrf.mxu0
    %v671 = vpop.f32.mrf.mxu0
    %v672 = vadd.f32 %v180, %v671
    %v673 = vpop.f32.mrf.mxu0
    %674 = vmatprep.mubr.bf16.mxu0 0
    %675 = vmatmul.mubr.bf16.gmra.mxu0 %v428
    %v676 = vpop.f32.mrf.mxu0
    %v677 = vadd.f32 %v180, %v676
    %v678 = vpop.f32.mrf.mxu0
    %v679 = vpop.f32.mrf.mxu0
    %v680 = vadd.f32 %v180, %v679
    %v681 = vpop.f32.mrf.mxu0
    %682 = vmatprep.mubr.bf16.mxu0 0
    %683 = vmatmul.mubr.bf16.gmra.mxu0 %v431
    %v684 = vpop.f32.mrf.mxu0
    %v685 = vadd.f32 %v180, %v684
    %v686 = vpop.f32.mrf.mxu0
    %v687 = vpop.f32.mrf.mxu0
    %v688 = vadd.f32 %v180, %v687
    %v689 = vpop.f32.mrf.mxu0
    %690 = vmatprep.mubr.bf16.mxu0 0
    %691 = vmatmul.mubr.bf16.gmra.mxu0 %v434
    %v692 = vpop.f32.mrf.mxu0
    %v693 = vadd.f32 %v180, %v692
    %v694 = vpop.f32.mrf.mxu0
    %v695 = vpop.f32.mrf.mxu0
    %v696 = vadd.f32 %v180, %v695
    %v697 = vpop.f32.mrf.mxu0
    %698 = vmatprep.mubr.bf16.mxu0 0
    %699 = vmatmul.mubr.bf16.gmra.mxu0 %v437
    %v700 = vpop.f32.mrf.mxu0
    %v701 = vadd.f32 %v180, %v700
    %v702 = vpop.f32.mrf.mxu0
    %v703 = vpop.f32.mrf.mxu0
    %v704 = vadd.f32 %v180, %v703
    %v705 = vpop.f32.mrf.mxu0
    %706 = vmatprep.mubr.bf16.mxu0 0
    %707 = vmatmul.mubr.bf16.gmra.mxu0 %v440
    %v708 = vpop.f32.mrf.mxu0
    %v709 = vadd.f32 %v180, %v708
    %v710 = vpop.f32.mrf.mxu0
    %v711 = vpop.f32.mrf.mxu0
    %v712 = vadd.f32 %v180, %v711
    %v713 = vpop.f32.mrf.mxu0
    %714 = vmatprep.mubr.bf16.mxu0 0
    %715 = vmatmul.mubr.bf16.gmra.mxu0 %v443
    %v716 = vpop.f32.mrf.mxu0
    %v717 = vadd.f32 %v180, %v716
    %v718 = vpop.f32.mrf.mxu0
    %v719 = vpop.f32.mrf.mxu0
    %v720 = vadd.f32 %v180, %v719
    %v721 = vpop.f32.mrf.mxu0
    %722 = vmatprep.mubr.bf16.mxu0 0
    %723 = vmatmul.mubr.bf16.gmra.mxu0 %v446
    %v724 = vpop.f32.mrf.mxu0
    %v725 = vadd.f32 %v180, %v724
    %v726 = vpop.f32.mrf.mxu0
    %v727 = vpop.f32.mrf.mxu0
    %v728 = vadd.f32 %v180, %v727
    %v729 = vpop.f32.mrf.mxu0
    %730 = vmatprep.mubr.bf16.mxu0 0
    %731 = vmatmul.mubr.bf16.gmra.mxu0 %v449
    %v732 = vpop.f32.mrf.mxu0
    %v733 = vadd.f32 %v180, %v732
    %v734 = vpop.f32.mrf.mxu0
    %v735 = vpop.f32.mrf.mxu0
    %v736 = vadd.f32 %v180, %v735
    %v737 = vpop.f32.mrf.mxu0
    %738 = vmatprep.mubr.bf16.mxu0 0
    %739 = vmatmul.mubr.bf16.gmra.mxu0 %v452
    %v740 = vpop.f32.mrf.mxu0
    %v741 = vadd.f32 %v180, %v740
    %v742 = vpop.f32.mrf.mxu0
    %v743 = vpop.f32.mrf.mxu0
    %v744 = vadd.f32 %v180, %v743
    %v745 = vpop.f32.mrf.mxu0
    %746 = vdwg.mxu0
    %vm747 = vcmp.gt.f32.partialorder %v493, 0.0
    %vm748 = vcmp.gt.f32.partialorder %v496, 0.0
    %vm749 = vcmp.gt.f32.partialorder %v501, 0.0
    %vm750 = vcmp.gt.f32.partialorder %v504, 0.0
    %vm751 = vcmp.gt.f32.partialorder %v509, 0.0
    %vm752 = vcmp.gt.f32.partialorder %v512, 0.0
    %vm753 = vcmp.gt.f32.partialorder %v517, 0.0
    %vm754 = vcmp.gt.f32.partialorder %v520, 0.0
    %vm755 = vcmp.gt.f32.partialorder %v525, 0.0
    %vm756 = vcmp.gt.f32.partialorder %v528, 0.0
    %vm757 = vcmp.gt.f32.partialorder %v533, 0.0
    %vm758 = vcmp.gt.f32.partialorder %v536, 0.0
    %vm759 = vcmp.gt.f32.partialorder %v541, 0.0
    %vm760 = vcmp.gt.f32.partialorder %v544, 0.0
    %vm761 = vcmp.gt.f32.partialorder %v549, 0.0
    %vm762 = vcmp.gt.f32.partialorder %v552, 0.0
    %vm763 = vcmp.gt.f32.partialorder %v557, 0.0
    %vm764 = vcmp.gt.f32.partialorder %v560, 0.0
    %vm765 = vcmp.gt.f32.partialorder %v565, 0.0
    %vm766 = vcmp.gt.f32.partialorder %v568, 0.0
    %vm767 = vcmp.gt.f32.partialorder %v573, 0.0
    %vm768 = vcmp.gt.f32.partialorder %v576, 0.0
    %vm769 = vcmp.gt.f32.partialorder %v581, 0.0
    %vm770 = vcmp.gt.f32.partialorder %v584, 0.0
    %vm771 = vcmp.gt.f32.partialorder %v589, 0.0
    %vm772 = vcmp.gt.f32.partialorder %v592, 0.0
    %vm773 = vcmp.gt.f32.partialorder %v597, 0.0
    %vm774 = vcmp.gt.f32.partialorder %v600, 0.0
    %vm775 = vcmp.gt.f32.partialorder %v605, 0.0
    %vm776 = vcmp.gt.f32.partialorder %v608, 0.0
    %vm777 = vcmp.gt.f32.partialorder %v613, 0.0
    %vm778 = vcmp.gt.f32.partialorder %v616, 0.0
    %vm779 = vcmp.gt.f32.partialorder %v621, 0.0
    %vm780 = vcmp.gt.f32.partialorder %v624, 0.0
    %vm781 = vcmp.gt.f32.partialorder %v629, 0.0
    %vm782 = vcmp.gt.f32.partialorder %v632, 0.0
    %vm783 = vcmp.gt.f32.partialorder %v637, 0.0
    %vm784 = vcmp.gt.f32.partialorder %v640, 0.0
    %vm785 = vcmp.gt.f32.partialorder %v645, 0.0
    %vm786 = vcmp.gt.f32.partialorder %v648, 0.0
    %vm787 = vcmp.gt.f32.partialorder %v653, 0.0
    %vm788 = vcmp.gt.f32.partialorder %v656, 0.0
    %vm789 = vcmp.gt.f32.partialorder %v661, 0.0
    %vm790 = vcmp.gt.f32.partialorder %v664, 0.0
    %vm791 = vcmp.gt.f32.partialorder %v669, 0.0
    %vm792 = vcmp.gt.f32.partialorder %v672, 0.0
    %vm793 = vcmp.gt.f32.partialorder %v677, 0.0
    %vm794 = vcmp.gt.f32.partialorder %v680, 0.0
    %vm795 = vcmp.gt.f32.partialorder %v685, 0.0
    %vm796 = vcmp.gt.f32.partialorder %v688, 0.0
    %vm797 = vcmp.gt.f32.partialorder %v693, 0.0
    %vm798 = vcmp.gt.f32.partialorder %v696, 0.0
    %vm799 = vcmp.gt.f32.partialorder %v701, 0.0
    %vm800 = vcmp.gt.f32.partialorder %v704, 0.0
    %vm801 = vcmp.gt.f32.partialorder %v709, 0.0
    %vm802 = vcmp.gt.f32.partialorder %v712, 0.0
    %vm803 = vcmp.gt.f32.partialorder %v717, 0.0
    %vm804 = vcmp.gt.f32.partialorder %v720, 0.0
    %vm805 = vcmp.gt.f32.partialorder %v725, 0.0
    %vm806 = vcmp.gt.f32.partialorder %v728, 0.0
    %vm807 = vcmp.gt.f32.partialorder %v733, 0.0
    %vm808 = vcmp.gt.f32.partialorder %v736, 0.0
    %vm809 = vcmp.gt.f32.partialorder %v741, 0.0
    %vm810 = vcmp.gt.f32.partialorder %v744, 0.0
    %v811 = vmul.f32 %v493, 1.442695
    %v812 = vpow.pop %v811
    %v813 = vmul.f32 %v496, 1.442695
    %v814 = vpow.pop %v813
    %v815 = vmul.f32 %v501, 1.442695
    %v816 = vpow.pop %v815
    %v817 = vmul.f32 %v504, 1.442695
    %v818 = vpow.pop %v817
    %v819 = vmul.f32 %v509, 1.442695
    %v820 = vpow.pop %v819
    %v821 = vmul.f32 %v512, 1.442695
    %v822 = vpow.pop %v821
    %v823 = vmul.f32 %v517, 1.442695
    %v824 = vpow.pop %v823
    %v825 = vmul.f32 %v520, 1.442695
    %v826 = vpow.pop %v825
    %v827 = vmul.f32 %v525, 1.442695
    %v828 = vpow.pop %v827
    %v829 = vmul.f32 %v528, 1.442695
    %v830 = vpow.pop %v829
    %v831 = vmul.f32 %v533, 1.442695
    %v832 = vpow.pop %v831
    %v833 = vmul.f32 %v536, 1.442695
    %v834 = vpow.pop %v833
    %v835 = vmul.f32 %v541, 1.442695
    %v836 = vpow.pop %v835
    %v837 = vmul.f32 %v544, 1.442695
    %v838 = vpow.pop %v837
    %v839 = vmul.f32 %v549, 1.442695
    %v840 = vpow.pop %v839
    %v841 = vmul.f32 %v552, 1.442695
    %v842 = vpow.pop %v841
    %v843 = vmul.f32 %v557, 1.442695
    %v844 = vpow.pop %v843
    %v845 = vmul.f32 %v560, 1.442695
    %v846 = vpow.pop %v845
    %v847 = vmul.f32 %v565, 1.442695
    %v848 = vpow.pop %v847
    %v849 = vmul.f32 %v568, 1.442695
    %v850 = vpow.pop %v849
    %v851 = vmul.f32 %v573, 1.442695
    %v852 = vpow.pop %v851
    %v853 = vmul.f32 %v576, 1.442695
    %v854 = vpow.pop %v853
    %v855 = vmul.f32 %v581, 1.442695
    %v856 = vpow.pop %v855
    %v857 = vmul.f32 %v584, 1.442695
    %v858 = vpow.pop %v857
    %v859 = vmul.f32 %v589, 1.442695
    %v860 = vpow.pop %v859
    %v861 = vmul.f32 %v592, 1.442695
    %v862 = vpow.pop %v861
    %v863 = vmul.f32 %v597, 1.442695
    %v864 = vpow.pop %v863
    %v865 = vmul.f32 %v600, 1.442695
    %v866 = vpow.pop %v865
    %v867 = vmul.f32 %v605, 1.442695
    %v868 = vpow.pop %v867
    %v869 = vmul.f32 %v608, 1.442695
    %v870 = vpow.pop %v869
    %v871 = vmul.f32 %v613, 1.442695
    %v872 = vpow.pop %v871
    %v873 = vmul.f32 %v616, 1.442695
    %v874 = vpow.pop %v873
    %v875 = vmul.f32 %v621, 1.442695
    %v876 = vpow.pop %v875
    %v877 = vmul.f32 %v624, 1.442695
    %v878 = vpow.pop %v877
    %v879 = vmul.f32 %v629, 1.442695
    %v880 = vpow.pop %v879
    %v881 = vmul.f32 %v632, 1.442695
    %v882 = vpow.pop %v881
    %v883 = vmul.f32 %v637, 1.442695
    %v884 = vpow.pop %v883
    %v885 = vmul.f32 %v640, 1.442695
    %v886 = vpow.pop %v885
    %v887 = vmul.f32 %v645, 1.442695
    %v888 = vpow.pop %v887
    %v889 = vmul.f32 %v648, 1.442695
    %v890 = vpow.pop %v889
    %v891 = vmul.f32 %v653, 1.442695
    %v892 = vpow.pop %v891
    %v893 = vmul.f32 %v656, 1.442695
    %v894 = vpow.pop %v893
    %v895 = vmul.f32 %v661, 1.442695
    %v896 = vpow.pop %v895
    %v897 = vmul.f32 %v664, 1.442695
    %v898 = vpow.pop %v897
    %v899 = vmul.f32 %v669, 1.442695
    %v900 = vpow.pop %v899
    %v901 = vmul.f32 %v672, 1.442695
    %v902 = vpow.pop %v901
    %v903 = vmul.f32 %v677, 1.442695
    %v904 = vpow.pop %v903
    %v905 = vmul.f32 %v680, 1.442695
    %v906 = vpow.pop %v905
    %v907 = vmul.f32 %v685, 1.442695
    %v908 = vpow.pop %v907
    %v909 = vmul.f32 %v688, 1.442695
    %v910 = vpow.pop %v909
    %v911 = vmul.f32 %v693, 1.442695
    %v912 = vpow.pop %v911
    %v913 = vmul.f32 %v696, 1.442695
    %v914 = vpow.pop %v913
    %v915 = vmul.f32 %v701, 1.442695
    %v916 = vpow.pop %v915
    %v917 = vmul.f32 %v704, 1.442695
    %v918 = vpow.pop %v917
    %v919 = vmul.f32 %v709, 1.442695
    %v920 = vpow.pop %v919
    %v921 = vmul.f32 %v712, 1.442695
    %v922 = vpow.pop %v921
    %v923 = vmul.f32 %v717, 1.442695
    %v924 = vpow.pop %v923
    %v925 = vmul.f32 %v720, 1.442695
    %v926 = vpow.pop %v925
    %v927 = vmul.f32 %v725, 1.442695
    %v928 = vpow.pop %v927
    %v929 = vmul.f32 %v728, 1.442695
    %v930 = vpow.pop %v929
    %v931 = vmul.f32 %v733, 1.442695
    %v932 = vpow.pop %v931
    %v933 = vmul.f32 %v736, 1.442695
    %v934 = vpow.pop %v933
    %v935 = vmul.f32 %v741, 1.442695
    %v936 = vpow.pop %v935
    %v937 = vmul.f32 %v744, 1.442695
    %v938 = vpow.pop %v937
    %v939 = vsub.f32 %v812, 1.0
    %v940 = vsub.f32 %v814, 1.0
    %v941 = vsub.f32 %v816, 1.0
    %v942 = vsub.f32 %v818, 1.0
    %v943 = vsub.f32 %v820, 1.0
    %v944 = vsub.f32 %v822, 1.0
    %v945 = vsub.f32 %v824, 1.0
    %v946 = vsub.f32 %v826, 1.0
    %v947 = vsub.f32 %v828, 1.0
    %v948 = vsub.f32 %v830, 1.0
    %v949 = vsub.f32 %v832, 1.0
    %v950 = vsub.f32 %v834, 1.0
    %v951 = vsub.f32 %v836, 1.0
    %v952 = vsub.f32 %v838, 1.0
    %v953 = vsub.f32 %v840, 1.0
    %v954 = vsub.f32 %v842, 1.0
    %v955 = vsub.f32 %v844, 1.0
    %v956 = vsub.f32 %v846, 1.0
    %v957 = vsub.f32 %v848, 1.0
    %v958 = vsub.f32 %v850, 1.0
    %v959 = vsub.f32 %v852, 1.0
    %v960 = vsub.f32 %v854, 1.0
    %v961 = vsub.f32 %v856, 1.0
    %v962 = vsub.f32 %v858, 1.0
    %v963 = vsub.f32 %v860, 1.0
    %v964 = vsub.f32 %v862, 1.0
    %v965 = vsub.f32 %v864, 1.0
    %v966 = vsub.f32 %v866, 1.0
    %v967 = vsub.f32 %v868, 1.0
    %v968 = vsub.f32 %v870, 1.0
    %v969 = vsub.f32 %v872, 1.0
    %v970 = vsub.f32 %v874, 1.0
    %v971 = vsub.f32 %v876, 1.0
    %v972 = vsub.f32 %v878, 1.0
    %v973 = vsub.f32 %v880, 1.0
    %v974 = vsub.f32 %v882, 1.0
    %v975 = vsub.f32 %v884, 1.0
    %v976 = vsub.f32 %v886, 1.0
    %v977 = vsub.f32 %v888, 1.0
    %v978 = vsub.f32 %v890, 1.0
    %v979 = vsub.f32 %v892, 1.0
    %v980 = vsub.f32 %v894, 1.0
    %v981 = vsub.f32 %v896, 1.0
    %v982 = vsub.f32 %v898, 1.0
    %v983 = vsub.f32 %v900, 1.0
    %v984 = vsub.f32 %v902, 1.0
    %v985 = vsub.f32 %v904, 1.0
    %v986 = vsub.f32 %v906, 1.0
    %v987 = vsub.f32 %v908, 1.0
    %v988 = vsub.f32 %v910, 1.0
    %v989 = vsub.f32 %v912, 1.0
    %v990 = vsub.f32 %v914, 1.0
    %v991 = vsub.f32 %v916, 1.0
    %v992 = vsub.f32 %v918, 1.0
    %v993 = vsub.f32 %v920, 1.0
    %v994 = vsub.f32 %v922, 1.0
    %v995 = vsub.f32 %v924, 1.0
    %v996 = vsub.f32 %v926, 1.0
    %v997 = vsub.f32 %v928, 1.0
    %v998 = vsub.f32 %v930, 1.0
    %v999 = vsub.f32 %v932, 1.0
    %v1000 = vsub.f32 %v934, 1.0
    %v1001 = vsub.f32 %v936, 1.0
    %v1002 = vsub.f32 %v938, 1.0
    %v1003 = vsel %vm747, %v493, %v939
    %v1004 = vsel %vm748, %v496, %v940
    %v1005 = vsel %vm749, %v501, %v941
    %v1006 = vsel %vm750, %v504, %v942
    %v1007 = vsel %vm751, %v509, %v943
    %v1008 = vsel %vm752, %v512, %v944
    %v1009 = vsel %vm753, %v517, %v945
    %v1010 = vsel %vm754, %v520, %v946
    %v1011 = vsel %vm755, %v525, %v947
    %v1012 = vsel %vm756, %v528, %v948
    %v1013 = vsel %vm757, %v533, %v949
    %v1014 = vsel %vm758, %v536, %v950
    %v1015 = vsel %vm759, %v541, %v951
    %v1016 = vsel %vm760, %v544, %v952
    %v1017 = vsel %vm761, %v549, %v953
    %v1018 = vsel %vm762, %v552, %v954
    %v1019 = vsel %vm763, %v557, %v955
    %v1020 = vsel %vm764, %v560, %v956
    %v1021 = vsel %vm765, %v565, %v957
    %v1022 = vsel %vm766, %v568, %v958
    %v1023 = vsel %vm767, %v573, %v959
    %v1024 = vsel %vm768, %v576, %v960
    %v1025 = vsel %vm769, %v581, %v961
    %v1026 = vsel %vm770, %v584, %v962
    %v1027 = vsel %vm771, %v589, %v963
    %v1028 = vsel %vm772, %v592, %v964
    %v1029 = vsel %vm773, %v597, %v965
    %v1030 = vsel %vm774, %v600, %v966
    %v1031 = vsel %vm775, %v605, %v967
    %v1032 = vsel %vm776, %v608, %v968
    %v1033 = vsel %vm777, %v613, %v969
    %v1034 = vsel %vm778, %v616, %v970
    %v1035 = vsel %vm779, %v621, %v971
    %v1036 = vsel %vm780, %v624, %v972
    %v1037 = vsel %vm781, %v629, %v973
    %v1038 = vsel %vm782, %v632, %v974
    %v1039 = vsel %vm783, %v637, %v975
    %v1040 = vsel %vm784, %v640, %v976
    %v1041 = vsel %vm785, %v645, %v977
    %v1042 = vsel %vm786, %v648, %v978
    %v1043 = vsel %vm787, %v653, %v979
    %v1044 = vsel %vm788, %v656, %v980
    %v1045 = vsel %vm789, %v661, %v981
    %v1046 = vsel %vm790, %v664, %v982
    %v1047 = vsel %vm791, %v669, %v983
    %v1048 = vsel %vm792, %v672, %v984
    %v1049 = vsel %vm793, %v677, %v985
    %v1050 = vsel %vm794, %v680, %v986
    %v1051 = vsel %vm795, %v685, %v987
    %v1052 = vsel %vm796, %v688, %v988
    %v1053 = vsel %vm797, %v693, %v989
    %v1054 = vsel %vm798, %v696, %v990
    %v1055 = vsel %vm799, %v701, %v991
    %v1056 = vsel %vm800, %v704, %v992
    %v1057 = vsel %vm801, %v709, %v993
    %v1058 = vsel %vm802, %v712, %v994
    %v1059 = vsel %vm803, %v717, %v995
    %v1060 = vsel %vm804, %v720, %v996
    %v1061 = vsel %vm805, %v725, %v997
    %v1062 = vsel %vm806, %v728, %v998
    %v1063 = vsel %vm807, %v733, %v999
    %v1064 = vsel %vm808, %v736, %v1000
    %v1065 = vsel %vm809, %v741, %v1001
    %v1066 = vsel %vm810, %v744, %v1002
    %1067 = vst.msk [vmem:[%s40 + $0x1] sm:$0xff] %vm25, %v1003
    %1068 = vst.msk [vmem:[%s40 + $0x9] sm:$0xff] %vm25, %v1004
    %1069 = vst.msk [vmem:[%s40 + $0x19] sm:$0xff] %vm25, %v1005
    %1070 = vst.msk [vmem:[%s40 + $0x21] sm:$0xff] %vm25, %v1006
    %1071 = vst.msk [vmem:[%s40 + $0x31] sm:$0xff] %vm25, %v1007
    %1072 = vst.msk [vmem:[%s40 + $0x39] sm:$0xff] %vm25, %v1008
    %1073 = vst.msk [vmem:[%s40 + $0x49] sm:$0xff] %vm25, %v1009
    %1074 = vst.msk [vmem:[%s40 + $0x51] sm:$0xff] %vm25, %v1010
    %1075 = vst.msk [vmem:[%s40 + $0x61] sm:$0xff] %vm25, %v1011
    %1076 = vst.msk [vmem:[%s40 + $0x69] sm:$0xff] %vm25, %v1012
    %1077 = vst.msk [vmem:[%s40 + $0x79] sm:$0xff] %vm25, %v1013
    %1078 = vst.msk [vmem:[%s40 + $0x81] sm:$0xff] %vm25, %v1014
    %1079 = vst.msk [vmem:[%s40 + $0x91] sm:$0xff] %vm25, %v1015
    %1080 = vst.msk [vmem:[%s40 + $0x99] sm:$0xff] %vm25, %v1016
    %1081 = vst.msk [vmem:[%s40 + $0xa9] sm:$0xff] %vm25, %v1017
    %1082 = vst.msk [vmem:[%s40 + $0xb1] sm:$0xff] %vm25, %v1018
    %1083 = vst.msk [vmem:[%s40 + $0xc1] sm:$0xff] %vm25, %v1019
    %1084 = vst.msk [vmem:[%s40 + $0xc9] sm:$0xff] %vm25, %v1020
    %1085 = vst.msk [vmem:[%s40 + $0xd9] sm:$0xff] %vm25, %v1021
    %1086 = vst.msk [vmem:[%s40 + $0xe1] sm:$0xff] %vm25, %v1022
    %1087 = vst.msk [vmem:[%s40 + $0xf1] sm:$0xff] %vm25, %v1023
    %1088 = vst.msk [vmem:[%s40 + $0xf9] sm:$0xff] %vm25, %v1024
    %1089 = vst.msk [vmem:[%s40 + $0x109] sm:$0xff] %vm25, %v1025
    %1090 = vst.msk [vmem:[%s40 + $0x111] sm:$0xff] %vm25, %v1026
    %1091 = vst.msk [vmem:[%s40 + $0x121] sm:$0xff] %vm25, %v1027
    %1092 = vst.msk [vmem:[%s40 + $0x129] sm:$0xff] %vm25, %v1028
    %1093 = vst.msk [vmem:[%s40 + $0x139] sm:$0xff] %vm25, %v1029
    %1094 = vst.msk [vmem:[%s40 + $0x141] sm:$0xff] %vm25, %v1030
    %1095 = vst.msk [vmem:[%s40 + $0x151] sm:$0xff] %vm25, %v1031
    %1096 = vst.msk [vmem:[%s40 + $0x159] sm:$0xff] %vm25, %v1032
    %1097 = vst.msk [vmem:[%s40 + $0x169] sm:$0xff] %vm25, %v1033
    %1098 = vst.msk [vmem:[%s40 + $0x171] sm:$0xff] %vm25, %v1034
    %1099 = vst.msk [vmem:[%s40 + $0x1b1] sm:$0xff] %vm25, %v1035
    %1100 = vst.msk [vmem:[%s40 + $0x1b9] sm:$0xff] %vm25, %v1036
    %1101 = vst.msk [vmem:[%s40 + $0x1c9] sm:$0xff] %vm25, %v1037
    %1102 = vst.msk [vmem:[%s40 + $0x1d1] sm:$0xff] %vm25, %v1038
    %1103 = vst.msk [vmem:[%s40 + $0x1e1] sm:$0xff] %vm25, %v1039
    %1104 = vst.msk [vmem:[%s40 + $0x1e9] sm:$0xff] %vm25, %v1040
    %1105 = vst.msk [vmem:[%s40 + $0x1f9] sm:$0xff] %vm25, %v1041
    %1106 = vst.msk [vmem:[%s40 + $0x201] sm:$0xff] %vm25, %v1042
    %1107 = vst.msk [vmem:[%s40 + $0x211] sm:$0xff] %vm25, %v1043
    %1108 = vst.msk [vmem:[%s40 + $0x219] sm:$0xff] %vm25, %v1044
    %1109 = vst.msk [vmem:[%s40 + $0x229] sm:$0xff] %vm25, %v1045
    %1110 = vst.msk [vmem:[%s40 + $0x231] sm:$0xff] %vm25, %v1046
    %1111 = vst.msk [vmem:[%s40 + $0x241] sm:$0xff] %vm25, %v1047
    %1112 = vst.msk [vmem:[%s40 + $0x249] sm:$0xff] %vm25, %v1048
    %1113 = vst.msk [vmem:[%s40 + $0x259] sm:$0xff] %vm25, %v1049
    %1114 = vst.msk [vmem:[%s40 + $0x261] sm:$0xff] %vm25, %v1050
    %1115 = vst.msk [vmem:[%s40 + $0x271] sm:$0xff] %vm25, %v1051
    %1116 = vst.msk [vmem:[%s40 + $0x279] sm:$0xff] %vm25, %v1052
    %1117 = vst.msk [vmem:[%s40 + $0x289] sm:$0xff] %vm25, %v1053
    %1118 = vst.msk [vmem:[%s40 + $0x291] sm:$0xff] %vm25, %v1054
    %1119 = vst.msk [vmem:[%s40 + $0x2a1] sm:$0xff] %vm25, %v1055
    %1120 = vst.msk [vmem:[%s40 + $0x2a9] sm:$0xff] %vm25, %v1056
    %1121 = vst.msk [vmem:[%s40 + $0x2b9] sm:$0xff] %vm25, %v1057
    %1122 = vst.msk [vmem:[%s40 + $0x2c1] sm:$0xff] %vm25, %v1058
    %1123 = vst.msk [vmem:[%s40 + $0x2d1] sm:$0xff] %vm25, %v1059
    %1124 = vst.msk [vmem:[%s40 + $0x2d9] sm:$0xff] %vm25, %v1060
    %1125 = vst.msk [vmem:[%s40 + $0x2e9] sm:$0xff] %vm25, %v1061
    %1126 = vst.msk [vmem:[%s40 + $0x2f1] sm:$0xff] %vm25, %v1062
    %1127 = vst.msk [vmem:[%s40 + $0x301] sm:$0xff] %vm25, %v1063
    %1128 = vst.msk [vmem:[%s40 + $0x309] sm:$0xff] %vm25, %v1064
    %1129 = vst.msk [vmem:[%s40 + $0x319] sm:$0xff] %vm25, %v1065
    %1130 = vst.msk [vmem:[%s40 + $0x321] sm:$0xff] %vm25, %v1066
    %v1131 = vld [vmem:[%s4] sm:$0xf]
    %v1132 = vld [vmem:[%s4 + $0x4] sm:$0xf]
    %v1133 = vld [vmem:[%s4 + $0x8] sm:$0xf]
    %v1134 = vld [vmem:[%s4 + $0xc] sm:$0xf]
    %v1135 = vld [vmem:[%s4 + $0x10] sm:$0x3]
    %v1136 = vld [vmem:[%s5] sm:$0x1]
    %v1138 = vlaneseq
    %v1139 = vshrl.u32 %v1138, 7
    %v1140 = vsub.s32 0, %v1139
    %v1141 = vrot.slane %v1136, %v1140
    %v1148 = vunpack.c.l.b16 %v1131
    %v1149 = vunpack.c.l.b16 %v1132
    %v1150 = vunpack.c.l.b16 %v1133
    %v1151 = vunpack.c.l.b16 %v1134
    %v1152 = vunpack.c.l.b16 %v1135
    %v1153 = vpack.c.b16 %v1149, %v1148
    %v1154 = vpack.c.b16 %v1151, %v1150
    %v1155 = vpack.c.b16 %v1152, %v1152
    %v1159 = vsel %vm454, %v1155, 0
    %1161 = vmatprep.subr.bf16.mxu0 0
    %1162 = vmatpush1.bf16.msra.mxu0 0
    %1163 = vmatprep.subr.bf16.mxu0 0
    %1164 = vmatpush1.bf16.msra.mxu0 0
    %1165 = vmatprep.subr.bf16.mxu0 0
    %1166 = vmatpush1.bf16.msra.mxu0 0
    %1167 = vmatprep.subr.bf16.mxu0 0
    %1168 = vmatpush1.bf16.msra.mxu0 0
    %1169 = vmatprep.subr.bf16.mxu0 0
    %1170 = vmatpush1.bf16.msra.mxu0 0
    %1171 = vmatprep.subr.bf16.mxu0 0
    %1172 = vmatpush1.bf16.msra.mxu0 %v1159
    %1173 = vmatprep.subr.bf16.mxu0 0
    %1174 = vmatpush1.bf16.msra.mxu0 %v1154
    %1175 = vmatprep.subr.bf16.mxu0 0
    %1176 = vmatpush1.bf16.msra.mxu0 %v1153
    %1177 = vmatprep.subr.bf16.mxu0 0
    %1178 = vmatpush2.bf16.msra.mxu0 0
    %1179 = vmatprep.subr.bf16.mxu0 0
    %1180 = vmatpush2.bf16.msra.mxu0 0
    %1181 = vmatprep.subr.bf16.mxu0 0
    %1182 = vmatpush2.bf16.msra.mxu0 0
    %1183 = vmatprep.subr.bf16.mxu0 0
    %1184 = vmatpush2.bf16.msra.mxu0 0
    %1185 = vmatprep.subr.bf16.mxu0 0
    %1186 = vmatpush2.bf16.msra.mxu0 0
    %1187 = vmatprep.subr.bf16.mxu0 0
    %1188 = vmatpush2.bf16.msra.mxu0 0
    %1189 = vmatprep.subr.bf16.mxu0 0
    %1190 = vmatpush2.bf16.msra.mxu0 0
    %1191 = vmatprep.subr.bf16.mxu0 0
    %1192 = vmatpush2.bf16.msra.mxu0 0
    %1193 = vmatprep.mubr.bf16.mxu0 0
    %1194 = vmatmul.mubr.bf16.gmra.mxu0 %v359
    %v1195 = vpop.f32.mrf.mxu0
    %v1196 = vadd.f32 %v1141, %v1195
    %v1197 = vpop.f32.mrf.mxu0
    %v1198 = vpop.f32.mrf.mxu0
    %v1199 = vadd.f32 %v1141, %v1198
    %v1200 = vpop.f32.mrf.mxu0
    %1201 = vmatprep.mubr.bf16.mxu0 0
    %1202 = vmatmul.mubr.bf16.gmra.mxu0 %v362
    %v1203 = vpop.f32.mrf.mxu0
    %v1204 = vadd.f32 %v1141, %v1203
    %v1205 = vpop.f32.mrf.mxu0
    %v1206 = vpop.f32.mrf.mxu0
    %v1207 = vadd.f32 %v1141, %v1206
    %v1208 = vpop.f32.mrf.mxu0
    %1209 = vmatprep.mubr.bf16.mxu0 0
    %1210 = vmatmul.mubr.bf16.gmra.mxu0 %v365
    %v1211 = vpop.f32.mrf.mxu0
    %v1212 = vadd.f32 %v1141, %v1211
    %v1213 = vpop.f32.mrf.mxu0
    %v1214 = vpop.f32.mrf.mxu0
    %v1215 = vadd.f32 %v1141, %v1214
    %v1216 = vpop.f32.mrf.mxu0
    %1217 = vmatprep.mubr.bf16.mxu0 0
    %1218 = vmatmul.mubr.bf16.gmra.mxu0 %v368
    %v1219 = vpop.f32.mrf.mxu0
    %v1220 = vadd.f32 %v1141, %v1219
    %v1221 = vpop.f32.mrf.mxu0
    %v1222 = vpop.f32.mrf.mxu0
    %v1223 = vadd.f32 %v1141, %v1222
    %v1224 = vpop.f32.mrf.mxu0
    %1225 = vmatprep.mubr.bf16.mxu0 0
    %1226 = vmatmul.mubr.bf16.gmra.mxu0 %v371
    %v1227 = vpop.f32.mrf.mxu0
    %v1228 = vadd.f32 %v1141, %v1227
    %v1229 = vpop.f32.mrf.mxu0
    %v1230 = vpop.f32.mrf.mxu0
    %v1231 = vadd.f32 %v1141, %v1230
    %v1232 = vpop.f32.mrf.mxu0
    %1233 = vmatprep.mubr.bf16.mxu0 0
    %1234 = vmatmul.mubr.bf16.gmra.mxu0 %v374
    %v1235 = vpop.f32.mrf.mxu0
    %v1236 = vadd.f32 %v1141, %v1235
    %v1237 = vpop.f32.mrf.mxu0
    %v1238 = vpop.f32.mrf.mxu0
    %v1239 = vadd.f32 %v1141, %v1238
    %v1240 = vpop.f32.mrf.mxu0
    %1241 = vmatprep.mubr.bf16.mxu0 0
    %1242 = vmatmul.mubr.bf16.gmra.mxu0 %v377
    %v1243 = vpop.f32.mrf.mxu0
    %v1244 = vadd.f32 %v1141, %v1243
    %v1245 = vpop.f32.mrf.mxu0
    %v1246 = vpop.f32.mrf.mxu0
    %v1247 = vadd.f32 %v1141, %v1246
    %v1248 = vpop.f32.mrf.mxu0
    %1249 = vmatprep.mubr.bf16.mxu0 0
    %1250 = vmatmul.mubr.bf16.gmra.mxu0 %v380
    %v1251 = vpop.f32.mrf.mxu0
    %v1252 = vadd.f32 %v1141, %v1251
    %v1253 = vpop.f32.mrf.mxu0
    %v1254 = vpop.f32.mrf.mxu0
    %v1255 = vadd.f32 %v1141, %v1254
    %v1256 = vpop.f32.mrf.mxu0
    %1257 = vmatprep.mubr.bf16.mxu0 0
    %1258 = vmatmul.mubr.bf16.gmra.mxu0 %v383
    %v1259 = vpop.f32.mrf.mxu0
    %v1260 = vadd.f32 %v1141, %v1259
    %v1261 = vpop.f32.mrf.mxu0
    %v1262 = vpop.f32.mrf.mxu0
    %v1263 = vadd.f32 %v1141, %v1262
    %v1264 = vpop.f32.mrf.mxu0
    %1265 = vmatprep.mubr.bf16.mxu0 0
    %1266 = vmatmul.mubr.bf16.gmra.mxu0 %v386
    %v1267 = vpop.f32.mrf.mxu0
    %v1268 = vadd.f32 %v1141, %v1267
    %v1269 = vpop.f32.mrf.mxu0
    %v1270 = vpop.f32.mrf.mxu0
    %v1271 = vadd.f32 %v1141, %v1270
    %v1272 = vpop.f32.mrf.mxu0
    %1273 = vmatprep.mubr.bf16.mxu0 0
    %1274 = vmatmul.mubr.bf16.gmra.mxu0 %v389
    %v1275 = vpop.f32.mrf.mxu0
    %v1276 = vadd.f32 %v1141, %v1275
    %v1277 = vpop.f32.mrf.mxu0
    %v1278 = vpop.f32.mrf.mxu0
    %v1279 = vadd.f32 %v1141, %v1278
    %v1280 = vpop.f32.mrf.mxu0
    %1281 = vmatprep.mubr.bf16.mxu0 0
    %1282 = vmatmul.mubr.bf16.gmra.mxu0 %v392
    %v1283 = vpop.f32.mrf.mxu0
    %v1284 = vadd.f32 %v1141, %v1283
    %v1285 = vpop.f32.mrf.mxu0
    %v1286 = vpop.f32.mrf.mxu0
    %v1287 = vadd.f32 %v1141, %v1286
    %v1288 = vpop.f32.mrf.mxu0
    %1289 = vmatprep.mubr.bf16.mxu0 0
    %1290 = vmatmul.mubr.bf16.gmra.mxu0 %v395
    %v1291 = vpop.f32.mrf.mxu0
    %v1292 = vadd.f32 %v1141, %v1291
    %v1293 = vpop.f32.mrf.mxu0
    %v1294 = vpop.f32.mrf.mxu0
    %v1295 = vadd.f32 %v1141, %v1294
    %v1296 = vpop.f32.mrf.mxu0
    %1297 = vmatprep.mubr.bf16.mxu0 0
    %1298 = vmatmul.mubr.bf16.gmra.mxu0 %v398
    %v1299 = vpop.f32.mrf.mxu0
    %v1300 = vadd.f32 %v1141, %v1299
    %v1301 = vpop.f32.mrf.mxu0
    %v1302 = vpop.f32.mrf.mxu0
    %v1303 = vadd.f32 %v1141, %v1302
    %v1304 = vpop.f32.mrf.mxu0
    %1305 = vmatprep.mubr.bf16.mxu0 0
    %1306 = vmatmul.mubr.bf16.gmra.mxu0 %v401
    %v1307 = vpop.f32.mrf.mxu0
    %v1308 = vadd.f32 %v1141, %v1307
    %v1309 = vpop.f32.mrf.mxu0
    %v1310 = vpop.f32.mrf.mxu0
    %v1311 = vadd.f32 %v1141, %v1310
    %v1312 = vpop.f32.mrf.mxu0
    %1313 = vmatprep.mubr.bf16.mxu0 0
    %1314 = vmatmul.mubr.bf16.gmra.mxu0 %v404
    %v1315 = vpop.f32.mrf.mxu0
    %v1316 = vadd.f32 %v1141, %v1315
    %v1317 = vpop.f32.mrf.mxu0
    %v1318 = vpop.f32.mrf.mxu0
    %v1319 = vadd.f32 %v1141, %v1318
    %v1320 = vpop.f32.mrf.mxu0
    %1321 = vmatprep.mubr.bf16.mxu0 0
    %1322 = vmatmul.mubr.bf16.gmra.mxu0 %v407
    %v1323 = vpop.f32.mrf.mxu0
    %v1324 = vadd.f32 %v1141, %v1323
    %v1325 = vpop.f32.mrf.mxu0
    %v1326 = vpop.f32.mrf.mxu0
    %v1327 = vadd.f32 %v1141, %v1326
    %v1328 = vpop.f32.mrf.mxu0
    %1329 = vmatprep.mubr.bf16.mxu0 0
    %1330 = vmatmul.mubr.bf16.gmra.mxu0 %v410
    %v1331 = vpop.f32.mrf.mxu0
    %v1332 = vadd.f32 %v1141, %v1331
    %v1333 = vpop.f32.mrf.mxu0
    %v1334 = vpop.f32.mrf.mxu0
    %v1335 = vadd.f32 %v1141, %v1334
    %v1336 = vpop.f32.mrf.mxu0
    %1337 = vmatprep.mubr.bf16.mxu0 0
    %1338 = vmatmul.mubr.bf16.gmra.mxu0 %v413
    %v1339 = vpop.f32.mrf.mxu0
    %v1340 = vadd.f32 %v1141, %v1339
    %v1341 = vpop.f32.mrf.mxu0
    %v1342 = vpop.f32.mrf.mxu0
    %v1343 = vadd.f32 %v1141, %v1342
    %v1344 = vpop.f32.mrf.mxu0
    %1345 = vmatprep.mubr.bf16.mxu0 0
    %1346 = vmatmul.mubr.bf16.gmra.mxu0 %v416
    %v1347 = vpop.f32.mrf.mxu0
    %v1348 = vadd.f32 %v1141, %v1347
    %v1349 = vpop.f32.mrf.mxu0
    %v1350 = vpop.f32.mrf.mxu0
    %v1351 = vadd.f32 %v1141, %v1350
    %v1352 = vpop.f32.mrf.mxu0
    %1353 = vmatprep.mubr.bf16.mxu0 0
    %1354 = vmatmul.mubr.bf16.gmra.mxu0 %v419
    %v1355 = vpop.f32.mrf.mxu0
    %v1356 = vadd.f32 %v1141, %v1355
    %v1357 = vpop.f32.mrf.mxu0
    %v1358 = vpop.f32.mrf.mxu0
    %v1359 = vadd.f32 %v1141, %v1358
    %v1360 = vpop.f32.mrf.mxu0
    %1361 = vmatprep.mubr.bf16.mxu0 0
    %1362 = vmatmul.mubr.bf16.gmra.mxu0 %v422
    %v1363 = vpop.f32.mrf.mxu0
    %v1364 = vadd.f32 %v1141, %v1363
    %v1365 = vpop.f32.mrf.mxu0
    %v1366 = vpop.f32.mrf.mxu0
    %v1367 = vadd.f32 %v1141, %v1366
    %v1368 = vpop.f32.mrf.mxu0
    %1369 = vmatprep.mubr.bf16.mxu0 0
    %1370 = vmatmul.mubr.bf16.gmra.mxu0 %v425
    %v1371 = vpop.f32.mrf.mxu0
    %v1372 = vadd.f32 %v1141, %v1371
    %v1373 = vpop.f32.mrf.mxu0
    %v1374 = vpop.f32.mrf.mxu0
    %v1375 = vadd.f32 %v1141, %v1374
    %v1376 = vpop.f32.mrf.mxu0
    %1377 = vmatprep.mubr.bf16.mxu0 0
    %1378 = vmatmul.mubr.bf16.gmra.mxu0 %v428
    %v1379 = vpop.f32.mrf.mxu0
    %v1380 = vadd.f32 %v1141, %v1379
    %v1381 = vpop.f32.mrf.mxu0
    %v1382 = vpop.f32.mrf.mxu0
    %v1383 = vadd.f32 %v1141, %v1382
    %v1384 = vpop.f32.mrf.mxu0
    %1385 = vmatprep.mubr.bf16.mxu0 0
    %1386 = vmatmul.mubr.bf16.gmra.mxu0 %v431
    %v1387 = vpop.f32.mrf.mxu0
    %v1388 = vadd.f32 %v1141, %v1387
    %v1389 = vpop.f32.mrf.mxu0
    %v1390 = vpop.f32.mrf.mxu0
    %v1391 = vadd.f32 %v1141, %v1390
    %v1392 = vpop.f32.mrf.mxu0
    %1393 = vmatprep.mubr.bf16.mxu0 0
    %1394 = vmatmul.mubr.bf16.gmra.mxu0 %v434
    %v1395 = vpop.f32.mrf.mxu0
    %v1396 = vadd.f32 %v1141, %v1395
    %v1397 = vpop.f32.mrf.mxu0
    %v1398 = vpop.f32.mrf.mxu0
    %v1399 = vadd.f32 %v1141, %v1398
    %v1400 = vpop.f32.mrf.mxu0
    %1401 = vmatprep.mubr.bf16.mxu0 0
    %1402 = vmatmul.mubr.bf16.gmra.mxu0 %v437
    %v1403 = vpop.f32.mrf.mxu0
    %v1404 = vadd.f32 %v1141, %v1403
    %v1405 = vpop.f32.mrf.mxu0
    %v1406 = vpop.f32.mrf.mxu0
    %v1407 = vadd.f32 %v1141, %v1406
    %v1408 = vpop.f32.mrf.mxu0
    %1409 = vmatprep.mubr.bf16.mxu0 0
    %1410 = vmatmul.mubr.bf16.gmra.mxu0 %v440
    %v1411 = vpop.f32.mrf.mxu0
    %v1412 = vadd.f32 %v1141, %v1411
    %v1413 = vpop.f32.mrf.mxu0
    %v1414 = vpop.f32.mrf.mxu0
    %v1415 = vadd.f32 %v1141, %v1414
    %v1416 = vpop.f32.mrf.mxu0
    %1417 = vmatprep.mubr.bf16.mxu0 0
    %1418 = vmatmul.mubr.bf16.gmra.mxu0 %v443
    %v1419 = vpop.f32.mrf.mxu0
    %v1420 = vadd.f32 %v1141, %v1419
    %v1421 = vpop.f32.mrf.mxu0
    %v1422 = vpop.f32.mrf.mxu0
    %v1423 = vadd.f32 %v1141, %v1422
    %v1424 = vpop.f32.mrf.mxu0
    %1425 = vmatprep.mubr.bf16.mxu0 0
    %1426 = vmatmul.mubr.bf16.gmra.mxu0 %v446
    %v1427 = vpop.f32.mrf.mxu0
    %v1428 = vadd.f32 %v1141, %v1427
    %v1429 = vpop.f32.mrf.mxu0
    %v1430 = vpop.f32.mrf.mxu0
    %v1431 = vadd.f32 %v1141, %v1430
    %v1432 = vpop.f32.mrf.mxu0
    %1433 = vmatprep.mubr.bf16.mxu0 0
    %1434 = vmatmul.mubr.bf16.gmra.mxu0 %v449
    %v1435 = vpop.f32.mrf.mxu0
    %v1436 = vadd.f32 %v1141, %v1435
    %v1437 = vpop.f32.mrf.mxu0
    %v1438 = vpop.f32.mrf.mxu0
    %v1439 = vadd.f32 %v1141, %v1438
    %v1440 = vpop.f32.mrf.mxu0
    %1441 = vmatprep.mubr.bf16.mxu0 0
    %1442 = vmatmul.mubr.bf16.gmra.mxu0 %v452
    %v1443 = vpop.f32.mrf.mxu0
    %v1444 = vadd.f32 %v1141, %v1443
    %v1445 = vpop.f32.mrf.mxu0
    %v1446 = vpop.f32.mrf.mxu0
    %v1447 = vadd.f32 %v1141, %v1446
    %v1448 = vpop.f32.mrf.mxu0
    %1449 = vdwg.mxu0
    %v1450 = vld [vmem:[#allocation2] sm:$0xff]
    %v1451 = vld [vmem:[#allocation2 + $0x8] sm:$0xff]
    %v1452 = vld [vmem:[#allocation2 + $0x18] sm:$0xff]
    %v1453 = vld [vmem:[#allocation2 + $0x20] sm:$0xff]
    %v1454 = vld [vmem:[#allocation2 + $0x30] sm:$0xff]
    %v1455 = vld [vmem:[#allocation2 + $0x38] sm:$0xff]
    %v1456 = vld [vmem:[#allocation2 + $0x48] sm:$0xff]
    %v1457 = vld [vmem:[#allocation2 + $0x50] sm:$0xff]
    %v1458 = vld [vmem:[#allocation2 + $0x60] sm:$0xff]
    %v1459 = vld [vmem:[#allocation2 + $0x68] sm:$0xff]
    %v1460 = vld [vmem:[#allocation2 + $0x78] sm:$0xff]
    %v1461 = vld [vmem:[#allocation2 + $0x80] sm:$0xff]
    %v1462 = vld [vmem:[#allocation2 + $0x90] sm:$0xff]
    %v1463 = vld [vmem:[#allocation2 + $0x98] sm:$0xff]
    %v1464 = vld [vmem:[#allocation2 + $0xa8] sm:$0xff]
    %v1465 = vld [vmem:[#allocation2 + $0xb0] sm:$0xff]
    %v1466 = vld [vmem:[#allocation2 + $0xc0] sm:$0xff]
    %v1467 = vld [vmem:[#allocation2 + $0xc8] sm:$0xff]
    %v1468 = vld [vmem:[#allocation2 + $0xd8] sm:$0xff]
    %v1469 = vld [vmem:[#allocation2 + $0xe0] sm:$0xff]
    %v1470 = vld [vmem:[#allocation2 + $0xf0] sm:$0xff]
    %v1471 = vld [vmem:[#allocation2 + $0xf8] sm:$0xff]
    %v1472 = vld [vmem:[#allocation2 + $0x108] sm:$0xff]
    %v1473 = vld [vmem:[#allocation2 + $0x110] sm:$0xff]
    %v1474 = vld [vmem:[#allocation2 + $0x120] sm:$0xff]
    %v1475 = vld [vmem:[#allocation2 + $0x128] sm:$0xff]
    %v1476 = vld [vmem:[#allocation2 + $0x138] sm:$0xff]
    %v1477 = vld [vmem:[#allocation2 + $0x140] sm:$0xff]
    %v1478 = vld [vmem:[#allocation2 + $0x150] sm:$0xff]
    %v1479 = vld [vmem:[#allocation2 + $0x158] sm:$0xff]
    %v1480 = vld [vmem:[#allocation2 + $0x168] sm:$0xff]
    %v1481 = vld [vmem:[#allocation2 + $0x170] sm:$0xff]
    %v1482 = vld [vmem:[#allocation2 + $0x1b0] sm:$0xff]
    %v1483 = vld [vmem:[#allocation2 + $0x1b8] sm:$0xff]
    %v1484 = vld [vmem:[#allocation2 + $0x1c8] sm:$0xff]
    %v1485 = vld [vmem:[#allocation2 + $0x1d0] sm:$0xff]
    %v1486 = vld [vmem:[#allocation2 + $0x1e0] sm:$0xff]
    %v1487 = vld [vmem:[#allocation2 + $0x1e8] sm:$0xff]
    %v1488 = vld [vmem:[#allocation2 + $0x1f8] sm:$0xff]
    %v1489 = vld [vmem:[#allocation2 + $0x200] sm:$0xff]
    %v1490 = vld [vmem:[#allocation2 + $0x210] sm:$0xff]
    %v1491 = vld [vmem:[#allocation2 + $0x218] sm:$0xff]
    %v1492 = vld [vmem:[#allocation2 + $0x228] sm:$0xff]
    %v1493 = vld [vmem:[#allocation2 + $0x230] sm:$0xff]
    %v1494 = vld [vmem:[#allocation2 + $0x240] sm:$0xff]
    %v1495 = vld [vmem:[#allocation2 + $0x248] sm:$0xff]
    %v1496 = vld [vmem:[#allocation2 + $0x258] sm:$0xff]
    %v1497 = vld [vmem:[#allocation2 + $0x260] sm:$0xff]
    %v1498 = vld [vmem:[#allocation2 + $0x270] sm:$0xff]
    %v1499 = vld [vmem:[#allocation2 + $0x278] sm:$0xff]
    %v1500 = vld [vmem:[#allocation2 + $0x288] sm:$0xff]
    %v1501 = vld [vmem:[#allocation2 + $0x290] sm:$0xff]
    %v1502 = vld [vmem:[#allocation2 + $0x2a0] sm:$0xff]
    %v1503 = vld [vmem:[#allocation2 + $0x2a8] sm:$0xff]
    %v1504 = vld [vmem:[#allocation2 + $0x2b8] sm:$0xff]
    %v1505 = vld [vmem:[#allocation2 + $0x2c0] sm:$0xff]
    %v1506 = vld [vmem:[#allocation2 + $0x2d0] sm:$0xff]
    %v1507 = vld [vmem:[#allocation2 + $0x2d8] sm:$0xff]
    %v1508 = vld [vmem:[#allocation2 + $0x2e8] sm:$0xff]
    %v1509 = vld [vmem:[#allocation2 + $0x2f0] sm:$0xff]
    %v1510 = vld [vmem:[#allocation2 + $0x300] sm:$0xff]
    %v1511 = vld [vmem:[#allocation2 + $0x308] sm:$0xff]
    %v1512 = vld [vmem:[#allocation2 + $0x318] sm:$0xff]
    %v1513 = vld [vmem:[#allocation2 + $0x320] sm:$0xff]
    %v1514 = vpack.c.bf16 %v1451, %v1450
    %v1515 = vpack.c.bf16 %v1453, %v1452
    %v1516 = vpack.c.bf16 %v1455, %v1454
    %v1517 = vpack.c.bf16 %v1457, %v1456
    %v1518 = vpack.c.bf16 %v1459, %v1458
    %v1519 = vpack.c.bf16 %v1461, %v1460
    %v1520 = vpack.c.bf16 %v1463, %v1462
    %v1521 = vpack.c.bf16 %v1465, %v1464
    %v1522 = vpack.c.bf16 %v1467, %v1466
    %v1523 = vpack.c.bf16 %v1469, %v1468
    %v1524 = vpack.c.bf16 %v1471, %v1470
    %v1525 = vpack.c.bf16 %v1473, %v1472
    %v1526 = vpack.c.bf16 %v1475, %v1474
    %v1527 = vpack.c.bf16 %v1477, %v1476
    %v1528 = vpack.c.bf16 %v1479, %v1478
    %v1529 = vpack.c.bf16 %v1481, %v1480
    %v1530 = vpack.c.bf16 %v1483, %v1482
    %v1531 = vpack.c.bf16 %v1485, %v1484
    %v1532 = vpack.c.bf16 %v1487, %v1486
    %v1533 = vpack.c.bf16 %v1489, %v1488
    %v1534 = vpack.c.bf16 %v1491, %v1490
    %v1535 = vpack.c.bf16 %v1493, %v1492
    %v1536 = vpack.c.bf16 %v1495, %v1494
    %v1537 = vpack.c.bf16 %v1497, %v1496
    %v1538 = vpack.c.bf16 %v1499, %v1498
    %v1539 = vpack.c.bf16 %v1501, %v1500
    %v1540 = vpack.c.bf16 %v1503, %v1502
    %v1541 = vpack.c.bf16 %v1505, %v1504
    %v1542 = vpack.c.bf16 %v1507, %v1506
    %v1543 = vpack.c.bf16 %v1509, %v1508
    %v1544 = vpack.c.bf16 %v1511, %v1510
    %v1545 = vpack.c.bf16 %v1513, %v1512
    %v1546 = vld [vmem:[%s3] sm:$0xf]
    %v1548 = vsel %vm25, %v1514, 0
    %v1551 = vsel %vm25, %v1515, 0
    %v1554 = vsel %vm25, %v1516, 0
    %v1557 = vsel %vm25, %v1517, 0
    %v1560 = vsel %vm25, %v1518, 0
    %v1563 = vsel %vm25, %v1519, 0
    %v1566 = vsel %vm25, %v1520, 0
    %v1569 = vsel %vm25, %v1521, 0
    %v1572 = vsel %vm25, %v1522, 0
    %v1575 = vsel %vm25, %v1523, 0
    %v1578 = vsel %vm25, %v1524, 0
    %v1581 = vsel %vm25, %v1525, 0
    %v1584 = vsel %vm25, %v1526, 0
    %v1587 = vsel %vm25, %v1527, 0
    %v1590 = vsel %vm25, %v1528, 0
    %v1593 = vsel %vm25, %v1529, 0
    %v1596 = vsel %vm25, %v1530, 0
    %v1599 = vsel %vm25, %v1531, 0
    %v1602 = vsel %vm25, %v1532, 0
    %v1605 = vsel %vm25, %v1533, 0
    %v1608 = vsel %vm25, %v1534, 0
    %v1611 = vsel %vm25, %v1535, 0
    %v1614 = vsel %vm25, %v1536, 0
    %v1617 = vsel %vm25, %v1537, 0
    %v1620 = vsel %vm25, %v1538, 0
    %v1623 = vsel %vm25, %v1539, 0
    %v1626 = vsel %vm25, %v1540, 0
    %v1629 = vsel %vm25, %v1541, 0
    %v1632 = vsel %vm25, %v1542, 0
    %v1635 = vsel %vm25, %v1543, 0
    %v1638 = vsel %vm25, %v1544, 0
    %v1641 = vsel %vm25, %v1545, 0
    %vm1643 = vcmask 1043456
    %v1645 = vsel %vm1643, %v1546, 0
    %1647 = vmatprep.subr.bf16.mxu0 0
    %1648 = vmatpush1.bf16.msra.mxu0 0
    %1649 = vmatprep.subr.bf16.mxu0 0
    %1650 = vmatpush1.bf16.msra.mxu0 0
    %1651 = vmatprep.subr.bf16.mxu0 0
    %1652 = vmatpush1.bf16.msra.mxu0 0
    %1653 = vmatprep.subr.bf16.mxu0 0
    %1654 = vmatpush1.bf16.msra.mxu0 0
    %1655 = vmatprep.subr.bf16.mxu0 0
    %1656 = vmatpush1.bf16.msra.mxu0 0
    %1657 = vmatprep.subr.bf16.mxu0 0
    %1658 = vmatpush1.bf16.msra.mxu0 0
    %1659 = vmatprep.subr.bf16.mxu0 0
    %1660 = vmatpush1.bf16.msra.mxu0 0
    %1661 = vmatprep.subr.bf16.mxu0 0
    %1662 = vmatpush1.bf16.msra.mxu0 %v1645
    %1663 = vmatprep.subr.bf16.mxu0 0
    %1664 = vmatpush2.bf16.msra.mxu0 0
    %1665 = vmatprep.subr.bf16.mxu0 0
    %1666 = vmatpush2.bf16.msra.mxu0 0
    %1667 = vmatprep.subr.bf16.mxu0 0
    %1668 = vmatpush2.bf16.msra.mxu0 0
    %1669 = vmatprep.subr.bf16.mxu0 0
    %1670 = vmatpush2.bf16.msra.mxu0 0
    %1671 = vmatprep.subr.bf16.mxu0 0
    %1672 = vmatpush2.bf16.msra.mxu0 0
    %1673 = vmatprep.subr.bf16.mxu0 0
    %1674 = vmatpush2.bf16.msra.mxu0 0
    %1675 = vmatprep.subr.bf16.mxu0 0
    %1676 = vmatpush2.bf16.msra.mxu0 0
    %1677 = vmatprep.subr.bf16.mxu0 0
    %1678 = vmatpush2.bf16.msra.mxu0 0
    %1679 = vmatprep.mubr.bf16.mxu0 0
    %1680 = vmatmul.mubr.bf16.gmra.mxu0 %v1548
    %v1681 = vpop.f32.mrf.mxu0
    %v1682 = vadd.f32 0.0, %v1681
    %v1683 = vpop.f32.mrf.mxu0
    %v1684 = vpop.f32.mrf.mxu0
    %v1685 = vadd.f32 0.0, %v1684
    %v1686 = vpop.f32.mrf.mxu0
    %1687 = vmatprep.mubr.bf16.mxu0 0
    %1688 = vmatmul.mubr.bf16.gmra.mxu0 %v1551
    %v1689 = vpop.f32.mrf.mxu0
    %v1690 = vadd.f32 0.0, %v1689
    %v1691 = vpop.f32.mrf.mxu0
    %v1692 = vpop.f32.mrf.mxu0
    %v1693 = vadd.f32 0.0, %v1692
    %v1694 = vpop.f32.mrf.mxu0
    %1695 = vmatprep.mubr.bf16.mxu0 0
    %1696 = vmatmul.mubr.bf16.gmra.mxu0 %v1554
    %v1697 = vpop.f32.mrf.mxu0
    %v1698 = vadd.f32 0.0, %v1697
    %v1699 = vpop.f32.mrf.mxu0
    %v1700 = vpop.f32.mrf.mxu0
    %v1701 = vadd.f32 0.0, %v1700
    %v1702 = vpop.f32.mrf.mxu0
    %1703 = vmatprep.mubr.bf16.mxu0 0
    %1704 = vmatmul.mubr.bf16.gmra.mxu0 %v1557
    %v1705 = vpop.f32.mrf.mxu0
    %v1706 = vadd.f32 0.0, %v1705
    %v1707 = vpop.f32.mrf.mxu0
    %v1708 = vpop.f32.mrf.mxu0
    %v1709 = vadd.f32 0.0, %v1708
    %v1710 = vpop.f32.mrf.mxu0
    %1711 = vmatprep.mubr.bf16.mxu0 0
    %1712 = vmatmul.mubr.bf16.gmra.mxu0 %v1560
    %v1713 = vpop.f32.mrf.mxu0
    %v1714 = vadd.f32 0.0, %v1713
    %v1715 = vpop.f32.mrf.mxu0
    %v1716 = vpop.f32.mrf.mxu0
    %v1717 = vadd.f32 0.0, %v1716
    %v1718 = vpop.f32.mrf.mxu0
    %1719 = vmatprep.mubr.bf16.mxu0 0
    %1720 = vmatmul.mubr.bf16.gmra.mxu0 %v1563
    %v1721 = vpop.f32.mrf.mxu0
    %v1722 = vadd.f32 0.0, %v1721
    %v1723 = vpop.f32.mrf.mxu0
    %v1724 = vpop.f32.mrf.mxu0
    %v1725 = vadd.f32 0.0, %v1724
    %v1726 = vpop.f32.mrf.mxu0
    %1727 = vmatprep.mubr.bf16.mxu0 0
    %1728 = vmatmul.mubr.bf16.gmra.mxu0 %v1566
    %v1729 = vpop.f32.mrf.mxu0
    %v1730 = vadd.f32 0.0, %v1729
    %v1731 = vpop.f32.mrf.mxu0
    %v1732 = vpop.f32.mrf.mxu0
    %v1733 = vadd.f32 0.0, %v1732
    %v1734 = vpop.f32.mrf.mxu0
    %1735 = vmatprep.mubr.bf16.mxu0 0
    %1736 = vmatmul.mubr.bf16.gmra.mxu0 %v1569
    %v1737 = vpop.f32.mrf.mxu0
    %v1738 = vadd.f32 0.0, %v1737
    %v1739 = vpop.f32.mrf.mxu0
    %v1740 = vpop.f32.mrf.mxu0
    %v1741 = vadd.f32 0.0, %v1740
    %v1742 = vpop.f32.mrf.mxu0
    %1743 = vmatprep.mubr.bf16.mxu0 0
    %1744 = vmatmul.mubr.bf16.gmra.mxu0 %v1572
    %v1745 = vpop.f32.mrf.mxu0
    %v1746 = vadd.f32 0.0, %v1745
    %v1747 = vpop.f32.mrf.mxu0
    %v1748 = vpop.f32.mrf.mxu0
    %v1749 = vadd.f32 0.0, %v1748
    %v1750 = vpop.f32.mrf.mxu0
    %1751 = vmatprep.mubr.bf16.mxu0 0
    %1752 = vmatmul.mubr.bf16.gmra.mxu0 %v1575
    %v1753 = vpop.f32.mrf.mxu0
    %v1754 = vadd.f32 0.0, %v1753
    %v1755 = vpop.f32.mrf.mxu0
    %v1756 = vpop.f32.mrf.mxu0
    %v1757 = vadd.f32 0.0, %v1756
    %v1758 = vpop.f32.mrf.mxu0
    %1759 = vmatprep.mubr.bf16.mxu0 0
    %1760 = vmatmul.mubr.bf16.gmra.mxu0 %v1578
    %v1761 = vpop.f32.mrf.mxu0
    %v1762 = vadd.f32 0.0, %v1761
    %v1763 = vpop.f32.mrf.mxu0
    %v1764 = vpop.f32.mrf.mxu0
    %v1765 = vadd.f32 0.0, %v1764
    %v1766 = vpop.f32.mrf.mxu0
    %1767 = vmatprep.mubr.bf16.mxu0 0
    %1768 = vmatmul.mubr.bf16.gmra.mxu0 %v1581
    %v1769 = vpop.f32.mrf.mxu0
    %v1770 = vadd.f32 0.0, %v1769
    %v1771 = vpop.f32.mrf.mxu0
    %v1772 = vpop.f32.mrf.mxu0
    %v1773 = vadd.f32 0.0, %v1772
    %v1774 = vpop.f32.mrf.mxu0
    %1775 = vmatprep.mubr.bf16.mxu0 0
    %1776 = vmatmul.mubr.bf16.gmra.mxu0 %v1584
    %v1777 = vpop.f32.mrf.mxu0
    %v1778 = vadd.f32 0.0, %v1777
    %v1779 = vpop.f32.mrf.mxu0
    %v1780 = vpop.f32.mrf.mxu0
    %v1781 = vadd.f32 0.0, %v1780
    %v1782 = vpop.f32.mrf.mxu0
    %1783 = vmatprep.mubr.bf16.mxu0 0
    %1784 = vmatmul.mubr.bf16.gmra.mxu0 %v1587
    %v1785 = vpop.f32.mrf.mxu0
    %v1786 = vadd.f32 0.0, %v1785
    %v1787 = vpop.f32.mrf.mxu0
    %v1788 = vpop.f32.mrf.mxu0
    %v1789 = vadd.f32 0.0, %v1788
    %v1790 = vpop.f32.mrf.mxu0
    %1791 = vmatprep.mubr.bf16.mxu0 0
    %1792 = vmatmul.mubr.bf16.gmra.mxu0 %v1590
    %v1793 = vpop.f32.mrf.mxu0
    %v1794 = vadd.f32 0.0, %v1793
    %v1795 = vpop.f32.mrf.mxu0
    %v1796 = vpop.f32.mrf.mxu0
    %v1797 = vadd.f32 0.0, %v1796
    %v1798 = vpop.f32.mrf.mxu0
    %1799 = vmatprep.mubr.bf16.mxu0 0
    %1800 = vmatmul.mubr.bf16.gmra.mxu0 %v1593
    %v1801 = vpop.f32.mrf.mxu0
    %v1802 = vadd.f32 0.0, %v1801
    %v1803 = vpop.f32.mrf.mxu0
    %v1804 = vpop.f32.mrf.mxu0
    %v1805 = vadd.f32 0.0, %v1804
    %v1806 = vpop.f32.mrf.mxu0
    %1807 = vmatprep.mubr.bf16.mxu0 0
    %1808 = vmatmul.mubr.bf16.gmra.mxu0 %v1596
    %v1809 = vpop.f32.mrf.mxu0
    %v1810 = vadd.f32 0.0, %v1809
    %v1811 = vpop.f32.mrf.mxu0
    %v1812 = vpop.f32.mrf.mxu0
    %v1813 = vadd.f32 0.0, %v1812
    %v1814 = vpop.f32.mrf.mxu0
    %1815 = vmatprep.mubr.bf16.mxu0 0
    %1816 = vmatmul.mubr.bf16.gmra.mxu0 %v1599
    %v1817 = vpop.f32.mrf.mxu0
    %v1818 = vadd.f32 0.0, %v1817
    %v1819 = vpop.f32.mrf.mxu0
    %v1820 = vpop.f32.mrf.mxu0
    %v1821 = vadd.f32 0.0, %v1820
    %v1822 = vpop.f32.mrf.mxu0
    %1823 = vmatprep.mubr.bf16.mxu0 0
    %1824 = vmatmul.mubr.bf16.gmra.mxu0 %v1602
    %v1825 = vpop.f32.mrf.mxu0
    %v1826 = vadd.f32 0.0, %v1825
    %v1827 = vpop.f32.mrf.mxu0
    %v1828 = vpop.f32.mrf.mxu0
    %v1829 = vadd.f32 0.0, %v1828
    %v1830 = vpop.f32.mrf.mxu0
    %1831 = vmatprep.mubr.bf16.mxu0 0
    %1832 = vmatmul.mubr.bf16.gmra.mxu0 %v1605
    %v1833 = vpop.f32.mrf.mxu0
    %v1834 = vadd.f32 0.0, %v1833
    %v1835 = vpop.f32.mrf.mxu0
    %v1836 = vpop.f32.mrf.mxu0
    %v1837 = vadd.f32 0.0, %v1836
    %v1838 = vpop.f32.mrf.mxu0
    %1839 = vmatprep.mubr.bf16.mxu0 0
    %1840 = vmatmul.mubr.bf16.gmra.mxu0 %v1608
    %v1841 = vpop.f32.mrf.mxu0
    %v1842 = vadd.f32 0.0, %v1841
    %v1843 = vpop.f32.mrf.mxu0
    %v1844 = vpop.f32.mrf.mxu0
    %v1845 = vadd.f32 0.0, %v1844
    %v1846 = vpop.f32.mrf.mxu0
    %1847 = vmatprep.mubr.bf16.mxu0 0
    %1848 = vmatmul.mubr.bf16.gmra.mxu0 %v1611
    %v1849 = vpop.f32.mrf.mxu0
    %v1850 = vadd.f32 0.0, %v1849
    %v1851 = vpop.f32.mrf.mxu0
    %v1852 = vpop.f32.mrf.mxu0
    %v1853 = vadd.f32 0.0, %v1852
    %v1854 = vpop.f32.mrf.mxu0
    %1855 = vmatprep.mubr.bf16.mxu0 0
    %1856 = vmatmul.mubr.bf16.gmra.mxu0 %v1614
    %v1857 = vpop.f32.mrf.mxu0
    %v1858 = vadd.f32 0.0, %v1857
    %v1859 = vpop.f32.mrf.mxu0
    %v1860 = vpop.f32.mrf.mxu0
    %v1861 = vadd.f32 0.0, %v1860
    %v1862 = vpop.f32.mrf.mxu0
    %1863 = vmatprep.mubr.bf16.mxu0 0
    %1864 = vmatmul.mubr.bf16.gmra.mxu0 %v1617
    %v1865 = vpop.f32.mrf.mxu0
    %v1866 = vadd.f32 0.0, %v1865
    %v1867 = vpop.f32.mrf.mxu0
    %v1868 = vpop.f32.mrf.mxu0
    %v1869 = vadd.f32 0.0, %v1868
    %v1870 = vpop.f32.mrf.mxu0
    %1871 = vmatprep.mubr.bf16.mxu0 0
    %1872 = vmatmul.mubr.bf16.gmra.mxu0 %v1620
    %v1873 = vpop.f32.mrf.mxu0
    %v1874 = vadd.f32 0.0, %v1873
    %v1875 = vpop.f32.mrf.mxu0
    %v1876 = vpop.f32.mrf.mxu0
    %v1877 = vadd.f32 0.0, %v1876
    %v1878 = vpop.f32.mrf.mxu0
    %1879 = vmatprep.mubr.bf16.mxu0 0
    %1880 = vmatmul.mubr.bf16.gmra.mxu0 %v1623
    %v1881 = vpop.f32.mrf.mxu0
    %v1882 = vadd.f32 0.0, %v1881
    %v1883 = vpop.f32.mrf.mxu0
    %v1884 = vpop.f32.mrf.mxu0
    %v1885 = vadd.f32 0.0, %v1884
    %v1886 = vpop.f32.mrf.mxu0
    %1887 = vmatprep.mubr.bf16.mxu0 0
    %1888 = vmatmul.mubr.bf16.gmra.mxu0 %v1626
    %v1889 = vpop.f32.mrf.mxu0
    %v1890 = vadd.f32 0.0, %v1889
    %v1891 = vpop.f32.mrf.mxu0
    %v1892 = vpop.f32.mrf.mxu0
    %v1893 = vadd.f32 0.0, %v1892
    %v1894 = vpop.f32.mrf.mxu0
    %1895 = vmatprep.mubr.bf16.mxu0 0
    %1896 = vmatmul.mubr.bf16.gmra.mxu0 %v1629
    %v1897 = vpop.f32.mrf.mxu0
    %v1898 = vadd.f32 0.0, %v1897
    %v1899 = vpop.f32.mrf.mxu0
    %v1900 = vpop.f32.mrf.mxu0
    %v1901 = vadd.f32 0.0, %v1900
    %v1902 = vpop.f32.mrf.mxu0
    %1903 = vmatprep.mubr.bf16.mxu0 0
    %1904 = vmatmul.mubr.bf16.gmra.mxu0 %v1632
    %v1905 = vpop.f32.mrf.mxu0
    %v1906 = vadd.f32 0.0, %v1905
    %v1907 = vpop.f32.mrf.mxu0
    %v1908 = vpop.f32.mrf.mxu0
    %v1909 = vadd.f32 0.0, %v1908
    %v1910 = vpop.f32.mrf.mxu0
    %1911 = vmatprep.mubr.bf16.mxu0 0
    %1912 = vmatmul.mubr.bf16.gmra.mxu0 %v1635
    %v1913 = vpop.f32.mrf.mxu0
    %v1914 = vadd.f32 0.0, %v1913
    %v1915 = vpop.f32.mrf.mxu0
    %v1916 = vpop.f32.mrf.mxu0
    %v1917 = vadd.f32 0.0, %v1916
    %v1918 = vpop.f32.mrf.mxu0
    %1919 = vmatprep.mubr.bf16.mxu0 0
    %1920 = vmatmul.mubr.bf16.gmra.mxu0 %v1638
    %v1921 = vpop.f32.mrf.mxu0
    %v1922 = vadd.f32 0.0, %v1921
    %v1923 = vpop.f32.mrf.mxu0
    %v1924 = vpop.f32.mrf.mxu0
    %v1925 = vadd.f32 0.0, %v1924
    %v1926 = vpop.f32.mrf.mxu0
    %1927 = vmatprep.mubr.bf16.mxu0 0
    %1928 = vmatmul.mubr.bf16.gmra.mxu0 %v1641
    %v1929 = vpop.f32.mrf.mxu0
    %v1930 = vadd.f32 0.0, %v1929
    %v1931 = vpop.f32.mrf.mxu0
    %v1932 = vpop.f32.mrf.mxu0
    %v1933 = vadd.f32 0.0, %v1932
    %v1934 = vpop.f32.mrf.mxu0
    %1935 = vdwg.mxu0
    %v1936 = vadd.f32 %v1196, %v1682
    %v1937 = vadd.f32 %v1199, %v1685
    %v1938 = vadd.f32 %v1204, %v1690
    %v1939 = vadd.f32 %v1207, %v1693
    %v1940 = vadd.f32 %v1212, %v1698
    %v1941 = vadd.f32 %v1215, %v1701
    %v1942 = vadd.f32 %v1220, %v1706
    %v1943 = vadd.f32 %v1223, %v1709
    %v1944 = vadd.f32 %v1228, %v1714
    %v1945 = vadd.f32 %v1231, %v1717
    %v1946 = vadd.f32 %v1236, %v1722
    %v1947 = vadd.f32 %v1239, %v1725
    %v1948 = vadd.f32 %v1244, %v1730
    %v1949 = vadd.f32 %v1247, %v1733
    %v1950 = vadd.f32 %v1252, %v1738
    %v1951 = vadd.f32 %v1255, %v1741
    %v1952 = vadd.f32 %v1260, %v1746
    %v1953 = vadd.f32 %v1263, %v1749
    %v1954 = vadd.f32 %v1268, %v1754
    %v1955 = vadd.f32 %v1271, %v1757
    %v1956 = vadd.f32 %v1276, %v1762
    %v1957 = vadd.f32 %v1279, %v1765
    %v1958 = vadd.f32 %v1284, %v1770
    %v1959 = vadd.f32 %v1287, %v1773
    %v1960 = vadd.f32 %v1292, %v1778
    %v1961 = vadd.f32 %v1295, %v1781
    %v1962 = vadd.f32 %v1300, %v1786
    %v1963 = vadd.f32 %v1303, %v1789
    %v1964 = vadd.f32 %v1308, %v1794
    %v1965 = vadd.f32 %v1311, %v1797
    %v1966 = vadd.f32 %v1316, %v1802
    %v1967 = vadd.f32 %v1319, %v1805
    %v1968 = vadd.f32 %v1324, %v1810
    %v1969 = vadd.f32 %v1327, %v1813
    %v1970 = vadd.f32 %v1332, %v1818
    %v1971 = vadd.f32 %v1335, %v1821
    %v1972 = vadd.f32 %v1340, %v1826
    %v1973 = vadd.f32 %v1343, %v1829
    %v1974 = vadd.f32 %v1348, %v1834
    %v1975 = vadd.f32 %v1351, %v1837
    %v1976 = vadd.f32 %v1356, %v1842
    %v1977 = vadd.f32 %v1359, %v1845
    %v1978 = vadd.f32 %v1364, %v1850
    %v1979 = vadd.f32 %v1367, %v1853
    %v1980 = vadd.f32 %v1372, %v1858
    %v1981 = vadd.f32 %v1375, %v1861
    %v1982 = vadd.f32 %v1380, %v1866
    %v1983 = vadd.f32 %v1383, %v1869
    %v1984 = vadd.f32 %v1388, %v1874
    %v1985 = vadd.f32 %v1391, %v1877
    %v1986 = vadd.f32 %v1396, %v1882
    %v1987 = vadd.f32 %v1399, %v1885
    %v1988 = vadd.f32 %v1404, %v1890
    %v1989 = vadd.f32 %v1407, %v1893
    %v1990 = vadd.f32 %v1412, %v1898
    %v1991 = vadd.f32 %v1415, %v1901
    %v1992 = vadd.f32 %v1420, %v1906
    %v1993 = vadd.f32 %v1423, %v1909
    %v1994 = vadd.f32 %v1428, %v1914
    %v1995 = vadd.f32 %v1431, %v1917
    %v1996 = vadd.f32 %v1436, %v1922
    %v1997 = vadd.f32 %v1439, %v1925
    %v1998 = vadd.f32 %v1444, %v1930
    %v1999 = vadd.f32 %v1447, %v1933
    %v2000 = vld [vmem:[#allocation2 + $0x1] sm:$0xff]
    %v2001 = vld [vmem:[#allocation2 + $0x9] sm:$0xff]
    %v2002 = vld [vmem:[#allocation2 + $0x19] sm:$0xff]
    %v2003 = vld [vmem:[#allocation2 + $0x21] sm:$0xff]
    %v2004 = vld [vmem:[#allocation2 + $0x31] sm:$0xff]
    %v2005 = vld [vmem:[#allocation2 + $0x39] sm:$0xff]
    %v2006 = vld [vmem:[#allocation2 + $0x49] sm:$0xff]
    %v2007 = vld [vmem:[#allocation2 + $0x51] sm:$0xff]
    %v2008 = vld [vmem:[#allocation2 + $0x61] sm:$0xff]
    %v2009 = vld [vmem:[#allocation2 + $0x69] sm:$0xff]
    %v2010 = vld [vmem:[#allocation2 + $0x79] sm:$0xff]
    %v2011 = vld [vmem:[#allocation2 + $0x81] sm:$0xff]
    %v2012 = vld [vmem:[#allocation2 + $0x91] sm:$0xff]
    %v2013 = vld [vmem:[#allocation2 + $0x99] sm:$0xff]
    %v2014 = vld [vmem:[#allocation2 + $0xa9] sm:$0xff]
    %v2015 = vld [vmem:[#allocation2 + $0xb1] sm:$0xff]
    %v2016 = vld [vmem:[#allocation2 + $0xc1] sm:$0xff]
    %v2017 = vld [vmem:[#allocation2 + $0xc9] sm:$0xff]
    %v2018 = vld [vmem:[#allocation2 + $0xd9] sm:$0xff]
    %v2019 = vld [vmem:[#allocation2 + $0xe1] sm:$0xff]
    %v2020 = vld [vmem:[#allocation2 + $0xf1] sm:$0xff]
    %v2021 = vld [vmem:[#allocation2 + $0xf9] sm:$0xff]
    %v2022 = vld [vmem:[#allocation2 + $0x109] sm:$0xff]
    %v2023 = vld [vmem:[#allocation2 + $0x111] sm:$0xff]
    %v2024 = vld [vmem:[#allocation2 + $0x121] sm:$0xff]
    %v2025 = vld [vmem:[#allocation2 + $0x129] sm:$0xff]
    %v2026 = vld [vmem:[#allocation2 + $0x139] sm:$0xff]
    %v2027 = vld [vmem:[#allocation2 + $0x141] sm:$0xff]
    %v2028 = vld [vmem:[#allocation2 + $0x151] sm:$0xff]
    %v2029 = vld [vmem:[#allocation2 + $0x159] sm:$0xff]
    %v2030 = vld [vmem:[#allocation2 + $0x169] sm:$0xff]
    %v2031 = vld [vmem:[#allocation2 + $0x171] sm:$0xff]
    %v2032 = vld [vmem:[#allocation2 + $0x1b1] sm:$0xff]
    %v2033 = vld [vmem:[#allocation2 + $0x1b9] sm:$0xff]
    %v2034 = vld [vmem:[#allocation2 + $0x1c9] sm:$0xff]
    %v2035 = vld [vmem:[#allocation2 + $0x1d1] sm:$0xff]
    %v2036 = vld [vmem:[#allocation2 + $0x1e1] sm:$0xff]
    %v2037 = vld [vmem:[#allocation2 + $0x1e9] sm:$0xff]
    %v2038 = vld [vmem:[#allocation2 + $0x1f9] sm:$0xff]
    %v2039 = vld [vmem:[#allocation2 + $0x201] sm:$0xff]
    %v2040 = vld [vmem:[#allocation2 + $0x211] sm:$0xff]
    %v2041 = vld [vmem:[#allocation2 + $0x219] sm:$0xff]
    %v2042 = vld [vmem:[#allocation2 + $0x229] sm:$0xff]
    %v2043 = vld [vmem:[#allocation2 + $0x231] sm:$0xff]
    %v2044 = vld [vmem:[#allocation2 + $0x241] sm:$0xff]
    %v2045 = vld [vmem:[#allocation2 + $0x249] sm:$0xff]
    %v2046 = vld [vmem:[#allocation2 + $0x259] sm:$0xff]
    %v2047 = vld [vmem:[#allocation2 + $0x261] sm:$0xff]
    %v2048 = vld [vmem:[#allocation2 + $0x271] sm:$0xff]
    %v2049 = vld [vmem:[#allocation2 + $0x279] sm:$0xff]
    %v2050 = vld [vmem:[#allocation2 + $0x289] sm:$0xff]
    %v2051 = vld [vmem:[#allocation2 + $0x291] sm:$0xff]
    %v2052 = vld [vmem:[#allocation2 + $0x2a1] sm:$0xff]
    %v2053 = vld [vmem:[#allocation2 + $0x2a9] sm:$0xff]
    %v2054 = vld [vmem:[#allocation2 + $0x2b9] sm:$0xff]
    %v2055 = vld [vmem:[#allocation2 + $0x2c1] sm:$0xff]
    %v2056 = vld [vmem:[#allocation2 + $0x2d1] sm:$0xff]
    %v2057 = vld [vmem:[#allocation2 + $0x2d9] sm:$0xff]
    %v2058 = vld [vmem:[#allocation2 + $0x2e9] sm:$0xff]
    %v2059 = vld [vmem:[#allocation2 + $0x2f1] sm:$0xff]
    %v2060 = vld [vmem:[#allocation2 + $0x301] sm:$0xff]
    %v2061 = vld [vmem:[#allocation2 + $0x309] sm:$0xff]
    %v2062 = vld [vmem:[#allocation2 + $0x319] sm:$0xff]
    %v2063 = vld [vmem:[#allocation2 + $0x321] sm:$0xff]
    %v2064 = vpack.c.bf16 %v2001, %v2000
    %v2065 = vpack.c.bf16 %v2003, %v2002
    %v2066 = vpack.c.bf16 %v2005, %v2004
    %v2067 = vpack.c.bf16 %v2007, %v2006
    %v2068 = vpack.c.bf16 %v2009, %v2008
    %v2069 = vpack.c.bf16 %v2011, %v2010
    %v2070 = vpack.c.bf16 %v2013, %v2012
    %v2071 = vpack.c.bf16 %v2015, %v2014
    %v2072 = vpack.c.bf16 %v2017, %v2016
    %v2073 = vpack.c.bf16 %v2019, %v2018
    %v2074 = vpack.c.bf16 %v2021, %v2020
    %v2075 = vpack.c.bf16 %v2023, %v2022
    %v2076 = vpack.c.bf16 %v2025, %v2024
    %v2077 = vpack.c.bf16 %v2027, %v2026
    %v2078 = vpack.c.bf16 %v2029, %v2028
    %v2079 = vpack.c.bf16 %v2031, %v2030
    %v2080 = vpack.c.bf16 %v2033, %v2032
    %v2081 = vpack.c.bf16 %v2035, %v2034
    %v2082 = vpack.c.bf16 %v2037, %v2036
    %v2083 = vpack.c.bf16 %v2039, %v2038
    %v2084 = vpack.c.bf16 %v2041, %v2040
    %v2085 = vpack.c.bf16 %v2043, %v2042
    %v2086 = vpack.c.bf16 %v2045, %v2044
    %v2087 = vpack.c.bf16 %v2047, %v2046
    %v2088 = vpack.c.bf16 %v2049, %v2048
    %v2089 = vpack.c.bf16 %v2051, %v2050
    %v2090 = vpack.c.bf16 %v2053, %v2052
    %v2091 = vpack.c.bf16 %v2055, %v2054
    %v2092 = vpack.c.bf16 %v2057, %v2056
    %v2093 = vpack.c.bf16 %v2059, %v2058
    %v2094 = vpack.c.bf16 %v2061, %v2060
    %v2095 = vpack.c.bf16 %v2063, %v2062
    %s2096 = scalar_lea.vmem %s3, 4
    %v2097 = vld [vmem:[%s2096] sm:$0xf]
    %v2099 = vsel %vm25, %v2064, 0
    %v2102 = vsel %vm25, %v2065, 0
    %v2105 = vsel %vm25, %v2066, 0
    %v2108 = vsel %vm25, %v2067, 0
    %v2111 = vsel %vm25, %v2068, 0
    %v2114 = vsel %vm25, %v2069, 0
    %v2117 = vsel %vm25, %v2070, 0
    %v2120 = vsel %vm25, %v2071, 0
    %v2123 = vsel %vm25, %v2072, 0
    %v2126 = vsel %vm25, %v2073, 0
    %v2129 = vsel %vm25, %v2074, 0
    %v2132 = vsel %vm25, %v2075, 0
    %v2135 = vsel %vm25, %v2076, 0
    %v2138 = vsel %vm25, %v2077, 0
    %v2141 = vsel %vm25, %v2078, 0
    %v2144 = vsel %vm25, %v2079, 0
    %v2147 = vsel %vm25, %v2080, 0
    %v2150 = vsel %vm25, %v2081, 0
    %v2153 = vsel %vm25, %v2082, 0
    %v2156 = vsel %vm25, %v2083, 0
    %v2159 = vsel %vm25, %v2084, 0
    %v2162 = vsel %vm25, %v2085, 0
    %v2165 = vsel %vm25, %v2086, 0
    %v2168 = vsel %vm25, %v2087, 0
    %v2171 = vsel %vm25, %v2088, 0
    %v2174 = vsel %vm25, %v2089, 0
    %v2177 = vsel %vm25, %v2090, 0
    %v2180 = vsel %vm25, %v2091, 0
    %v2183 = vsel %vm25, %v2092, 0
    %v2186 = vsel %vm25, %v2093, 0
    %v2189 = vsel %vm25, %v2094, 0
    %v2192 = vsel %vm25, %v2095, 0
    %v2195 = vsel %vm1643, %v2097, 0
    %2197 = vmatprep.subr.bf16.mxu0 0
    %2198 = vmatpush1.bf16.msra.mxu0 0
    %2199 = vmatprep.subr.bf16.mxu0 0
    %2200 = vmatpush1.bf16.msra.mxu0 0
    %2201 = vmatprep.subr.bf16.mxu0 0
    %2202 = vmatpush1.bf16.msra.mxu0 0
    %2203 = vmatprep.subr.bf16.mxu0 0
    %2204 = vmatpush1.bf16.msra.mxu0 0
    %2205 = vmatprep.subr.bf16.mxu0 0
    %2206 = vmatpush1.bf16.msra.mxu0 0
    %2207 = vmatprep.subr.bf16.mxu0 0
    %2208 = vmatpush1.bf16.msra.mxu0 0
    %2209 = vmatprep.subr.bf16.mxu0 0
    %2210 = vmatpush1.bf16.msra.mxu0 0
    %2211 = vmatprep.subr.bf16.mxu0 0
    %2212 = vmatpush1.bf16.msra.mxu0 %v2195
    %2213 = vmatprep.subr.bf16.mxu0 0
    %2214 = vmatpush2.bf16.msra.mxu0 0
    %2215 = vmatprep.subr.bf16.mxu0 0
    %2216 = vmatpush2.bf16.msra.mxu0 0
    %2217 = vmatprep.subr.bf16.mxu0 0
    %2218 = vmatpush2.bf16.msra.mxu0 0
    %2219 = vmatprep.subr.bf16.mxu0 0
    %2220 = vmatpush2.bf16.msra.mxu0 0
    %2221 = vmatprep.subr.bf16.mxu0 0
    %2222 = vmatpush2.bf16.msra.mxu0 0
    %2223 = vmatprep.subr.bf16.mxu0 0
    %2224 = vmatpush2.bf16.msra.mxu0 0
    %2225 = vmatprep.subr.bf16.mxu0 0
    %2226 = vmatpush2.bf16.msra.mxu0 0
    %2227 = vmatprep.subr.bf16.mxu0 0
    %2228 = vmatpush2.bf16.msra.mxu0 0
    %2229 = vmatprep.mubr.bf16.mxu0 0
    %2230 = vmatmul.mubr.bf16.gmra.mxu0 %v2099
    %v2231 = vpop.f32.mrf.mxu0
    %v2232 = vadd.f32 0.0, %v2231
    %v2233 = vpop.f32.mrf.mxu0
    %v2234 = vpop.f32.mrf.mxu0
    %v2235 = vadd.f32 0.0, %v2234
    %v2236 = vpop.f32.mrf.mxu0
    %2237 = vmatprep.mubr.bf16.mxu0 0
    %2238 = vmatmul.mubr.bf16.gmra.mxu0 %v2102
    %v2239 = vpop.f32.mrf.mxu0
    %v2240 = vadd.f32 0.0, %v2239
    %v2241 = vpop.f32.mrf.mxu0
    %v2242 = vpop.f32.mrf.mxu0
    %v2243 = vadd.f32 0.0, %v2242
    %v2244 = vpop.f32.mrf.mxu0
    %2245 = vmatprep.mubr.bf16.mxu0 0
    %2246 = vmatmul.mubr.bf16.gmra.mxu0 %v2105
    %v2247 = vpop.f32.mrf.mxu0
    %v2248 = vadd.f32 0.0, %v2247
    %v2249 = vpop.f32.mrf.mxu0
    %v2250 = vpop.f32.mrf.mxu0
    %v2251 = vadd.f32 0.0, %v2250
    %v2252 = vpop.f32.mrf.mxu0
    %2253 = vmatprep.mubr.bf16.mxu0 0
    %2254 = vmatmul.mubr.bf16.gmra.mxu0 %v2108
    %v2255 = vpop.f32.mrf.mxu0
    %v2256 = vadd.f32 0.0, %v2255
    %v2257 = vpop.f32.mrf.mxu0
    %v2258 = vpop.f32.mrf.mxu0
    %v2259 = vadd.f32 0.0, %v2258
    %v2260 = vpop.f32.mrf.mxu0
    %2261 = vmatprep.mubr.bf16.mxu0 0
    %2262 = vmatmul.mubr.bf16.gmra.mxu0 %v2111
    %v2263 = vpop.f32.mrf.mxu0
    %v2264 = vadd.f32 0.0, %v2263
    %v2265 = vpop.f32.mrf.mxu0
    %v2266 = vpop.f32.mrf.mxu0
    %v2267 = vadd.f32 0.0, %v2266
    %v2268 = vpop.f32.mrf.mxu0
    %2269 = vmatprep.mubr.bf16.mxu0 0
    %2270 = vmatmul.mubr.bf16.gmra.mxu0 %v2114
    %v2271 = vpop.f32.mrf.mxu0
    %v2272 = vadd.f32 0.0, %v2271
    %v2273 = vpop.f32.mrf.mxu0
    %v2274 = vpop.f32.mrf.mxu0
    %v2275 = vadd.f32 0.0, %v2274
    %v2276 = vpop.f32.mrf.mxu0
    %2277 = vmatprep.mubr.bf16.mxu0 0
    %2278 = vmatmul.mubr.bf16.gmra.mxu0 %v2117
    %v2279 = vpop.f32.mrf.mxu0
    %v2280 = vadd.f32 0.0, %v2279
    %v2281 = vpop.f32.mrf.mxu0
    %v2282 = vpop.f32.mrf.mxu0
    %v2283 = vadd.f32 0.0, %v2282
    %v2284 = vpop.f32.mrf.mxu0
    %2285 = vmatprep.mubr.bf16.mxu0 0
    %2286 = vmatmul.mubr.bf16.gmra.mxu0 %v2120
    %v2287 = vpop.f32.mrf.mxu0
    %v2288 = vadd.f32 0.0, %v2287
    %v2289 = vpop.f32.mrf.mxu0
    %v2290 = vpop.f32.mrf.mxu0
    %v2291 = vadd.f32 0.0, %v2290
    %v2292 = vpop.f32.mrf.mxu0
    %2293 = vmatprep.mubr.bf16.mxu0 0
    %2294 = vmatmul.mubr.bf16.gmra.mxu0 %v2123
    %v2295 = vpop.f32.mrf.mxu0
    %v2296 = vadd.f32 0.0, %v2295
    %v2297 = vpop.f32.mrf.mxu0
    %v2298 = vpop.f32.mrf.mxu0
    %v2299 = vadd.f32 0.0, %v2298
    %v2300 = vpop.f32.mrf.mxu0
    %2301 = vmatprep.mubr.bf16.mxu0 0
    %2302 = vmatmul.mubr.bf16.gmra.mxu0 %v2126
    %v2303 = vpop.f32.mrf.mxu0
    %v2304 = vadd.f32 0.0, %v2303
    %v2305 = vpop.f32.mrf.mxu0
    %v2306 = vpop.f32.mrf.mxu0
    %v2307 = vadd.f32 0.0, %v2306
    %v2308 = vpop.f32.mrf.mxu0
    %2309 = vmatprep.mubr.bf16.mxu0 0
    %2310 = vmatmul.mubr.bf16.gmra.mxu0 %v2129
    %v2311 = vpop.f32.mrf.mxu0
    %v2312 = vadd.f32 0.0, %v2311
    %v2313 = vpop.f32.mrf.mxu0
    %v2314 = vpop.f32.mrf.mxu0
    %v2315 = vadd.f32 0.0, %v2314
    %v2316 = vpop.f32.mrf.mxu0
    %2317 = vmatprep.mubr.bf16.mxu0 0
    %2318 = vmatmul.mubr.bf16.gmra.mxu0 %v2132
    %v2319 = vpop.f32.mrf.mxu0
    %v2320 = vadd.f32 0.0, %v2319
    %v2321 = vpop.f32.mrf.mxu0
    %v2322 = vpop.f32.mrf.mxu0
    %v2323 = vadd.f32 0.0, %v2322
    %v2324 = vpop.f32.mrf.mxu0
    %2325 = vmatprep.mubr.bf16.mxu0 0
    %2326 = vmatmul.mubr.bf16.gmra.mxu0 %v2135
    %v2327 = vpop.f32.mrf.mxu0
    %v2328 = vadd.f32 0.0, %v2327
    %v2329 = vpop.f32.mrf.mxu0
    %v2330 = vpop.f32.mrf.mxu0
    %v2331 = vadd.f32 0.0, %v2330
    %v2332 = vpop.f32.mrf.mxu0
    %2333 = vmatprep.mubr.bf16.mxu0 0
    %2334 = vmatmul.mubr.bf16.gmra.mxu0 %v2138
    %v2335 = vpop.f32.mrf.mxu0
    %v2336 = vadd.f32 0.0, %v2335
    %v2337 = vpop.f32.mrf.mxu0
    %v2338 = vpop.f32.mrf.mxu0
    %v2339 = vadd.f32 0.0, %v2338
    %v2340 = vpop.f32.mrf.mxu0
    %2341 = vmatprep.mubr.bf16.mxu0 0
    %2342 = vmatmul.mubr.bf16.gmra.mxu0 %v2141
    %v2343 = vpop.f32.mrf.mxu0
    %v2344 = vadd.f32 0.0, %v2343
    %v2345 = vpop.f32.mrf.mxu0
    %v2346 = vpop.f32.mrf.mxu0
    %v2347 = vadd.f32 0.0, %v2346
    %v2348 = vpop.f32.mrf.mxu0
    %2349 = vmatprep.mubr.bf16.mxu0 0
    %2350 = vmatmul.mubr.bf16.gmra.mxu0 %v2144
    %v2351 = vpop.f32.mrf.mxu0
    %v2352 = vadd.f32 0.0, %v2351
    %v2353 = vpop.f32.mrf.mxu0
    %v2354 = vpop.f32.mrf.mxu0
    %v2355 = vadd.f32 0.0, %v2354
    %v2356 = vpop.f32.mrf.mxu0
    %2357 = vmatprep.mubr.bf16.mxu0 0
    %2358 = vmatmul.mubr.bf16.gmra.mxu0 %v2147
    %v2359 = vpop.f32.mrf.mxu0
    %v2360 = vadd.f32 0.0, %v2359
    %v2361 = vpop.f32.mrf.mxu0
    %v2362 = vpop.f32.mrf.mxu0
    %v2363 = vadd.f32 0.0, %v2362
    %v2364 = vpop.f32.mrf.mxu0
    %2365 = vmatprep.mubr.bf16.mxu0 0
    %2366 = vmatmul.mubr.bf16.gmra.mxu0 %v2150
    %v2367 = vpop.f32.mrf.mxu0
    %v2368 = vadd.f32 0.0, %v2367
    %v2369 = vpop.f32.mrf.mxu0
    %v2370 = vpop.f32.mrf.mxu0
    %v2371 = vadd.f32 0.0, %v2370
    %v2372 = vpop.f32.mrf.mxu0
    %2373 = vmatprep.mubr.bf16.mxu0 0
    %2374 = vmatmul.mubr.bf16.gmra.mxu0 %v2153
    %v2375 = vpop.f32.mrf.mxu0
    %v2376 = vadd.f32 0.0, %v2375
    %v2377 = vpop.f32.mrf.mxu0
    %v2378 = vpop.f32.mrf.mxu0
    %v2379 = vadd.f32 0.0, %v2378
    %v2380 = vpop.f32.mrf.mxu0
    %2381 = vmatprep.mubr.bf16.mxu0 0
    %2382 = vmatmul.mubr.bf16.gmra.mxu0 %v2156
    %v2383 = vpop.f32.mrf.mxu0
    %v2384 = vadd.f32 0.0, %v2383
    %v2385 = vpop.f32.mrf.mxu0
    %v2386 = vpop.f32.mrf.mxu0
    %v2387 = vadd.f32 0.0, %v2386
    %v2388 = vpop.f32.mrf.mxu0
    %2389 = vmatprep.mubr.bf16.mxu0 0
    %2390 = vmatmul.mubr.bf16.gmra.mxu0 %v2159
    %v2391 = vpop.f32.mrf.mxu0
    %v2392 = vadd.f32 0.0, %v2391
    %v2393 = vpop.f32.mrf.mxu0
    %v2394 = vpop.f32.mrf.mxu0
    %v2395 = vadd.f32 0.0, %v2394
    %v2396 = vpop.f32.mrf.mxu0
    %2397 = vmatprep.mubr.bf16.mxu0 0
    %2398 = vmatmul.mubr.bf16.gmra.mxu0 %v2162
    %v2399 = vpop.f32.mrf.mxu0
    %v2400 = vadd.f32 0.0, %v2399
    %v2401 = vpop.f32.mrf.mxu0
    %v2402 = vpop.f32.mrf.mxu0
    %v2403 = vadd.f32 0.0, %v2402
    %v2404 = vpop.f32.mrf.mxu0
    %2405 = vmatprep.mubr.bf16.mxu0 0
    %2406 = vmatmul.mubr.bf16.gmra.mxu0 %v2165
    %v2407 = vpop.f32.mrf.mxu0
    %v2408 = vadd.f32 0.0, %v2407
    %v2409 = vpop.f32.mrf.mxu0
    %v2410 = vpop.f32.mrf.mxu0
    %v2411 = vadd.f32 0.0, %v2410
    %v2412 = vpop.f32.mrf.mxu0
    %2413 = vmatprep.mubr.bf16.mxu0 0
    %2414 = vmatmul.mubr.bf16.gmra.mxu0 %v2168
    %v2415 = vpop.f32.mrf.mxu0
    %v2416 = vadd.f32 0.0, %v2415
    %v2417 = vpop.f32.mrf.mxu0
    %v2418 = vpop.f32.mrf.mxu0
    %v2419 = vadd.f32 0.0, %v2418
    %v2420 = vpop.f32.mrf.mxu0
    %2421 = vmatprep.mubr.bf16.mxu0 0
    %2422 = vmatmul.mubr.bf16.gmra.mxu0 %v2171
    %v2423 = vpop.f32.mrf.mxu0
    %v2424 = vadd.f32 0.0, %v2423
    %v2425 = vpop.f32.mrf.mxu0
    %v2426 = vpop.f32.mrf.mxu0
    %v2427 = vadd.f32 0.0, %v2426
    %v2428 = vpop.f32.mrf.mxu0
    %2429 = vmatprep.mubr.bf16.mxu0 0
    %2430 = vmatmul.mubr.bf16.gmra.mxu0 %v2174
    %v2431 = vpop.f32.mrf.mxu0
    %v2432 = vadd.f32 0.0, %v2431
    %v2433 = vpop.f32.mrf.mxu0
    %v2434 = vpop.f32.mrf.mxu0
    %v2435 = vadd.f32 0.0, %v2434
    %v2436 = vpop.f32.mrf.mxu0
    %2437 = vmatprep.mubr.bf16.mxu0 0
    %2438 = vmatmul.mubr.bf16.gmra.mxu0 %v2177
    %v2439 = vpop.f32.mrf.mxu0
    %v2440 = vadd.f32 0.0, %v2439
    %v2441 = vpop.f32.mrf.mxu0
    %v2442 = vpop.f32.mrf.mxu0
    %v2443 = vadd.f32 0.0, %v2442
    %v2444 = vpop.f32.mrf.mxu0
    %2445 = vmatprep.mubr.bf16.mxu0 0
    %2446 = vmatmul.mubr.bf16.gmra.mxu0 %v2180
    %v2447 = vpop.f32.mrf.mxu0
    %v2448 = vadd.f32 0.0, %v2447
    %v2449 = vpop.f32.mrf.mxu0
    %v2450 = vpop.f32.mrf.mxu0
    %v2451 = vadd.f32 0.0, %v2450
    %v2452 = vpop.f32.mrf.mxu0
    %2453 = vmatprep.mubr.bf16.mxu0 0
    %2454 = vmatmul.mubr.bf16.gmra.mxu0 %v2183
    %v2455 = vpop.f32.mrf.mxu0
    %v2456 = vadd.f32 0.0, %v2455
    %v2457 = vpop.f32.mrf.mxu0
    %v2458 = vpop.f32.mrf.mxu0
    %v2459 = vadd.f32 0.0, %v2458
    %v2460 = vpop.f32.mrf.mxu0
    %2461 = vmatprep.mubr.bf16.mxu0 0
    %2462 = vmatmul.mubr.bf16.gmra.mxu0 %v2186
    %v2463 = vpop.f32.mrf.mxu0
    %v2464 = vadd.f32 0.0, %v2463
    %v2465 = vpop.f32.mrf.mxu0
    %v2466 = vpop.f32.mrf.mxu0
    %v2467 = vadd.f32 0.0, %v2466
    %v2468 = vpop.f32.mrf.mxu0
    %2469 = vmatprep.mubr.bf16.mxu0 0
    %2470 = vmatmul.mubr.bf16.gmra.mxu0 %v2189
    %v2471 = vpop.f32.mrf.mxu0
    %v2472 = vadd.f32 0.0, %v2471
    %v2473 = vpop.f32.mrf.mxu0
    %v2474 = vpop.f32.mrf.mxu0
    %v2475 = vadd.f32 0.0, %v2474
    %v2476 = vpop.f32.mrf.mxu0
    %2477 = vmatprep.mubr.bf16.mxu0 0
    %2478 = vmatmul.mubr.bf16.gmra.mxu0 %v2192
    %v2479 = vpop.f32.mrf.mxu0
    %v2480 = vadd.f32 0.0, %v2479
    %v2481 = vpop.f32.mrf.mxu0
    %v2482 = vpop.f32.mrf.mxu0
    %v2483 = vadd.f32 0.0, %v2482
    %v2484 = vpop.f32.mrf.mxu0
    %2485 = vdwg.mxu0
    %v2486 = vadd.f32 %v1936, %v2232
    %v2487 = vadd.f32 %v1937, %v2235
    %v2488 = vadd.f32 %v1938, %v2240
    %v2489 = vadd.f32 %v1939, %v2243
    %v2490 = vadd.f32 %v1940, %v2248
    %v2491 = vadd.f32 %v1941, %v2251
    %v2492 = vadd.f32 %v1942, %v2256
    %v2493 = vadd.f32 %v1943, %v2259
    %v2494 = vadd.f32 %v1944, %v2264
    %v2495 = vadd.f32 %v1945, %v2267
    %v2496 = vadd.f32 %v1946, %v2272
    %v2497 = vadd.f32 %v1947, %v2275
    %v2498 = vadd.f32 %v1948, %v2280
    %v2499 = vadd.f32 %v1949, %v2283
    %v2500 = vadd.f32 %v1950, %v2288
    %v2501 = vadd.f32 %v1951, %v2291
    %v2502 = vadd.f32 %v1952, %v2296
    %v2503 = vadd.f32 %v1953, %v2299
    %v2504 = vadd.f32 %v1954, %v2304
    %v2505 = vadd.f32 %v1955, %v2307
    %v2506 = vadd.f32 %v1956, %v2312
    %v2507 = vadd.f32 %v1957, %v2315
    %v2508 = vadd.f32 %v1958, %v2320
    %v2509 = vadd.f32 %v1959, %v2323
    %v2510 = vadd.f32 %v1960, %v2328
    %v2511 = vadd.f32 %v1961, %v2331
    %v2512 = vadd.f32 %v1962, %v2336
    %v2513 = vadd.f32 %v1963, %v2339
    %v2514 = vadd.f32 %v1964, %v2344
    %v2515 = vadd.f32 %v1965, %v2347
    %v2516 = vadd.f32 %v1966, %v2352
    %v2517 = vadd.f32 %v1967, %v2355
    %v2518 = vadd.f32 %v1968, %v2360
    %v2519 = vadd.f32 %v1969, %v2363
    %v2520 = vadd.f32 %v1970, %v2368
    %v2521 = vadd.f32 %v1971, %v2371
    %v2522 = vadd.f32 %v1972, %v2376
    %v2523 = vadd.f32 %v1973, %v2379
    %v2524 = vadd.f32 %v1974, %v2384
    %v2525 = vadd.f32 %v1975, %v2387
    %v2526 = vadd.f32 %v1976, %v2392
    %v2527 = vadd.f32 %v1977, %v2395
    %v2528 = vadd.f32 %v1978, %v2400
    %v2529 = vadd.f32 %v1979, %v2403
    %v2530 = vadd.f32 %v1980, %v2408
    %v2531 = vadd.f32 %v1981, %v2411
    %v2532 = vadd.f32 %v1982, %v2416
    %v2533 = vadd.f32 %v1983, %v2419
    %v2534 = vadd.f32 %v1984, %v2424
    %v2535 = vadd.f32 %v1985, %v2427
    %v2536 = vadd.f32 %v1986, %v2432
    %v2537 = vadd.f32 %v1987, %v2435
    %v2538 = vadd.f32 %v1988, %v2440
    %v2539 = vadd.f32 %v1989, %v2443
    %v2540 = vadd.f32 %v1990, %v2448
    %v2541 = vadd.f32 %v1991, %v2451
    %v2542 = vadd.f32 %v1992, %v2456
    %v2543 = vadd.f32 %v1993, %v2459
    %v2544 = vadd.f32 %v1994, %v2464
    %v2545 = vadd.f32 %v1995, %v2467
    %v2546 = vadd.f32 %v1996, %v2472
    %v2547 = vadd.f32 %v1997, %v2475
    %v2548 = vadd.f32 %v1998, %v2480
    %v2549 = vadd.f32 %v1999, %v2483
    %v2550 = vld [vmem:[#allocation2 + $0x2] sm:$0xff]
    %v2551 = vld [vmem:[#allocation2 + $0xa] sm:$0xff]
    %v2552 = vld [vmem:[#allocation2 + $0x1a] sm:$0xff]
    %v2553 = vld [vmem:[#allocation2 + $0x22] sm:$0xff]
    %v2554 = vld [vmem:[#allocation2 + $0x32] sm:$0xff]
    %v2555 = vld [vmem:[#allocation2 + $0x3a] sm:$0xff]
    %v2556 = vld [vmem:[#allocation2 + $0x4a] sm:$0xff]
    %v2557 = vld [vmem:[#allocation2 + $0x52] sm:$0xff]
    %v2558 = vld [vmem:[#allocation2 + $0x62] sm:$0xff]
    %v2559 = vld [vmem:[#allocation2 + $0x6a] sm:$0xff]
    %v2560 = vld [vmem:[#allocation2 + $0x7a] sm:$0xff]
    %v2561 = vld [vmem:[#allocation2 + $0x82] sm:$0xff]
    %v2562 = vld [vmem:[#allocation2 + $0x92] sm:$0xff]
    %v2563 = vld [vmem:[#allocation2 + $0x9a] sm:$0xff]
    %v2564 = vld [vmem:[#allocation2 + $0xaa] sm:$0xff]
    %v2565 = vld [vmem:[#allocation2 + $0xb2] sm:$0xff]
    %v2566 = vld [vmem:[#allocation2 + $0xc2] sm:$0xff]
    %v2567 = vld [vmem:[#allocation2 + $0xca] sm:$0xff]
    %v2568 = vld [vmem:[#allocation2 + $0xda] sm:$0xff]
    %v2569 = vld [vmem:[#allocation2 + $0xe2] sm:$0xff]
    %v2570 = vld [vmem:[#allocation2 + $0xf2] sm:$0xff]
    %v2571 = vld [vmem:[#allocation2 + $0xfa] sm:$0xff]
    %v2572 = vld [vmem:[#allocation2 + $0x10a] sm:$0xff]
    %v2573 = vld [vmem:[#allocation2 + $0x112] sm:$0xff]
    %v2574 = vld [vmem:[#allocation2 + $0x122] sm:$0xff]
    %v2575 = vld [vmem:[#allocation2 + $0x12a] sm:$0xff]
    %v2576 = vld [vmem:[#allocation2 + $0x13a] sm:$0xff]
    %v2577 = vld [vmem:[#allocation2 + $0x142] sm:$0xff]
    %v2578 = vld [vmem:[#allocation2 + $0x152] sm:$0xff]
    %v2579 = vld [vmem:[#allocation2 + $0x15a] sm:$0xff]
    %v2580 = vld [vmem:[#allocation2 + $0x16a] sm:$0xff]
    %v2581 = vld [vmem:[#allocation2 + $0x172] sm:$0xff]
    %v2582 = vld [vmem:[#allocation2 + $0x1b2] sm:$0xff]
    %v2583 = vld [vmem:[#allocation2 + $0x1ba] sm:$0xff]
    %v2584 = vld [vmem:[#allocation2 + $0x1ca] sm:$0xff]
    %v2585 = vld [vmem:[#allocation2 + $0x1d2] sm:$0xff]
    %v2586 = vld [vmem:[#allocation2 + $0x1e2] sm:$0xff]
    %v2587 = vld [vmem:[#allocation2 + $0x1ea] sm:$0xff]
    %v2588 = vld [vmem:[#allocation2 + $0x1fa] sm:$0xff]
    %v2589 = vld [vmem:[#allocation2 + $0x202] sm:$0xff]
    %v2590 = vld [vmem:[#allocation2 + $0x212] sm:$0xff]
    %v2591 = vld [vmem:[#allocation2 + $0x21a] sm:$0xff]
    %v2592 = vld [vmem:[#allocation2 + $0x22a] sm:$0xff]
    %v2593 = vld [vmem:[#allocation2 + $0x232] sm:$0xff]
    %v2594 = vld [vmem:[#allocation2 + $0x242] sm:$0xff]
    %v2595 = vld [vmem:[#allocation2 + $0x24a] sm:$0xff]
    %v2596 = vld [vmem:[#allocation2 + $0x25a] sm:$0xff]
    %v2597 = vld [vmem:[#allocation2 + $0x262] sm:$0xff]
    %v2598 = vld [vmem:[#allocation2 + $0x272] sm:$0xff]
    %v2599 = vld [vmem:[#allocation2 + $0x27a] sm:$0xff]
    %v2600 = vld [vmem:[#allocation2 + $0x28a] sm:$0xff]
    %v2601 = vld [vmem:[#allocation2 + $0x292] sm:$0xff]
    %v2602 = vld [vmem:[#allocation2 + $0x2a2] sm:$0xff]
    %v2603 = vld [vmem:[#allocation2 + $0x2aa] sm:$0xff]
    %v2604 = vld [vmem:[#allocation2 + $0x2ba] sm:$0xff]
    %v2605 = vld [vmem:[#allocation2 + $0x2c2] sm:$0xff]
    %v2606 = vld [vmem:[#allocation2 + $0x2d2] sm:$0xff]
    %v2607 = vld [vmem:[#allocation2 + $0x2da] sm:$0xff]
    %v2608 = vld [vmem:[#allocation2 + $0x2ea] sm:$0xff]
    %v2609 = vld [vmem:[#allocation2 + $0x2f2] sm:$0xff]
    %v2610 = vld [vmem:[#allocation2 + $0x302] sm:$0xff]
    %v2611 = vld [vmem:[#allocation2 + $0x30a] sm:$0xff]
    %v2612 = vld [vmem:[#allocation2 + $0x31a] sm:$0xff]
    %v2613 = vld [vmem:[#allocation2 + $0x322] sm:$0xff]
    %v2614 = vpack.c.bf16 %v2551, %v2550
    %v2615 = vpack.c.bf16 %v2553, %v2552
    %v2616 = vpack.c.bf16 %v2555, %v2554
    %v2617 = vpack.c.bf16 %v2557, %v2556
    %v2618 = vpack.c.bf16 %v2559, %v2558
    %v2619 = vpack.c.bf16 %v2561, %v2560
    %v2620 = vpack.c.bf16 %v2563, %v2562
    %v2621 = vpack.c.bf16 %v2565, %v2564
    %v2622 = vpack.c.bf16 %v2567, %v2566
    %v2623 = vpack.c.bf16 %v2569, %v2568
    %v2624 = vpack.c.bf16 %v2571, %v2570
    %v2625 = vpack.c.bf16 %v2573, %v2572
    %v2626 = vpack.c.bf16 %v2575, %v2574
    %v2627 = vpack.c.bf16 %v2577, %v2576
    %v2628 = vpack.c.bf16 %v2579, %v2578
    %v2629 = vpack.c.bf16 %v2581, %v2580
    %v2630 = vpack.c.bf16 %v2583, %v2582
    %v2631 = vpack.c.bf16 %v2585, %v2584
    %v2632 = vpack.c.bf16 %v2587, %v2586
    %v2633 = vpack.c.bf16 %v2589, %v2588
    %v2634 = vpack.c.bf16 %v2591, %v2590
    %v2635 = vpack.c.bf16 %v2593, %v2592
    %v2636 = vpack.c.bf16 %v2595, %v2594
    %v2637 = vpack.c.bf16 %v2597, %v2596
    %v2638 = vpack.c.bf16 %v2599, %v2598
    %v2639 = vpack.c.bf16 %v2601, %v2600
    %v2640 = vpack.c.bf16 %v2603, %v2602
    %v2641 = vpack.c.bf16 %v2605, %v2604
    %v2642 = vpack.c.bf16 %v2607, %v2606
    %v2643 = vpack.c.bf16 %v2609, %v2608
    %v2644 = vpack.c.bf16 %v2611, %v2610
    %v2645 = vpack.c.bf16 %v2613, %v2612
    %s2646 = scalar_lea.vmem %s3, 8
    %v2647 = vld [vmem:[%s2646] sm:$0xf]
    %v2649 = vsel %vm25, %v2614, 0
    %v2652 = vsel %vm25, %v2615, 0
    %v2655 = vsel %vm25, %v2616, 0
    %v2658 = vsel %vm25, %v2617, 0
    %v2661 = vsel %vm25, %v2618, 0
    %v2664 = vsel %vm25, %v2619, 0
    %v2667 = vsel %vm25, %v2620, 0
    %v2670 = vsel %vm25, %v2621, 0
    %v2673 = vsel %vm25, %v2622, 0
    %v2676 = vsel %vm25, %v2623, 0
    %v2679 = vsel %vm25, %v2624, 0
    %v2682 = vsel %vm25, %v2625, 0
    %v2685 = vsel %vm25, %v2626, 0
    %v2688 = vsel %vm25, %v2627, 0
    %v2691 = vsel %vm25, %v2628, 0
    %v2694 = vsel %vm25, %v2629, 0
    %v2697 = vsel %vm25, %v2630, 0
    %v2700 = vsel %vm25, %v2631, 0
    %v2703 = vsel %vm25, %v2632, 0
    %v2706 = vsel %vm25, %v2633, 0
    %v2709 = vsel %vm25, %v2634, 0
    %v2712 = vsel %vm25, %v2635, 0
    %v2715 = vsel %vm25, %v2636, 0
    %v2718 = vsel %vm25, %v2637, 0
    %v2721 = vsel %vm25, %v2638, 0
    %v2724 = vsel %vm25, %v2639, 0
    %v2727 = vsel %vm25, %v2640, 0
    %v2730 = vsel %vm25, %v2641, 0
    %v2733 = vsel %vm25, %v2642, 0
    %v2736 = vsel %vm25, %v2643, 0
    %v2739 = vsel %vm25, %v2644, 0
    %v2742 = vsel %vm25, %v2645, 0
    %v2745 = vsel %vm1643, %v2647, 0
    %2747 = vmatprep.subr.bf16.mxu0 0
    %2748 = vmatpush1.bf16.msra.mxu0 0
    %2749 = vmatprep.subr.bf16.mxu0 0
    %2750 = vmatpush1.bf16.msra.mxu0 0
    %2751 = vmatprep.subr.bf16.mxu0 0
    %2752 = vmatpush1.bf16.msra.mxu0 0
    %2753 = vmatprep.subr.bf16.mxu0 0
    %2754 = vmatpush1.bf16.msra.mxu0 0
    %2755 = vmatprep.subr.bf16.mxu0 0
    %2756 = vmatpush1.bf16.msra.mxu0 0
    %2757 = vmatprep.subr.bf16.mxu0 0
    %2758 = vmatpush1.bf16.msra.mxu0 0
    %2759 = vmatprep.subr.bf16.mxu0 0
    %2760 = vmatpush1.bf16.msra.mxu0 0
    %2761 = vmatprep.subr.bf16.mxu0 0
    %2762 = vmatpush1.bf16.msra.mxu0 %v2745
    %2763 = vmatprep.subr.bf16.mxu0 0
    %2764 = vmatpush2.bf16.msra.mxu0 0
    %2765 = vmatprep.subr.bf16.mxu0 0
    %2766 = vmatpush2.bf16.msra.mxu0 0
    %2767 = vmatprep.subr.bf16.mxu0 0
    %2768 = vmatpush2.bf16.msra.mxu0 0
    %2769 = vmatprep.subr.bf16.mxu0 0
    %2770 = vmatpush2.bf16.msra.mxu0 0
    %2771 = vmatprep.subr.bf16.mxu0 0
    %2772 = vmatpush2.bf16.msra.mxu0 0
    %2773 = vmatprep.subr.bf16.mxu0 0
    %2774 = vmatpush2.bf16.msra.mxu0 0
    %2775 = vmatprep.subr.bf16.mxu0 0
    %2776 = vmatpush2.bf16.msra.mxu0 0
    %2777 = vmatprep.subr.bf16.mxu0 0
    %2778 = vmatpush2.bf16.msra.mxu0 0
    %2779 = vmatprep.mubr.bf16.mxu0 0
    %2780 = vmatmul.mubr.bf16.gmra.mxu0 %v2649
    %v2781 = vpop.f32.mrf.mxu0
    %v2782 = vadd.f32 0.0, %v2781
    %v2783 = vpop.f32.mrf.mxu0
    %v2784 = vpop.f32.mrf.mxu0
    %v2785 = vadd.f32 0.0, %v2784
    %v2786 = vpop.f32.mrf.mxu0
    %2787 = vmatprep.mubr.bf16.mxu0 0
    %2788 = vmatmul.mubr.bf16.gmra.mxu0 %v2652
    %v2789 = vpop.f32.mrf.mxu0
    %v2790 = vadd.f32 0.0, %v2789
    %v2791 = vpop.f32.mrf.mxu0
    %v2792 = vpop.f32.mrf.mxu0
    %v2793 = vadd.f32 0.0, %v2792
    %v2794 = vpop.f32.mrf.mxu0
    %2795 = vmatprep.mubr.bf16.mxu0 0
    %2796 = vmatmul.mubr.bf16.gmra.mxu0 %v2655
    %v2797 = vpop.f32.mrf.mxu0
    %v2798 = vadd.f32 0.0, %v2797
    %v2799 = vpop.f32.mrf.mxu0
    %v2800 = vpop.f32.mrf.mxu0
    %v2801 = vadd.f32 0.0, %v2800
    %v2802 = vpop.f32.mrf.mxu0
    %2803 = vmatprep.mubr.bf16.mxu0 0
    %2804 = vmatmul.mubr.bf16.gmra.mxu0 %v2658
    %v2805 = vpop.f32.mrf.mxu0
    %v2806 = vadd.f32 0.0, %v2805
    %v2807 = vpop.f32.mrf.mxu0
    %v2808 = vpop.f32.mrf.mxu0
    %v2809 = vadd.f32 0.0, %v2808
    %v2810 = vpop.f32.mrf.mxu0
    %2811 = vmatprep.mubr.bf16.mxu0 0
    %2812 = vmatmul.mubr.bf16.gmra.mxu0 %v2661
    %v2813 = vpop.f32.mrf.mxu0
    %v2814 = vadd.f32 0.0, %v2813
    %v2815 = vpop.f32.mrf.mxu0
    %v2816 = vpop.f32.mrf.mxu0
    %v2817 = vadd.f32 0.0, %v2816
    %v2818 = vpop.f32.mrf.mxu0
    %2819 = vmatprep.mubr.bf16.mxu0 0
    %2820 = vmatmul.mubr.bf16.gmra.mxu0 %v2664
    %v2821 = vpop.f32.mrf.mxu0
    %v2822 = vadd.f32 0.0, %v2821
    %v2823 = vpop.f32.mrf.mxu0
    %v2824 = vpop.f32.mrf.mxu0
    %v2825 = vadd.f32 0.0, %v2824
    %v2826 = vpop.f32.mrf.mxu0
    %2827 = vmatprep.mubr.bf16.mxu0 0
    %2828 = vmatmul.mubr.bf16.gmra.mxu0 %v2667
    %v2829 = vpop.f32.mrf.mxu0
    %v2830 = vadd.f32 0.0, %v2829
    %v2831 = vpop.f32.mrf.mxu0
    %v2832 = vpop.f32.mrf.mxu0
    %v2833 = vadd.f32 0.0, %v2832
    %v2834 = vpop.f32.mrf.mxu0
    %2835 = vmatprep.mubr.bf16.mxu0 0
    %2836 = vmatmul.mubr.bf16.gmra.mxu0 %v2670
    %v2837 = vpop.f32.mrf.mxu0
    %v2838 = vadd.f32 0.0, %v2837
    %v2839 = vpop.f32.mrf.mxu0
    %v2840 = vpop.f32.mrf.mxu0
    %v2841 = vadd.f32 0.0, %v2840
    %v2842 = vpop.f32.mrf.mxu0
    %2843 = vmatprep.mubr.bf16.mxu0 0
    %2844 = vmatmul.mubr.bf16.gmra.mxu0 %v2673
    %v2845 = vpop.f32.mrf.mxu0
    %v2846 = vadd.f32 0.0, %v2845
    %v2847 = vpop.f32.mrf.mxu0
    %v2848 = vpop.f32.mrf.mxu0
    %v2849 = vadd.f32 0.0, %v2848
    %v2850 = vpop.f32.mrf.mxu0
    %2851 = vmatprep.mubr.bf16.mxu0 0
    %2852 = vmatmul.mubr.bf16.gmra.mxu0 %v2676
    %v2853 = vpop.f32.mrf.mxu0
    %v2854 = vadd.f32 0.0, %v2853
    %v2855 = vpop.f32.mrf.mxu0
    %v2856 = vpop.f32.mrf.mxu0
    %v2857 = vadd.f32 0.0, %v2856
    %v2858 = vpop.f32.mrf.mxu0
    %2859 = vmatprep.mubr.bf16.mxu0 0
    %2860 = vmatmul.mubr.bf16.gmra.mxu0 %v2679
    %v2861 = vpop.f32.mrf.mxu0
    %v2862 = vadd.f32 0.0, %v2861
    %v2863 = vpop.f32.mrf.mxu0
    %v2864 = vpop.f32.mrf.mxu0
    %v2865 = vadd.f32 0.0, %v2864
    %v2866 = vpop.f32.mrf.mxu0
    %2867 = vmatprep.mubr.bf16.mxu0 0
    %2868 = vmatmul.mubr.bf16.gmra.mxu0 %v2682
    %v2869 = vpop.f32.mrf.mxu0
    %v2870 = vadd.f32 0.0, %v2869
    %v2871 = vpop.f32.mrf.mxu0
    %v2872 = vpop.f32.mrf.mxu0
    %v2873 = vadd.f32 0.0, %v2872
    %v2874 = vpop.f32.mrf.mxu0
    %2875 = vmatprep.mubr.bf16.mxu0 0
    %2876 = vmatmul.mubr.bf16.gmra.mxu0 %v2685
    %v2877 = vpop.f32.mrf.mxu0
    %v2878 = vadd.f32 0.0, %v2877
    %v2879 = vpop.f32.mrf.mxu0
    %v2880 = vpop.f32.mrf.mxu0
    %v2881 = vadd.f32 0.0, %v2880
    %v2882 = vpop.f32.mrf.mxu0
    %2883 = vmatprep.mubr.bf16.mxu0 0
    %2884 = vmatmul.mubr.bf16.gmra.mxu0 %v2688
    %v2885 = vpop.f32.mrf.mxu0
    %v2886 = vadd.f32 0.0, %v2885
    %v2887 = vpop.f32.mrf.mxu0
    %v2888 = vpop.f32.mrf.mxu0
    %v2889 = vadd.f32 0.0, %v2888
    %v2890 = vpop.f32.mrf.mxu0
    %2891 = vmatprep.mubr.bf16.mxu0 0
    %2892 = vmatmul.mubr.bf16.gmra.mxu0 %v2691
    %v2893 = vpop.f32.mrf.mxu0
    %v2894 = vadd.f32 0.0, %v2893
    %v2895 = vpop.f32.mrf.mxu0
    %v2896 = vpop.f32.mrf.mxu0
    %v2897 = vadd.f32 0.0, %v2896
    %v2898 = vpop.f32.mrf.mxu0
    %2899 = vmatprep.mubr.bf16.mxu0 0
    %2900 = vmatmul.mubr.bf16.gmra.mxu0 %v2694
    %v2901 = vpop.f32.mrf.mxu0
    %v2902 = vadd.f32 0.0, %v2901
    %v2903 = vpop.f32.mrf.mxu0
    %v2904 = vpop.f32.mrf.mxu0
    %v2905 = vadd.f32 0.0, %v2904
    %v2906 = vpop.f32.mrf.mxu0
    %2907 = vmatprep.mubr.bf16.mxu0 0
    %2908 = vmatmul.mubr.bf16.gmra.mxu0 %v2697
    %v2909 = vpop.f32.mrf.mxu0
    %v2910 = vadd.f32 0.0, %v2909
    %v2911 = vpop.f32.mrf.mxu0
    %v2912 = vpop.f32.mrf.mxu0
    %v2913 = vadd.f32 0.0, %v2912
    %v2914 = vpop.f32.mrf.mxu0
    %2915 = vmatprep.mubr.bf16.mxu0 0
    %2916 = vmatmul.mubr.bf16.gmra.mxu0 %v2700
    %v2917 = vpop.f32.mrf.mxu0
    %v2918 = vadd.f32 0.0, %v2917
    %v2919 = vpop.f32.mrf.mxu0
    %v2920 = vpop.f32.mrf.mxu0
    %v2921 = vadd.f32 0.0, %v2920
    %v2922 = vpop.f32.mrf.mxu0
    %2923 = vmatprep.mubr.bf16.mxu0 0
    %2924 = vmatmul.mubr.bf16.gmra.mxu0 %v2703
    %v2925 = vpop.f32.mrf.mxu0
    %v2926 = vadd.f32 0.0, %v2925
    %v2927 = vpop.f32.mrf.mxu0
    %v2928 = vpop.f32.mrf.mxu0
    %v2929 = vadd.f32 0.0, %v2928
    %v2930 = vpop.f32.mrf.mxu0
    %2931 = vmatprep.mubr.bf16.mxu0 0
    %2932 = vmatmul.mubr.bf16.gmra.mxu0 %v2706
    %v2933 = vpop.f32.mrf.mxu0
    %v2934 = vadd.f32 0.0, %v2933
    %v2935 = vpop.f32.mrf.mxu0
    %v2936 = vpop.f32.mrf.mxu0
    %v2937 = vadd.f32 0.0, %v2936
    %v2938 = vpop.f32.mrf.mxu0
    %2939 = vmatprep.mubr.bf16.mxu0 0
    %2940 = vmatmul.mubr.bf16.gmra.mxu0 %v2709
    %v2941 = vpop.f32.mrf.mxu0
    %v2942 = vadd.f32 0.0, %v2941
    %v2943 = vpop.f32.mrf.mxu0
    %v2944 = vpop.f32.mrf.mxu0
    %v2945 = vadd.f32 0.0, %v2944
    %v2946 = vpop.f32.mrf.mxu0
    %2947 = vmatprep.mubr.bf16.mxu0 0
    %2948 = vmatmul.mubr.bf16.gmra.mxu0 %v2712
    %v2949 = vpop.f32.mrf.mxu0
    %v2950 = vadd.f32 0.0, %v2949
    %v2951 = vpop.f32.mrf.mxu0
    %v2952 = vpop.f32.mrf.mxu0
    %v2953 = vadd.f32 0.0, %v2952
    %v2954 = vpop.f32.mrf.mxu0
    %2955 = vmatprep.mubr.bf16.mxu0 0
    %2956 = vmatmul.mubr.bf16.gmra.mxu0 %v2715
    %v2957 = vpop.f32.mrf.mxu0
    %v2958 = vadd.f32 0.0, %v2957
    %v2959 = vpop.f32.mrf.mxu0
    %v2960 = vpop.f32.mrf.mxu0
    %v2961 = vadd.f32 0.0, %v2960
    %v2962 = vpop.f32.mrf.mxu0
    %2963 = vmatprep.mubr.bf16.mxu0 0
    %2964 = vmatmul.mubr.bf16.gmra.mxu0 %v2718
    %v2965 = vpop.f32.mrf.mxu0
    %v2966 = vadd.f32 0.0, %v2965
    %v2967 = vpop.f32.mrf.mxu0
    %v2968 = vpop.f32.mrf.mxu0
    %v2969 = vadd.f32 0.0, %v2968
    %v2970 = vpop.f32.mrf.mxu0
    %2971 = vmatprep.mubr.bf16.mxu0 0
    %2972 = vmatmul.mubr.bf16.gmra.mxu0 %v2721
    %v2973 = vpop.f32.mrf.mxu0
    %v2974 = vadd.f32 0.0, %v2973
    %v2975 = vpop.f32.mrf.mxu0
    %v2976 = vpop.f32.mrf.mxu0
    %v2977 = vadd.f32 0.0, %v2976
    %v2978 = vpop.f32.mrf.mxu0
    %2979 = vmatprep.mubr.bf16.mxu0 0
    %2980 = vmatmul.mubr.bf16.gmra.mxu0 %v2724
    %v2981 = vpop.f32.mrf.mxu0
    %v2982 = vadd.f32 0.0, %v2981
    %v2983 = vpop.f32.mrf.mxu0
    %v2984 = vpop.f32.mrf.mxu0
    %v2985 = vadd.f32 0.0, %v2984
    %v2986 = vpop.f32.mrf.mxu0
    %2987 = vmatprep.mubr.bf16.mxu0 0
    %2988 = vmatmul.mubr.bf16.gmra.mxu0 %v2727
    %v2989 = vpop.f32.mrf.mxu0
    %v2990 = vadd.f32 0.0, %v2989
    %v2991 = vpop.f32.mrf.mxu0
    %v2992 = vpop.f32.mrf.mxu0
    %v2993 = vadd.f32 0.0, %v2992
    %v2994 = vpop.f32.mrf.mxu0
    %2995 = vmatprep.mubr.bf16.mxu0 0
    %2996 = vmatmul.mubr.bf16.gmra.mxu0 %v2730
    %v2997 = vpop.f32.mrf.mxu0
    %v2998 = vadd.f32 0.0, %v2997
    %v2999 = vpop.f32.mrf.mxu0
    %v3000 = vpop.f32.mrf.mxu0
    %v3001 = vadd.f32 0.0, %v3000
    %v3002 = vpop.f32.mrf.mxu0
    %3003 = vmatprep.mubr.bf16.mxu0 0
    %3004 = vmatmul.mubr.bf16.gmra.mxu0 %v2733
    %v3005 = vpop.f32.mrf.mxu0
    %v3006 = vadd.f32 0.0, %v3005
    %v3007 = vpop.f32.mrf.mxu0
    %v3008 = vpop.f32.mrf.mxu0
    %v3009 = vadd.f32 0.0, %v3008
    %v3010 = vpop.f32.mrf.mxu0
    %3011 = vmatprep.mubr.bf16.mxu0 0
    %3012 = vmatmul.mubr.bf16.gmra.mxu0 %v2736
    %v3013 = vpop.f32.mrf.mxu0
    %v3014 = vadd.f32 0.0, %v3013
    %v3015 = vpop.f32.mrf.mxu0
    %v3016 = vpop.f32.mrf.mxu0
    %v3017 = vadd.f32 0.0, %v3016
    %v3018 = vpop.f32.mrf.mxu0
    %3019 = vmatprep.mubr.bf16.mxu0 0
    %3020 = vmatmul.mubr.bf16.gmra.mxu0 %v2739
    %v3021 = vpop.f32.mrf.mxu0
    %v3022 = vadd.f32 0.0, %v3021
    %v3023 = vpop.f32.mrf.mxu0
    %v3024 = vpop.f32.mrf.mxu0
    %v3025 = vadd.f32 0.0, %v3024
    %v3026 = vpop.f32.mrf.mxu0
    %3027 = vmatprep.mubr.bf16.mxu0 0
    %3028 = vmatmul.mubr.bf16.gmra.mxu0 %v2742
    %v3029 = vpop.f32.mrf.mxu0
    %v3030 = vadd.f32 0.0, %v3029
    %v3031 = vpop.f32.mrf.mxu0
    %v3032 = vpop.f32.mrf.mxu0
    %v3033 = vadd.f32 0.0, %v3032
    %v3034 = vpop.f32.mrf.mxu0
    %3035 = vdwg.mxu0
    %v3036 = vadd.f32 %v2486, %v2782
    %v3037 = vadd.f32 %v2487, %v2785
    %v3038 = vadd.f32 %v2488, %v2790
    %v3039 = vadd.f32 %v2489, %v2793
    %v3040 = vadd.f32 %v2490, %v2798
    %v3041 = vadd.f32 %v2491, %v2801
    %v3042 = vadd.f32 %v2492, %v2806
    %v3043 = vadd.f32 %v2493, %v2809
    %v3044 = vadd.f32 %v2494, %v2814
    %v3045 = vadd.f32 %v2495, %v2817
    %v3046 = vadd.f32 %v2496, %v2822
    %v3047 = vadd.f32 %v2497, %v2825
    %v3048 = vadd.f32 %v2498, %v2830
    %v3049 = vadd.f32 %v2499, %v2833
    %v3050 = vadd.f32 %v2500, %v2838
    %v3051 = vadd.f32 %v2501, %v2841
    %v3052 = vadd.f32 %v2502, %v2846
    %v3053 = vadd.f32 %v2503, %v2849
    %v3054 = vadd.f32 %v2504, %v2854
    %v3055 = vadd.f32 %v2505, %v2857
    %v3056 = vadd.f32 %v2506, %v2862
    %v3057 = vadd.f32 %v2507, %v2865
    %v3058 = vadd.f32 %v2508, %v2870
    %v3059 = vadd.f32 %v2509, %v2873
    %v3060 = vadd.f32 %v2510, %v2878
    %v3061 = vadd.f32 %v2511, %v2881
    %v3062 = vadd.f32 %v2512, %v2886
    %v3063 = vadd.f32 %v2513, %v2889
    %v3064 = vadd.f32 %v2514, %v2894
    %v3065 = vadd.f32 %v2515, %v2897
    %v3066 = vadd.f32 %v2516, %v2902
    %v3067 = vadd.f32 %v2517, %v2905
    %v3068 = vadd.f32 %v2518, %v2910
    %v3069 = vadd.f32 %v2519, %v2913
    %v3070 = vadd.f32 %v2520, %v2918
    %v3071 = vadd.f32 %v2521, %v2921
    %v3072 = vadd.f32 %v2522, %v2926
    %v3073 = vadd.f32 %v2523, %v2929
    %v3074 = vadd.f32 %v2524, %v2934
    %v3075 = vadd.f32 %v2525, %v2937
    %v3076 = vadd.f32 %v2526, %v2942
    %v3077 = vadd.f32 %v2527, %v2945
    %v3078 = vadd.f32 %v2528, %v2950
    %v3079 = vadd.f32 %v2529, %v2953
    %v3080 = vadd.f32 %v2530, %v2958
    %v3081 = vadd.f32 %v2531, %v2961
    %v3082 = vadd.f32 %v2532, %v2966
    %v3083 = vadd.f32 %v2533, %v2969
    %v3084 = vadd.f32 %v2534, %v2974
    %v3085 = vadd.f32 %v2535, %v2977
    %v3086 = vadd.f32 %v2536, %v2982
    %v3087 = vadd.f32 %v2537, %v2985
    %v3088 = vadd.f32 %v2538, %v2990
    %v3089 = vadd.f32 %v2539, %v2993
    %v3090 = vadd.f32 %v2540, %v2998
    %v3091 = vadd.f32 %v2541, %v3001
    %v3092 = vadd.f32 %v2542, %v3006
    %v3093 = vadd.f32 %v2543, %v3009
    %v3094 = vadd.f32 %v2544, %v3014
    %v3095 = vadd.f32 %v2545, %v3017
    %v3096 = vadd.f32 %v2546, %v3022
    %v3097 = vadd.f32 %v2547, %v3025
    %v3098 = vadd.f32 %v2548, %v3030
    %v3099 = vadd.f32 %v2549, %v3033
    %v3100 = vld [vmem:[%s40] sm:$0xff]
    %v3101 = vld [vmem:[%s40 + $0x8] sm:$0xff]
    %v3102 = vld [vmem:[%s40 + $0x18] sm:$0xff]
    %v3103 = vld [vmem:[%s40 + $0x20] sm:$0xff]
    %v3104 = vld [vmem:[%s40 + $0x30] sm:$0xff]
    %v3105 = vld [vmem:[%s40 + $0x38] sm:$0xff]
    %v3106 = vld [vmem:[%s40 + $0x48] sm:$0xff]
    %v3107 = vld [vmem:[%s40 + $0x50] sm:$0xff]
    %v3108 = vld [vmem:[%s40 + $0x60] sm:$0xff]
    %v3109 = vld [vmem:[%s40 + $0x68] sm:$0xff]
    %v3110 = vld [vmem:[%s40 + $0x78] sm:$0xff]
    %v3111 = vld [vmem:[%s40 + $0x80] sm:$0xff]
    %v3112 = vld [vmem:[%s40 + $0x90] sm:$0xff]
    %v3113 = vld [vmem:[%s40 + $0x98] sm:$0xff]
    %v3114 = vld [vmem:[%s40 + $0xa8] sm:$0xff]
    %v3115 = vld [vmem:[%s40 + $0xb0] sm:$0xff]
    %v3116 = vld [vmem:[%s40 + $0xc0] sm:$0xff]
    %v3117 = vld [vmem:[%s40 + $0xc8] sm:$0xff]
    %v3118 = vld [vmem:[%s40 + $0xd8] sm:$0xff]
    %v3119 = vld [vmem:[%s40 + $0xe0] sm:$0xff]
    %v3120 = vld [vmem:[%s40 + $0xf0] sm:$0xff]
    %v3121 = vld [vmem:[%s40 + $0xf8] sm:$0xff]
    %v3122 = vld [vmem:[%s40 + $0x108] sm:$0xff]
    %v3123 = vld [vmem:[%s40 + $0x110] sm:$0xff]
    %v3124 = vld [vmem:[%s40 + $0x120] sm:$0xff]
    %v3125 = vld [vmem:[%s40 + $0x128] sm:$0xff]
    %v3126 = vld [vmem:[%s40 + $0x138] sm:$0xff]
    %v3127 = vld [vmem:[%s40 + $0x140] sm:$0xff]
    %v3128 = vld [vmem:[%s40 + $0x150] sm:$0xff]
    %v3129 = vld [vmem:[%s40 + $0x158] sm:$0xff]
    %v3130 = vld [vmem:[%s40 + $0x168] sm:$0xff]
    %v3131 = vld [vmem:[%s40 + $0x170] sm:$0xff]
    %v3132 = vld [vmem:[%s40 + $0x1b0] sm:$0xff]
    %v3133 = vld [vmem:[%s40 + $0x1b8] sm:$0xff]
    %v3134 = vld [vmem:[%s40 + $0x1c8] sm:$0xff]
    %v3135 = vld [vmem:[%s40 + $0x1d0] sm:$0xff]
    %v3136 = vld [vmem:[%s40 + $0x1e0] sm:$0xff]
    %v3137 = vld [vmem:[%s40 + $0x1e8] sm:$0xff]
    %v3138 = vld [vmem:[%s40 + $0x1f8] sm:$0xff]
    %v3139 = vld [vmem:[%s40 + $0x200] sm:$0xff]
    %v3140 = vld [vmem:[%s40 + $0x210] sm:$0xff]
    %v3141 = vld [vmem:[%s40 + $0x218] sm:$0xff]
    %v3142 = vld [vmem:[%s40 + $0x228] sm:$0xff]
    %v3143 = vld [vmem:[%s40 + $0x230] sm:$0xff]
    %v3144 = vld [vmem:[%s40 + $0x240] sm:$0xff]
    %v3145 = vld [vmem:[%s40 + $0x248] sm:$0xff]
    %v3146 = vld [vmem:[%s40 + $0x258] sm:$0xff]
    %v3147 = vld [vmem:[%s40 + $0x260] sm:$0xff]
    %v3148 = vld [vmem:[%s40 + $0x270] sm:$0xff]
    %v3149 = vld [vmem:[%s40 + $0x278] sm:$0xff]
    %v3150 = vld [vmem:[%s40 + $0x288] sm:$0xff]
    %v3151 = vld [vmem:[%s40 + $0x290] sm:$0xff]
    %v3152 = vld [vmem:[%s40 + $0x2a0] sm:$0xff]
    %v3153 = vld [vmem:[%s40 + $0x2a8] sm:$0xff]
    %v3154 = vld [vmem:[%s40 + $0x2b8] sm:$0xff]
    %v3155 = vld [vmem:[%s40 + $0x2c0] sm:$0xff]
    %v3156 = vld [vmem:[%s40 + $0x2d0] sm:$0xff]
    %v3157 = vld [vmem:[%s40 + $0x2d8] sm:$0xff]
    %v3158 = vld [vmem:[%s40 + $0x2e8] sm:$0xff]
    %v3159 = vld [vmem:[%s40 + $0x2f0] sm:$0xff]
    %v3160 = vld [vmem:[%s40 + $0x300] sm:$0xff]
    %v3161 = vld [vmem:[%s40 + $0x308] sm:$0xff]
    %v3162 = vld [vmem:[%s40 + $0x318] sm:$0xff]
    %v3163 = vld [vmem:[%s40 + $0x320] sm:$0xff]
    %v3164 = vpack.c.bf16 %v3101, %v3100
    %v3165 = vpack.c.bf16 %v3103, %v3102
    %v3166 = vpack.c.bf16 %v3105, %v3104
    %v3167 = vpack.c.bf16 %v3107, %v3106
    %v3168 = vpack.c.bf16 %v3109, %v3108
    %v3169 = vpack.c.bf16 %v3111, %v3110
    %v3170 = vpack.c.bf16 %v3113, %v3112
    %v3171 = vpack.c.bf16 %v3115, %v3114
    %v3172 = vpack.c.bf16 %v3117, %v3116
    %v3173 = vpack.c.bf16 %v3119, %v3118
    %v3174 = vpack.c.bf16 %v3121, %v3120
    %v3175 = vpack.c.bf16 %v3123, %v3122
    %v3176 = vpack.c.bf16 %v3125, %v3124
    %v3177 = vpack.c.bf16 %v3127, %v3126
    %v3178 = vpack.c.bf16 %v3129, %v3128
    %v3179 = vpack.c.bf16 %v3131, %v3130
    %v3180 = vpack.c.bf16 %v3133, %v3132
    %v3181 = vpack.c.bf16 %v3135, %v3134
    %v3182 = vpack.c.bf16 %v3137, %v3136
    %v3183 = vpack.c.bf16 %v3139, %v3138
    %v3184 = vpack.c.bf16 %v3141, %v3140
    %v3185 = vpack.c.bf16 %v3143, %v3142
    %v3186 = vpack.c.bf16 %v3145, %v3144
    %v3187 = vpack.c.bf16 %v3147, %v3146
    %v3188 = vpack.c.bf16 %v3149, %v3148
    %v3189 = vpack.c.bf16 %v3151, %v3150
    %v3190 = vpack.c.bf16 %v3153, %v3152
    %v3191 = vpack.c.bf16 %v3155, %v3154
    %v3192 = vpack.c.bf16 %v3157, %v3156
    %v3193 = vpack.c.bf16 %v3159, %v3158
    %v3194 = vpack.c.bf16 %v3161, %v3160
    %v3195 = vpack.c.bf16 %v3163, %v3162
    %s3196 = scalar_lea.vmem %s3, 12
    %v3197 = vld [vmem:[%s3196] sm:$0xf]
    %v3199 = vsel %vm25, %v3164, 0
    %v3202 = vsel %vm25, %v3165, 0
    %v3205 = vsel %vm25, %v3166, 0
    %v3208 = vsel %vm25, %v3167, 0
    %v3211 = vsel %vm25, %v3168, 0
    %v3214 = vsel %vm25, %v3169, 0
    %v3217 = vsel %vm25, %v3170, 0
    %v3220 = vsel %vm25, %v3171, 0
    %v3223 = vsel %vm25, %v3172, 0
    %v3226 = vsel %vm25, %v3173, 0
    %v3229 = vsel %vm25, %v3174, 0
    %v3232 = vsel %vm25, %v3175, 0
    %v3235 = vsel %vm25, %v3176, 0
    %v3238 = vsel %vm25, %v3177, 0
    %v3241 = vsel %vm25, %v3178, 0
    %v3244 = vsel %vm25, %v3179, 0
    %v3247 = vsel %vm25, %v3180, 0
    %v3250 = vsel %vm25, %v3181, 0
    %v3253 = vsel %vm25, %v3182, 0
    %v3256 = vsel %vm25, %v3183, 0
    %v3259 = vsel %vm25, %v3184, 0
    %v3262 = vsel %vm25, %v3185, 0
    %v3265 = vsel %vm25, %v3186, 0
    %v3268 = vsel %vm25, %v3187, 0
    %v3271 = vsel %vm25, %v3188, 0
    %v3274 = vsel %vm25, %v3189, 0
    %v3277 = vsel %vm25, %v3190, 0
    %v3280 = vsel %vm25, %v3191, 0
    %v3283 = vsel %vm25, %v3192, 0
    %v3286 = vsel %vm25, %v3193, 0
    %v3289 = vsel %vm25, %v3194, 0
    %v3292 = vsel %vm25, %v3195, 0
    %v3295 = vsel %vm1643, %v3197, 0
    %3297 = vmatprep.subr.bf16.mxu0 0
    %3298 = vmatpush1.bf16.msra.mxu0 0
    %3299 = vmatprep.subr.bf16.mxu0 0
    %3300 = vmatpush1.bf16.msra.mxu0 0
    %3301 = vmatprep.subr.bf16.mxu0 0
    %3302 = vmatpush1.bf16.msra.mxu0 0
    %3303 = vmatprep.subr.bf16.mxu0 0
    %3304 = vmatpush1.bf16.msra.mxu0 0
    %3305 = vmatprep.subr.bf16.mxu0 0
    %3306 = vmatpush1.bf16.msra.mxu0 0
    %3307 = vmatprep.subr.bf16.mxu0 0
    %3308 = vmatpush1.bf16.msra.mxu0 0
    %3309 = vmatprep.subr.bf16.mxu0 0
    %3310 = vmatpush1.bf16.msra.mxu0 0
    %3311 = vmatprep.subr.bf16.mxu0 0
    %3312 = vmatpush1.bf16.msra.mxu0 %v3295
    %3313 = vmatprep.subr.bf16.mxu0 0
    %3314 = vmatpush2.bf16.msra.mxu0 0
    %3315 = vmatprep.subr.bf16.mxu0 0
    %3316 = vmatpush2.bf16.msra.mxu0 0
    %3317 = vmatprep.subr.bf16.mxu0 0
    %3318 = vmatpush2.bf16.msra.mxu0 0
    %3319 = vmatprep.subr.bf16.mxu0 0
    %3320 = vmatpush2.bf16.msra.mxu0 0
    %3321 = vmatprep.subr.bf16.mxu0 0
    %3322 = vmatpush2.bf16.msra.mxu0 0
    %3323 = vmatprep.subr.bf16.mxu0 0
    %3324 = vmatpush2.bf16.msra.mxu0 0
    %3325 = vmatprep.subr.bf16.mxu0 0
    %3326 = vmatpush2.bf16.msra.mxu0 0
    %3327 = vmatprep.subr.bf16.mxu0 0
    %3328 = vmatpush2.bf16.msra.mxu0 0
    %3329 = vmatprep.mubr.bf16.mxu0 0
    %3330 = vmatmul.mubr.bf16.gmra.mxu0 %v3199
    %v3331 = vpop.f32.mrf.mxu0
    %v3332 = vadd.f32 0.0, %v3331
    %v3333 = vpop.f32.mrf.mxu0
    %v3334 = vpop.f32.mrf.mxu0
    %v3335 = vadd.f32 0.0, %v3334
    %v3336 = vpop.f32.mrf.mxu0
    %3337 = vmatprep.mubr.bf16.mxu0 0
    %3338 = vmatmul.mubr.bf16.gmra.mxu0 %v3202
    %v3339 = vpop.f32.mrf.mxu0
    %v3340 = vadd.f32 0.0, %v3339
    %v3341 = vpop.f32.mrf.mxu0
    %v3342 = vpop.f32.mrf.mxu0
    %v3343 = vadd.f32 0.0, %v3342
    %v3344 = vpop.f32.mrf.mxu0
    %3345 = vmatprep.mubr.bf16.mxu0 0
    %3346 = vmatmul.mubr.bf16.gmra.mxu0 %v3205
    %v3347 = vpop.f32.mrf.mxu0
    %v3348 = vadd.f32 0.0, %v3347
    %v3349 = vpop.f32.mrf.mxu0
    %v3350 = vpop.f32.mrf.mxu0
    %v3351 = vadd.f32 0.0, %v3350
    %v3352 = vpop.f32.mrf.mxu0
    %3353 = vmatprep.mubr.bf16.mxu0 0
    %3354 = vmatmul.mubr.bf16.gmra.mxu0 %v3208
    %v3355 = vpop.f32.mrf.mxu0
    %v3356 = vadd.f32 0.0, %v3355
    %v3357 = vpop.f32.mrf.mxu0
    %v3358 = vpop.f32.mrf.mxu0
    %v3359 = vadd.f32 0.0, %v3358
    %v3360 = vpop.f32.mrf.mxu0
    %3361 = vmatprep.mubr.bf16.mxu0 0
    %3362 = vmatmul.mubr.bf16.gmra.mxu0 %v3211
    %v3363 = vpop.f32.mrf.mxu0
    %v3364 = vadd.f32 0.0, %v3363
    %v3365 = vpop.f32.mrf.mxu0
    %v3366 = vpop.f32.mrf.mxu0
    %v3367 = vadd.f32 0.0, %v3366
    %v3368 = vpop.f32.mrf.mxu0
    %3369 = vmatprep.mubr.bf16.mxu0 0
    %3370 = vmatmul.mubr.bf16.gmra.mxu0 %v3214
    %v3371 = vpop.f32.mrf.mxu0
    %v3372 = vadd.f32 0.0, %v3371
    %v3373 = vpop.f32.mrf.mxu0
    %v3374 = vpop.f32.mrf.mxu0
    %v3375 = vadd.f32 0.0, %v3374
    %v3376 = vpop.f32.mrf.mxu0
    %3377 = vmatprep.mubr.bf16.mxu0 0
    %3378 = vmatmul.mubr.bf16.gmra.mxu0 %v3217
    %v3379 = vpop.f32.mrf.mxu0
    %v3380 = vadd.f32 0.0, %v3379
    %v3381 = vpop.f32.mrf.mxu0
    %v3382 = vpop.f32.mrf.mxu0
    %v3383 = vadd.f32 0.0, %v3382
    %v3384 = vpop.f32.mrf.mxu0
    %3385 = vmatprep.mubr.bf16.mxu0 0
    %3386 = vmatmul.mubr.bf16.gmra.mxu0 %v3220
    %v3387 = vpop.f32.mrf.mxu0
    %v3388 = vadd.f32 0.0, %v3387
    %v3389 = vpop.f32.mrf.mxu0
    %v3390 = vpop.f32.mrf.mxu0
    %v3391 = vadd.f32 0.0, %v3390
    %v3392 = vpop.f32.mrf.mxu0
    %3393 = vmatprep.mubr.bf16.mxu0 0
    %3394 = vmatmul.mubr.bf16.gmra.mxu0 %v3223
    %v3395 = vpop.f32.mrf.mxu0
    %v3396 = vadd.f32 0.0, %v3395
    %v3397 = vpop.f32.mrf.mxu0
    %v3398 = vpop.f32.mrf.mxu0
    %v3399 = vadd.f32 0.0, %v3398
    %v3400 = vpop.f32.mrf.mxu0
    %3401 = vmatprep.mubr.bf16.mxu0 0
    %3402 = vmatmul.mubr.bf16.gmra.mxu0 %v3226
    %v3403 = vpop.f32.mrf.mxu0
    %v3404 = vadd.f32 0.0, %v3403
    %v3405 = vpop.f32.mrf.mxu0
    %v3406 = vpop.f32.mrf.mxu0
    %v3407 = vadd.f32 0.0, %v3406
    %v3408 = vpop.f32.mrf.mxu0
    %3409 = vmatprep.mubr.bf16.mxu0 0
    %3410 = vmatmul.mubr.bf16.gmra.mxu0 %v3229
    %v3411 = vpop.f32.mrf.mxu0
    %v3412 = vadd.f32 0.0, %v3411
    %v3413 = vpop.f32.mrf.mxu0
    %v3414 = vpop.f32.mrf.mxu0
    %v3415 = vadd.f32 0.0, %v3414
    %v3416 = vpop.f32.mrf.mxu0
    %3417 = vmatprep.mubr.bf16.mxu0 0
    %3418 = vmatmul.mubr.bf16.gmra.mxu0 %v3232
    %v3419 = vpop.f32.mrf.mxu0
    %v3420 = vadd.f32 0.0, %v3419
    %v3421 = vpop.f32.mrf.mxu0
    %v3422 = vpop.f32.mrf.mxu0
    %v3423 = vadd.f32 0.0, %v3422
    %v3424 = vpop.f32.mrf.mxu0
    %3425 = vmatprep.mubr.bf16.mxu0 0
    %3426 = vmatmul.mubr.bf16.gmra.mxu0 %v3235
    %v3427 = vpop.f32.mrf.mxu0
    %v3428 = vadd.f32 0.0, %v3427
    %v3429 = vpop.f32.mrf.mxu0
    %v3430 = vpop.f32.mrf.mxu0
    %v3431 = vadd.f32 0.0, %v3430
    %v3432 = vpop.f32.mrf.mxu0
    %3433 = vmatprep.mubr.bf16.mxu0 0
    %3434 = vmatmul.mubr.bf16.gmra.mxu0 %v3238
    %v3435 = vpop.f32.mrf.mxu0
    %v3436 = vadd.f32 0.0, %v3435
    %v3437 = vpop.f32.mrf.mxu0
    %v3438 = vpop.f32.mrf.mxu0
    %v3439 = vadd.f32 0.0, %v3438
    %v3440 = vpop.f32.mrf.mxu0
    %3441 = vmatprep.mubr.bf16.mxu0 0
    %3442 = vmatmul.mubr.bf16.gmra.mxu0 %v3241
    %v3443 = vpop.f32.mrf.mxu0
    %v3444 = vadd.f32 0.0, %v3443
    %v3445 = vpop.f32.mrf.mxu0
    %v3446 = vpop.f32.mrf.mxu0
    %v3447 = vadd.f32 0.0, %v3446
    %v3448 = vpop.f32.mrf.mxu0
    %3449 = vmatprep.mubr.bf16.mxu0 0
    %3450 = vmatmul.mubr.bf16.gmra.mxu0 %v3244
    %v3451 = vpop.f32.mrf.mxu0
    %v3452 = vadd.f32 0.0, %v3451
    %v3453 = vpop.f32.mrf.mxu0
    %v3454 = vpop.f32.mrf.mxu0
    %v3455 = vadd.f32 0.0, %v3454
    %v3456 = vpop.f32.mrf.mxu0
    %3457 = vmatprep.mubr.bf16.mxu0 0
    %3458 = vmatmul.mubr.bf16.gmra.mxu0 %v3247
    %v3459 = vpop.f32.mrf.mxu0
    %v3460 = vadd.f32 0.0, %v3459
    %v3461 = vpop.f32.mrf.mxu0
    %v3462 = vpop.f32.mrf.mxu0
    %v3463 = vadd.f32 0.0, %v3462
    %v3464 = vpop.f32.mrf.mxu0
    %3465 = vmatprep.mubr.bf16.mxu0 0
    %3466 = vmatmul.mubr.bf16.gmra.mxu0 %v3250
    %v3467 = vpop.f32.mrf.mxu0
    %v3468 = vadd.f32 0.0, %v3467
    %v3469 = vpop.f32.mrf.mxu0
    %v3470 = vpop.f32.mrf.mxu0
    %v3471 = vadd.f32 0.0, %v3470
    %v3472 = vpop.f32.mrf.mxu0
    %3473 = vmatprep.mubr.bf16.mxu0 0
    %3474 = vmatmul.mubr.bf16.gmra.mxu0 %v3253
    %v3475 = vpop.f32.mrf.mxu0
    %v3476 = vadd.f32 0.0, %v3475
    %v3477 = vpop.f32.mrf.mxu0
    %v3478 = vpop.f32.mrf.mxu0
    %v3479 = vadd.f32 0.0, %v3478
    %v3480 = vpop.f32.mrf.mxu0
    %3481 = vmatprep.mubr.bf16.mxu0 0
    %3482 = vmatmul.mubr.bf16.gmra.mxu0 %v3256
    %v3483 = vpop.f32.mrf.mxu0
    %v3484 = vadd.f32 0.0, %v3483
    %v3485 = vpop.f32.mrf.mxu0
    %v3486 = vpop.f32.mrf.mxu0
    %v3487 = vadd.f32 0.0, %v3486
    %v3488 = vpop.f32.mrf.mxu0
    %3489 = vmatprep.mubr.bf16.mxu0 0
    %3490 = vmatmul.mubr.bf16.gmra.mxu0 %v3259
    %v3491 = vpop.f32.mrf.mxu0
    %v3492 = vadd.f32 0.0, %v3491
    %v3493 = vpop.f32.mrf.mxu0
    %v3494 = vpop.f32.mrf.mxu0
    %v3495 = vadd.f32 0.0, %v3494
    %v3496 = vpop.f32.mrf.mxu0
    %3497 = vmatprep.mubr.bf16.mxu0 0
    %3498 = vmatmul.mubr.bf16.gmra.mxu0 %v3262
    %v3499 = vpop.f32.mrf.mxu0
    %v3500 = vadd.f32 0.0, %v3499
    %v3501 = vpop.f32.mrf.mxu0
    %v3502 = vpop.f32.mrf.mxu0
    %v3503 = vadd.f32 0.0, %v3502
    %v3504 = vpop.f32.mrf.mxu0
    %3505 = vmatprep.mubr.bf16.mxu0 0
    %3506 = vmatmul.mubr.bf16.gmra.mxu0 %v3265
    %v3507 = vpop.f32.mrf.mxu0
    %v3508 = vadd.f32 0.0, %v3507
    %v3509 = vpop.f32.mrf.mxu0
    %v3510 = vpop.f32.mrf.mxu0
    %v3511 = vadd.f32 0.0, %v3510
    %v3512 = vpop.f32.mrf.mxu0
    %3513 = vmatprep.mubr.bf16.mxu0 0
    %3514 = vmatmul.mubr.bf16.gmra.mxu0 %v3268
    %v3515 = vpop.f32.mrf.mxu0
    %v3516 = vadd.f32 0.0, %v3515
    %v3517 = vpop.f32.mrf.mxu0
    %v3518 = vpop.f32.mrf.mxu0
    %v3519 = vadd.f32 0.0, %v3518
    %v3520 = vpop.f32.mrf.mxu0
    %3521 = vmatprep.mubr.bf16.mxu0 0
    %3522 = vmatmul.mubr.bf16.gmra.mxu0 %v3271
    %v3523 = vpop.f32.mrf.mxu0
    %v3524 = vadd.f32 0.0, %v3523
    %v3525 = vpop.f32.mrf.mxu0
    %v3526 = vpop.f32.mrf.mxu0
    %v3527 = vadd.f32 0.0, %v3526
    %v3528 = vpop.f32.mrf.mxu0
    %3529 = vmatprep.mubr.bf16.mxu0 0
    %3530 = vmatmul.mubr.bf16.gmra.mxu0 %v3274
    %v3531 = vpop.f32.mrf.mxu0
    %v3532 = vadd.f32 0.0, %v3531
    %v3533 = vpop.f32.mrf.mxu0
    %v3534 = vpop.f32.mrf.mxu0
    %v3535 = vadd.f32 0.0, %v3534
    %v3536 = vpop.f32.mrf.mxu0
    %3537 = vmatprep.mubr.bf16.mxu0 0
    %3538 = vmatmul.mubr.bf16.gmra.mxu0 %v3277
    %v3539 = vpop.f32.mrf.mxu0
    %v3540 = vadd.f32 0.0, %v3539
    %v3541 = vpop.f32.mrf.mxu0
    %v3542 = vpop.f32.mrf.mxu0
    %v3543 = vadd.f32 0.0, %v3542
    %v3544 = vpop.f32.mrf.mxu0
    %3545 = vmatprep.mubr.bf16.mxu0 0
    %3546 = vmatmul.mubr.bf16.gmra.mxu0 %v3280
    %v3547 = vpop.f32.mrf.mxu0
    %v3548 = vadd.f32 0.0, %v3547
    %v3549 = vpop.f32.mrf.mxu0
    %v3550 = vpop.f32.mrf.mxu0
    %v3551 = vadd.f32 0.0, %v3550
    %v3552 = vpop.f32.mrf.mxu0
    %3553 = vmatprep.mubr.bf16.mxu0 0
    %3554 = vmatmul.mubr.bf16.gmra.mxu0 %v3283
    %v3555 = vpop.f32.mrf.mxu0
    %v3556 = vadd.f32 0.0, %v3555
    %v3557 = vpop.f32.mrf.mxu0
    %v3558 = vpop.f32.mrf.mxu0
    %v3559 = vadd.f32 0.0, %v3558
    %v3560 = vpop.f32.mrf.mxu0
    %3561 = vmatprep.mubr.bf16.mxu0 0
    %3562 = vmatmul.mubr.bf16.gmra.mxu0 %v3286
    %v3563 = vpop.f32.mrf.mxu0
    %v3564 = vadd.f32 0.0, %v3563
    %v3565 = vpop.f32.mrf.mxu0
    %v3566 = vpop.f32.mrf.mxu0
    %v3567 = vadd.f32 0.0, %v3566
    %v3568 = vpop.f32.mrf.mxu0
    %3569 = vmatprep.mubr.bf16.mxu0 0
    %3570 = vmatmul.mubr.bf16.gmra.mxu0 %v3289
    %v3571 = vpop.f32.mrf.mxu0
    %v3572 = vadd.f32 0.0, %v3571
    %v3573 = vpop.f32.mrf.mxu0
    %v3574 = vpop.f32.mrf.mxu0
    %v3575 = vadd.f32 0.0, %v3574
    %v3576 = vpop.f32.mrf.mxu0
    %3577 = vmatprep.mubr.bf16.mxu0 0
    %3578 = vmatmul.mubr.bf16.gmra.mxu0 %v3292
    %v3579 = vpop.f32.mrf.mxu0
    %v3580 = vadd.f32 0.0, %v3579
    %v3581 = vpop.f32.mrf.mxu0
    %v3582 = vpop.f32.mrf.mxu0
    %v3583 = vadd.f32 0.0, %v3582
    %v3584 = vpop.f32.mrf.mxu0
    %3585 = vdwg.mxu0
    %v3586 = vadd.f32 %v3036, %v3332
    %v3587 = vadd.f32 %v3037, %v3335
    %v3588 = vadd.f32 %v3038, %v3340
    %v3589 = vadd.f32 %v3039, %v3343
    %v3590 = vadd.f32 %v3040, %v3348
    %v3591 = vadd.f32 %v3041, %v3351
    %v3592 = vadd.f32 %v3042, %v3356
    %v3593 = vadd.f32 %v3043, %v3359
    %v3594 = vadd.f32 %v3044, %v3364
    %v3595 = vadd.f32 %v3045, %v3367
    %v3596 = vadd.f32 %v3046, %v3372
    %v3597 = vadd.f32 %v3047, %v3375
    %v3598 = vadd.f32 %v3048, %v3380
    %v3599 = vadd.f32 %v3049, %v3383
    %v3600 = vadd.f32 %v3050, %v3388
    %v3601 = vadd.f32 %v3051, %v3391
    %v3602 = vadd.f32 %v3052, %v3396
    %v3603 = vadd.f32 %v3053, %v3399
    %v3604 = vadd.f32 %v3054, %v3404
    %v3605 = vadd.f32 %v3055, %v3407
    %v3606 = vadd.f32 %v3056, %v3412
    %v3607 = vadd.f32 %v3057, %v3415
    %v3608 = vadd.f32 %v3058, %v3420
    %v3609 = vadd.f32 %v3059, %v3423
    %v3610 = vadd.f32 %v3060, %v3428
    %v3611 = vadd.f32 %v3061, %v3431
    %v3612 = vadd.f32 %v3062, %v3436
    %v3613 = vadd.f32 %v3063, %v3439
    %v3614 = vadd.f32 %v3064, %v3444
    %v3615 = vadd.f32 %v3065, %v3447
    %v3616 = vadd.f32 %v3066, %v3452
    %v3617 = vadd.f32 %v3067, %v3455
    %v3618 = vadd.f32 %v3068, %v3460
    %v3619 = vadd.f32 %v3069, %v3463
    %v3620 = vadd.f32 %v3070, %v3468
    %v3621 = vadd.f32 %v3071, %v3471
    %v3622 = vadd.f32 %v3072, %v3476
    %v3623 = vadd.f32 %v3073, %v3479
    %v3624 = vadd.f32 %v3074, %v3484
    %v3625 = vadd.f32 %v3075, %v3487
    %v3626 = vadd.f32 %v3076, %v3492
    %v3627 = vadd.f32 %v3077, %v3495
    %v3628 = vadd.f32 %v3078, %v3500
    %v3629 = vadd.f32 %v3079, %v3503
    %v3630 = vadd.f32 %v3080, %v3508
    %v3631 = vadd.f32 %v3081, %v3511
    %v3632 = vadd.f32 %v3082, %v3516
    %v3633 = vadd.f32 %v3083, %v3519
    %v3634 = vadd.f32 %v3084, %v3524
    %v3635 = vadd.f32 %v3085, %v3527
    %v3636 = vadd.f32 %v3086, %v3532
    %v3637 = vadd.f32 %v3087, %v3535
    %v3638 = vadd.f32 %v3088, %v3540
    %v3639 = vadd.f32 %v3089, %v3543
    %v3640 = vadd.f32 %v3090, %v3548
    %v3641 = vadd.f32 %v3091, %v3551
    %v3642 = vadd.f32 %v3092, %v3556
    %v3643 = vadd.f32 %v3093, %v3559
    %v3644 = vadd.f32 %v3094, %v3564
    %v3645 = vadd.f32 %v3095, %v3567
    %v3646 = vadd.f32 %v3096, %v3572
    %v3647 = vadd.f32 %v3097, %v3575
    %v3648 = vadd.f32 %v3098, %v3580
    %v3649 = vadd.f32 %v3099, %v3583
    %v3650 = vld [vmem:[%s40 + $0x1] sm:$0xff]
    %v3651 = vld [vmem:[%s40 + $0x9] sm:$0xff]
    %v3652 = vld [vmem:[%s40 + $0x19] sm:$0xff]
    %v3653 = vld [vmem:[%s40 + $0x21] sm:$0xff]
    %v3654 = vld [vmem:[%s40 + $0x31] sm:$0xff]
    %v3655 = vld [vmem:[%s40 + $0x39] sm:$0xff]
    %v3656 = vld [vmem:[%s40 + $0x49] sm:$0xff]
    %v3657 = vld [vmem:[%s40 + $0x51] sm:$0xff]
    %v3658 = vld [vmem:[%s40 + $0x61] sm:$0xff]
    %v3659 = vld [vmem:[%s40 + $0x69] sm:$0xff]
    %v3660 = vld [vmem:[%s40 + $0x79] sm:$0xff]
    %v3661 = vld [vmem:[%s40 + $0x81] sm:$0xff]
    %v3662 = vld [vmem:[%s40 + $0x91] sm:$0xff]
    %v3663 = vld [vmem:[%s40 + $0x99] sm:$0xff]
    %v3664 = vld [vmem:[%s40 + $0xa9] sm:$0xff]
    %v3665 = vld [vmem:[%s40 + $0xb1] sm:$0xff]
    %v3666 = vld [vmem:[%s40 + $0xc1] sm:$0xff]
    %v3667 = vld [vmem:[%s40 + $0xc9] sm:$0xff]
    %v3668 = vld [vmem:[%s40 + $0xd9] sm:$0xff]
    %v3669 = vld [vmem:[%s40 + $0xe1] sm:$0xff]
    %v3670 = vld [vmem:[%s40 + $0xf1] sm:$0xff]
    %v3671 = vld [vmem:[%s40 + $0xf9] sm:$0xff]
    %v3672 = vld [vmem:[%s40 + $0x109] sm:$0xff]
    %v3673 = vld [vmem:[%s40 + $0x111] sm:$0xff]
    %v3674 = vld [vmem:[%s40 + $0x121] sm:$0xff]
    %v3675 = vld [vmem:[%s40 + $0x129] sm:$0xff]
    %v3676 = vld [vmem:[%s40 + $0x139] sm:$0xff]
    %v3677 = vld [vmem:[%s40 + $0x141] sm:$0xff]
    %v3678 = vld [vmem:[%s40 + $0x151] sm:$0xff]
    %v3679 = vld [vmem:[%s40 + $0x159] sm:$0xff]
    %v3680 = vld [vmem:[%s40 + $0x169] sm:$0xff]
    %v3681 = vld [vmem:[%s40 + $0x171] sm:$0xff]
    %v3682 = vld [vmem:[%s40 + $0x1b1] sm:$0xff]
    %v3683 = vld [vmem:[%s40 + $0x1b9] sm:$0xff]
    %v3684 = vld [vmem:[%s40 + $0x1c9] sm:$0xff]
    %v3685 = vld [vmem:[%s40 + $0x1d1] sm:$0xff]
    %v3686 = vld [vmem:[%s40 + $0x1e1] sm:$0xff]
    %v3687 = vld [vmem:[%s40 + $0x1e9] sm:$0xff]
    %v3688 = vld [vmem:[%s40 + $0x1f9] sm:$0xff]
    %v3689 = vld [vmem:[%s40 + $0x201] sm:$0xff]
    %v3690 = vld [vmem:[%s40 + $0x211] sm:$0xff]
    %v3691 = vld [vmem:[%s40 + $0x219] sm:$0xff]
    %v3692 = vld [vmem:[%s40 + $0x229] sm:$0xff]
    %v3693 = vld [vmem:[%s40 + $0x231] sm:$0xff]
    %v3694 = vld [vmem:[%s40 + $0x241] sm:$0xff]
    %v3695 = vld [vmem:[%s40 + $0x249] sm:$0xff]
    %v3696 = vld [vmem:[%s40 + $0x259] sm:$0xff]
    %v3697 = vld [vmem:[%s40 + $0x261] sm:$0xff]
    %v3698 = vld [vmem:[%s40 + $0x271] sm:$0xff]
    %v3699 = vld [vmem:[%s40 + $0x279] sm:$0xff]
    %v3700 = vld [vmem:[%s40 + $0x289] sm:$0xff]
    %v3701 = vld [vmem:[%s40 + $0x291] sm:$0xff]
    %v3702 = vld [vmem:[%s40 + $0x2a1] sm:$0xff]
    %v3703 = vld [vmem:[%s40 + $0x2a9] sm:$0xff]
    %v3704 = vld [vmem:[%s40 + $0x2b9] sm:$0xff]
    %v3705 = vld [vmem:[%s40 + $0x2c1] sm:$0xff]
    %v3706 = vld [vmem:[%s40 + $0x2d1] sm:$0xff]
    %v3707 = vld [vmem:[%s40 + $0x2d9] sm:$0xff]
    %v3708 = vld [vmem:[%s40 + $0x2e9] sm:$0xff]
    %v3709 = vld [vmem:[%s40 + $0x2f1] sm:$0xff]
    %v3710 = vld [vmem:[%s40 + $0x301] sm:$0xff]
    %v3711 = vld [vmem:[%s40 + $0x309] sm:$0xff]
    %v3712 = vld [vmem:[%s40 + $0x319] sm:$0xff]
    %v3713 = vld [vmem:[%s40 + $0x321] sm:$0xff]
    %v3714 = vpack.c.bf16 %v3651, %v3650
    %v3715 = vpack.c.bf16 %v3653, %v3652
    %v3716 = vpack.c.bf16 %v3655, %v3654
    %v3717 = vpack.c.bf16 %v3657, %v3656
    %v3718 = vpack.c.bf16 %v3659, %v3658
    %v3719 = vpack.c.bf16 %v3661, %v3660
    %v3720 = vpack.c.bf16 %v3663, %v3662
    %v3721 = vpack.c.bf16 %v3665, %v3664
    %v3722 = vpack.c.bf16 %v3667, %v3666
    %v3723 = vpack.c.bf16 %v3669, %v3668
    %v3724 = vpack.c.bf16 %v3671, %v3670
    %v3725 = vpack.c.bf16 %v3673, %v3672
    %v3726 = vpack.c.bf16 %v3675, %v3674
    %v3727 = vpack.c.bf16 %v3677, %v3676
    %v3728 = vpack.c.bf16 %v3679, %v3678
    %v3729 = vpack.c.bf16 %v3681, %v3680
    %v3730 = vpack.c.bf16 %v3683, %v3682
    %v3731 = vpack.c.bf16 %v3685, %v3684
    %v3732 = vpack.c.bf16 %v3687, %v3686
    %v3733 = vpack.c.bf16 %v3689, %v3688
    %v3734 = vpack.c.bf16 %v3691, %v3690
    %v3735 = vpack.c.bf16 %v3693, %v3692
    %v3736 = vpack.c.bf16 %v3695, %v3694
    %v3737 = vpack.c.bf16 %v3697, %v3696
    %v3738 = vpack.c.bf16 %v3699, %v3698
    %v3739 = vpack.c.bf16 %v3701, %v3700
    %v3740 = vpack.c.bf16 %v3703, %v3702
    %v3741 = vpack.c.bf16 %v3705, %v3704
    %v3742 = vpack.c.bf16 %v3707, %v3706
    %v3743 = vpack.c.bf16 %v3709, %v3708
    %v3744 = vpack.c.bf16 %v3711, %v3710
    %v3745 = vpack.c.bf16 %v3713, %v3712
    %s3746 = scalar_lea.vmem %s3, 16
    %v3747 = vld [vmem:[%s3746] sm:$0xf]
    %v3749 = vsel %vm25, %v3714, 0
    %v3752 = vsel %vm25, %v3715, 0
    %v3755 = vsel %vm25, %v3716, 0
    %v3758 = vsel %vm25, %v3717, 0
    %v3761 = vsel %vm25, %v3718, 0
    %v3764 = vsel %vm25, %v3719, 0
    %v3767 = vsel %vm25, %v3720, 0
    %v3770 = vsel %vm25, %v3721, 0
    %v3773 = vsel %vm25, %v3722, 0
    %v3776 = vsel %vm25, %v3723, 0
    %v3779 = vsel %vm25, %v3724, 0
    %v3782 = vsel %vm25, %v3725, 0
    %v3785 = vsel %vm25, %v3726, 0
    %v3788 = vsel %vm25, %v3727, 0
    %v3791 = vsel %vm25, %v3728, 0
    %v3794 = vsel %vm25, %v3729, 0
    %v3797 = vsel %vm25, %v3730, 0
    %v3800 = vsel %vm25, %v3731, 0
    %v3803 = vsel %vm25, %v3732, 0
    %v3806 = vsel %vm25, %v3733, 0
    %v3809 = vsel %vm25, %v3734, 0
    %v3812 = vsel %vm25, %v3735, 0
    %v3815 = vsel %vm25, %v3736, 0
    %v3818 = vsel %vm25, %v3737, 0
    %v3821 = vsel %vm25, %v3738, 0
    %v3824 = vsel %vm25, %v3739, 0
    %v3827 = vsel %vm25, %v3740, 0
    %v3830 = vsel %vm25, %v3741, 0
    %v3833 = vsel %vm25, %v3742, 0
    %v3836 = vsel %vm25, %v3743, 0
    %v3839 = vsel %vm25, %v3744, 0
    %v3842 = vsel %vm25, %v3745, 0
    %v3845 = vsel %vm1643, %v3747, 0
    %3847 = vmatprep.subr.bf16.mxu0 0
    %3848 = vmatpush1.bf16.msra.mxu0 0
    %3849 = vmatprep.subr.bf16.mxu0 0
    %3850 = vmatpush1.bf16.msra.mxu0 0
    %3851 = vmatprep.subr.bf16.mxu0 0
    %3852 = vmatpush1.bf16.msra.mxu0 0
    %3853 = vmatprep.subr.bf16.mxu0 0
    %3854 = vmatpush1.bf16.msra.mxu0 0
    %3855 = vmatprep.subr.bf16.mxu0 0
    %3856 = vmatpush1.bf16.msra.mxu0 0
    %3857 = vmatprep.subr.bf16.mxu0 0
    %3858 = vmatpush1.bf16.msra.mxu0 0
    %3859 = vmatprep.subr.bf16.mxu0 0
    %3860 = vmatpush1.bf16.msra.mxu0 0
    %3861 = vmatprep.subr.bf16.mxu0 0
    %3862 = vmatpush1.bf16.msra.mxu0 %v3845
    %3863 = vmatprep.subr.bf16.mxu0 0
    %3864 = vmatpush2.bf16.msra.mxu0 0
    %3865 = vmatprep.subr.bf16.mxu0 0
    %3866 = vmatpush2.bf16.msra.mxu0 0
    %3867 = vmatprep.subr.bf16.mxu0 0
    %3868 = vmatpush2.bf16.msra.mxu0 0
    %3869 = vmatprep.subr.bf16.mxu0 0
    %3870 = vmatpush2.bf16.msra.mxu0 0
    %3871 = vmatprep.subr.bf16.mxu0 0
    %3872 = vmatpush2.bf16.msra.mxu0 0
    %3873 = vmatprep.subr.bf16.mxu0 0
    %3874 = vmatpush2.bf16.msra.mxu0 0
    %3875 = vmatprep.subr.bf16.mxu0 0
    %3876 = vmatpush2.bf16.msra.mxu0 0
    %3877 = vmatprep.subr.bf16.mxu0 0
    %3878 = vmatpush2.bf16.msra.mxu0 0
    %3879 = vmatprep.mubr.bf16.mxu0 0
    %3880 = vmatmul.mubr.bf16.gmra.mxu0 %v3749
    %v3881 = vpop.f32.mrf.mxu0
    %v3882 = vadd.f32 0.0, %v3881
    %v3883 = vpop.f32.mrf.mxu0
    %v3884 = vpop.f32.mrf.mxu0
    %v3885 = vadd.f32 0.0, %v3884
    %v3886 = vpop.f32.mrf.mxu0
    %3887 = vmatprep.mubr.bf16.mxu0 0
    %3888 = vmatmul.mubr.bf16.gmra.mxu0 %v3752
    %v3889 = vpop.f32.mrf.mxu0
    %v3890 = vadd.f32 0.0, %v3889
    %v3891 = vpop.f32.mrf.mxu0
    %v3892 = vpop.f32.mrf.mxu0
    %v3893 = vadd.f32 0.0, %v3892
    %v3894 = vpop.f32.mrf.mxu0
    %3895 = vmatprep.mubr.bf16.mxu0 0
    %3896 = vmatmul.mubr.bf16.gmra.mxu0 %v3755
    %v3897 = vpop.f32.mrf.mxu0
    %v3898 = vadd.f32 0.0, %v3897
    %v3899 = vpop.f32.mrf.mxu0
    %v3900 = vpop.f32.mrf.mxu0
    %v3901 = vadd.f32 0.0, %v3900
    %v3902 = vpop.f32.mrf.mxu0
    %3903 = vmatprep.mubr.bf16.mxu0 0
    %3904 = vmatmul.mubr.bf16.gmra.mxu0 %v3758
    %v3905 = vpop.f32.mrf.mxu0
    %v3906 = vadd.f32 0.0, %v3905
    %v3907 = vpop.f32.mrf.mxu0
    %v3908 = vpop.f32.mrf.mxu0
    %v3909 = vadd.f32 0.0, %v3908
    %v3910 = vpop.f32.mrf.mxu0
    %3911 = vmatprep.mubr.bf16.mxu0 0
    %3912 = vmatmul.mubr.bf16.gmra.mxu0 %v3761
    %v3913 = vpop.f32.mrf.mxu0
    %v3914 = vadd.f32 0.0, %v3913
    %v3915 = vpop.f32.mrf.mxu0
    %v3916 = vpop.f32.mrf.mxu0
    %v3917 = vadd.f32 0.0, %v3916
    %v3918 = vpop.f32.mrf.mxu0
    %3919 = vmatprep.mubr.bf16.mxu0 0
    %3920 = vmatmul.mubr.bf16.gmra.mxu0 %v3764
    %v3921 = vpop.f32.mrf.mxu0
    %v3922 = vadd.f32 0.0, %v3921
    %v3923 = vpop.f32.mrf.mxu0
    %v3924 = vpop.f32.mrf.mxu0
    %v3925 = vadd.f32 0.0, %v3924
    %v3926 = vpop.f32.mrf.mxu0
    %3927 = vmatprep.mubr.bf16.mxu0 0
    %3928 = vmatmul.mubr.bf16.gmra.mxu0 %v3767
    %v3929 = vpop.f32.mrf.mxu0
    %v3930 = vadd.f32 0.0, %v3929
    %v3931 = vpop.f32.mrf.mxu0
    %v3932 = vpop.f32.mrf.mxu0
    %v3933 = vadd.f32 0.0, %v3932
    %v3934 = vpop.f32.mrf.mxu0
    %3935 = vmatprep.mubr.bf16.mxu0 0
    %3936 = vmatmul.mubr.bf16.gmra.mxu0 %v3770
    %v3937 = vpop.f32.mrf.mxu0
    %v3938 = vadd.f32 0.0, %v3937
    %v3939 = vpop.f32.mrf.mxu0
    %v3940 = vpop.f32.mrf.mxu0
    %v3941 = vadd.f32 0.0, %v3940
    %v3942 = vpop.f32.mrf.mxu0
    %3943 = vmatprep.mubr.bf16.mxu0 0
    %3944 = vmatmul.mubr.bf16.gmra.mxu0 %v3773
    %v3945 = vpop.f32.mrf.mxu0
    %v3946 = vadd.f32 0.0, %v3945
    %v3947 = vpop.f32.mrf.mxu0
    %v3948 = vpop.f32.mrf.mxu0
    %v3949 = vadd.f32 0.0, %v3948
    %v3950 = vpop.f32.mrf.mxu0
    %3951 = vmatprep.mubr.bf16.mxu0 0
    %3952 = vmatmul.mubr.bf16.gmra.mxu0 %v3776
    %v3953 = vpop.f32.mrf.mxu0
    %v3954 = vadd.f32 0.0, %v3953
    %v3955 = vpop.f32.mrf.mxu0
    %v3956 = vpop.f32.mrf.mxu0
    %v3957 = vadd.f32 0.0, %v3956
    %v3958 = vpop.f32.mrf.mxu0
    %3959 = vmatprep.mubr.bf16.mxu0 0
    %3960 = vmatmul.mubr.bf16.gmra.mxu0 %v3779
    %v3961 = vpop.f32.mrf.mxu0
    %v3962 = vadd.f32 0.0, %v3961
    %v3963 = vpop.f32.mrf.mxu0
    %v3964 = vpop.f32.mrf.mxu0
    %v3965 = vadd.f32 0.0, %v3964
    %v3966 = vpop.f32.mrf.mxu0
    %3967 = vmatprep.mubr.bf16.mxu0 0
    %3968 = vmatmul.mubr.bf16.gmra.mxu0 %v3782
    %v3969 = vpop.f32.mrf.mxu0
    %v3970 = vadd.f32 0.0, %v3969
    %v3971 = vpop.f32.mrf.mxu0
    %v3972 = vpop.f32.mrf.mxu0
    %v3973 = vadd.f32 0.0, %v3972
    %v3974 = vpop.f32.mrf.mxu0
    %3975 = vmatprep.mubr.bf16.mxu0 0
    %3976 = vmatmul.mubr.bf16.gmra.mxu0 %v3785
    %v3977 = vpop.f32.mrf.mxu0
    %v3978 = vadd.f32 0.0, %v3977
    %v3979 = vpop.f32.mrf.mxu0
    %v3980 = vpop.f32.mrf.mxu0
    %v3981 = vadd.f32 0.0, %v3980
    %v3982 = vpop.f32.mrf.mxu0
    %3983 = vmatprep.mubr.bf16.mxu0 0
    %3984 = vmatmul.mubr.bf16.gmra.mxu0 %v3788
    %v3985 = vpop.f32.mrf.mxu0
    %v3986 = vadd.f32 0.0, %v3985
    %v3987 = vpop.f32.mrf.mxu0
    %v3988 = vpop.f32.mrf.mxu0
    %v3989 = vadd.f32 0.0, %v3988
    %v3990 = vpop.f32.mrf.mxu0
    %3991 = vmatprep.mubr.bf16.mxu0 0
    %3992 = vmatmul.mubr.bf16.gmra.mxu0 %v3791
    %v3993 = vpop.f32.mrf.mxu0
    %v3994 = vadd.f32 0.0, %v3993
    %v3995 = vpop.f32.mrf.mxu0
    %v3996 = vpop.f32.mrf.mxu0
    %v3997 = vadd.f32 0.0, %v3996
    %v3998 = vpop.f32.mrf.mxu0
    %3999 = vmatprep.mubr.bf16.mxu0 0
    %4000 = vmatmul.mubr.bf16.gmra.mxu0 %v3794
    %v4001 = vpop.f32.mrf.mxu0
    %v4002 = vadd.f32 0.0, %v4001
    %v4003 = vpop.f32.mrf.mxu0
    %v4004 = vpop.f32.mrf.mxu0
    %v4005 = vadd.f32 0.0, %v4004
    %v4006 = vpop.f32.mrf.mxu0
    %4007 = vmatprep.mubr.bf16.mxu0 0
    %4008 = vmatmul.mubr.bf16.gmra.mxu0 %v3797
    %v4009 = vpop.f32.mrf.mxu0
    %v4010 = vadd.f32 0.0, %v4009
    %v4011 = vpop.f32.mrf.mxu0
    %v4012 = vpop.f32.mrf.mxu0
    %v4013 = vadd.f32 0.0, %v4012
    %v4014 = vpop.f32.mrf.mxu0
    %4015 = vmatprep.mubr.bf16.mxu0 0
    %4016 = vmatmul.mubr.bf16.gmra.mxu0 %v3800
    %v4017 = vpop.f32.mrf.mxu0
    %v4018 = vadd.f32 0.0, %v4017
    %v4019 = vpop.f32.mrf.mxu0
    %v4020 = vpop.f32.mrf.mxu0
    %v4021 = vadd.f32 0.0, %v4020
    %v4022 = vpop.f32.mrf.mxu0
    %4023 = vmatprep.mubr.bf16.mxu0 0
    %4024 = vmatmul.mubr.bf16.gmra.mxu0 %v3803
    %v4025 = vpop.f32.mrf.mxu0
    %v4026 = vadd.f32 0.0, %v4025
    %v4027 = vpop.f32.mrf.mxu0
    %v4028 = vpop.f32.mrf.mxu0
    %v4029 = vadd.f32 0.0, %v4028
    %v4030 = vpop.f32.mrf.mxu0
    %4031 = vmatprep.mubr.bf16.mxu0 0
    %4032 = vmatmul.mubr.bf16.gmra.mxu0 %v3806
    %v4033 = vpop.f32.mrf.mxu0
    %v4034 = vadd.f32 0.0, %v4033
    %v4035 = vpop.f32.mrf.mxu0
    %v4036 = vpop.f32.mrf.mxu0
    %v4037 = vadd.f32 0.0, %v4036
    %v4038 = vpop.f32.mrf.mxu0
    %4039 = vmatprep.mubr.bf16.mxu0 0
    %4040 = vmatmul.mubr.bf16.gmra.mxu0 %v3809
    %v4041 = vpop.f32.mrf.mxu0
    %v4042 = vadd.f32 0.0, %v4041
    %v4043 = vpop.f32.mrf.mxu0
    %v4044 = vpop.f32.mrf.mxu0
    %v4045 = vadd.f32 0.0, %v4044
    %v4046 = vpop.f32.mrf.mxu0
    %4047 = vmatprep.mubr.bf16.mxu0 0
    %4048 = vmatmul.mubr.bf16.gmra.mxu0 %v3812
    %v4049 = vpop.f32.mrf.mxu0
    %v4050 = vadd.f32 0.0, %v4049
    %v4051 = vpop.f32.mrf.mxu0
    %v4052 = vpop.f32.mrf.mxu0
    %v4053 = vadd.f32 0.0, %v4052
    %v4054 = vpop.f32.mrf.mxu0
    %4055 = vmatprep.mubr.bf16.mxu0 0
    %4056 = vmatmul.mubr.bf16.gmra.mxu0 %v3815
    %v4057 = vpop.f32.mrf.mxu0
    %v4058 = vadd.f32 0.0, %v4057
    %v4059 = vpop.f32.mrf.mxu0
    %v4060 = vpop.f32.mrf.mxu0
    %v4061 = vadd.f32 0.0, %v4060
    %v4062 = vpop.f32.mrf.mxu0
    %4063 = vmatprep.mubr.bf16.mxu0 0
    %4064 = vmatmul.mubr.bf16.gmra.mxu0 %v3818
    %v4065 = vpop.f32.mrf.mxu0
    %v4066 = vadd.f32 0.0, %v4065
    %v4067 = vpop.f32.mrf.mxu0
    %v4068 = vpop.f32.mrf.mxu0
    %v4069 = vadd.f32 0.0, %v4068
    %v4070 = vpop.f32.mrf.mxu0
    %4071 = vmatprep.mubr.bf16.mxu0 0
    %4072 = vmatmul.mubr.bf16.gmra.mxu0 %v3821
    %v4073 = vpop.f32.mrf.mxu0
    %v4074 = vadd.f32 0.0, %v4073
    %v4075 = vpop.f32.mrf.mxu0
    %v4076 = vpop.f32.mrf.mxu0
    %v4077 = vadd.f32 0.0, %v4076
    %v4078 = vpop.f32.mrf.mxu0
    %4079 = vmatprep.mubr.bf16.mxu0 0
    %4080 = vmatmul.mubr.bf16.gmra.mxu0 %v3824
    %v4081 = vpop.f32.mrf.mxu0
    %v4082 = vadd.f32 0.0, %v4081
    %v4083 = vpop.f32.mrf.mxu0
    %v4084 = vpop.f32.mrf.mxu0
    %v4085 = vadd.f32 0.0, %v4084
    %v4086 = vpop.f32.mrf.mxu0
    %4087 = vmatprep.mubr.bf16.mxu0 0
    %4088 = vmatmul.mubr.bf16.gmra.mxu0 %v3827
    %v4089 = vpop.f32.mrf.mxu0
    %v4090 = vadd.f32 0.0, %v4089
    %v4091 = vpop.f32.mrf.mxu0
    %v4092 = vpop.f32.mrf.mxu0
    %v4093 = vadd.f32 0.0, %v4092
    %v4094 = vpop.f32.mrf.mxu0
    %4095 = vmatprep.mubr.bf16.mxu0 0
    %4096 = vmatmul.mubr.bf16.gmra.mxu0 %v3830
    %v4097 = vpop.f32.mrf.mxu0
    %v4098 = vadd.f32 0.0, %v4097
    %v4099 = vpop.f32.mrf.mxu0
    %v4100 = vpop.f32.mrf.mxu0
    %v4101 = vadd.f32 0.0, %v4100
    %v4102 = vpop.f32.mrf.mxu0
    %4103 = vmatprep.mubr.bf16.mxu0 0
    %4104 = vmatmul.mubr.bf16.gmra.mxu0 %v3833
    %v4105 = vpop.f32.mrf.mxu0
    %v4106 = vadd.f32 0.0, %v4105
    %v4107 = vpop.f32.mrf.mxu0
    %v4108 = vpop.f32.mrf.mxu0
    %v4109 = vadd.f32 0.0, %v4108
    %v4110 = vpop.f32.mrf.mxu0
    %4111 = vmatprep.mubr.bf16.mxu0 0
    %4112 = vmatmul.mubr.bf16.gmra.mxu0 %v3836
    %v4113 = vpop.f32.mrf.mxu0
    %v4114 = vadd.f32 0.0, %v4113
    %v4115 = vpop.f32.mrf.mxu0
    %v4116 = vpop.f32.mrf.mxu0
    %v4117 = vadd.f32 0.0, %v4116
    %v4118 = vpop.f32.mrf.mxu0
    %4119 = vmatprep.mubr.bf16.mxu0 0
    %4120 = vmatmul.mubr.bf16.gmra.mxu0 %v3839
    %v4121 = vpop.f32.mrf.mxu0
    %v4122 = vadd.f32 0.0, %v4121
    %v4123 = vpop.f32.mrf.mxu0
    %v4124 = vpop.f32.mrf.mxu0
    %v4125 = vadd.f32 0.0, %v4124
    %v4126 = vpop.f32.mrf.mxu0
    %4127 = vmatprep.mubr.bf16.mxu0 0
    %4128 = vmatmul.mubr.bf16.gmra.mxu0 %v3842
    %v4129 = vpop.f32.mrf.mxu0
    %v4130 = vadd.f32 0.0, %v4129
    %v4131 = vpop.f32.mrf.mxu0
    %v4132 = vpop.f32.mrf.mxu0
    %v4133 = vadd.f32 0.0, %v4132
    %v4134 = vpop.f32.mrf.mxu0
    %4135 = vdwg.mxu0
    %v4136 = vadd.f32 %v3586, %v3882
    %v4137 = vadd.f32 %v3587, %v3885
    %v4138 = vadd.f32 %v3588, %v3890
    %v4139 = vadd.f32 %v3589, %v3893
    %v4140 = vadd.f32 %v3590, %v3898
    %v4141 = vadd.f32 %v3591, %v3901
    %v4142 = vadd.f32 %v3592, %v3906
    %v4143 = vadd.f32 %v3593, %v3909
    %v4144 = vadd.f32 %v3594, %v3914
    %v4145 = vadd.f32 %v3595, %v3917
    %v4146 = vadd.f32 %v3596, %v3922
    %v4147 = vadd.f32 %v3597, %v3925
    %v4148 = vadd.f32 %v3598, %v3930
    %v4149 = vadd.f32 %v3599, %v3933
    %v4150 = vadd.f32 %v3600, %v3938
    %v4151 = vadd.f32 %v3601, %v3941
    %v4152 = vadd.f32 %v3602, %v3946
    %v4153 = vadd.f32 %v3603, %v3949
    %v4154 = vadd.f32 %v3604, %v3954
    %v4155 = vadd.f32 %v3605, %v3957
    %v4156 = vadd.f32 %v3606, %v3962
    %v4157 = vadd.f32 %v3607, %v3965
    %v4158 = vadd.f32 %v3608, %v3970
    %v4159 = vadd.f32 %v3609, %v3973
    %v4160 = vadd.f32 %v3610, %v3978
    %v4161 = vadd.f32 %v3611, %v3981
    %v4162 = vadd.f32 %v3612, %v3986
    %v4163 = vadd.f32 %v3613, %v3989
    %v4164 = vadd.f32 %v3614, %v3994
    %v4165 = vadd.f32 %v3615, %v3997
    %v4166 = vadd.f32 %v3616, %v4002
    %v4167 = vadd.f32 %v3617, %v4005
    %v4168 = vadd.f32 %v3618, %v4010
    %v4169 = vadd.f32 %v3619, %v4013
    %v4170 = vadd.f32 %v3620, %v4018
    %v4171 = vadd.f32 %v3621, %v4021
    %v4172 = vadd.f32 %v3622, %v4026
    %v4173 = vadd.f32 %v3623, %v4029
    %v4174 = vadd.f32 %v3624, %v4034
    %v4175 = vadd.f32 %v3625, %v4037
    %v4176 = vadd.f32 %v3626, %v4042
    %v4177 = vadd.f32 %v3627, %v4045
    %v4178 = vadd.f32 %v3628, %v4050
    %v4179 = vadd.f32 %v3629, %v4053
    %v4180 = vadd.f32 %v3630, %v4058
    %v4181 = vadd.f32 %v3631, %v4061
    %v4182 = vadd.f32 %v3632, %v4066
    %v4183 = vadd.f32 %v3633, %v4069
    %v4184 = vadd.f32 %v3634, %v4074
    %v4185 = vadd.f32 %v3635, %v4077
    %v4186 = vadd.f32 %v3636, %v4082
    %v4187 = vadd.f32 %v3637, %v4085
    %v4188 = vadd.f32 %v3638, %v4090
    %v4189 = vadd.f32 %v3639, %v4093
    %v4190 = vadd.f32 %v3640, %v4098
    %v4191 = vadd.f32 %v3641, %v4101
    %v4192 = vadd.f32 %v3642, %v4106
    %v4193 = vadd.f32 %v3643, %v4109
    %v4194 = vadd.f32 %v3644, %v4114
    %v4195 = vadd.f32 %v3645, %v4117
    %v4196 = vadd.f32 %v3646, %v4122
    %v4197 = vadd.f32 %v3647, %v4125
    %v4198 = vadd.f32 %v3648, %v4130
    %v4199 = vadd.f32 %v3649, %v4133
    %v4200 = vld [vmem:[%s40 + $0x2] sm:$0xff]
    %v4201 = vld [vmem:[%s40 + $0xa] sm:$0xff]
    %v4202 = vld [vmem:[%s40 + $0x1a] sm:$0xff]
    %v4203 = vld [vmem:[%s40 + $0x22] sm:$0xff]
    %v4204 = vld [vmem:[%s40 + $0x32] sm:$0xff]
    %v4205 = vld [vmem:[%s40 + $0x3a] sm:$0xff]
    %v4206 = vld [vmem:[%s40 + $0x4a] sm:$0xff]
    %v4207 = vld [vmem:[%s40 + $0x52] sm:$0xff]
    %v4208 = vld [vmem:[%s40 + $0x62] sm:$0xff]
    %v4209 = vld [vmem:[%s40 + $0x6a] sm:$0xff]
    %v4210 = vld [vmem:[%s40 + $0x7a] sm:$0xff]
    %v4211 = vld [vmem:[%s40 + $0x82] sm:$0xff]
    %v4212 = vld [vmem:[%s40 + $0x92] sm:$0xff]
    %v4213 = vld [vmem:[%s40 + $0x9a] sm:$0xff]
    %v4214 = vld [vmem:[%s40 + $0xaa] sm:$0xff]
    %v4215 = vld [vmem:[%s40 + $0xb2] sm:$0xff]
    %v4216 = vld [vmem:[%s40 + $0xc2] sm:$0xff]
    %v4217 = vld [vmem:[%s40 + $0xca] sm:$0xff]
    %v4218 = vld [vmem:[%s40 + $0xda] sm:$0xff]
    %v4219 = vld [vmem:[%s40 + $0xe2] sm:$0xff]
    %v4220 = vld [vmem:[%s40 + $0xf2] sm:$0xff]
    %v4221 = vld [vmem:[%s40 + $0xfa] sm:$0xff]
    %v4222 = vld [vmem:[%s40 + $0x10a] sm:$0xff]
    %v4223 = vld [vmem:[%s40 + $0x112] sm:$0xff]
    %v4224 = vld [vmem:[%s40 + $0x122] sm:$0xff]
    %v4225 = vld [vmem:[%s40 + $0x12a] sm:$0xff]
    %v4226 = vld [vmem:[%s40 + $0x13a] sm:$0xff]
    %v4227 = vld [vmem:[%s40 + $0x142] sm:$0xff]
    %v4228 = vld [vmem:[%s40 + $0x152] sm:$0xff]
    %v4229 = vld [vmem:[%s40 + $0x15a] sm:$0xff]
    %v4230 = vld [vmem:[%s40 + $0x16a] sm:$0xff]
    %v4231 = vld [vmem:[%s40 + $0x172] sm:$0xff]
    %v4232 = vld [vmem:[%s40 + $0x1b2] sm:$0xff]
    %v4233 = vld [vmem:[%s40 + $0x1ba] sm:$0xff]
    %v4234 = vld [vmem:[%s40 + $0x1ca] sm:$0xff]
    %v4235 = vld [vmem:[%s40 + $0x1d2] sm:$0xff]
    %v4236 = vld [vmem:[%s40 + $0x1e2] sm:$0xff]
    %v4237 = vld [vmem:[%s40 + $0x1ea] sm:$0xff]
    %v4238 = vld [vmem:[%s40 + $0x1fa] sm:$0xff]
    %v4239 = vld [vmem:[%s40 + $0x202] sm:$0xff]
    %v4240 = vld [vmem:[%s40 + $0x212] sm:$0xff]
    %v4241 = vld [vmem:[%s40 + $0x21a] sm:$0xff]
    %v4242 = vld [vmem:[%s40 + $0x22a] sm:$0xff]
    %v4243 = vld [vmem:[%s40 + $0x232] sm:$0xff]
    %v4244 = vld [vmem:[%s40 + $0x242] sm:$0xff]
    %v4245 = vld [vmem:[%s40 + $0x24a] sm:$0xff]
    %v4246 = vld [vmem:[%s40 + $0x25a] sm:$0xff]
    %v4247 = vld [vmem:[%s40 + $0x262] sm:$0xff]
    %v4248 = vld [vmem:[%s40 + $0x272] sm:$0xff]
    %v4249 = vld [vmem:[%s40 + $0x27a] sm:$0xff]
    %v4250 = vld [vmem:[%s40 + $0x28a] sm:$0xff]
    %v4251 = vld [vmem:[%s40 + $0x292] sm:$0xff]
    %v4252 = vld [vmem:[%s40 + $0x2a2] sm:$0xff]
    %v4253 = vld [vmem:[%s40 + $0x2aa] sm:$0xff]
    %v4254 = vld [vmem:[%s40 + $0x2ba] sm:$0xff]
    %v4255 = vld [vmem:[%s40 + $0x2c2] sm:$0xff]
    %v4256 = vld [vmem:[%s40 + $0x2d2] sm:$0xff]
    %v4257 = vld [vmem:[%s40 + $0x2da] sm:$0xff]
    %v4258 = vld [vmem:[%s40 + $0x2ea] sm:$0xff]
    %v4259 = vld [vmem:[%s40 + $0x2f2] sm:$0xff]
    %v4260 = vld [vmem:[%s40 + $0x302] sm:$0xff]
    %v4261 = vld [vmem:[%s40 + $0x30a] sm:$0xff]
    %v4262 = vld [vmem:[%s40 + $0x31a] sm:$0xff]
    %v4263 = vld [vmem:[%s40 + $0x322] sm:$0xff]
    %v4264 = vpack.c.bf16 %v4201, %v4200
    %v4265 = vpack.c.bf16 %v4203, %v4202
    %v4266 = vpack.c.bf16 %v4205, %v4204
    %v4267 = vpack.c.bf16 %v4207, %v4206
    %v4268 = vpack.c.bf16 %v4209, %v4208
    %v4269 = vpack.c.bf16 %v4211, %v4210
    %v4270 = vpack.c.bf16 %v4213, %v4212
    %v4271 = vpack.c.bf16 %v4215, %v4214
    %v4272 = vpack.c.bf16 %v4217, %v4216
    %v4273 = vpack.c.bf16 %v4219, %v4218
    %v4274 = vpack.c.bf16 %v4221, %v4220
    %v4275 = vpack.c.bf16 %v4223, %v4222
    %v4276 = vpack.c.bf16 %v4225, %v4224
    %v4277 = vpack.c.bf16 %v4227, %v4226
    %v4278 = vpack.c.bf16 %v4229, %v4228
    %v4279 = vpack.c.bf16 %v4231, %v4230
    %v4280 = vpack.c.bf16 %v4233, %v4232
    %v4281 = vpack.c.bf16 %v4235, %v4234
    %v4282 = vpack.c.bf16 %v4237, %v4236
    %v4283 = vpack.c.bf16 %v4239, %v4238
    %v4284 = vpack.c.bf16 %v4241, %v4240
    %v4285 = vpack.c.bf16 %v4243, %v4242
    %v4286 = vpack.c.bf16 %v4245, %v4244
    %v4287 = vpack.c.bf16 %v4247, %v4246
    %v4288 = vpack.c.bf16 %v4249, %v4248
    %v4289 = vpack.c.bf16 %v4251, %v4250
    %v4290 = vpack.c.bf16 %v4253, %v4252
    %v4291 = vpack.c.bf16 %v4255, %v4254
    %v4292 = vpack.c.bf16 %v4257, %v4256
    %v4293 = vpack.c.bf16 %v4259, %v4258
    %v4294 = vpack.c.bf16 %v4261, %v4260
    %v4295 = vpack.c.bf16 %v4263, %v4262
    %s4296 = scalar_lea.vmem %s3, 20
    %v4297 = vld [vmem:[%s4296] sm:$0xf]
    %v4299 = vsel %vm25, %v4264, 0
    %v4302 = vsel %vm25, %v4265, 0
    %v4305 = vsel %vm25, %v4266, 0
    %v4308 = vsel %vm25, %v4267, 0
    %v4311 = vsel %vm25, %v4268, 0
    %v4314 = vsel %vm25, %v4269, 0
    %v4317 = vsel %vm25, %v4270, 0
    %v4320 = vsel %vm25, %v4271, 0
    %v4323 = vsel %vm25, %v4272, 0
    %v4326 = vsel %vm25, %v4273, 0
    %v4329 = vsel %vm25, %v4274, 0
    %v4332 = vsel %vm25, %v4275, 0
    %v4335 = vsel %vm25, %v4276, 0
    %v4338 = vsel %vm25, %v4277, 0
    %v4341 = vsel %vm25, %v4278, 0
    %v4344 = vsel %vm25, %v4279, 0
    %v4347 = vsel %vm25, %v4280, 0
    %v4350 = vsel %vm25, %v4281, 0
    %v4353 = vsel %vm25, %v4282, 0
    %v4356 = vsel %vm25, %v4283, 0
    %v4359 = vsel %vm25, %v4284, 0
    %v4362 = vsel %vm25, %v4285, 0
    %v4365 = vsel %vm25, %v4286, 0
    %v4368 = vsel %vm25, %v4287, 0
    %v4371 = vsel %vm25, %v4288, 0
    %v4374 = vsel %vm25, %v4289, 0
    %v4377 = vsel %vm25, %v4290, 0
    %v4380 = vsel %vm25, %v4291, 0
    %v4383 = vsel %vm25, %v4292, 0
    %v4386 = vsel %vm25, %v4293, 0
    %v4389 = vsel %vm25, %v4294, 0
    %v4392 = vsel %vm25, %v4295, 0
    %v4395 = vsel %vm1643, %v4297, 0
    %4397 = vmatprep.subr.bf16.mxu0 0
    %4398 = vmatpush1.bf16.msra.mxu0 0
    %4399 = vmatprep.subr.bf16.mxu0 0
    %4400 = vmatpush1.bf16.msra.mxu0 0
    %4401 = vmatprep.subr.bf16.mxu0 0
    %4402 = vmatpush1.bf16.msra.mxu0 0
    %4403 = vmatprep.subr.bf16.mxu0 0
    %4404 = vmatpush1.bf16.msra.mxu0 0
    %4405 = vmatprep.subr.bf16.mxu0 0
    %4406 = vmatpush1.bf16.msra.mxu0 0
    %4407 = vmatprep.subr.bf16.mxu0 0
    %4408 = vmatpush1.bf16.msra.mxu0 0
    %4409 = vmatprep.subr.bf16.mxu0 0
    %4410 = vmatpush1.bf16.msra.mxu0 0
    %4411 = vmatprep.subr.bf16.mxu0 0
    %4412 = vmatpush1.bf16.msra.mxu0 %v4395
    %4413 = vmatprep.subr.bf16.mxu0 0
    %4414 = vmatpush2.bf16.msra.mxu0 0
    %4415 = vmatprep.subr.bf16.mxu0 0
    %4416 = vmatpush2.bf16.msra.mxu0 0
    %4417 = vmatprep.subr.bf16.mxu0 0
    %4418 = vmatpush2.bf16.msra.mxu0 0
    %4419 = vmatprep.subr.bf16.mxu0 0
    %4420 = vmatpush2.bf16.msra.mxu0 0
    %4421 = vmatprep.subr.bf16.mxu0 0
    %4422 = vmatpush2.bf16.msra.mxu0 0
    %4423 = vmatprep.subr.bf16.mxu0 0
    %4424 = vmatpush2.bf16.msra.mxu0 0
    %4425 = vmatprep.subr.bf16.mxu0 0
    %4426 = vmatpush2.bf16.msra.mxu0 0
    %4427 = vmatprep.subr.bf16.mxu0 0
    %4428 = vmatpush2.bf16.msra.mxu0 0
    %4429 = vmatprep.mubr.bf16.mxu0 0
    %4430 = vmatmul.mubr.bf16.gmra.mxu0 %v4299
    %v4431 = vpop.f32.mrf.mxu0
    %v4432 = vadd.f32 0.0, %v4431
    %v4433 = vpop.f32.mrf.mxu0
    %v4434 = vpop.f32.mrf.mxu0
    %v4435 = vadd.f32 0.0, %v4434
    %v4436 = vpop.f32.mrf.mxu0
    %4437 = vmatprep.mubr.bf16.mxu0 0
    %4438 = vmatmul.mubr.bf16.gmra.mxu0 %v4302
    %v4439 = vpop.f32.mrf.mxu0
    %v4440 = vadd.f32 0.0, %v4439
    %v4441 = vpop.f32.mrf.mxu0
    %v4442 = vpop.f32.mrf.mxu0
    %v4443 = vadd.f32 0.0, %v4442
    %v4444 = vpop.f32.mrf.mxu0
    %4445 = vmatprep.mubr.bf16.mxu0 0
    %4446 = vmatmul.mubr.bf16.gmra.mxu0 %v4305
    %v4447 = vpop.f32.mrf.mxu0
    %v4448 = vadd.f32 0.0, %v4447
    %v4449 = vpop.f32.mrf.mxu0
    %v4450 = vpop.f32.mrf.mxu0
    %v4451 = vadd.f32 0.0, %v4450
    %v4452 = vpop.f32.mrf.mxu0
    %4453 = vmatprep.mubr.bf16.mxu0 0
    %4454 = vmatmul.mubr.bf16.gmra.mxu0 %v4308
    %v4455 = vpop.f32.mrf.mxu0
    %v4456 = vadd.f32 0.0, %v4455
    %v4457 = vpop.f32.mrf.mxu0
    %v4458 = vpop.f32.mrf.mxu0
    %v4459 = vadd.f32 0.0, %v4458
    %v4460 = vpop.f32.mrf.mxu0
    %4461 = vmatprep.mubr.bf16.mxu0 0
    %4462 = vmatmul.mubr.bf16.gmra.mxu0 %v4311
    %v4463 = vpop.f32.mrf.mxu0
    %v4464 = vadd.f32 0.0, %v4463
    %v4465 = vpop.f32.mrf.mxu0
    %v4466 = vpop.f32.mrf.mxu0
    %v4467 = vadd.f32 0.0, %v4466
    %v4468 = vpop.f32.mrf.mxu0
    %4469 = vmatprep.mubr.bf16.mxu0 0
    %4470 = vmatmul.mubr.bf16.gmra.mxu0 %v4314
    %v4471 = vpop.f32.mrf.mxu0
    %v4472 = vadd.f32 0.0, %v4471
    %v4473 = vpop.f32.mrf.mxu0
    %v4474 = vpop.f32.mrf.mxu0
    %v4475 = vadd.f32 0.0, %v4474
    %v4476 = vpop.f32.mrf.mxu0
    %4477 = vmatprep.mubr.bf16.mxu0 0
    %4478 = vmatmul.mubr.bf16.gmra.mxu0 %v4317
    %v4479 = vpop.f32.mrf.mxu0
    %v4480 = vadd.f32 0.0, %v4479
    %v4481 = vpop.f32.mrf.mxu0
    %v4482 = vpop.f32.mrf.mxu0
    %v4483 = vadd.f32 0.0, %v4482
    %v4484 = vpop.f32.mrf.mxu0
    %4485 = vmatprep.mubr.bf16.mxu0 0
    %4486 = vmatmul.mubr.bf16.gmra.mxu0 %v4320
    %v4487 = vpop.f32.mrf.mxu0
    %v4488 = vadd.f32 0.0, %v4487
    %v4489 = vpop.f32.mrf.mxu0
    %v4490 = vpop.f32.mrf.mxu0
    %v4491 = vadd.f32 0.0, %v4490
    %v4492 = vpop.f32.mrf.mxu0
    %4493 = vmatprep.mubr.bf16.mxu0 0
    %4494 = vmatmul.mubr.bf16.gmra.mxu0 %v4323
    %v4495 = vpop.f32.mrf.mxu0
    %v4496 = vadd.f32 0.0, %v4495
    %v4497 = vpop.f32.mrf.mxu0
    %v4498 = vpop.f32.mrf.mxu0
    %v4499 = vadd.f32 0.0, %v4498
    %v4500 = vpop.f32.mrf.mxu0
    %4501 = vmatprep.mubr.bf16.mxu0 0
    %4502 = vmatmul.mubr.bf16.gmra.mxu0 %v4326
    %v4503 = vpop.f32.mrf.mxu0
    %v4504 = vadd.f32 0.0, %v4503
    %v4505 = vpop.f32.mrf.mxu0
    %v4506 = vpop.f32.mrf.mxu0
    %v4507 = vadd.f32 0.0, %v4506
    %v4508 = vpop.f32.mrf.mxu0
    %4509 = vmatprep.mubr.bf16.mxu0 0
    %4510 = vmatmul.mubr.bf16.gmra.mxu0 %v4329
    %v4511 = vpop.f32.mrf.mxu0
    %v4512 = vadd.f32 0.0, %v4511
    %v4513 = vpop.f32.mrf.mxu0
    %v4514 = vpop.f32.mrf.mxu0
    %v4515 = vadd.f32 0.0, %v4514
    %v4516 = vpop.f32.mrf.mxu0
    %4517 = vmatprep.mubr.bf16.mxu0 0
    %4518 = vmatmul.mubr.bf16.gmra.mxu0 %v4332
    %v4519 = vpop.f32.mrf.mxu0
    %v4520 = vadd.f32 0.0, %v4519
    %v4521 = vpop.f32.mrf.mxu0
    %v4522 = vpop.f32.mrf.mxu0
    %v4523 = vadd.f32 0.0, %v4522
    %v4524 = vpop.f32.mrf.mxu0
    %4525 = vmatprep.mubr.bf16.mxu0 0
    %4526 = vmatmul.mubr.bf16.gmra.mxu0 %v4335
    %v4527 = vpop.f32.mrf.mxu0
    %v4528 = vadd.f32 0.0, %v4527
    %v4529 = vpop.f32.mrf.mxu0
    %v4530 = vpop.f32.mrf.mxu0
    %v4531 = vadd.f32 0.0, %v4530
    %v4532 = vpop.f32.mrf.mxu0
    %4533 = vmatprep.mubr.bf16.mxu0 0
    %4534 = vmatmul.mubr.bf16.gmra.mxu0 %v4338
    %v4535 = vpop.f32.mrf.mxu0
    %v4536 = vadd.f32 0.0, %v4535
    %v4537 = vpop.f32.mrf.mxu0
    %v4538 = vpop.f32.mrf.mxu0
    %v4539 = vadd.f32 0.0, %v4538
    %v4540 = vpop.f32.mrf.mxu0
    %4541 = vmatprep.mubr.bf16.mxu0 0
    %4542 = vmatmul.mubr.bf16.gmra.mxu0 %v4341
    %v4543 = vpop.f32.mrf.mxu0
    %v4544 = vadd.f32 0.0, %v4543
    %v4545 = vpop.f32.mrf.mxu0
    %v4546 = vpop.f32.mrf.mxu0
    %v4547 = vadd.f32 0.0, %v4546
    %v4548 = vpop.f32.mrf.mxu0
    %4549 = vmatprep.mubr.bf16.mxu0 0
    %4550 = vmatmul.mubr.bf16.gmra.mxu0 %v4344
    %v4551 = vpop.f32.mrf.mxu0
    %v4552 = vadd.f32 0.0, %v4551
    %v4553 = vpop.f32.mrf.mxu0
    %v4554 = vpop.f32.mrf.mxu0
    %v4555 = vadd.f32 0.0, %v4554
    %v4556 = vpop.f32.mrf.mxu0
    %4557 = vmatprep.mubr.bf16.mxu0 0
    %4558 = vmatmul.mubr.bf16.gmra.mxu0 %v4347
    %v4559 = vpop.f32.mrf.mxu0
    %v4560 = vadd.f32 0.0, %v4559
    %v4561 = vpop.f32.mrf.mxu0
    %v4562 = vpop.f32.mrf.mxu0
    %v4563 = vadd.f32 0.0, %v4562
    %v4564 = vpop.f32.mrf.mxu0
    %4565 = vmatprep.mubr.bf16.mxu0 0
    %4566 = vmatmul.mubr.bf16.gmra.mxu0 %v4350
    %v4567 = vpop.f32.mrf.mxu0
    %v4568 = vadd.f32 0.0, %v4567
    %v4569 = vpop.f32.mrf.mxu0
    %v4570 = vpop.f32.mrf.mxu0
    %v4571 = vadd.f32 0.0, %v4570
    %v4572 = vpop.f32.mrf.mxu0
    %4573 = vmatprep.mubr.bf16.mxu0 0
    %4574 = vmatmul.mubr.bf16.gmra.mxu0 %v4353
    %v4575 = vpop.f32.mrf.mxu0
    %v4576 = vadd.f32 0.0, %v4575
    %v4577 = vpop.f32.mrf.mxu0
    %v4578 = vpop.f32.mrf.mxu0
    %v4579 = vadd.f32 0.0, %v4578
    %v4580 = vpop.f32.mrf.mxu0
    %4581 = vmatprep.mubr.bf16.mxu0 0
    %4582 = vmatmul.mubr.bf16.gmra.mxu0 %v4356
    %v4583 = vpop.f32.mrf.mxu0
    %v4584 = vadd.f32 0.0, %v4583
    %v4585 = vpop.f32.mrf.mxu0
    %v4586 = vpop.f32.mrf.mxu0
    %v4587 = vadd.f32 0.0, %v4586
    %v4588 = vpop.f32.mrf.mxu0
    %4589 = vmatprep.mubr.bf16.mxu0 0
    %4590 = vmatmul.mubr.bf16.gmra.mxu0 %v4359
    %v4591 = vpop.f32.mrf.mxu0
    %v4592 = vadd.f32 0.0, %v4591
    %v4593 = vpop.f32.mrf.mxu0
    %v4594 = vpop.f32.mrf.mxu0
    %v4595 = vadd.f32 0.0, %v4594
    %v4596 = vpop.f32.mrf.mxu0
    %4597 = vmatprep.mubr.bf16.mxu0 0
    %4598 = vmatmul.mubr.bf16.gmra.mxu0 %v4362
    %v4599 = vpop.f32.mrf.mxu0
    %v4600 = vadd.f32 0.0, %v4599
    %v4601 = vpop.f32.mrf.mxu0
    %v4602 = vpop.f32.mrf.mxu0
    %v4603 = vadd.f32 0.0, %v4602
    %v4604 = vpop.f32.mrf.mxu0
    %4605 = vmatprep.mubr.bf16.mxu0 0
    %4606 = vmatmul.mubr.bf16.gmra.mxu0 %v4365
    %v4607 = vpop.f32.mrf.mxu0
    %v4608 = vadd.f32 0.0, %v4607
    %v4609 = vpop.f32.mrf.mxu0
    %v4610 = vpop.f32.mrf.mxu0
    %v4611 = vadd.f32 0.0, %v4610
    %v4612 = vpop.f32.mrf.mxu0
    %4613 = vmatprep.mubr.bf16.mxu0 0
    %4614 = vmatmul.mubr.bf16.gmra.mxu0 %v4368
    %v4615 = vpop.f32.mrf.mxu0
    %v4616 = vadd.f32 0.0, %v4615
    %v4617 = vpop.f32.mrf.mxu0
    %v4618 = vpop.f32.mrf.mxu0
    %v4619 = vadd.f32 0.0, %v4618
    %v4620 = vpop.f32.mrf.mxu0
    %4621 = vmatprep.mubr.bf16.mxu0 0
    %4622 = vmatmul.mubr.bf16.gmra.mxu0 %v4371
    %v4623 = vpop.f32.mrf.mxu0
    %v4624 = vadd.f32 0.0, %v4623
    %v4625 = vpop.f32.mrf.mxu0
    %v4626 = vpop.f32.mrf.mxu0
    %v4627 = vadd.f32 0.0, %v4626
    %v4628 = vpop.f32.mrf.mxu0
    %4629 = vmatprep.mubr.bf16.mxu0 0
    %4630 = vmatmul.mubr.bf16.gmra.mxu0 %v4374
    %v4631 = vpop.f32.mrf.mxu0
    %v4632 = vadd.f32 0.0, %v4631
    %v4633 = vpop.f32.mrf.mxu0
    %v4634 = vpop.f32.mrf.mxu0
    %v4635 = vadd.f32 0.0, %v4634
    %v4636 = vpop.f32.mrf.mxu0
    %4637 = vmatprep.mubr.bf16.mxu0 0
    %4638 = vmatmul.mubr.bf16.gmra.mxu0 %v4377
    %v4639 = vpop.f32.mrf.mxu0
    %v4640 = vadd.f32 0.0, %v4639
    %v4641 = vpop.f32.mrf.mxu0
    %v4642 = vpop.f32.mrf.mxu0
    %v4643 = vadd.f32 0.0, %v4642
    %v4644 = vpop.f32.mrf.mxu0
    %4645 = vmatprep.mubr.bf16.mxu0 0
    %4646 = vmatmul.mubr.bf16.gmra.mxu0 %v4380
    %v4647 = vpop.f32.mrf.mxu0
    %v4648 = vadd.f32 0.0, %v4647
    %v4649 = vpop.f32.mrf.mxu0
    %v4650 = vpop.f32.mrf.mxu0
    %v4651 = vadd.f32 0.0, %v4650
    %v4652 = vpop.f32.mrf.mxu0
    %4653 = vmatprep.mubr.bf16.mxu0 0
    %4654 = vmatmul.mubr.bf16.gmra.mxu0 %v4383
    %v4655 = vpop.f32.mrf.mxu0
    %v4656 = vadd.f32 0.0, %v4655
    %v4657 = vpop.f32.mrf.mxu0
    %v4658 = vpop.f32.mrf.mxu0
    %v4659 = vadd.f32 0.0, %v4658
    %v4660 = vpop.f32.mrf.mxu0
    %4661 = vmatprep.mubr.bf16.mxu0 0
    %4662 = vmatmul.mubr.bf16.gmra.mxu0 %v4386
    %v4663 = vpop.f32.mrf.mxu0
    %v4664 = vadd.f32 0.0, %v4663
    %v4665 = vpop.f32.mrf.mxu0
    %v4666 = vpop.f32.mrf.mxu0
    %v4667 = vadd.f32 0.0, %v4666
    %v4668 = vpop.f32.mrf.mxu0
    %4669 = vmatprep.mubr.bf16.mxu0 0
    %4670 = vmatmul.mubr.bf16.gmra.mxu0 %v4389
    %v4671 = vpop.f32.mrf.mxu0
    %v4672 = vadd.f32 0.0, %v4671
    %v4673 = vpop.f32.mrf.mxu0
    %v4674 = vpop.f32.mrf.mxu0
    %v4675 = vadd.f32 0.0, %v4674
    %v4676 = vpop.f32.mrf.mxu0
    %4677 = vmatprep.mubr.bf16.mxu0 0
    %4678 = vmatmul.mubr.bf16.gmra.mxu0 %v4392
    %v4679 = vpop.f32.mrf.mxu0
    %v4680 = vadd.f32 0.0, %v4679
    %v4681 = vpop.f32.mrf.mxu0
    %v4682 = vpop.f32.mrf.mxu0
    %v4683 = vadd.f32 0.0, %v4682
    %v4684 = vpop.f32.mrf.mxu0
    %4685 = vdwg.mxu0
    %v4686 = vadd.f32 %v4136, %v4432
    %v4687 = vadd.f32 %v4137, %v4435
    %v4688 = vadd.f32 %v4138, %v4440
    %v4689 = vadd.f32 %v4139, %v4443
    %v4690 = vadd.f32 %v4140, %v4448
    %v4691 = vadd.f32 %v4141, %v4451
    %v4692 = vadd.f32 %v4142, %v4456
    %v4693 = vadd.f32 %v4143, %v4459
    %v4694 = vadd.f32 %v4144, %v4464
    %v4695 = vadd.f32 %v4145, %v4467
    %v4696 = vadd.f32 %v4146, %v4472
    %v4697 = vadd.f32 %v4147, %v4475
    %v4698 = vadd.f32 %v4148, %v4480
    %v4699 = vadd.f32 %v4149, %v4483
    %v4700 = vadd.f32 %v4150, %v4488
    %v4701 = vadd.f32 %v4151, %v4491
    %v4702 = vadd.f32 %v4152, %v4496
    %v4703 = vadd.f32 %v4153, %v4499
    %v4704 = vadd.f32 %v4154, %v4504
    %v4705 = vadd.f32 %v4155, %v4507
    %v4706 = vadd.f32 %v4156, %v4512
    %v4707 = vadd.f32 %v4157, %v4515
    %v4708 = vadd.f32 %v4158, %v4520
    %v4709 = vadd.f32 %v4159, %v4523
    %v4710 = vadd.f32 %v4160, %v4528
    %v4711 = vadd.f32 %v4161, %v4531
    %v4712 = vadd.f32 %v4162, %v4536
    %v4713 = vadd.f32 %v4163, %v4539
    %v4714 = vadd.f32 %v4164, %v4544
    %v4715 = vadd.f32 %v4165, %v4547
    %v4716 = vadd.f32 %v4166, %v4552
    %v4717 = vadd.f32 %v4167, %v4555
    %v4718 = vadd.f32 %v4168, %v4560
    %v4719 = vadd.f32 %v4169, %v4563
    %v4720 = vadd.f32 %v4170, %v4568
    %v4721 = vadd.f32 %v4171, %v4571
    %v4722 = vadd.f32 %v4172, %v4576
    %v4723 = vadd.f32 %v4173, %v4579
    %v4724 = vadd.f32 %v4174, %v4584
    %v4725 = vadd.f32 %v4175, %v4587
    %v4726 = vadd.f32 %v4176, %v4592
    %v4727 = vadd.f32 %v4177, %v4595
    %v4728 = vadd.f32 %v4178, %v4600
    %v4729 = vadd.f32 %v4179, %v4603
    %v4730 = vadd.f32 %v4180, %v4608
    %v4731 = vadd.f32 %v4181, %v4611
    %v4732 = vadd.f32 %v4182, %v4616
    %v4733 = vadd.f32 %v4183, %v4619
    %v4734 = vadd.f32 %v4184, %v4624
    %v4735 = vadd.f32 %v4185, %v4627
    %v4736 = vadd.f32 %v4186, %v4632
    %v4737 = vadd.f32 %v4187, %v4635
    %v4738 = vadd.f32 %v4188, %v4640
    %v4739 = vadd.f32 %v4189, %v4643
    %v4740 = vadd.f32 %v4190, %v4648
    %v4741 = vadd.f32 %v4191, %v4651
    %v4742 = vadd.f32 %v4192, %v4656
    %v4743 = vadd.f32 %v4193, %v4659
    %v4744 = vadd.f32 %v4194, %v4664
    %v4745 = vadd.f32 %v4195, %v4667
    %v4746 = vadd.f32 %v4196, %v4672
    %v4747 = vadd.f32 %v4197, %v4675
    %v4748 = vadd.f32 %v4198, %v4680
    %v4749 = vadd.f32 %v4199, %v4683
    %s4750 = scalar_lea.vmem [#allocation2], 48
    %v4751 = vld [vmem:[%s4750] sm:$0xff]
    %v4752 = vld [vmem:[%s4750 + $0x8] sm:$0xff]
    %v4753 = vld [vmem:[%s4750 + $0x18] sm:$0xff]
    %v4754 = vld [vmem:[%s4750 + $0x20] sm:$0xff]
    %v4755 = vld [vmem:[%s4750 + $0x30] sm:$0xff]
    %v4756 = vld [vmem:[%s4750 + $0x38] sm:$0xff]
    %v4757 = vld [vmem:[%s4750 + $0x48] sm:$0xff]
    %v4758 = vld [vmem:[%s4750 + $0x50] sm:$0xff]
    %v4759 = vld [vmem:[%s4750 + $0x60] sm:$0xff]
    %v4760 = vld [vmem:[%s4750 + $0x68] sm:$0xff]
    %v4761 = vld [vmem:[%s4750 + $0x78] sm:$0xff]
    %v4762 = vld [vmem:[%s4750 + $0x80] sm:$0xff]
    %v4763 = vld [vmem:[%s4750 + $0x90] sm:$0xff]
    %v4764 = vld [vmem:[%s4750 + $0x98] sm:$0xff]
    %v4765 = vld [vmem:[%s4750 + $0xa8] sm:$0xff]
    %v4766 = vld [vmem:[%s4750 + $0xb0] sm:$0xff]
    %v4767 = vld [vmem:[%s4750 + $0xc0] sm:$0xff]
    %v4768 = vld [vmem:[%s4750 + $0xc8] sm:$0xff]
    %v4769 = vld [vmem:[%s4750 + $0xd8] sm:$0xff]
    %v4770 = vld [vmem:[%s4750 + $0xe0] sm:$0xff]
    %v4771 = vld [vmem:[%s4750 + $0xf0] sm:$0xff]
    %v4772 = vld [vmem:[%s4750 + $0xf8] sm:$0xff]
    %v4773 = vld [vmem:[%s4750 + $0x108] sm:$0xff]
    %v4774 = vld [vmem:[%s4750 + $0x110] sm:$0xff]
    %v4775 = vld [vmem:[%s4750 + $0x120] sm:$0xff]
    %v4776 = vld [vmem:[%s4750 + $0x128] sm:$0xff]
    %v4777 = vld [vmem:[%s4750 + $0x138] sm:$0xff]
    %v4778 = vld [vmem:[%s4750 + $0x140] sm:$0xff]
    %v4779 = vld [vmem:[%s4750 + $0x150] sm:$0xff]
    %v4780 = vld [vmem:[%s4750 + $0x158] sm:$0xff]
    %v4781 = vld [vmem:[%s4750 + $0x168] sm:$0xff]
    %v4782 = vld [vmem:[%s4750 + $0x170] sm:$0xff]
    %v4783 = vld [vmem:[%s4750 + $0x1b0] sm:$0xff]
    %v4784 = vld [vmem:[%s4750 + $0x1b8] sm:$0xff]
    %v4785 = vld [vmem:[%s4750 + $0x1c8] sm:$0xff]
    %v4786 = vld [vmem:[%s4750 + $0x1d0] sm:$0xff]
    %v4787 = vld [vmem:[%s4750 + $0x1e0] sm:$0xff]
    %v4788 = vld [vmem:[%s4750 + $0x1e8] sm:$0xff]
    %v4789 = vld [vmem:[%s4750 + $0x1f8] sm:$0xff]
    %v4790 = vld [vmem:[%s4750 + $0x200] sm:$0xff]
    %v4791 = vld [vmem:[%s4750 + $0x210] sm:$0xff]
    %v4792 = vld [vmem:[%s4750 + $0x218] sm:$0xff]
    %v4793 = vld [vmem:[%s4750 + $0x228] sm:$0xff]
    %v4794 = vld [vmem:[%s4750 + $0x230] sm:$0xff]
    %v4795 = vld [vmem:[%s4750 + $0x240] sm:$0xff]
    %v4796 = vld [vmem:[%s4750 + $0x248] sm:$0xff]
    %v4797 = vld [vmem:[%s4750 + $0x258] sm:$0xff]
    %v4798 = vld [vmem:[%s4750 + $0x260] sm:$0xff]
    %v4799 = vld [vmem:[%s4750 + $0x270] sm:$0xff]
    %v4800 = vld [vmem:[%s4750 + $0x278] sm:$0xff]
    %v4801 = vld [vmem:[%s4750 + $0x288] sm:$0xff]
    %v4802 = vld [vmem:[%s4750 + $0x290] sm:$0xff]
    %v4803 = vld [vmem:[%s4750 + $0x2a0] sm:$0xff]
    %v4804 = vld [vmem:[%s4750 + $0x2a8] sm:$0xff]
    %v4805 = vld [vmem:[%s4750 + $0x2b8] sm:$0xff]
    %v4806 = vld [vmem:[%s4750 + $0x2c0] sm:$0xff]
    %v4807 = vld [vmem:[%s4750 + $0x2d0] sm:$0xff]
    %v4808 = vld [vmem:[%s4750 + $0x2d8] sm:$0xff]
    %v4809 = vld [vmem:[%s4750 + $0x2e8] sm:$0xff]
    %v4810 = vld [vmem:[%s4750 + $0x2f0] sm:$0xff]
    %v4811 = vld [vmem:[%s4750 + $0x300] sm:$0xff]
    %v4812 = vld [vmem:[%s4750 + $0x308] sm:$0xff]
    %v4813 = vld [vmem:[%s4750 + $0x318] sm:$0xff]
    %v4814 = vld [vmem:[%s4750 + $0x320] sm:$0xff]
    %v4815 = vpack.c.bf16 %v4752, %v4751
    %v4816 = vpack.c.bf16 %v4754, %v4753
    %v4817 = vpack.c.bf16 %v4756, %v4755
    %v4818 = vpack.c.bf16 %v4758, %v4757
    %v4819 = vpack.c.bf16 %v4760, %v4759
    %v4820 = vpack.c.bf16 %v4762, %v4761
    %v4821 = vpack.c.bf16 %v4764, %v4763
    %v4822 = vpack.c.bf16 %v4766, %v4765
    %v4823 = vpack.c.bf16 %v4768, %v4767
    %v4824 = vpack.c.bf16 %v4770, %v4769
    %v4825 = vpack.c.bf16 %v4772, %v4771
    %v4826 = vpack.c.bf16 %v4774, %v4773
    %v4827 = vpack.c.bf16 %v4776, %v4775
    %v4828 = vpack.c.bf16 %v4778, %v4777
    %v4829 = vpack.c.bf16 %v4780, %v4779
    %v4830 = vpack.c.bf16 %v4782, %v4781
    %v4831 = vpack.c.bf16 %v4784, %v4783
    %v4832 = vpack.c.bf16 %v4786, %v4785
    %v4833 = vpack.c.bf16 %v4788, %v4787
    %v4834 = vpack.c.bf16 %v4790, %v4789
    %v4835 = vpack.c.bf16 %v4792, %v4791
    %v4836 = vpack.c.bf16 %v4794, %v4793
    %v4837 = vpack.c.bf16 %v4796, %v4795
    %v4838 = vpack.c.bf16 %v4798, %v4797
    %v4839 = vpack.c.bf16 %v4800, %v4799
    %v4840 = vpack.c.bf16 %v4802, %v4801
    %v4841 = vpack.c.bf16 %v4804, %v4803
    %v4842 = vpack.c.bf16 %v4806, %v4805
    %v4843 = vpack.c.bf16 %v4808, %v4807
    %v4844 = vpack.c.bf16 %v4810, %v4809
    %v4845 = vpack.c.bf16 %v4812, %v4811
    %v4846 = vpack.c.bf16 %v4814, %v4813
    %s4847 = scalar_lea.vmem %s3, 24
    %v4848 = vld [vmem:[%s4847] sm:$0xf]
    %v4850 = vsel %vm25, %v4815, 0
    %v4853 = vsel %vm25, %v4816, 0
    %v4856 = vsel %vm25, %v4817, 0
    %v4859 = vsel %vm25, %v4818, 0
    %v4862 = vsel %vm25, %v4819, 0
    %v4865 = vsel %vm25, %v4820, 0
    %v4868 = vsel %vm25, %v4821, 0
    %v4871 = vsel %vm25, %v4822, 0
    %v4874 = vsel %vm25, %v4823, 0
    %v4877 = vsel %vm25, %v4824, 0
    %v4880 = vsel %vm25, %v4825, 0
    %v4883 = vsel %vm25, %v4826, 0
    %v4886 = vsel %vm25, %v4827, 0
    %v4889 = vsel %vm25, %v4828, 0
    %v4892 = vsel %vm25, %v4829, 0
    %v4895 = vsel %vm25, %v4830, 0
    %v4898 = vsel %vm25, %v4831, 0
    %v4901 = vsel %vm25, %v4832, 0
    %v4904 = vsel %vm25, %v4833, 0
    %v4907 = vsel %vm25, %v4834, 0
    %v4910 = vsel %vm25, %v4835, 0
    %v4913 = vsel %vm25, %v4836, 0
    %v4916 = vsel %vm25, %v4837, 0
    %v4919 = vsel %vm25, %v4838, 0
    %v4922 = vsel %vm25, %v4839, 0
    %v4925 = vsel %vm25, %v4840, 0
    %v4928 = vsel %vm25, %v4841, 0
    %v4931 = vsel %vm25, %v4842, 0
    %v4934 = vsel %vm25, %v4843, 0
    %v4937 = vsel %vm25, %v4844, 0
    %v4940 = vsel %vm25, %v4845, 0
    %v4943 = vsel %vm25, %v4846, 0
    %v4946 = vsel %vm1643, %v4848, 0
    %4948 = vmatprep.subr.bf16.mxu0 0
    %4949 = vmatpush1.bf16.msra.mxu0 0
    %4950 = vmatprep.subr.bf16.mxu0 0
    %4951 = vmatpush1.bf16.msra.mxu0 0
    %4952 = vmatprep.subr.bf16.mxu0 0
    %4953 = vmatpush1.bf16.msra.mxu0 0
    %4954 = vmatprep.subr.bf16.mxu0 0
    %4955 = vmatpush1.bf16.msra.mxu0 0
    %4956 = vmatprep.subr.bf16.mxu0 0
    %4957 = vmatpush1.bf16.msra.mxu0 0
    %4958 = vmatprep.subr.bf16.mxu0 0
    %4959 = vmatpush1.bf16.msra.mxu0 0
    %4960 = vmatprep.subr.bf16.mxu0 0
    %4961 = vmatpush1.bf16.msra.mxu0 0
    %4962 = vmatprep.subr.bf16.mxu0 0
    %4963 = vmatpush1.bf16.msra.mxu0 %v4946
    %4964 = vmatprep.subr.bf16.mxu0 0
    %4965 = vmatpush2.bf16.msra.mxu0 0
    %4966 = vmatprep.subr.bf16.mxu0 0
    %4967 = vmatpush2.bf16.msra.mxu0 0
    %4968 = vmatprep.subr.bf16.mxu0 0
    %4969 = vmatpush2.bf16.msra.mxu0 0
    %4970 = vmatprep.subr.bf16.mxu0 0
    %4971 = vmatpush2.bf16.msra.mxu0 0
    %4972 = vmatprep.subr.bf16.mxu0 0
    %4973 = vmatpush2.bf16.msra.mxu0 0
    %4974 = vmatprep.subr.bf16.mxu0 0
    %4975 = vmatpush2.bf16.msra.mxu0 0
    %4976 = vmatprep.subr.bf16.mxu0 0
    %4977 = vmatpush2.bf16.msra.mxu0 0
    %4978 = vmatprep.subr.bf16.mxu0 0
    %4979 = vmatpush2.bf16.msra.mxu0 0
    %4980 = vmatprep.mubr.bf16.mxu0 0
    %4981 = vmatmul.mubr.bf16.gmra.mxu0 %v4850
    %v4982 = vpop.f32.mrf.mxu0
    %v4983 = vadd.f32 0.0, %v4982
    %v4984 = vpop.f32.mrf.mxu0
    %v4985 = vpop.f32.mrf.mxu0
    %v4986 = vadd.f32 0.0, %v4985
    %v4987 = vpop.f32.mrf.mxu0
    %4988 = vmatprep.mubr.bf16.mxu0 0
    %4989 = vmatmul.mubr.bf16.gmra.mxu0 %v4853
    %v4990 = vpop.f32.mrf.mxu0
    %v4991 = vadd.f32 0.0, %v4990
    %v4992 = vpop.f32.mrf.mxu0
    %v4993 = vpop.f32.mrf.mxu0
    %v4994 = vadd.f32 0.0, %v4993
    %v4995 = vpop.f32.mrf.mxu0
    %4996 = vmatprep.mubr.bf16.mxu0 0
    %4997 = vmatmul.mubr.bf16.gmra.mxu0 %v4856
    %v4998 = vpop.f32.mrf.mxu0
    %v4999 = vadd.f32 0.0, %v4998
    %v5000 = vpop.f32.mrf.mxu0
    %v5001 = vpop.f32.mrf.mxu0
    %v5002 = vadd.f32 0.0, %v5001
    %v5003 = vpop.f32.mrf.mxu0
    %5004 = vmatprep.mubr.bf16.mxu0 0
    %5005 = vmatmul.mubr.bf16.gmra.mxu0 %v4859
    %v5006 = vpop.f32.mrf.mxu0
    %v5007 = vadd.f32 0.0, %v5006
    %v5008 = vpop.f32.mrf.mxu0
    %v5009 = vpop.f32.mrf.mxu0
    %v5010 = vadd.f32 0.0, %v5009
    %v5011 = vpop.f32.mrf.mxu0
    %5012 = vmatprep.mubr.bf16.mxu0 0
    %5013 = vmatmul.mubr.bf16.gmra.mxu0 %v4862
    %v5014 = vpop.f32.mrf.mxu0
    %v5015 = vadd.f32 0.0, %v5014
    %v5016 = vpop.f32.mrf.mxu0
    %v5017 = vpop.f32.mrf.mxu0
    %v5018 = vadd.f32 0.0, %v5017
    %v5019 = vpop.f32.mrf.mxu0
    %5020 = vmatprep.mubr.bf16.mxu0 0
    %5021 = vmatmul.mubr.bf16.gmra.mxu0 %v4865
    %v5022 = vpop.f32.mrf.mxu0
    %v5023 = vadd.f32 0.0, %v5022
    %v5024 = vpop.f32.mrf.mxu0
    %v5025 = vpop.f32.mrf.mxu0
    %v5026 = vadd.f32 0.0, %v5025
    %v5027 = vpop.f32.mrf.mxu0
    %5028 = vmatprep.mubr.bf16.mxu0 0
    %5029 = vmatmul.mubr.bf16.gmra.mxu0 %v4868
    %v5030 = vpop.f32.mrf.mxu0
    %v5031 = vadd.f32 0.0, %v5030
    %v5032 = vpop.f32.mrf.mxu0
    %v5033 = vpop.f32.mrf.mxu0
    %v5034 = vadd.f32 0.0, %v5033
    %v5035 = vpop.f32.mrf.mxu0
    %5036 = vmatprep.mubr.bf16.mxu0 0
    %5037 = vmatmul.mubr.bf16.gmra.mxu0 %v4871
    %v5038 = vpop.f32.mrf.mxu0
    %v5039 = vadd.f32 0.0, %v5038
    %v5040 = vpop.f32.mrf.mxu0
    %v5041 = vpop.f32.mrf.mxu0
    %v5042 = vadd.f32 0.0, %v5041
    %v5043 = vpop.f32.mrf.mxu0
    %5044 = vmatprep.mubr.bf16.mxu0 0
    %5045 = vmatmul.mubr.bf16.gmra.mxu0 %v4874
    %v5046 = vpop.f32.mrf.mxu0
    %v5047 = vadd.f32 0.0, %v5046
    %v5048 = vpop.f32.mrf.mxu0
    %v5049 = vpop.f32.mrf.mxu0
    %v5050 = vadd.f32 0.0, %v5049
    %v5051 = vpop.f32.mrf.mxu0
    %5052 = vmatprep.mubr.bf16.mxu0 0
    %5053 = vmatmul.mubr.bf16.gmra.mxu0 %v4877
    %v5054 = vpop.f32.mrf.mxu0
    %v5055 = vadd.f32 0.0, %v5054
    %v5056 = vpop.f32.mrf.mxu0
    %v5057 = vpop.f32.mrf.mxu0
    %v5058 = vadd.f32 0.0, %v5057
    %v5059 = vpop.f32.mrf.mxu0
    %5060 = vmatprep.mubr.bf16.mxu0 0
    %5061 = vmatmul.mubr.bf16.gmra.mxu0 %v4880
    %v5062 = vpop.f32.mrf.mxu0
    %v5063 = vadd.f32 0.0, %v5062
    %v5064 = vpop.f32.mrf.mxu0
    %v5065 = vpop.f32.mrf.mxu0
    %v5066 = vadd.f32 0.0, %v5065
    %v5067 = vpop.f32.mrf.mxu0
    %5068 = vmatprep.mubr.bf16.mxu0 0
    %5069 = vmatmul.mubr.bf16.gmra.mxu0 %v4883
    %v5070 = vpop.f32.mrf.mxu0
    %v5071 = vadd.f32 0.0, %v5070
    %v5072 = vpop.f32.mrf.mxu0
    %v5073 = vpop.f32.mrf.mxu0
    %v5074 = vadd.f32 0.0, %v5073
    %v5075 = vpop.f32.mrf.mxu0
    %5076 = vmatprep.mubr.bf16.mxu0 0
    %5077 = vmatmul.mubr.bf16.gmra.mxu0 %v4886
    %v5078 = vpop.f32.mrf.mxu0
    %v5079 = vadd.f32 0.0, %v5078
    %v5080 = vpop.f32.mrf.mxu0
    %v5081 = vpop.f32.mrf.mxu0
    %v5082 = vadd.f32 0.0, %v5081
    %v5083 = vpop.f32.mrf.mxu0
    %5084 = vmatprep.mubr.bf16.mxu0 0
    %5085 = vmatmul.mubr.bf16.gmra.mxu0 %v4889
    %v5086 = vpop.f32.mrf.mxu0
    %v5087 = vadd.f32 0.0, %v5086
    %v5088 = vpop.f32.mrf.mxu0
    %v5089 = vpop.f32.mrf.mxu0
    %v5090 = vadd.f32 0.0, %v5089
    %v5091 = vpop.f32.mrf.mxu0
    %5092 = vmatprep.mubr.bf16.mxu0 0
    %5093 = vmatmul.mubr.bf16.gmra.mxu0 %v4892
    %v5094 = vpop.f32.mrf.mxu0
    %v5095 = vadd.f32 0.0, %v5094
    %v5096 = vpop.f32.mrf.mxu0
    %v5097 = vpop.f32.mrf.mxu0
    %v5098 = vadd.f32 0.0, %v5097
    %v5099 = vpop.f32.mrf.mxu0
    %5100 = vmatprep.mubr.bf16.mxu0 0
    %5101 = vmatmul.mubr.bf16.gmra.mxu0 %v4895
    %v5102 = vpop.f32.mrf.mxu0
    %v5103 = vadd.f32 0.0, %v5102
    %v5104 = vpop.f32.mrf.mxu0
    %v5105 = vpop.f32.mrf.mxu0
    %v5106 = vadd.f32 0.0, %v5105
    %v5107 = vpop.f32.mrf.mxu0
    %5108 = vmatprep.mubr.bf16.mxu0 0
    %5109 = vmatmul.mubr.bf16.gmra.mxu0 %v4898
    %v5110 = vpop.f32.mrf.mxu0
    %v5111 = vadd.f32 0.0, %v5110
    %v5112 = vpop.f32.mrf.mxu0
    %v5113 = vpop.f32.mrf.mxu0
    %v5114 = vadd.f32 0.0, %v5113
    %v5115 = vpop.f32.mrf.mxu0
    %5116 = vmatprep.mubr.bf16.mxu0 0
    %5117 = vmatmul.mubr.bf16.gmra.mxu0 %v4901
    %v5118 = vpop.f32.mrf.mxu0
    %v5119 = vadd.f32 0.0, %v5118
    %v5120 = vpop.f32.mrf.mxu0
    %v5121 = vpop.f32.mrf.mxu0
    %v5122 = vadd.f32 0.0, %v5121
    %v5123 = vpop.f32.mrf.mxu0
    %5124 = vmatprep.mubr.bf16.mxu0 0
    %5125 = vmatmul.mubr.bf16.gmra.mxu0 %v4904
    %v5126 = vpop.f32.mrf.mxu0
    %v5127 = vadd.f32 0.0, %v5126
    %v5128 = vpop.f32.mrf.mxu0
    %v5129 = vpop.f32.mrf.mxu0
    %v5130 = vadd.f32 0.0, %v5129
    %v5131 = vpop.f32.mrf.mxu0
    %5132 = vmatprep.mubr.bf16.mxu0 0
    %5133 = vmatmul.mubr.bf16.gmra.mxu0 %v4907
    %v5134 = vpop.f32.mrf.mxu0
    %v5135 = vadd.f32 0.0, %v5134
    %v5136 = vpop.f32.mrf.mxu0
    %v5137 = vpop.f32.mrf.mxu0
    %v5138 = vadd.f32 0.0, %v5137
    %v5139 = vpop.f32.mrf.mxu0
    %5140 = vmatprep.mubr.bf16.mxu0 0
    %5141 = vmatmul.mubr.bf16.gmra.mxu0 %v4910
    %v5142 = vpop.f32.mrf.mxu0
    %v5143 = vadd.f32 0.0, %v5142
    %v5144 = vpop.f32.mrf.mxu0
    %v5145 = vpop.f32.mrf.mxu0
    %v5146 = vadd.f32 0.0, %v5145
    %v5147 = vpop.f32.mrf.mxu0
    %5148 = vmatprep.mubr.bf16.mxu0 0
    %5149 = vmatmul.mubr.bf16.gmra.mxu0 %v4913
    %v5150 = vpop.f32.mrf.mxu0
    %v5151 = vadd.f32 0.0, %v5150
    %v5152 = vpop.f32.mrf.mxu0
    %v5153 = vpop.f32.mrf.mxu0
    %v5154 = vadd.f32 0.0, %v5153
    %v5155 = vpop.f32.mrf.mxu0
    %5156 = vmatprep.mubr.bf16.mxu0 0
    %5157 = vmatmul.mubr.bf16.gmra.mxu0 %v4916
    %v5158 = vpop.f32.mrf.mxu0
    %v5159 = vadd.f32 0.0, %v5158
    %v5160 = vpop.f32.mrf.mxu0
    %v5161 = vpop.f32.mrf.mxu0
    %v5162 = vadd.f32 0.0, %v5161
    %v5163 = vpop.f32.mrf.mxu0
    %5164 = vmatprep.mubr.bf16.mxu0 0
    %5165 = vmatmul.mubr.bf16.gmra.mxu0 %v4919
    %v5166 = vpop.f32.mrf.mxu0
    %v5167 = vadd.f32 0.0, %v5166
    %v5168 = vpop.f32.mrf.mxu0
    %v5169 = vpop.f32.mrf.mxu0
    %v5170 = vadd.f32 0.0, %v5169
    %v5171 = vpop.f32.mrf.mxu0
    %5172 = vmatprep.mubr.bf16.mxu0 0
    %5173 = vmatmul.mubr.bf16.gmra.mxu0 %v4922
    %v5174 = vpop.f32.mrf.mxu0
    %v5175 = vadd.f32 0.0, %v5174
    %v5176 = vpop.f32.mrf.mxu0
    %v5177 = vpop.f32.mrf.mxu0
    %v5178 = vadd.f32 0.0, %v5177
    %v5179 = vpop.f32.mrf.mxu0
    %5180 = vmatprep.mubr.bf16.mxu0 0
    %5181 = vmatmul.mubr.bf16.gmra.mxu0 %v4925
    %v5182 = vpop.f32.mrf.mxu0
    %v5183 = vadd.f32 0.0, %v5182
    %v5184 = vpop.f32.mrf.mxu0
    %v5185 = vpop.f32.mrf.mxu0
    %v5186 = vadd.f32 0.0, %v5185
    %v5187 = vpop.f32.mrf.mxu0
    %5188 = vmatprep.mubr.bf16.mxu0 0
    %5189 = vmatmul.mubr.bf16.gmra.mxu0 %v4928
    %v5190 = vpop.f32.mrf.mxu0
    %v5191 = vadd.f32 0.0, %v5190
    %v5192 = vpop.f32.mrf.mxu0
    %v5193 = vpop.f32.mrf.mxu0
    %v5194 = vadd.f32 0.0, %v5193
    %v5195 = vpop.f32.mrf.mxu0
    %5196 = vmatprep.mubr.bf16.mxu0 0
    %5197 = vmatmul.mubr.bf16.gmra.mxu0 %v4931
    %v5198 = vpop.f32.mrf.mxu0
    %v5199 = vadd.f32 0.0, %v5198
    %v5200 = vpop.f32.mrf.mxu0
    %v5201 = vpop.f32.mrf.mxu0
    %v5202 = vadd.f32 0.0, %v5201
    %v5203 = vpop.f32.mrf.mxu0
    %5204 = vmatprep.mubr.bf16.mxu0 0
    %5205 = vmatmul.mubr.bf16.gmra.mxu0 %v4934
    %v5206 = vpop.f32.mrf.mxu0
    %v5207 = vadd.f32 0.0, %v5206
    %v5208 = vpop.f32.mrf.mxu0
    %v5209 = vpop.f32.mrf.mxu0
    %v5210 = vadd.f32 0.0, %v5209
    %v5211 = vpop.f32.mrf.mxu0
    %5212 = vmatprep.mubr.bf16.mxu0 0
    %5213 = vmatmul.mubr.bf16.gmra.mxu0 %v4937
    %v5214 = vpop.f32.mrf.mxu0
    %v5215 = vadd.f32 0.0, %v5214
    %v5216 = vpop.f32.mrf.mxu0
    %v5217 = vpop.f32.mrf.mxu0
    %v5218 = vadd.f32 0.0, %v5217
    %v5219 = vpop.f32.mrf.mxu0
    %5220 = vmatprep.mubr.bf16.mxu0 0
    %5221 = vmatmul.mubr.bf16.gmra.mxu0 %v4940
    %v5222 = vpop.f32.mrf.mxu0
    %v5223 = vadd.f32 0.0, %v5222
    %v5224 = vpop.f32.mrf.mxu0
    %v5225 = vpop.f32.mrf.mxu0
    %v5226 = vadd.f32 0.0, %v5225
    %v5227 = vpop.f32.mrf.mxu0
    %5228 = vmatprep.mubr.bf16.mxu0 0
    %5229 = vmatmul.mubr.bf16.gmra.mxu0 %v4943
    %v5230 = vpop.f32.mrf.mxu0
    %v5231 = vadd.f32 0.0, %v5230
    %v5232 = vpop.f32.mrf.mxu0
    %v5233 = vpop.f32.mrf.mxu0
    %v5234 = vadd.f32 0.0, %v5233
    %v5235 = vpop.f32.mrf.mxu0
    %5236 = vdwg.mxu0
    %v5237 = vadd.f32 %v4686, %v4983
    %v5238 = vadd.f32 %v4687, %v4986
    %v5239 = vadd.f32 %v4688, %v4991
    %v5240 = vadd.f32 %v4689, %v4994
    %v5241 = vadd.f32 %v4690, %v4999
    %v5242 = vadd.f32 %v4691, %v5002
    %v5243 = vadd.f32 %v4692, %v5007
    %v5244 = vadd.f32 %v4693, %v5010
    %v5245 = vadd.f32 %v4694, %v5015
    %v5246 = vadd.f32 %v4695, %v5018
    %v5247 = vadd.f32 %v4696, %v5023
    %v5248 = vadd.f32 %v4697, %v5026
    %v5249 = vadd.f32 %v4698, %v5031
    %v5250 = vadd.f32 %v4699, %v5034
    %v5251 = vadd.f32 %v4700, %v5039
    %v5252 = vadd.f32 %v4701, %v5042
    %v5253 = vadd.f32 %v4702, %v5047
    %v5254 = vadd.f32 %v4703, %v5050
    %v5255 = vadd.f32 %v4704, %v5055
    %v5256 = vadd.f32 %v4705, %v5058
    %v5257 = vadd.f32 %v4706, %v5063
    %v5258 = vadd.f32 %v4707, %v5066
    %v5259 = vadd.f32 %v4708, %v5071
    %v5260 = vadd.f32 %v4709, %v5074
    %v5261 = vadd.f32 %v4710, %v5079
    %v5262 = vadd.f32 %v4711, %v5082
    %v5263 = vadd.f32 %v4712, %v5087
    %v5264 = vadd.f32 %v4713, %v5090
    %v5265 = vadd.f32 %v4714, %v5095
    %v5266 = vadd.f32 %v4715, %v5098
    %v5267 = vadd.f32 %v4716, %v5103
    %v5268 = vadd.f32 %v4717, %v5106
    %v5269 = vadd.f32 %v4718, %v5111
    %v5270 = vadd.f32 %v4719, %v5114
    %v5271 = vadd.f32 %v4720, %v5119
    %v5272 = vadd.f32 %v4721, %v5122
    %v5273 = vadd.f32 %v4722, %v5127
    %v5274 = vadd.f32 %v4723, %v5130
    %v5275 = vadd.f32 %v4724, %v5135
    %v5276 = vadd.f32 %v4725, %v5138
    %v5277 = vadd.f32 %v4726, %v5143
    %v5278 = vadd.f32 %v4727, %v5146
    %v5279 = vadd.f32 %v4728, %v5151
    %v5280 = vadd.f32 %v4729, %v5154
    %v5281 = vadd.f32 %v4730, %v5159
    %v5282 = vadd.f32 %v4731, %v5162
    %v5283 = vadd.f32 %v4732, %v5167
    %v5284 = vadd.f32 %v4733, %v5170
    %v5285 = vadd.f32 %v4734, %v5175
    %v5286 = vadd.f32 %v4735, %v5178
    %v5287 = vadd.f32 %v4736, %v5183
    %v5288 = vadd.f32 %v4737, %v5186
    %v5289 = vadd.f32 %v4738, %v5191
    %v5290 = vadd.f32 %v4739, %v5194
    %v5291 = vadd.f32 %v4740, %v5199
    %v5292 = vadd.f32 %v4741, %v5202
    %v5293 = vadd.f32 %v4742, %v5207
    %v5294 = vadd.f32 %v4743, %v5210
    %v5295 = vadd.f32 %v4744, %v5215
    %v5296 = vadd.f32 %v4745, %v5218
    %v5297 = vadd.f32 %v4746, %v5223
    %v5298 = vadd.f32 %v4747, %v5226
    %v5299 = vadd.f32 %v4748, %v5231
    %v5300 = vadd.f32 %v4749, %v5234
    %v5301 = vld [vmem:[%s4750 + $0x1] sm:$0xff]
    %v5302 = vld [vmem:[%s4750 + $0x9] sm:$0xff]
    %v5303 = vld [vmem:[%s4750 + $0x19] sm:$0xff]
    %v5304 = vld [vmem:[%s4750 + $0x21] sm:$0xff]
    %v5305 = vld [vmem:[%s4750 + $0x31] sm:$0xff]
    %v5306 = vld [vmem:[%s4750 + $0x39] sm:$0xff]
    %v5307 = vld [vmem:[%s4750 + $0x49] sm:$0xff]
    %v5308 = vld [vmem:[%s4750 + $0x51] sm:$0xff]
    %v5309 = vld [vmem:[%s4750 + $0x61] sm:$0xff]
    %v5310 = vld [vmem:[%s4750 + $0x69] sm:$0xff]
    %v5311 = vld [vmem:[%s4750 + $0x79] sm:$0xff]
    %v5312 = vld [vmem:[%s4750 + $0x81] sm:$0xff]
    %v5313 = vld [vmem:[%s4750 + $0x91] sm:$0xff]
    %v5314 = vld [vmem:[%s4750 + $0x99] sm:$0xff]
    %v5315 = vld [vmem:[%s4750 + $0xa9] sm:$0xff]
    %v5316 = vld [vmem:[%s4750 + $0xb1] sm:$0xff]
    %v5317 = vld [vmem:[%s4750 + $0xc1] sm:$0xff]
    %v5318 = vld [vmem:[%s4750 + $0xc9] sm:$0xff]
    %v5319 = vld [vmem:[%s4750 + $0xd9] sm:$0xff]
    %v5320 = vld [vmem:[%s4750 + $0xe1] sm:$0xff]
    %v5321 = vld [vmem:[%s4750 + $0xf1] sm:$0xff]
    %v5322 = vld [vmem:[%s4750 + $0xf9] sm:$0xff]
    %v5323 = vld [vmem:[%s4750 + $0x109] sm:$0xff]
    %v5324 = vld [vmem:[%s4750 + $0x111] sm:$0xff]
    %v5325 = vld [vmem:[%s4750 + $0x121] sm:$0xff]
    %v5326 = vld [vmem:[%s4750 + $0x129] sm:$0xff]
    %v5327 = vld [vmem:[%s4750 + $0x139] sm:$0xff]
    %v5328 = vld [vmem:[%s4750 + $0x141] sm:$0xff]
    %v5329 = vld [vmem:[%s4750 + $0x151] sm:$0xff]
    %v5330 = vld [vmem:[%s4750 + $0x159] sm:$0xff]
    %v5331 = vld [vmem:[%s4750 + $0x169] sm:$0xff]
    %v5332 = vld [vmem:[%s4750 + $0x171] sm:$0xff]
    %v5333 = vld [vmem:[%s4750 + $0x1b1] sm:$0xff]
    %v5334 = vld [vmem:[%s4750 + $0x1b9] sm:$0xff]
    %v5335 = vld [vmem:[%s4750 + $0x1c9] sm:$0xff]
    %v5336 = vld [vmem:[%s4750 + $0x1d1] sm:$0xff]
    %v5337 = vld [vmem:[%s4750 + $0x1e1] sm:$0xff]
    %v5338 = vld [vmem:[%s4750 + $0x1e9] sm:$0xff]
    %v5339 = vld [vmem:[%s4750 + $0x1f9] sm:$0xff]
    %v5340 = vld [vmem:[%s4750 + $0x201] sm:$0xff]
    %v5341 = vld [vmem:[%s4750 + $0x211] sm:$0xff]
    %v5342 = vld [vmem:[%s4750 + $0x219] sm:$0xff]
    %v5343 = vld [vmem:[%s4750 + $0x229] sm:$0xff]
    %v5344 = vld [vmem:[%s4750 + $0x231] sm:$0xff]
    %v5345 = vld [vmem:[%s4750 + $0x241] sm:$0xff]
    %v5346 = vld [vmem:[%s4750 + $0x249] sm:$0xff]
    %v5347 = vld [vmem:[%s4750 + $0x259] sm:$0xff]
    %v5348 = vld [vmem:[%s4750 + $0x261] sm:$0xff]
    %v5349 = vld [vmem:[%s4750 + $0x271] sm:$0xff]
    %v5350 = vld [vmem:[%s4750 + $0x279] sm:$0xff]
    %v5351 = vld [vmem:[%s4750 + $0x289] sm:$0xff]
    %v5352 = vld [vmem:[%s4750 + $0x291] sm:$0xff]
    %v5353 = vld [vmem:[%s4750 + $0x2a1] sm:$0xff]
    %v5354 = vld [vmem:[%s4750 + $0x2a9] sm:$0xff]
    %v5355 = vld [vmem:[%s4750 + $0x2b9] sm:$0xff]
    %v5356 = vld [vmem:[%s4750 + $0x2c1] sm:$0xff]
    %v5357 = vld [vmem:[%s4750 + $0x2d1] sm:$0xff]
    %v5358 = vld [vmem:[%s4750 + $0x2d9] sm:$0xff]
    %v5359 = vld [vmem:[%s4750 + $0x2e9] sm:$0xff]
    %v5360 = vld [vmem:[%s4750 + $0x2f1] sm:$0xff]
    %v5361 = vld [vmem:[%s4750 + $0x301] sm:$0xff]
    %v5362 = vld [vmem:[%s4750 + $0x309] sm:$0xff]
    %v5363 = vld [vmem:[%s4750 + $0x319] sm:$0xff]
    %v5364 = vld [vmem:[%s4750 + $0x321] sm:$0xff]
    %v5365 = vpack.c.bf16 %v5302, %v5301
    %v5366 = vpack.c.bf16 %v5304, %v5303
    %v5367 = vpack.c.bf16 %v5306, %v5305
    %v5368 = vpack.c.bf16 %v5308, %v5307
    %v5369 = vpack.c.bf16 %v5310, %v5309
    %v5370 = vpack.c.bf16 %v5312, %v5311
    %v5371 = vpack.c.bf16 %v5314, %v5313
    %v5372 = vpack.c.bf16 %v5316, %v5315
    %v5373 = vpack.c.bf16 %v5318, %v5317
    %v5374 = vpack.c.bf16 %v5320, %v5319
    %v5375 = vpack.c.bf16 %v5322, %v5321
    %v5376 = vpack.c.bf16 %v5324, %v5323
    %v5377 = vpack.c.bf16 %v5326, %v5325
    %v5378 = vpack.c.bf16 %v5328, %v5327
    %v5379 = vpack.c.bf16 %v5330, %v5329
    %v5380 = vpack.c.bf16 %v5332, %v5331
    %v5381 = vpack.c.bf16 %v5334, %v5333
    %v5382 = vpack.c.bf16 %v5336, %v5335
    %v5383 = vpack.c.bf16 %v5338, %v5337
    %v5384 = vpack.c.bf16 %v5340, %v5339
    %v5385 = vpack.c.bf16 %v5342, %v5341
    %v5386 = vpack.c.bf16 %v5344, %v5343
    %v5387 = vpack.c.bf16 %v5346, %v5345
    %v5388 = vpack.c.bf16 %v5348, %v5347
    %v5389 = vpack.c.bf16 %v5350, %v5349
    %v5390 = vpack.c.bf16 %v5352, %v5351
    %v5391 = vpack.c.bf16 %v5354, %v5353
    %v5392 = vpack.c.bf16 %v5356, %v5355
    %v5393 = vpack.c.bf16 %v5358, %v5357
    %v5394 = vpack.c.bf16 %v5360, %v5359
    %v5395 = vpack.c.bf16 %v5362, %v5361
    %v5396 = vpack.c.bf16 %v5364, %v5363
    %s5397 = scalar_lea.vmem %s3, 28
    %v5398 = vld [vmem:[%s5397] sm:$0xf]
    %v5400 = vsel %vm25, %v5365, 0
    %v5403 = vsel %vm25, %v5366, 0
    %v5406 = vsel %vm25, %v5367, 0
    %v5409 = vsel %vm25, %v5368, 0
    %v5412 = vsel %vm25, %v5369, 0
    %v5415 = vsel %vm25, %v5370, 0
    %v5418 = vsel %vm25, %v5371, 0
    %v5421 = vsel %vm25, %v5372, 0
    %v5424 = vsel %vm25, %v5373, 0
    %v5427 = vsel %vm25, %v5374, 0
    %v5430 = vsel %vm25, %v5375, 0
    %v5433 = vsel %vm25, %v5376, 0
    %v5436 = vsel %vm25, %v5377, 0
    %v5439 = vsel %vm25, %v5378, 0
    %v5442 = vsel %vm25, %v5379, 0
    %v5445 = vsel %vm25, %v5380, 0
    %v5448 = vsel %vm25, %v5381, 0
    %v5451 = vsel %vm25, %v5382, 0
    %v5454 = vsel %vm25, %v5383, 0
    %v5457 = vsel %vm25, %v5384, 0
    %v5460 = vsel %vm25, %v5385, 0
    %v5463 = vsel %vm25, %v5386, 0
    %v5466 = vsel %vm25, %v5387, 0
    %v5469 = vsel %vm25, %v5388, 0
    %v5472 = vsel %vm25, %v5389, 0
    %v5475 = vsel %vm25, %v5390, 0
    %v5478 = vsel %vm25, %v5391, 0
    %v5481 = vsel %vm25, %v5392, 0
    %v5484 = vsel %vm25, %v5393, 0
    %v5487 = vsel %vm25, %v5394, 0
    %v5490 = vsel %vm25, %v5395, 0
    %v5493 = vsel %vm25, %v5396, 0
    %v5496 = vsel %vm1643, %v5398, 0
    %5498 = vmatprep.subr.bf16.mxu0 0
    %5499 = vmatpush1.bf16.msra.mxu0 0
    %5500 = vmatprep.subr.bf16.mxu0 0
    %5501 = vmatpush1.bf16.msra.mxu0 0
    %5502 = vmatprep.subr.bf16.mxu0 0
    %5503 = vmatpush1.bf16.msra.mxu0 0
    %5504 = vmatprep.subr.bf16.mxu0 0
    %5505 = vmatpush1.bf16.msra.mxu0 0
    %5506 = vmatprep.subr.bf16.mxu0 0
    %5507 = vmatpush1.bf16.msra.mxu0 0
    %5508 = vmatprep.subr.bf16.mxu0 0
    %5509 = vmatpush1.bf16.msra.mxu0 0
    %5510 = vmatprep.subr.bf16.mxu0 0
    %5511 = vmatpush1.bf16.msra.mxu0 0
    %5512 = vmatprep.subr.bf16.mxu0 0
    %5513 = vmatpush1.bf16.msra.mxu0 %v5496
    %5514 = vmatprep.subr.bf16.mxu0 0
    %5515 = vmatpush2.bf16.msra.mxu0 0
    %5516 = vmatprep.subr.bf16.mxu0 0
    %5517 = vmatpush2.bf16.msra.mxu0 0
    %5518 = vmatprep.subr.bf16.mxu0 0
    %5519 = vmatpush2.bf16.msra.mxu0 0
    %5520 = vmatprep.subr.bf16.mxu0 0
    %5521 = vmatpush2.bf16.msra.mxu0 0
    %5522 = vmatprep.subr.bf16.mxu0 0
    %5523 = vmatpush2.bf16.msra.mxu0 0
    %5524 = vmatprep.subr.bf16.mxu0 0
    %5525 = vmatpush2.bf16.msra.mxu0 0
    %5526 = vmatprep.subr.bf16.mxu0 0
    %5527 = vmatpush2.bf16.msra.mxu0 0
    %5528 = vmatprep.subr.bf16.mxu0 0
    %5529 = vmatpush2.bf16.msra.mxu0 0
    %5530 = vmatprep.mubr.bf16.mxu0 0
    %5531 = vmatmul.mubr.bf16.gmra.mxu0 %v5400
    %v5532 = vpop.f32.mrf.mxu0
    %v5533 = vadd.f32 0.0, %v5532
    %v5534 = vpop.f32.mrf.mxu0
    %v5535 = vpop.f32.mrf.mxu0
    %v5536 = vadd.f32 0.0, %v5535
    %v5537 = vpop.f32.mrf.mxu0
    %5538 = vmatprep.mubr.bf16.mxu0 0
    %5539 = vmatmul.mubr.bf16.gmra.mxu0 %v5403
    %v5540 = vpop.f32.mrf.mxu0
    %v5541 = vadd.f32 0.0, %v5540
    %v5542 = vpop.f32.mrf.mxu0
    %v5543 = vpop.f32.mrf.mxu0
    %v5544 = vadd.f32 0.0, %v5543
    %v5545 = vpop.f32.mrf.mxu0
    %5546 = vmatprep.mubr.bf16.mxu0 0
    %5547 = vmatmul.mubr.bf16.gmra.mxu0 %v5406
    %v5548 = vpop.f32.mrf.mxu0
    %v5549 = vadd.f32 0.0, %v5548
    %v5550 = vpop.f32.mrf.mxu0
    %v5551 = vpop.f32.mrf.mxu0
    %v5552 = vadd.f32 0.0, %v5551
    %v5553 = vpop.f32.mrf.mxu0
    %5554 = vmatprep.mubr.bf16.mxu0 0
    %5555 = vmatmul.mubr.bf16.gmra.mxu0 %v5409
    %v5556 = vpop.f32.mrf.mxu0
    %v5557 = vadd.f32 0.0, %v5556
    %v5558 = vpop.f32.mrf.mxu0
    %v5559 = vpop.f32.mrf.mxu0
    %v5560 = vadd.f32 0.0, %v5559
    %v5561 = vpop.f32.mrf.mxu0
    %5562 = vmatprep.mubr.bf16.mxu0 0
    %5563 = vmatmul.mubr.bf16.gmra.mxu0 %v5412
    %v5564 = vpop.f32.mrf.mxu0
    %v5565 = vadd.f32 0.0, %v5564
    %v5566 = vpop.f32.mrf.mxu0
    %v5567 = vpop.f32.mrf.mxu0
    %v5568 = vadd.f32 0.0, %v5567
    %v5569 = vpop.f32.mrf.mxu0
    %5570 = vmatprep.mubr.bf16.mxu0 0
    %5571 = vmatmul.mubr.bf16.gmra.mxu0 %v5415
    %v5572 = vpop.f32.mrf.mxu0
    %v5573 = vadd.f32 0.0, %v5572
    %v5574 = vpop.f32.mrf.mxu0
    %v5575 = vpop.f32.mrf.mxu0
    %v5576 = vadd.f32 0.0, %v5575
    %v5577 = vpop.f32.mrf.mxu0
    %5578 = vmatprep.mubr.bf16.mxu0 0
    %5579 = vmatmul.mubr.bf16.gmra.mxu0 %v5418
    %v5580 = vpop.f32.mrf.mxu0
    %v5581 = vadd.f32 0.0, %v5580
    %v5582 = vpop.f32.mrf.mxu0
    %v5583 = vpop.f32.mrf.mxu0
    %v5584 = vadd.f32 0.0, %v5583
    %v5585 = vpop.f32.mrf.mxu0
    %5586 = vmatprep.mubr.bf16.mxu0 0
    %5587 = vmatmul.mubr.bf16.gmra.mxu0 %v5421
    %v5588 = vpop.f32.mrf.mxu0
    %v5589 = vadd.f32 0.0, %v5588
    %v5590 = vpop.f32.mrf.mxu0
    %v5591 = vpop.f32.mrf.mxu0
    %v5592 = vadd.f32 0.0, %v5591
    %v5593 = vpop.f32.mrf.mxu0
    %5594 = vmatprep.mubr.bf16.mxu0 0
    %5595 = vmatmul.mubr.bf16.gmra.mxu0 %v5424
    %v5596 = vpop.f32.mrf.mxu0
    %v5597 = vadd.f32 0.0, %v5596
    %v5598 = vpop.f32.mrf.mxu0
    %v5599 = vpop.f32.mrf.mxu0
    %v5600 = vadd.f32 0.0, %v5599
    %v5601 = vpop.f32.mrf.mxu0
    %5602 = vmatprep.mubr.bf16.mxu0 0
    %5603 = vmatmul.mubr.bf16.gmra.mxu0 %v5427
    %v5604 = vpop.f32.mrf.mxu0
    %v5605 = vadd.f32 0.0, %v5604
    %v5606 = vpop.f32.mrf.mxu0
    %v5607 = vpop.f32.mrf.mxu0
    %v5608 = vadd.f32 0.0, %v5607
    %v5609 = vpop.f32.mrf.mxu0
    %5610 = vmatprep.mubr.bf16.mxu0 0
    %5611 = vmatmul.mubr.bf16.gmra.mxu0 %v5430
    %v5612 = vpop.f32.mrf.mxu0
    %v5613 = vadd.f32 0.0, %v5612
    %v5614 = vpop.f32.mrf.mxu0
    %v5615 = vpop.f32.mrf.mxu0
    %v5616 = vadd.f32 0.0, %v5615
    %v5617 = vpop.f32.mrf.mxu0
    %5618 = vmatprep.mubr.bf16.mxu0 0
    %5619 = vmatmul.mubr.bf16.gmra.mxu0 %v5433
    %v5620 = vpop.f32.mrf.mxu0
    %v5621 = vadd.f32 0.0, %v5620
    %v5622 = vpop.f32.mrf.mxu0
    %v5623 = vpop.f32.mrf.mxu0
    %v5624 = vadd.f32 0.0, %v5623
    %v5625 = vpop.f32.mrf.mxu0
    %5626 = vmatprep.mubr.bf16.mxu0 0
    %5627 = vmatmul.mubr.bf16.gmra.mxu0 %v5436
    %v5628 = vpop.f32.mrf.mxu0
    %v5629 = vadd.f32 0.0, %v5628
    %v5630 = vpop.f32.mrf.mxu0
    %v5631 = vpop.f32.mrf.mxu0
    %v5632 = vadd.f32 0.0, %v5631
    %v5633 = vpop.f32.mrf.mxu0
    %5634 = vmatprep.mubr.bf16.mxu0 0
    %5635 = vmatmul.mubr.bf16.gmra.mxu0 %v5439
    %v5636 = vpop.f32.mrf.mxu0
    %v5637 = vadd.f32 0.0, %v5636
    %v5638 = vpop.f32.mrf.mxu0
    %v5639 = vpop.f32.mrf.mxu0
    %v5640 = vadd.f32 0.0, %v5639
    %v5641 = vpop.f32.mrf.mxu0
    %5642 = vmatprep.mubr.bf16.mxu0 0
    %5643 = vmatmul.mubr.bf16.gmra.mxu0 %v5442
    %v5644 = vpop.f32.mrf.mxu0
    %v5645 = vadd.f32 0.0, %v5644
    %v5646 = vpop.f32.mrf.mxu0
    %v5647 = vpop.f32.mrf.mxu0
    %v5648 = vadd.f32 0.0, %v5647
    %v5649 = vpop.f32.mrf.mxu0
    %5650 = vmatprep.mubr.bf16.mxu0 0
    %5651 = vmatmul.mubr.bf16.gmra.mxu0 %v5445
    %v5652 = vpop.f32.mrf.mxu0
    %v5653 = vadd.f32 0.0, %v5652
    %v5654 = vpop.f32.mrf.mxu0
    %v5655 = vpop.f32.mrf.mxu0
    %v5656 = vadd.f32 0.0, %v5655
    %v5657 = vpop.f32.mrf.mxu0
    %5658 = vmatprep.mubr.bf16.mxu0 0
    %5659 = vmatmul.mubr.bf16.gmra.mxu0 %v5448
    %v5660 = vpop.f32.mrf.mxu0
    %v5661 = vadd.f32 0.0, %v5660
    %v5662 = vpop.f32.mrf.mxu0
    %v5663 = vpop.f32.mrf.mxu0
    %v5664 = vadd.f32 0.0, %v5663
    %v5665 = vpop.f32.mrf.mxu0
    %5666 = vmatprep.mubr.bf16.mxu0 0
    %5667 = vmatmul.mubr.bf16.gmra.mxu0 %v5451
    %v5668 = vpop.f32.mrf.mxu0
    %v5669 = vadd.f32 0.0, %v5668
    %v5670 = vpop.f32.mrf.mxu0
    %v5671 = vpop.f32.mrf.mxu0
    %v5672 = vadd.f32 0.0, %v5671
    %v5673 = vpop.f32.mrf.mxu0
    %5674 = vmatprep.mubr.bf16.mxu0 0
    %5675 = vmatmul.mubr.bf16.gmra.mxu0 %v5454
    %v5676 = vpop.f32.mrf.mxu0
    %v5677 = vadd.f32 0.0, %v5676
    %v5678 = vpop.f32.mrf.mxu0
    %v5679 = vpop.f32.mrf.mxu0
    %v5680 = vadd.f32 0.0, %v5679
    %v5681 = vpop.f32.mrf.mxu0
    %5682 = vmatprep.mubr.bf16.mxu0 0
    %5683 = vmatmul.mubr.bf16.gmra.mxu0 %v5457
    %v5684 = vpop.f32.mrf.mxu0
    %v5685 = vadd.f32 0.0, %v5684
    %v5686 = vpop.f32.mrf.mxu0
    %v5687 = vpop.f32.mrf.mxu0
    %v5688 = vadd.f32 0.0, %v5687
    %v5689 = vpop.f32.mrf.mxu0
    %5690 = vmatprep.mubr.bf16.mxu0 0
    %5691 = vmatmul.mubr.bf16.gmra.mxu0 %v5460
    %v5692 = vpop.f32.mrf.mxu0
    %v5693 = vadd.f32 0.0, %v5692
    %v5694 = vpop.f32.mrf.mxu0
    %v5695 = vpop.f32.mrf.mxu0
    %v5696 = vadd.f32 0.0, %v5695
    %v5697 = vpop.f32.mrf.mxu0
    %5698 = vmatprep.mubr.bf16.mxu0 0
    %5699 = vmatmul.mubr.bf16.gmra.mxu0 %v5463
    %v5700 = vpop.f32.mrf.mxu0
    %v5701 = vadd.f32 0.0, %v5700
    %v5702 = vpop.f32.mrf.mxu0
    %v5703 = vpop.f32.mrf.mxu0
    %v5704 = vadd.f32 0.0, %v5703
    %v5705 = vpop.f32.mrf.mxu0
    %5706 = vmatprep.mubr.bf16.mxu0 0
    %5707 = vmatmul.mubr.bf16.gmra.mxu0 %v5466
    %v5708 = vpop.f32.mrf.mxu0
    %v5709 = vadd.f32 0.0, %v5708
    %v5710 = vpop.f32.mrf.mxu0
    %v5711 = vpop.f32.mrf.mxu0
    %v5712 = vadd.f32 0.0, %v5711
    %v5713 = vpop.f32.mrf.mxu0
    %5714 = vmatprep.mubr.bf16.mxu0 0
    %5715 = vmatmul.mubr.bf16.gmra.mxu0 %v5469
    %v5716 = vpop.f32.mrf.mxu0
    %v5717 = vadd.f32 0.0, %v5716
    %v5718 = vpop.f32.mrf.mxu0
    %v5719 = vpop.f32.mrf.mxu0
    %v5720 = vadd.f32 0.0, %v5719
    %v5721 = vpop.f32.mrf.mxu0
    %5722 = vmatprep.mubr.bf16.mxu0 0
    %5723 = vmatmul.mubr.bf16.gmra.mxu0 %v5472
    %v5724 = vpop.f32.mrf.mxu0
    %v5725 = vadd.f32 0.0, %v5724
    %v5726 = vpop.f32.mrf.mxu0
    %v5727 = vpop.f32.mrf.mxu0
    %v5728 = vadd.f32 0.0, %v5727
    %v5729 = vpop.f32.mrf.mxu0
    %5730 = vmatprep.mubr.bf16.mxu0 0
    %5731 = vmatmul.mubr.bf16.gmra.mxu0 %v5475
    %v5732 = vpop.f32.mrf.mxu0
    %v5733 = vadd.f32 0.0, %v5732
    %v5734 = vpop.f32.mrf.mxu0
    %v5735 = vpop.f32.mrf.mxu0
    %v5736 = vadd.f32 0.0, %v5735
    %v5737 = vpop.f32.mrf.mxu0
    %5738 = vmatprep.mubr.bf16.mxu0 0
    %5739 = vmatmul.mubr.bf16.gmra.mxu0 %v5478
    %v5740 = vpop.f32.mrf.mxu0
    %v5741 = vadd.f32 0.0, %v5740
    %v5742 = vpop.f32.mrf.mxu0
    %v5743 = vpop.f32.mrf.mxu0
    %v5744 = vadd.f32 0.0, %v5743
    %v5745 = vpop.f32.mrf.mxu0
    %5746 = vmatprep.mubr.bf16.mxu0 0
    %5747 = vmatmul.mubr.bf16.gmra.mxu0 %v5481
    %v5748 = vpop.f32.mrf.mxu0
    %v5749 = vadd.f32 0.0, %v5748
    %v5750 = vpop.f32.mrf.mxu0
    %v5751 = vpop.f32.mrf.mxu0
    %v5752 = vadd.f32 0.0, %v5751
    %v5753 = vpop.f32.mrf.mxu0
    %5754 = vmatprep.mubr.bf16.mxu0 0
    %5755 = vmatmul.mubr.bf16.gmra.mxu0 %v5484
    %v5756 = vpop.f32.mrf.mxu0
    %v5757 = vadd.f32 0.0, %v5756
    %v5758 = vpop.f32.mrf.mxu0
    %v5759 = vpop.f32.mrf.mxu0
    %v5760 = vadd.f32 0.0, %v5759
    %v5761 = vpop.f32.mrf.mxu0
    %5762 = vmatprep.mubr.bf16.mxu0 0
    %5763 = vmatmul.mubr.bf16.gmra.mxu0 %v5487
    %v5764 = vpop.f32.mrf.mxu0
    %v5765 = vadd.f32 0.0, %v5764
    %v5766 = vpop.f32.mrf.mxu0
    %v5767 = vpop.f32.mrf.mxu0
    %v5768 = vadd.f32 0.0, %v5767
    %v5769 = vpop.f32.mrf.mxu0
    %5770 = vmatprep.mubr.bf16.mxu0 0
    %5771 = vmatmul.mubr.bf16.gmra.mxu0 %v5490
    %v5772 = vpop.f32.mrf.mxu0
    %v5773 = vadd.f32 0.0, %v5772
    %v5774 = vpop.f32.mrf.mxu0
    %v5775 = vpop.f32.mrf.mxu0
    %v5776 = vadd.f32 0.0, %v5775
    %v5777 = vpop.f32.mrf.mxu0
    %5778 = vmatprep.mubr.bf16.mxu0 0
    %5779 = vmatmul.mubr.bf16.gmra.mxu0 %v5493
    %v5780 = vpop.f32.mrf.mxu0
    %v5781 = vadd.f32 0.0, %v5780
    %v5782 = vpop.f32.mrf.mxu0
    %v5783 = vpop.f32.mrf.mxu0
    %v5784 = vadd.f32 0.0, %v5783
    %v5785 = vpop.f32.mrf.mxu0
    %5786 = vdwg.mxu0
    %v5787 = vadd.f32 %v5237, %v5533
    %v5788 = vadd.f32 %v5238, %v5536
    %v5789 = vadd.f32 %v5239, %v5541
    %v5790 = vadd.f32 %v5240, %v5544
    %v5791 = vadd.f32 %v5241, %v5549
    %v5792 = vadd.f32 %v5242, %v5552
    %v5793 = vadd.f32 %v5243, %v5557
    %v5794 = vadd.f32 %v5244, %v5560
    %v5795 = vadd.f32 %v5245, %v5565
    %v5796 = vadd.f32 %v5246, %v5568
    %v5797 = vadd.f32 %v5247, %v5573
    %v5798 = vadd.f32 %v5248, %v5576
    %v5799 = vadd.f32 %v5249, %v5581
    %v5800 = vadd.f32 %v5250, %v5584
    %v5801 = vadd.f32 %v5251, %v5589
    %v5802 = vadd.f32 %v5252, %v5592
    %v5803 = vadd.f32 %v5253, %v5597
    %v5804 = vadd.f32 %v5254, %v5600
    %v5805 = vadd.f32 %v5255, %v5605
    %v5806 = vadd.f32 %v5256, %v5608
    %v5807 = vadd.f32 %v5257, %v5613
    %v5808 = vadd.f32 %v5258, %v5616
    %v5809 = vadd.f32 %v5259, %v5621
    %v5810 = vadd.f32 %v5260, %v5624
    %v5811 = vadd.f32 %v5261, %v5629
    %v5812 = vadd.f32 %v5262, %v5632
    %v5813 = vadd.f32 %v5263, %v5637
    %v5814 = vadd.f32 %v5264, %v5640
    %v5815 = vadd.f32 %v5265, %v5645
    %v5816 = vadd.f32 %v5266, %v5648
    %v5817 = vadd.f32 %v5267, %v5653
    %v5818 = vadd.f32 %v5268, %v5656
    %v5819 = vadd.f32 %v5269, %v5661
    %v5820 = vadd.f32 %v5270, %v5664
    %v5821 = vadd.f32 %v5271, %v5669
    %v5822 = vadd.f32 %v5272, %v5672
    %v5823 = vadd.f32 %v5273, %v5677
    %v5824 = vadd.f32 %v5274, %v5680
    %v5825 = vadd.f32 %v5275, %v5685
    %v5826 = vadd.f32 %v5276, %v5688
    %v5827 = vadd.f32 %v5277, %v5693
    %v5828 = vadd.f32 %v5278, %v5696
    %v5829 = vadd.f32 %v5279, %v5701
    %v5830 = vadd.f32 %v5280, %v5704
    %v5831 = vadd.f32 %v5281, %v5709
    %v5832 = vadd.f32 %v5282, %v5712
    %v5833 = vadd.f32 %v5283, %v5717
    %v5834 = vadd.f32 %v5284, %v5720
    %v5835 = vadd.f32 %v5285, %v5725
    %v5836 = vadd.f32 %v5286, %v5728
    %v5837 = vadd.f32 %v5287, %v5733
    %v5838 = vadd.f32 %v5288, %v5736
    %v5839 = vadd.f32 %v5289, %v5741
    %v5840 = vadd.f32 %v5290, %v5744
    %v5841 = vadd.f32 %v5291, %v5749
    %v5842 = vadd.f32 %v5292, %v5752
    %v5843 = vadd.f32 %v5293, %v5757
    %v5844 = vadd.f32 %v5294, %v5760
    %v5845 = vadd.f32 %v5295, %v5765
    %v5846 = vadd.f32 %v5296, %v5768
    %v5847 = vadd.f32 %v5297, %v5773
    %v5848 = vadd.f32 %v5298, %v5776
    %v5849 = vadd.f32 %v5299, %v5781
    %v5850 = vadd.f32 %v5300, %v5784
    %v5851 = vld [vmem:[%s4750 + $0x2] sm:$0xff]
    %v5852 = vld [vmem:[%s4750 + $0xa] sm:$0xff]
    %v5853 = vld [vmem:[%s4750 + $0x1a] sm:$0xff]
    %v5854 = vld [vmem:[%s4750 + $0x22] sm:$0xff]
    %v5855 = vld [vmem:[%s4750 + $0x32] sm:$0xff]
    %v5856 = vld [vmem:[%s4750 + $0x3a] sm:$0xff]
    %v5857 = vld [vmem:[%s4750 + $0x4a] sm:$0xff]
    %v5858 = vld [vmem:[%s4750 + $0x52] sm:$0xff]
    %v5859 = vld [vmem:[%s4750 + $0x62] sm:$0xff]
    %v5860 = vld [vmem:[%s4750 + $0x6a] sm:$0xff]
    %v5861 = vld [vmem:[%s4750 + $0x7a] sm:$0xff]
    %v5862 = vld [vmem:[%s4750 + $0x82] sm:$0xff]
    %v5863 = vld [vmem:[%s4750 + $0x92] sm:$0xff]
    %v5864 = vld [vmem:[%s4750 + $0x9a] sm:$0xff]
    %v5865 = vld [vmem:[%s4750 + $0xaa] sm:$0xff]
    %v5866 = vld [vmem:[%s4750 + $0xb2] sm:$0xff]
    %v5867 = vld [vmem:[%s4750 + $0xc2] sm:$0xff]
    %v5868 = vld [vmem:[%s4750 + $0xca] sm:$0xff]
    %v5869 = vld [vmem:[%s4750 + $0xda] sm:$0xff]
    %v5870 = vld [vmem:[%s4750 + $0xe2] sm:$0xff]
    %v5871 = vld [vmem:[%s4750 + $0xf2] sm:$0xff]
    %v5872 = vld [vmem:[%s4750 + $0xfa] sm:$0xff]
    %v5873 = vld [vmem:[%s4750 + $0x10a] sm:$0xff]
    %v5874 = vld [vmem:[%s4750 + $0x112] sm:$0xff]
    %v5875 = vld [vmem:[%s4750 + $0x122] sm:$0xff]
    %v5876 = vld [vmem:[%s4750 + $0x12a] sm:$0xff]
    %v5877 = vld [vmem:[%s4750 + $0x13a] sm:$0xff]
    %v5878 = vld [vmem:[%s4750 + $0x142] sm:$0xff]
    %v5879 = vld [vmem:[%s4750 + $0x152] sm:$0xff]
    %v5880 = vld [vmem:[%s4750 + $0x15a] sm:$0xff]
    %v5881 = vld [vmem:[%s4750 + $0x16a] sm:$0xff]
    %v5882 = vld [vmem:[%s4750 + $0x172] sm:$0xff]
    %v5883 = vld [vmem:[%s4750 + $0x1b2] sm:$0xff]
    %v5884 = vld [vmem:[%s4750 + $0x1ba] sm:$0xff]
    %v5885 = vld [vmem:[%s4750 + $0x1ca] sm:$0xff]
    %v5886 = vld [vmem:[%s4750 + $0x1d2] sm:$0xff]
    %v5887 = vld [vmem:[%s4750 + $0x1e2] sm:$0xff]
    %v5888 = vld [vmem:[%s4750 + $0x1ea] sm:$0xff]
    %v5889 = vld [vmem:[%s4750 + $0x1fa] sm:$0xff]
    %v5890 = vld [vmem:[%s4750 + $0x202] sm:$0xff]
    %v5891 = vld [vmem:[%s4750 + $0x212] sm:$0xff]
    %v5892 = vld [vmem:[%s4750 + $0x21a] sm:$0xff]
    %v5893 = vld [vmem:[%s4750 + $0x22a] sm:$0xff]
    %v5894 = vld [vmem:[%s4750 + $0x232] sm:$0xff]
    %v5895 = vld [vmem:[%s4750 + $0x242] sm:$0xff]
    %v5896 = vld [vmem:[%s4750 + $0x24a] sm:$0xff]
    %v5897 = vld [vmem:[%s4750 + $0x25a] sm:$0xff]
    %v5898 = vld [vmem:[%s4750 + $0x262] sm:$0xff]
    %v5899 = vld [vmem:[%s4750 + $0x272] sm:$0xff]
    %v5900 = vld [vmem:[%s4750 + $0x27a] sm:$0xff]
    %v5901 = vld [vmem:[%s4750 + $0x28a] sm:$0xff]
    %v5902 = vld [vmem:[%s4750 + $0x292] sm:$0xff]
    %v5903 = vld [vmem:[%s4750 + $0x2a2] sm:$0xff]
    %v5904 = vld [vmem:[%s4750 + $0x2aa] sm:$0xff]
    %v5905 = vld [vmem:[%s4750 + $0x2ba] sm:$0xff]
    %v5906 = vld [vmem:[%s4750 + $0x2c2] sm:$0xff]
    %v5907 = vld [vmem:[%s4750 + $0x2d2] sm:$0xff]
    %v5908 = vld [vmem:[%s4750 + $0x2da] sm:$0xff]
    %v5909 = vld [vmem:[%s4750 + $0x2ea] sm:$0xff]
    %v5910 = vld [vmem:[%s4750 + $0x2f2] sm:$0xff]
    %v5911 = vld [vmem:[%s4750 + $0x302] sm:$0xff]
    %v5912 = vld [vmem:[%s4750 + $0x30a] sm:$0xff]
    %v5913 = vld [vmem:[%s4750 + $0x31a] sm:$0xff]
    %v5914 = vld [vmem:[%s4750 + $0x322] sm:$0xff]
    %v5915 = vpack.c.bf16 %v5852, %v5851
    %v5916 = vpack.c.bf16 %v5854, %v5853
    %v5917 = vpack.c.bf16 %v5856, %v5855
    %v5918 = vpack.c.bf16 %v5858, %v5857
    %v5919 = vpack.c.bf16 %v5860, %v5859
    %v5920 = vpack.c.bf16 %v5862, %v5861
    %v5921 = vpack.c.bf16 %v5864, %v5863
    %v5922 = vpack.c.bf16 %v5866, %v5865
    %v5923 = vpack.c.bf16 %v5868, %v5867
    %v5924 = vpack.c.bf16 %v5870, %v5869
    %v5925 = vpack.c.bf16 %v5872, %v5871
    %v5926 = vpack.c.bf16 %v5874, %v5873
    %v5927 = vpack.c.bf16 %v5876, %v5875
    %v5928 = vpack.c.bf16 %v5878, %v5877
    %v5929 = vpack.c.bf16 %v5880, %v5879
    %v5930 = vpack.c.bf16 %v5882, %v5881
    %v5931 = vpack.c.bf16 %v5884, %v5883
    %v5932 = vpack.c.bf16 %v5886, %v5885
    %v5933 = vpack.c.bf16 %v5888, %v5887
    %v5934 = vpack.c.bf16 %v5890, %v5889
    %v5935 = vpack.c.bf16 %v5892, %v5891
    %v5936 = vpack.c.bf16 %v5894, %v5893
    %v5937 = vpack.c.bf16 %v5896, %v5895
    %v5938 = vpack.c.bf16 %v5898, %v5897
    %v5939 = vpack.c.bf16 %v5900, %v5899
    %v5940 = vpack.c.bf16 %v5902, %v5901
    %v5941 = vpack.c.bf16 %v5904, %v5903
    %v5942 = vpack.c.bf16 %v5906, %v5905
    %v5943 = vpack.c.bf16 %v5908, %v5907
    %v5944 = vpack.c.bf16 %v5910, %v5909
    %v5945 = vpack.c.bf16 %v5912, %v5911
    %v5946 = vpack.c.bf16 %v5914, %v5913
    %s5947 = scalar_lea.vmem %s3, 32
    %v5948 = vld [vmem:[%s5947] sm:$0xf]
    %v5950 = vsel %vm25, %v5915, 0
    %v5953 = vsel %vm25, %v5916, 0
    %v5956 = vsel %vm25, %v5917, 0
    %v5959 = vsel %vm25, %v5918, 0
    %v5962 = vsel %vm25, %v5919, 0
    %v5965 = vsel %vm25, %v5920, 0
    %v5968 = vsel %vm25, %v5921, 0
    %v5971 = vsel %vm25, %v5922, 0
    %v5974 = vsel %vm25, %v5923, 0
    %v5977 = vsel %vm25, %v5924, 0
    %v5980 = vsel %vm25, %v5925, 0
    %v5983 = vsel %vm25, %v5926, 0
    %v5986 = vsel %vm25, %v5927, 0
    %v5989 = vsel %vm25, %v5928, 0
    %v5992 = vsel %vm25, %v5929, 0
    %v5995 = vsel %vm25, %v5930, 0
    %v5998 = vsel %vm25, %v5931, 0
    %v6001 = vsel %vm25, %v5932, 0
    %v6004 = vsel %vm25, %v5933, 0
    %v6007 = vsel %vm25, %v5934, 0
    %v6010 = vsel %vm25, %v5935, 0
    %v6013 = vsel %vm25, %v5936, 0
    %v6016 = vsel %vm25, %v5937, 0
    %v6019 = vsel %vm25, %v5938, 0
    %v6022 = vsel %vm25, %v5939, 0
    %v6025 = vsel %vm25, %v5940, 0
    %v6028 = vsel %vm25, %v5941, 0
    %v6031 = vsel %vm25, %v5942, 0
    %v6034 = vsel %vm25, %v5943, 0
    %v6037 = vsel %vm25, %v5944, 0
    %v6040 = vsel %vm25, %v5945, 0
    %v6043 = vsel %vm25, %v5946, 0
    %v6046 = vsel %vm1643, %v5948, 0
    %6048 = vmatprep.subr.bf16.mxu0 0
    %6049 = vmatpush1.bf16.msra.mxu0 0
    %6050 = vmatprep.subr.bf16.mxu0 0
    %6051 = vmatpush1.bf16.msra.mxu0 0
    %6052 = vmatprep.subr.bf16.mxu0 0
    %6053 = vmatpush1.bf16.msra.mxu0 0
    %6054 = vmatprep.subr.bf16.mxu0 0
    %6055 = vmatpush1.bf16.msra.mxu0 0
    %6056 = vmatprep.subr.bf16.mxu0 0
    %6057 = vmatpush1.bf16.msra.mxu0 0
    %6058 = vmatprep.subr.bf16.mxu0 0
    %6059 = vmatpush1.bf16.msra.mxu0 0
    %6060 = vmatprep.subr.bf16.mxu0 0
    %6061 = vmatpush1.bf16.msra.mxu0 0
    %6062 = vmatprep.subr.bf16.mxu0 0
    %6063 = vmatpush1.bf16.msra.mxu0 %v6046
    %6064 = vmatprep.subr.bf16.mxu0 0
    %6065 = vmatpush2.bf16.msra.mxu0 0
    %6066 = vmatprep.subr.bf16.mxu0 0
    %6067 = vmatpush2.bf16.msra.mxu0 0
    %6068 = vmatprep.subr.bf16.mxu0 0
    %6069 = vmatpush2.bf16.msra.mxu0 0
    %6070 = vmatprep.subr.bf16.mxu0 0
    %6071 = vmatpush2.bf16.msra.mxu0 0
    %6072 = vmatprep.subr.bf16.mxu0 0
    %6073 = vmatpush2.bf16.msra.mxu0 0
    %6074 = vmatprep.subr.bf16.mxu0 0
    %6075 = vmatpush2.bf16.msra.mxu0 0
    %6076 = vmatprep.subr.bf16.mxu0 0
    %6077 = vmatpush2.bf16.msra.mxu0 0
    %6078 = vmatprep.subr.bf16.mxu0 0
    %6079 = vmatpush2.bf16.msra.mxu0 0
    %6080 = vmatprep.mubr.bf16.mxu0 0
    %6081 = vmatmul.mubr.bf16.gmra.mxu0 %v5950
    %v6082 = vpop.f32.mrf.mxu0
    %v6083 = vadd.f32 0.0, %v6082
    %v6084 = vpop.f32.mrf.mxu0
    %v6085 = vpop.f32.mrf.mxu0
    %v6086 = vadd.f32 0.0, %v6085
    %v6087 = vpop.f32.mrf.mxu0
    %6088 = vmatprep.mubr.bf16.mxu0 0
    %6089 = vmatmul.mubr.bf16.gmra.mxu0 %v5953
    %v6090 = vpop.f32.mrf.mxu0
    %v6091 = vadd.f32 0.0, %v6090
    %v6092 = vpop.f32.mrf.mxu0
    %v6093 = vpop.f32.mrf.mxu0
    %v6094 = vadd.f32 0.0, %v6093
    %v6095 = vpop.f32.mrf.mxu0
    %6096 = vmatprep.mubr.bf16.mxu0 0
    %6097 = vmatmul.mubr.bf16.gmra.mxu0 %v5956
    %v6098 = vpop.f32.mrf.mxu0
    %v6099 = vadd.f32 0.0, %v6098
    %v6100 = vpop.f32.mrf.mxu0
    %v6101 = vpop.f32.mrf.mxu0
    %v6102 = vadd.f32 0.0, %v6101
    %v6103 = vpop.f32.mrf.mxu0
    %6104 = vmatprep.mubr.bf16.mxu0 0
    %6105 = vmatmul.mubr.bf16.gmra.mxu0 %v5959
    %v6106 = vpop.f32.mrf.mxu0
    %v6107 = vadd.f32 0.0, %v6106
    %v6108 = vpop.f32.mrf.mxu0
    %v6109 = vpop.f32.mrf.mxu0
    %v6110 = vadd.f32 0.0, %v6109
    %v6111 = vpop.f32.mrf.mxu0
    %6112 = vmatprep.mubr.bf16.mxu0 0
    %6113 = vmatmul.mubr.bf16.gmra.mxu0 %v5962
    %v6114 = vpop.f32.mrf.mxu0
    %v6115 = vadd.f32 0.0, %v6114
    %v6116 = vpop.f32.mrf.mxu0
    %v6117 = vpop.f32.mrf.mxu0
    %v6118 = vadd.f32 0.0, %v6117
    %v6119 = vpop.f32.mrf.mxu0
    %6120 = vmatprep.mubr.bf16.mxu0 0
    %6121 = vmatmul.mubr.bf16.gmra.mxu0 %v5965
    %v6122 = vpop.f32.mrf.mxu0
    %v6123 = vadd.f32 0.0, %v6122
    %v6124 = vpop.f32.mrf.mxu0
    %v6125 = vpop.f32.mrf.mxu0
    %v6126 = vadd.f32 0.0, %v6125
    %v6127 = vpop.f32.mrf.mxu0
    %6128 = vmatprep.mubr.bf16.mxu0 0
    %6129 = vmatmul.mubr.bf16.gmra.mxu0 %v5968
    %v6130 = vpop.f32.mrf.mxu0
    %v6131 = vadd.f32 0.0, %v6130
    %v6132 = vpop.f32.mrf.mxu0
    %v6133 = vpop.f32.mrf.mxu0
    %v6134 = vadd.f32 0.0, %v6133
    %v6135 = vpop.f32.mrf.mxu0
    %6136 = vmatprep.mubr.bf16.mxu0 0
    %6137 = vmatmul.mubr.bf16.gmra.mxu0 %v5971
    %v6138 = vpop.f32.mrf.mxu0
    %v6139 = vadd.f32 0.0, %v6138
    %v6140 = vpop.f32.mrf.mxu0
    %v6141 = vpop.f32.mrf.mxu0
    %v6142 = vadd.f32 0.0, %v6141
    %v6143 = vpop.f32.mrf.mxu0
    %6144 = vmatprep.mubr.bf16.mxu0 0
    %6145 = vmatmul.mubr.bf16.gmra.mxu0 %v5974
    %v6146 = vpop.f32.mrf.mxu0
    %v6147 = vadd.f32 0.0, %v6146
    %v6148 = vpop.f32.mrf.mxu0
    %v6149 = vpop.f32.mrf.mxu0
    %v6150 = vadd.f32 0.0, %v6149
    %v6151 = vpop.f32.mrf.mxu0
    %6152 = vmatprep.mubr.bf16.mxu0 0
    %6153 = vmatmul.mubr.bf16.gmra.mxu0 %v5977
    %v6154 = vpop.f32.mrf.mxu0
    %v6155 = vadd.f32 0.0, %v6154
    %v6156 = vpop.f32.mrf.mxu0
    %v6157 = vpop.f32.mrf.mxu0
    %v6158 = vadd.f32 0.0, %v6157
    %v6159 = vpop.f32.mrf.mxu0
    %6160 = vmatprep.mubr.bf16.mxu0 0
    %6161 = vmatmul.mubr.bf16.gmra.mxu0 %v5980
    %v6162 = vpop.f32.mrf.mxu0
    %v6163 = vadd.f32 0.0, %v6162
    %v6164 = vpop.f32.mrf.mxu0
    %v6165 = vpop.f32.mrf.mxu0
    %v6166 = vadd.f32 0.0, %v6165
    %v6167 = vpop.f32.mrf.mxu0
    %6168 = vmatprep.mubr.bf16.mxu0 0
    %6169 = vmatmul.mubr.bf16.gmra.mxu0 %v5983
    %v6170 = vpop.f32.mrf.mxu0
    %v6171 = vadd.f32 0.0, %v6170
    %v6172 = vpop.f32.mrf.mxu0
    %v6173 = vpop.f32.mrf.mxu0
    %v6174 = vadd.f32 0.0, %v6173
    %v6175 = vpop.f32.mrf.mxu0
    %6176 = vmatprep.mubr.bf16.mxu0 0
    %6177 = vmatmul.mubr.bf16.gmra.mxu0 %v5986
    %v6178 = vpop.f32.mrf.mxu0
    %v6179 = vadd.f32 0.0, %v6178
    %v6180 = vpop.f32.mrf.mxu0
    %v6181 = vpop.f32.mrf.mxu0
    %v6182 = vadd.f32 0.0, %v6181
    %v6183 = vpop.f32.mrf.mxu0
    %6184 = vmatprep.mubr.bf16.mxu0 0
    %6185 = vmatmul.mubr.bf16.gmra.mxu0 %v5989
    %v6186 = vpop.f32.mrf.mxu0
    %v6187 = vadd.f32 0.0, %v6186
    %v6188 = vpop.f32.mrf.mxu0
    %v6189 = vpop.f32.mrf.mxu0
    %v6190 = vadd.f32 0.0, %v6189
    %v6191 = vpop.f32.mrf.mxu0
    %6192 = vmatprep.mubr.bf16.mxu0 0
    %6193 = vmatmul.mubr.bf16.gmra.mxu0 %v5992
    %v6194 = vpop.f32.mrf.mxu0
    %v6195 = vadd.f32 0.0, %v6194
    %v6196 = vpop.f32.mrf.mxu0
    %v6197 = vpop.f32.mrf.mxu0
    %v6198 = vadd.f32 0.0, %v6197
    %v6199 = vpop.f32.mrf.mxu0
    %6200 = vmatprep.mubr.bf16.mxu0 0
    %6201 = vmatmul.mubr.bf16.gmra.mxu0 %v5995
    %v6202 = vpop.f32.mrf.mxu0
    %v6203 = vadd.f32 0.0, %v6202
    %v6204 = vpop.f32.mrf.mxu0
    %v6205 = vpop.f32.mrf.mxu0
    %v6206 = vadd.f32 0.0, %v6205
    %v6207 = vpop.f32.mrf.mxu0
    %6208 = vmatprep.mubr.bf16.mxu0 0
    %6209 = vmatmul.mubr.bf16.gmra.mxu0 %v5998
    %v6210 = vpop.f32.mrf.mxu0
    %v6211 = vadd.f32 0.0, %v6210
    %v6212 = vpop.f32.mrf.mxu0
    %v6213 = vpop.f32.mrf.mxu0
    %v6214 = vadd.f32 0.0, %v6213
    %v6215 = vpop.f32.mrf.mxu0
    %6216 = vmatprep.mubr.bf16.mxu0 0
    %6217 = vmatmul.mubr.bf16.gmra.mxu0 %v6001
    %v6218 = vpop.f32.mrf.mxu0
    %v6219 = vadd.f32 0.0, %v6218
    %v6220 = vpop.f32.mrf.mxu0
    %v6221 = vpop.f32.mrf.mxu0
    %v6222 = vadd.f32 0.0, %v6221
    %v6223 = vpop.f32.mrf.mxu0
    %6224 = vmatprep.mubr.bf16.mxu0 0
    %6225 = vmatmul.mubr.bf16.gmra.mxu0 %v6004
    %v6226 = vpop.f32.mrf.mxu0
    %v6227 = vadd.f32 0.0, %v6226
    %v6228 = vpop.f32.mrf.mxu0
    %v6229 = vpop.f32.mrf.mxu0
    %v6230 = vadd.f32 0.0, %v6229
    %v6231 = vpop.f32.mrf.mxu0
    %6232 = vmatprep.mubr.bf16.mxu0 0
    %6233 = vmatmul.mubr.bf16.gmra.mxu0 %v6007
    %v6234 = vpop.f32.mrf.mxu0
    %v6235 = vadd.f32 0.0, %v6234
    %v6236 = vpop.f32.mrf.mxu0
    %v6237 = vpop.f32.mrf.mxu0
    %v6238 = vadd.f32 0.0, %v6237
    %v6239 = vpop.f32.mrf.mxu0
    %6240 = vmatprep.mubr.bf16.mxu0 0
    %6241 = vmatmul.mubr.bf16.gmra.mxu0 %v6010
    %v6242 = vpop.f32.mrf.mxu0
    %v6243 = vadd.f32 0.0, %v6242
    %v6244 = vpop.f32.mrf.mxu0
    %v6245 = vpop.f32.mrf.mxu0
    %v6246 = vadd.f32 0.0, %v6245
    %v6247 = vpop.f32.mrf.mxu0
    %6248 = vmatprep.mubr.bf16.mxu0 0
    %6249 = vmatmul.mubr.bf16.gmra.mxu0 %v6013
    %v6250 = vpop.f32.mrf.mxu0
    %v6251 = vadd.f32 0.0, %v6250
    %v6252 = vpop.f32.mrf.mxu0
    %v6253 = vpop.f32.mrf.mxu0
    %v6254 = vadd.f32 0.0, %v6253
    %v6255 = vpop.f32.mrf.mxu0
    %6256 = vmatprep.mubr.bf16.mxu0 0
    %6257 = vmatmul.mubr.bf16.gmra.mxu0 %v6016
    %v6258 = vpop.f32.mrf.mxu0
    %v6259 = vadd.f32 0.0, %v6258
    %v6260 = vpop.f32.mrf.mxu0
    %v6261 = vpop.f32.mrf.mxu0
    %v6262 = vadd.f32 0.0, %v6261
    %v6263 = vpop.f32.mrf.mxu0
    %6264 = vmatprep.mubr.bf16.mxu0 0
    %6265 = vmatmul.mubr.bf16.gmra.mxu0 %v6019
    %v6266 = vpop.f32.mrf.mxu0
    %v6267 = vadd.f32 0.0, %v6266
    %v6268 = vpop.f32.mrf.mxu0
    %v6269 = vpop.f32.mrf.mxu0
    %v6270 = vadd.f32 0.0, %v6269
    %v6271 = vpop.f32.mrf.mxu0
    %6272 = vmatprep.mubr.bf16.mxu0 0
    %6273 = vmatmul.mubr.bf16.gmra.mxu0 %v6022
    %v6274 = vpop.f32.mrf.mxu0
    %v6275 = vadd.f32 0.0, %v6274
    %v6276 = vpop.f32.mrf.mxu0
    %v6277 = vpop.f32.mrf.mxu0
    %v6278 = vadd.f32 0.0, %v6277
    %v6279 = vpop.f32.mrf.mxu0
    %6280 = vmatprep.mubr.bf16.mxu0 0
    %6281 = vmatmul.mubr.bf16.gmra.mxu0 %v6025
    %v6282 = vpop.f32.mrf.mxu0
    %v6283 = vadd.f32 0.0, %v6282
    %v6284 = vpop.f32.mrf.mxu0
    %v6285 = vpop.f32.mrf.mxu0
    %v6286 = vadd.f32 0.0, %v6285
    %v6287 = vpop.f32.mrf.mxu0
    %6288 = vmatprep.mubr.bf16.mxu0 0
    %6289 = vmatmul.mubr.bf16.gmra.mxu0 %v6028
    %v6290 = vpop.f32.mrf.mxu0
    %v6291 = vadd.f32 0.0, %v6290
    %v6292 = vpop.f32.mrf.mxu0
    %v6293 = vpop.f32.mrf.mxu0
    %v6294 = vadd.f32 0.0, %v6293
    %v6295 = vpop.f32.mrf.mxu0
    %6296 = vmatprep.mubr.bf16.mxu0 0
    %6297 = vmatmul.mubr.bf16.gmra.mxu0 %v6031
    %v6298 = vpop.f32.mrf.mxu0
    %v6299 = vadd.f32 0.0, %v6298
    %v6300 = vpop.f32.mrf.mxu0
    %v6301 = vpop.f32.mrf.mxu0
    %v6302 = vadd.f32 0.0, %v6301
    %v6303 = vpop.f32.mrf.mxu0
    %6304 = vmatprep.mubr.bf16.mxu0 0
    %6305 = vmatmul.mubr.bf16.gmra.mxu0 %v6034
    %v6306 = vpop.f32.mrf.mxu0
    %v6307 = vadd.f32 0.0, %v6306
    %v6308 = vpop.f32.mrf.mxu0
    %v6309 = vpop.f32.mrf.mxu0
    %v6310 = vadd.f32 0.0, %v6309
    %v6311 = vpop.f32.mrf.mxu0
    %6312 = vmatprep.mubr.bf16.mxu0 0
    %6313 = vmatmul.mubr.bf16.gmra.mxu0 %v6037
    %v6314 = vpop.f32.mrf.mxu0
    %v6315 = vadd.f32 0.0, %v6314
    %v6316 = vpop.f32.mrf.mxu0
    %v6317 = vpop.f32.mrf.mxu0
    %v6318 = vadd.f32 0.0, %v6317
    %v6319 = vpop.f32.mrf.mxu0
    %6320 = vmatprep.mubr.bf16.mxu0 0
    %6321 = vmatmul.mubr.bf16.gmra.mxu0 %v6040
    %v6322 = vpop.f32.mrf.mxu0
    %v6323 = vadd.f32 0.0, %v6322
    %v6324 = vpop.f32.mrf.mxu0
    %v6325 = vpop.f32.mrf.mxu0
    %v6326 = vadd.f32 0.0, %v6325
    %v6327 = vpop.f32.mrf.mxu0
    %6328 = vmatprep.mubr.bf16.mxu0 0
    %6329 = vmatmul.mubr.bf16.gmra.mxu0 %v6043
    %v6330 = vpop.f32.mrf.mxu0
    %v6331 = vadd.f32 0.0, %v6330
    %v6332 = vpop.f32.mrf.mxu0
    %v6333 = vpop.f32.mrf.mxu0
    %v6334 = vadd.f32 0.0, %v6333
    %v6335 = vpop.f32.mrf.mxu0
    %6336 = vdwg.mxu0
    %v6337 = vadd.f32 %v5787, %v6083
    %v6338 = vadd.f32 %v5788, %v6086
    %v6339 = vadd.f32 %v5789, %v6091
    %v6340 = vadd.f32 %v5790, %v6094
    %v6341 = vadd.f32 %v5791, %v6099
    %v6342 = vadd.f32 %v5792, %v6102
    %v6343 = vadd.f32 %v5793, %v6107
    %v6344 = vadd.f32 %v5794, %v6110
    %v6345 = vadd.f32 %v5795, %v6115
    %v6346 = vadd.f32 %v5796, %v6118
    %v6347 = vadd.f32 %v5797, %v6123
    %v6348 = vadd.f32 %v5798, %v6126
    %v6349 = vadd.f32 %v5799, %v6131
    %v6350 = vadd.f32 %v5800, %v6134
    %v6351 = vadd.f32 %v5801, %v6139
    %v6352 = vadd.f32 %v5802, %v6142
    %v6353 = vadd.f32 %v5803, %v6147
    %v6354 = vadd.f32 %v5804, %v6150
    %v6355 = vadd.f32 %v5805, %v6155
    %v6356 = vadd.f32 %v5806, %v6158
    %v6357 = vadd.f32 %v5807, %v6163
    %v6358 = vadd.f32 %v5808, %v6166
    %v6359 = vadd.f32 %v5809, %v6171
    %v6360 = vadd.f32 %v5810, %v6174
    %v6361 = vadd.f32 %v5811, %v6179
    %v6362 = vadd.f32 %v5812, %v6182
    %v6363 = vadd.f32 %v5813, %v6187
    %v6364 = vadd.f32 %v5814, %v6190
    %v6365 = vadd.f32 %v5815, %v6195
    %v6366 = vadd.f32 %v5816, %v6198
    %v6367 = vadd.f32 %v5817, %v6203
    %v6368 = vadd.f32 %v5818, %v6206
    %v6369 = vadd.f32 %v5819, %v6211
    %v6370 = vadd.f32 %v5820, %v6214
    %v6371 = vadd.f32 %v5821, %v6219
    %v6372 = vadd.f32 %v5822, %v6222
    %v6373 = vadd.f32 %v5823, %v6227
    %v6374 = vadd.f32 %v5824, %v6230
    %v6375 = vadd.f32 %v5825, %v6235
    %v6376 = vadd.f32 %v5826, %v6238
    %v6377 = vadd.f32 %v5827, %v6243
    %v6378 = vadd.f32 %v5828, %v6246
    %v6379 = vadd.f32 %v5829, %v6251
    %v6380 = vadd.f32 %v5830, %v6254
    %v6381 = vadd.f32 %v5831, %v6259
    %v6382 = vadd.f32 %v5832, %v6262
    %v6383 = vadd.f32 %v5833, %v6267
    %v6384 = vadd.f32 %v5834, %v6270
    %v6385 = vadd.f32 %v5835, %v6275
    %v6386 = vadd.f32 %v5836, %v6278
    %v6387 = vadd.f32 %v5837, %v6283
    %v6388 = vadd.f32 %v5838, %v6286
    %v6389 = vadd.f32 %v5839, %v6291
    %v6390 = vadd.f32 %v5840, %v6294
    %v6391 = vadd.f32 %v5841, %v6299
    %v6392 = vadd.f32 %v5842, %v6302
    %v6393 = vadd.f32 %v5843, %v6307
    %v6394 = vadd.f32 %v5844, %v6310
    %v6395 = vadd.f32 %v5845, %v6315
    %v6396 = vadd.f32 %v5846, %v6318
    %v6397 = vadd.f32 %v5847, %v6323
    %v6398 = vadd.f32 %v5848, %v6326
    %v6399 = vadd.f32 %v5849, %v6331
    %v6400 = vadd.f32 %v5850, %v6334
    %v6401 = vmax.f32 %v6337, %v6339
    %v6402 = vmax.f32 %v6338, %v6340
    %v6403 = vmax.f32 %v6341, %v6343
    %v6404 = vmax.f32 %v6342, %v6344
    %v6405 = vmax.f32 %v6345, %v6347
    %v6406 = vmax.f32 %v6346, %v6348
    %v6407 = vmax.f32 %v6349, %v6351
    %v6408 = vmax.f32 %v6350, %v6352
    %v6409 = vmax.f32 %v6353, %v6355
    %v6410 = vmax.f32 %v6354, %v6356
    %v6411 = vmax.f32 %v6357, %v6359
    %v6412 = vmax.f32 %v6358, %v6360
    %v6413 = vmax.f32 %v6361, %v6363
    %v6414 = vmax.f32 %v6362, %v6364
    %v6415 = vmax.f32 %v6365, %v6367
    %v6416 = vmax.f32 %v6366, %v6368
    %v6417 = vmax.f32 %v6369, %v6371
    %v6418 = vmax.f32 %v6370, %v6372
    %v6419 = vmax.f32 %v6373, %v6375
    %v6420 = vmax.f32 %v6374, %v6376
    %v6421 = vmax.f32 %v6377, %v6379
    %v6422 = vmax.f32 %v6378, %v6380
    %v6423 = vmax.f32 %v6381, %v6383
    %v6424 = vmax.f32 %v6382, %v6384
    %v6425 = vmax.f32 %v6385, %v6387
    %v6426 = vmax.f32 %v6386, %v6388
    %v6427 = vmax.f32 %v6389, %v6391
    %v6428 = vmax.f32 %v6390, %v6392
    %v6429 = vmax.f32 %v6393, %v6395
    %v6430 = vmax.f32 %v6394, %v6396
    %v6431 = vmax.f32 %v6397, %v6399
    %v6432 = vmax.f32 %v6398, %v6400
    %6433 = vst.msk [vmem:[#allocation3] sm:$0xff] %vm25, %v6401
    %6434 = vst.msk [vmem:[#allocation3 + $0x8] sm:$0xff] %vm25, %v6402
    %6435 = vst.msk [vmem:[#allocation3 + $0x10] sm:$0xff] %vm25, %v6403
    %6436 = vst.msk [vmem:[#allocation3 + $0x18] sm:$0xff] %vm25, %v6404
    %6437 = vst.msk [vmem:[#allocation3 + $0x20] sm:$0xff] %vm25, %v6405
    %6438 = vst.msk [vmem:[#allocation3 + $0x28] sm:$0xff] %vm25, %v6406
    %6439 = vst.msk [vmem:[#allocation3 + $0x30] sm:$0xff] %vm25, %v6407
    %6440 = vst.msk [vmem:[#allocation3 + $0x38] sm:$0xff] %vm25, %v6408
    %6441 = vst.msk [vmem:[#allocation3 + $0x40] sm:$0xff] %vm25, %v6409
    %6442 = vst.msk [vmem:[#allocation3 + $0x48] sm:$0xff] %vm25, %v6410
    %6443 = vst.msk [vmem:[#allocation3 + $0x50] sm:$0xff] %vm25, %v6411
    %6444 = vst.msk [vmem:[#allocation3 + $0x58] sm:$0xff] %vm25, %v6412
    %6445 = vst.msk [vmem:[#allocation3 + $0x60] sm:$0xff] %vm25, %v6413
    %6446 = vst.msk [vmem:[#allocation3 + $0x68] sm:$0xff] %vm25, %v6414
    %6447 = vst.msk [vmem:[#allocation3 + $0x70] sm:$0xff] %vm25, %v6415
    %6448 = vst.msk [vmem:[#allocation3 + $0x78] sm:$0xff] %vm25, %v6416
    %6449 = vst.msk [vmem:[#allocation3 + $0x80] sm:$0xff] %vm25, %v6417
    %6450 = vst.msk [vmem:[#allocation3 + $0x88] sm:$0xff] %vm25, %v6418
    %6451 = vst.msk [vmem:[#allocation3 + $0x90] sm:$0xff] %vm25, %v6419
    %6452 = vst.msk [vmem:[#allocation3 + $0x98] sm:$0xff] %vm25, %v6420
    %6453 = vst.msk [vmem:[#allocation3 + $0xa0] sm:$0xff] %vm25, %v6421
    %6454 = vst.msk [vmem:[#allocation3 + $0xa8] sm:$0xff] %vm25, %v6422
    %6455 = vst.msk [vmem:[#allocation3 + $0xb0] sm:$0xff] %vm25, %v6423
    %6456 = vst.msk [vmem:[#allocation3 + $0xb8] sm:$0xff] %vm25, %v6424
    %6457 = vst.msk [vmem:[#allocation3 + $0xc0] sm:$0xff] %vm25, %v6425
    %6458 = vst.msk [vmem:[#allocation3 + $0xc8] sm:$0xff] %vm25, %v6426
    %6459 = vst.msk [vmem:[#allocation3 + $0xd0] sm:$0xff] %vm25, %v6427
    %6460 = vst.msk [vmem:[#allocation3 + $0xd8] sm:$0xff] %vm25, %v6428
    %6461 = vst.msk [vmem:[#allocation3 + $0xe0] sm:$0xff] %vm25, %v6429
    %6462 = vst.msk [vmem:[#allocation3 + $0xe8] sm:$0xff] %vm25, %v6430
    %6463 = vst.msk [vmem:[#allocation3 + $0xf0] sm:$0xff] %vm25, %v6431
    %6464 = vst.msk [vmem:[#allocation3 + $0xf8] sm:$0xff] %vm25, %v6432
    %v6465 = vld [vmem:[#allocation3] ss:$2 sm:$0xff]
    %s6466 = scalar_lea.vmem [#allocation3], 16
    %v6467 = vld [vmem:[%s6466] ss:$2 sm:$0xff]
    %s6468 = scalar_lea.vmem [#allocation3], 32
    %v6469 = vld [vmem:[%s6468] ss:$2 sm:$0xff]
    %s6470 = scalar_lea.vmem [#allocation3], 48
    %v6471 = vld [vmem:[%s6470] ss:$2 sm:$0xff]
    %s6472 = scalar_lea.vmem [#allocation3], 64
    %v6473 = vld [vmem:[%s6472] ss:$2 sm:$0xff]
    %s6474 = scalar_lea.vmem [#allocation3], 80
    %v6475 = vld [vmem:[%s6474] ss:$2 sm:$0xff]
    %s6476 = scalar_lea.vmem [#allocation3], 96
    %v6477 = vld [vmem:[%s6476] ss:$2 sm:$0xff]
    %s6478 = scalar_lea.vmem [#allocation3], 112
    %v6479 = vld [vmem:[%s6478] ss:$2 sm:$0xff]
    %s6480 = scalar_lea.vmem [#allocation3], 128
    %v6481 = vld [vmem:[%s6480] ss:$2 sm:$0xff]
    %s6482 = scalar_lea.vmem [#allocation3], 144
    %v6483 = vld [vmem:[%s6482] ss:$2 sm:$0xff]
    %s6484 = scalar_lea.vmem [#allocation3], 160
    %v6485 = vld [vmem:[%s6484] ss:$2 sm:$0xff]
    %s6486 = scalar_lea.vmem [#allocation3], 176
    %v6487 = vld [vmem:[%s6486] ss:$2 sm:$0xff]
    %s6488 = scalar_lea.vmem [#allocation3], 192
    %v6489 = vld [vmem:[%s6488] ss:$2 sm:$0xff]
    %s6490 = scalar_lea.vmem [#allocation3], 208
    %v6491 = vld [vmem:[%s6490] ss:$2 sm:$0xff]
    %s6492 = scalar_lea.vmem [#allocation3], 224
    %v6493 = vld [vmem:[%s6492] ss:$2 sm:$0xff]
    %s6494 = scalar_lea.vmem [#allocation3], 240
    %v6495 = vld [vmem:[%s6494] ss:$2 sm:$0xff]
    %s6496 = scalar_lea.vmem [#allocation3], 1
    %v6497 = vld [vmem:[%s6496] ss:$2 sm:$0xff]
    %s6498 = scalar_lea.vmem [#allocation3], 17
    %v6499 = vld [vmem:[%s6498] ss:$2 sm:$0xff]
    %s6500 = scalar_lea.vmem [#allocation3], 33
    %v6501 = vld [vmem:[%s6500] ss:$2 sm:$0xff]
    %s6502 = scalar_lea.vmem [#allocation3], 49
    %v6503 = vld [vmem:[%s6502] ss:$2 sm:$0xff]
    %s6504 = scalar_lea.vmem [#allocation3], 65
    %v6505 = vld [vmem:[%s6504] ss:$2 sm:$0xff]
    %s6506 = scalar_lea.vmem [#allocation3], 81
    %v6507 = vld [vmem:[%s6506] ss:$2 sm:$0xff]
    %s6508 = scalar_lea.vmem [#allocation3], 97
    %v6509 = vld [vmem:[%s6508] ss:$2 sm:$0xff]
    %s6510 = scalar_lea.vmem [#allocation3], 113
    %v6511 = vld [vmem:[%s6510] ss:$2 sm:$0xff]
    %s6512 = scalar_lea.vmem [#allocation3], 129
    %v6513 = vld [vmem:[%s6512] ss:$2 sm:$0xff]
    %s6514 = scalar_lea.vmem [#allocation3], 145
    %v6515 = vld [vmem:[%s6514] ss:$2 sm:$0xff]
    %s6516 = scalar_lea.vmem [#allocation3], 161
    %v6517 = vld [vmem:[%s6516] ss:$2 sm:$0xff]
    %s6518 = scalar_lea.vmem [#allocation3], 177
    %v6519 = vld [vmem:[%s6518] ss:$2 sm:$0xff]
    %s6520 = scalar_lea.vmem [#allocation3], 193
    %v6521 = vld [vmem:[%s6520] ss:$2 sm:$0xff]
    %s6522 = scalar_lea.vmem [#allocation3], 209
    %v6523 = vld [vmem:[%s6522] ss:$2 sm:$0xff]
    %s6524 = scalar_lea.vmem [#allocation3], 225
    %v6525 = vld [vmem:[%s6524] ss:$2 sm:$0xff]
    %s6526 = scalar_lea.vmem [#allocation3], 241
    %v6527 = vld [vmem:[%s6526] ss:$2 sm:$0xff]
    %v6528 = vmax.f32 %v6465, %v6497
    %v6529 = vmax.f32 %v6467, %v6499
    %v6530 = vmax.f32 %v6469, %v6501
    %v6531 = vmax.f32 %v6471, %v6503
    %v6532 = vmax.f32 %v6473, %v6505
    %v6533 = vmax.f32 %v6475, %v6507
    %v6534 = vmax.f32 %v6477, %v6509
    %v6535 = vmax.f32 %v6479, %v6511
    %v6536 = vmax.f32 %v6481, %v6513
    %v6537 = vmax.f32 %v6483, %v6515
    %v6538 = vmax.f32 %v6485, %v6517
    %v6539 = vmax.f32 %v6487, %v6519
    %v6540 = vmax.f32 %v6489, %v6521
    %v6541 = vmax.f32 %v6491, %v6523
    %v6542 = vmax.f32 %v6493, %v6525
    %v6543 = vmax.f32 %v6495, %v6527
    %6544 = vst.msk [vmem:[#allocation4] sm:$0xff] %vm25, %v6528
    %6545 = vst.msk [vmem:[#allocation4 + $0x8] sm:$0xff] %vm25, %v6529
    %6546 = vst.msk [vmem:[#allocation4 + $0x10] sm:$0xff] %vm25, %v6530
    %6547 = vst.msk [vmem:[#allocation4 + $0x18] sm:$0xff] %vm25, %v6531
    %6548 = vst.msk [vmem:[#allocation4 + $0x20] sm:$0xff] %vm25, %v6532
    %6549 = vst.msk [vmem:[#allocation4 + $0x28] sm:$0xff] %vm25, %v6533
    %6550 = vst.msk [vmem:[#allocation4 + $0x30] sm:$0xff] %vm25, %v6534
    %6551 = vst.msk [vmem:[#allocation4 + $0x38] sm:$0xff] %vm25, %v6535
    %6552 = vst.msk [vmem:[#allocation4 + $0x40] sm:$0xff] %vm25, %v6536
    %6553 = vst.msk [vmem:[#allocation4 + $0x48] sm:$0xff] %vm25, %v6537
    %6554 = vst.msk [vmem:[#allocation4 + $0x50] sm:$0xff] %vm25, %v6538
    %6555 = vst.msk [vmem:[#allocation4 + $0x58] sm:$0xff] %vm25, %v6539
    %6556 = vst.msk [vmem:[#allocation4 + $0x60] sm:$0xff] %vm25, %v6540
    %6557 = vst.msk [vmem:[#allocation4 + $0x68] sm:$0xff] %vm25, %v6541
    %6558 = vst.msk [vmem:[#allocation4 + $0x70] sm:$0xff] %vm25, %v6542
    %6559 = vst.msk [vmem:[#allocation4 + $0x78] sm:$0xff] %vm25, %v6543
    // Predicated region
    $region26: #{tpu_custom_call.1} parent=1 // pred_check
      _
    $region27: #{tpu_custom_call.1} parent=1 // pred_check_branch
      %6561 = sbr.rel (0) target = $region29
    $region28: #{tpu_custom_call.1} parent=1 // pred_region
      %s6563 = ssub.s32 2048, 2048
      %6564 = vsyncadd [#allocation5], %s6563
      %s6565 = sshll.u32 [#allocation4], 4
      %s6566 = int_to_ptr.vmem [resolvable:$true] %s6565
      %6571 = dma.vmem_to_hbm [thread:$0]  %s6566, 2048, %s6, [#allocation5], 128, 128, 8
    $region29: #{tpu_custom_call.1} parent=1 // pred_fallthru
      _
    // Predicated region
    $region30: #{tpu_custom_call.1} parent=1 // pred_check
      _
    $region31: #{tpu_custom_call.1} parent=1 // pred_check_branch
      %6573 = sbr.rel (0) target = $region33
    $region32: #{tpu_custom_call.1} parent=1 // pred_region
      %6574 = dma.done [#allocation5], 2048
    $region33: #{tpu_custom_call.1} parent=1 // pred_fallthru
      _
    %6575 = vsyncpa [#allocation5], 1

</llo_original>
